<compile_context>
chip_gen: v7x
topology: tpu7x:2x2x1
jax: 0.10.0
libtpu: 0.0.40
codegen_flags: <defaults>
</compile_context>

<pallas_src>
import jax
import jax.numpy as jnp
from jax.experimental import pallas as pl
from jax.experimental.pallas import tpu as pltpu

NEG_SLOPE = 0.01      # nn.LeakyReLU default negative_slope
BN_EPS = 1e-5
N_LAYERS = 5
C = 32                # conv width; layer-1 Cin (3) is zero-padded up to C
POOL_OUT = 16         # AdaptiveAvgPool1d(16)
FC_HIDDEN = 128


def _pool_len(L):
    # MaxPool1d(kernel=3, stride=2), floor mode
    return (L - 3) // 2 + 1


def _layer_lens(L_in):
    lens = [L_in]
    for _ in range(N_LAYERS):
        lens.append(_pool_len(lens[-1]))
    return lens


# ---------------------------------------------------------------------------
# Fused kernel (one grid step per sample)
# ---------------------------------------------------------------------------
def _build_kernel(L_in):
    lens = _layer_lens(L_in)

    def kernel(x_ref, wc_ref, scale_ref, shift_ref, w1_ref, b1_ref,
               w2_ref, b2_ref, o_ref, *act_refs):

        def strided(ref, s, Lm):
            # rows s, s+2, ..., s+2*(Lm-1) of the padded activation
            return ref[pl.ds(s, Lm, stride=2), :].astype(jnp.bfloat16)

        def conv_pool_bn_act(src_ref, layer, L):
            # Conv1d(k=3,pad=1)+MaxPool1d(3,2) computed at pooled resolution.
            Lm = _pool_len(L)
            S = [strided(src_ref, s, Lm) for s in range(5)]       # [Lm, C] bf16
            W = [wc_ref[layer * 3 + k] for k in range(3)]         # [C, C] bf16

            def y_at(o):  # conv output at positions 2t+o (bias folded in shift)
                acc = jnp.dot(S[o], W[0], preferred_element_type=jnp.float32)
                acc = acc + jnp.dot(S[o + 1], W[1],
                                    preferred_element_type=jnp.float32)
                acc = acc + jnp.dot(S[o + 2], W[2],
                                    preferred_element_type=jnp.float32)
                return acc

            z = jnp.maximum(jnp.maximum(y_at(0), y_at(1)), y_at(2))  # [Lm, C]
            v = z * scale_ref[layer] + shift_ref[layer]   # folded BN + conv bias
            return jnp.where(v >= 0.0, v, NEG_SLOPE * v), Lm

        def store_padded(dst_ref, val, Lm):
            zero_row = jnp.zeros((1, C), jnp.float32)
            dst_ref[0:1, :] = zero_row                    # left conv pad
            dst_ref[Lm + 1:Lm + 2, :] = zero_row          # right conv pad
            dst_ref[1:Lm + 1, :] = val                    # single store / layer

        src = x_ref
        L = lens[0]
        val = None
        for layer in range(N_LAYERS):
            val, Lm = conv_pool_bn_act(src, layer, L)
            if layer < N_LAYERS - 1:
                store_padded(act_refs[layer], val, Lm)
                src = act_refs[layer]
            L = Lm

        # AdaptiveAvgPool1d(16) + channel-major flatten fused into fc1:
        #   flat[c*16+t] = pooled[t, c]  and  w1r[t, c, :] = W1[c*16+t, :]
        #   => fc1 = sum_t pooled[t, :] @ w1r[t]   (no transpose/reshape)
        L5 = lens[-1]
        h = b1_ref[...]                                           # [1, 128] f32
        for t in range(POOL_OUT):
            if L5 == POOL_OUT:                 # adaptive pool is the identity
                row = val[t:t + 1, :]
            else:                              # generic PyTorch bin formula
                s = (t * L5) // POOL_OUT
                e = -((-(t + 1) * L5) // POOL_OUT)
                row = jnp.mean(val[s:e, :], axis=0, keepdims=True)
            h = h + jnp.dot(row.astype(jnp.bfloat16), w1_ref[t],
                            preferred_element_type=jnp.float32)
        h = jnp.where(h >= 0.0, h, NEG_SLOPE * h)
        # TODO(synk): nn.Dropout(0.5) is identity in eval mode; not applied.
        out = jnp.dot(h.astype(jnp.bfloat16), w2_ref[...],
                      preferred_element_type=jnp.float32) + b2_ref[...]
        o_ref[...] = out

    return kernel, lens


def cnn_simple2_forward(x_ncl, params):
    wc, scale, shift, w1r, b1, w2, b2 = params
    B, c_in, L_in = x_ncl.shape
    num_classes = w2.shape[1]
    kernel, lens = _build_kernel(L_in)

    # Tiny boundary layout prep: NCL -> channels-last, +1 zero row each side
    # (Conv1d padding=1), channels zero-padded c_in -> 32.
    x = jnp.transpose(x_ncl, (0, 2, 1)).astype(jnp.float32)
    x = jnp.pad(x, ((0, 0), (1, 1), (0, C - c_in)))               # [B, L+2, C]

    out = pl.pallas_call(
        kernel,
        out_shape=jax.ShapeDtypeStruct((B, 1, num_classes), jnp.float32),
        grid_spec=pltpu.PrefetchScalarGridSpec(
            num_scalar_prefetch=0,
            grid=(B,),
            in_specs=[
                pl.BlockSpec((None, L_in + 2, C), lambda b: (b, 0, 0)),
                pl.BlockSpec(wc.shape, lambda b: (0, 0, 0)),      # conv weights
                pl.BlockSpec(scale.shape, lambda b: (0, 0, 0)),   # folded BN scale
                pl.BlockSpec(shift.shape, lambda b: (0, 0, 0)),   # folded BN shift
                pl.BlockSpec(w1r.shape, lambda b: (0, 0, 0)),     # fc1 (permuted)
                pl.BlockSpec(b1.shape, lambda b: (0, 0)),
                pl.BlockSpec(w2.shape, lambda b: (0, 0)),
                pl.BlockSpec(b2.shape, lambda b: (0, 0)),
            ],
            out_specs=pl.BlockSpec((None, 1, num_classes), lambda b: (b, 0, 0)),
            # one padded VMEM activation buffer per inner layer boundary
            scratch_shapes=[pltpu.VMEM((lens[i + 1] + 2, C), jnp.float32)
                            for i in range(N_LAYERS - 1)],
        ),
        compiler_params=pltpu.CompilerParams(
            # batch axis is independent -> v7x can split samples across 2 TCs
            dimension_semantics=("parallel",)),
    )(x, wc, scale, shift, w1r, b1, w2, b2)
    return out[:, 0, :]


# ---------------------------------------------------------------------------
# Parameters (raw, PyTorch-style, eval mode) + kernel-format preparation
# ---------------------------------------------------------------------------
def init_params(key, num_classes):
    conv = []
    cins = [3] + [C] * (N_LAYERS - 1)
    for i in range(N_LAYERS):
        key, k1, k2, k3, k4, k5, k6 = jax.random.split(key, 7)
        cin = cins[i]
        w = 0.1 * jax.random.normal(k1, (3, cin, C), jnp.float32)  # [k, Cin, Cout]
        b = 0.05 * jax.random.normal(k2, (C,), jnp.float32)
        gamma = 1.0 + 0.1 * jax.random.normal(k3, (C,), jnp.float32)
        beta = 0.05 * jax.random.normal(k4, (C,), jnp.float32)
        rmean = 0.01 * jax.random.normal(k5, (C,), jnp.float32)
        rvar = 1.0 + 0.1 * jax.random.uniform(k6, (C,), jnp.float32)
        conv.append((w, b, gamma, beta, rmean, rvar))
    key, k1, k2, k3, k4 = jax.random.split(key, 5)
    w1 = jax.random.normal(k1, (C * POOL_OUT, FC_HIDDEN), jnp.float32) \
        / jnp.sqrt(float(C * POOL_OUT))
    b1 = 0.05 * jax.random.normal(k2, (FC_HIDDEN,), jnp.float32)
    w2 = jax.random.normal(k3, (FC_HIDDEN, num_classes), jnp.float32) \
        / jnp.sqrt(float(FC_HIDDEN))
    b2 = 0.05 * jax.random.normal(k4, (num_classes,), jnp.float32)
    return conv, (w1, b1, w2, b2)


def prepare_kernel_params(conv, head):
    wcs, scales, shifts = [], [], []
    for (w, b, gamma, beta, rmean, rvar) in conv:
        cin = w.shape[1]
        if cin < C:
            w = jnp.pad(w, ((0, 0), (0, C - cin), (0, 0)))   # zero-pad Cin -> 32
        s = gamma / jnp.sqrt(rvar + BN_EPS)
        sh = beta + (b - rmean) * s          # conv bias folded (max commutes w/ +b)
        wcs.append(w)
        scales.append(s.reshape(1, C))
        shifts.append(sh.reshape(1, C))
    wc = jnp.stack(wcs).reshape(N_LAYERS * 3, C, C).astype(jnp.bfloat16)
    scale = jnp.stack(scales)                                 # [5, 1, C] f32
    shift = jnp.stack(shifts)                                 # [5, 1, C] f32

    w1, b1, w2, b2 = head
    # flat[c*16 + t] -> w1r[t, c, :] = w1[c*16 + t, :]
    w1r = jnp.transpose(w1.reshape(C, POOL_OUT, FC_HIDDEN),
                        (1, 0, 2)).astype(jnp.bfloat16)       # [16, C, 128]
    return (wc, scale, shift, w1r,
            b1.reshape(1, FC_HIDDEN).astype(jnp.float32),
            w2.astype(jnp.bfloat16),
            b2.reshape(1, -1).astype(jnp.float32))


# ---------------------------------------------------------------------------
# Pure-JAX reference (f32), mirrors the PyTorch module in eval mode
# ---------------------------------------------------------------------------
def reference_forward(x_ncl, conv, head):
    x = jnp.transpose(x_ncl, (0, 2, 1)).astype(jnp.float32)   # [B, L, Cin]
    for (w, b, gamma, beta, rmean, rvar) in conv:
        B, L, _ = x.shape
        xp = jnp.pad(x, ((0, 0), (1, 1), (0, 0)))
        y = sum(jnp.einsum('blc,co->blo', xp[:, k:k + L, :], w[k],
                           precision=jax.lax.Precision.HIGHEST)
                for k in range(3)) + b
        Lm = _pool_len(L)
        z = jnp.maximum(jnp.maximum(y[:, 0:2 * Lm - 1:2, :],
                                    y[:, 1:2 * Lm:2, :]),
                        y[:, 2:2 * Lm + 1:2, :])
        z = (z - rmean) / jnp.sqrt(rvar + BN_EPS) * gamma + beta
        x = jnp.where(z >= 0, z, NEG_SLOPE * z)
    B, L, _ = x.shape
    bins = []
    for i in range(POOL_OUT):
        s = (i * L) // POOL_OUT
        e = -((-(i + 1) * L) // POOL_OUT)
        bins.append(jnp.mean(x[:, s:e, :], axis=1))
    p = jnp.stack(bins, axis=1)                               # [B, 16, C]
    flat = jnp.transpose(p, (0, 2, 1)).reshape(B, C * POOL_OUT)
    w1, b1, w2, b2 = head
    h = flat @ w1 + b1
    h = jnp.where(h >= 0, h, NEG_SLOPE * h)
    return h @ w2 + b2


if __name__ == "__main__":
    NUM_CLASSES = 4
    B, C_IN, L_IN = 2, 3, 544   # 544 -> 271 -> 135 -> 67 -> 33 -> 16

    key = jax.random.PRNGKey(0)
    key_x, key_p = jax.random.split(key)
    x = jax.random.normal(key_x, (B, C_IN, L_IN), jnp.float32)

    conv_raw, head_raw = init_params(key_p, NUM_CLASSES)
    params = prepare_kernel_params(conv_raw, head_raw)

    fwd = jax.jit(cnn_simple2_forward)
    out = jax.block_until_ready(fwd(x, params))

    assert out.shape == (B, NUM_CLASSES), out.shape
    assert bool(jnp.all(jnp.isfinite(out)))

    ref = jax.jit(reference_forward)(x, conv_raw, head_raw)
    assert bool(jnp.allclose(out, ref, atol=0.1, rtol=0.1)), (
        float(jnp.max(jnp.abs(out - ref))))

    print("KERNEL_OK")
</pallas_src>

<mosaic_0001>
module attributes {stable_mosaic.version = 11 : i64} {
  func.func @kernel(%arg0: i32, %arg1: memref<1x546x32xf32, #tpu.memory_space<vmem>>, %arg2: memref<15x32x32xbf16, #tpu.memory_space<vmem>>, %arg3: memref<5x1x32xf32, #tpu.memory_space<vmem>>, %arg4: memref<5x1x32xf32, #tpu.memory_space<vmem>>, %arg5: memref<16x32x128xbf16, #tpu.memory_space<vmem>>, %arg6: memref<1x128xf32, #tpu.memory_space<vmem>>, %arg7: memref<128x4xbf16, #tpu.memory_space<vmem>>, %arg8: memref<1x4xf32, #tpu.memory_space<vmem>>, %arg9: memref<1x1x4xf32, #tpu.memory_space<vmem>>, %arg10: memref<273x32xf32, #tpu.memory_space<vmem>>, %arg11: memref<137x32xf32, #tpu.memory_space<vmem>>, %arg12: memref<69x32xf32, #tpu.memory_space<vmem>>, %arg13: memref<35x32xf32, #tpu.memory_space<vmem>>) attributes {dimension_semantics = [#tpu.dimension_semantics<parallel>], iteration_bounds = array<i64: 2>, scalar_prefetch = 0 : i64, scratch_operands = 4 : i64, tpu.core_type = #tpu.core_type<tc>, window_params = [{transform_indices = @transform_0, window_bounds = array<i64: 1, 546, 32>}, {pipeline_mode = #tpu.pipeline_mode<synchronous>, transform_indices = @transform_1, window_bounds = array<i64: 15, 32, 32>}, {pipeline_mode = #tpu.pipeline_mode<synchronous>, transform_indices = @transform_2, window_bounds = array<i64: 5, 1, 32>}, {pipeline_mode = #tpu.pipeline_mode<synchronous>, transform_indices = @transform_3, window_bounds = array<i64: 5, 1, 32>}, {pipeline_mode = #tpu.pipeline_mode<synchronous>, transform_indices = @transform_4, window_bounds = array<i64: 16, 32, 128>}, {pipeline_mode = #tpu.pipeline_mode<synchronous>, transform_indices = @transform_5, window_bounds = array<i64: 1, 128>}, {pipeline_mode = #tpu.pipeline_mode<synchronous>, transform_indices = @transform_6, window_bounds = array<i64: 128, 4>}, {pipeline_mode = #tpu.pipeline_mode<synchronous>, transform_indices = @transform_7, window_bounds = array<i64: 1, 4>}, {transform_indices = @transform_8, window_bounds = array<i64: 1, 1, 4>}]} {
    %c0 = arith.constant 0 : index
    %c0_0 = arith.constant 0 : index
    %c0_1 = arith.constant 0 : index
    %0 = tpu.strided_load %arg1[%c0, %c0_0, %c0_1] {strides = array<i32: 1, 2, 1>} : memref<1x546x32xf32, #tpu.memory_space<vmem>>, vector<1x271x32xf32>
    %1 = vector.shape_cast %0 : vector<1x271x32xf32> to vector<271x32xf32>
    %2 = arith.truncf %1 : vector<271x32xf32> to vector<271x32xbf16>
    %c0_2 = arith.constant 0 : index
    %c1 = arith.constant 1 : index
    %c0_3 = arith.constant 0 : index
    %3 = tpu.strided_load %arg1[%c0_2, %c1, %c0_3] {strides = array<i32: 1, 2, 1>} : memref<1x546x32xf32, #tpu.memory_space<vmem>>, vector<1x271x32xf32>
    %4 = vector.shape_cast %3 : vector<1x271x32xf32> to vector<271x32xf32>
    %5 = arith.truncf %4 : vector<271x32xf32> to vector<271x32xbf16>
    %c0_4 = arith.constant 0 : index
    %c2 = arith.constant 2 : index
    %c0_5 = arith.constant 0 : index
    %6 = tpu.strided_load %arg1[%c0_4, %c2, %c0_5] {strides = array<i32: 1, 2, 1>} : memref<1x546x32xf32, #tpu.memory_space<vmem>>, vector<1x271x32xf32>
    %7 = vector.shape_cast %6 : vector<1x271x32xf32> to vector<271x32xf32>
    %8 = arith.truncf %7 : vector<271x32xf32> to vector<271x32xbf16>
    %c0_6 = arith.constant 0 : index
    %c3 = arith.constant 3 : index
    %c0_7 = arith.constant 0 : index
    %9 = tpu.strided_load %arg1[%c0_6, %c3, %c0_7] {strides = array<i32: 1, 2, 1>} : memref<1x546x32xf32, #tpu.memory_space<vmem>>, vector<1x271x32xf32>
    %10 = vector.shape_cast %9 : vector<1x271x32xf32> to vector<271x32xf32>
    %11 = arith.truncf %10 : vector<271x32xf32> to vector<271x32xbf16>
    %c0_8 = arith.constant 0 : index
    %c4 = arith.constant 4 : index
    %c0_9 = arith.constant 0 : index
    %12 = tpu.strided_load %arg1[%c0_8, %c4, %c0_9] {strides = array<i32: 1, 2, 1>} : memref<1x546x32xf32, #tpu.memory_space<vmem>>, vector<1x271x32xf32>
    %13 = vector.shape_cast %12 : vector<1x271x32xf32> to vector<271x32xf32>
    %14 = arith.truncf %13 : vector<271x32xf32> to vector<271x32xbf16>
    %c0_10 = arith.constant 0 : index
    %c0_11 = arith.constant 0 : index
    %c0_12 = arith.constant 0 : index
    %15 = vector.load %arg2[%c0_10, %c0_11, %c0_12] : memref<15x32x32xbf16, #tpu.memory_space<vmem>>, vector<1x32x32xbf16>
    %16 = vector.shape_cast %15 : vector<1x32x32xbf16> to vector<32x32xbf16>
    %c1_13 = arith.constant 1 : index
    %c0_14 = arith.constant 0 : index
    %c0_15 = arith.constant 0 : index
    %17 = vector.load %arg2[%c1_13, %c0_14, %c0_15] : memref<15x32x32xbf16, #tpu.memory_space<vmem>>, vector<1x32x32xbf16>
    %18 = vector.shape_cast %17 : vector<1x32x32xbf16> to vector<32x32xbf16>
    %c2_16 = arith.constant 2 : index
    %c0_17 = arith.constant 0 : index
    %c0_18 = arith.constant 0 : index
    %19 = vector.load %arg2[%c2_16, %c0_17, %c0_18] : memref<15x32x32xbf16, #tpu.memory_space<vmem>>, vector<1x32x32xbf16>
    %20 = vector.shape_cast %19 : vector<1x32x32xbf16> to vector<32x32xbf16>
    %cst = arith.constant dense<0.000000e+00> : vector<271x32xf32>
    %21 = tpu.matmul %2, %16, %cst {dimension_numbers = #tpu.dot_dimension_numbers<[1], [0], [0], [1], [0, 0, 1, 1], [], []>} : vector<271x32xbf16>, vector<32x32xbf16>, vector<271x32xf32> -> vector<271x32xf32>
    %cst_19 = arith.constant dense<0.000000e+00> : vector<271x32xf32>
    %22 = tpu.matmul %5, %18, %cst_19 {dimension_numbers = #tpu.dot_dimension_numbers<[1], [0], [0], [1], [0, 0, 1, 1], [], []>} : vector<271x32xbf16>, vector<32x32xbf16>, vector<271x32xf32> -> vector<271x32xf32>
    %23 = arith.addf %21, %22 : vector<271x32xf32>
    %cst_20 = arith.constant dense<0.000000e+00> : vector<271x32xf32>
    %24 = tpu.matmul %8, %20, %cst_20 {dimension_numbers = #tpu.dot_dimension_numbers<[1], [0], [0], [1], [0, 0, 1, 1], [], []>} : vector<271x32xbf16>, vector<32x32xbf16>, vector<271x32xf32> -> vector<271x32xf32>
    %25 = arith.addf %23, %24 : vector<271x32xf32>
    %cst_21 = arith.constant dense<0.000000e+00> : vector<271x32xf32>
    %26 = tpu.matmul %5, %16, %cst_21 {dimension_numbers = #tpu.dot_dimension_numbers<[1], [0], [0], [1], [0, 0, 1, 1], [], []>} : vector<271x32xbf16>, vector<32x32xbf16>, vector<271x32xf32> -> vector<271x32xf32>
    %cst_22 = arith.constant dense<0.000000e+00> : vector<271x32xf32>
    %27 = tpu.matmul %8, %18, %cst_22 {dimension_numbers = #tpu.dot_dimension_numbers<[1], [0], [0], [1], [0, 0, 1, 1], [], []>} : vector<271x32xbf16>, vector<32x32xbf16>, vector<271x32xf32> -> vector<271x32xf32>
    %28 = arith.addf %26, %27 : vector<271x32xf32>
    %cst_23 = arith.constant dense<0.000000e+00> : vector<271x32xf32>
    %29 = tpu.matmul %11, %20, %cst_23 {dimension_numbers = #tpu.dot_dimension_numbers<[1], [0], [0], [1], [0, 0, 1, 1], [], []>} : vector<271x32xbf16>, vector<32x32xbf16>, vector<271x32xf32> -> vector<271x32xf32>
    %30 = arith.addf %28, %29 : vector<271x32xf32>
    %31 = arith.maximumf %25, %30 : vector<271x32xf32>
    %cst_24 = arith.constant dense<0.000000e+00> : vector<271x32xf32>
    %32 = tpu.matmul %8, %16, %cst_24 {dimension_numbers = #tpu.dot_dimension_numbers<[1], [0], [0], [1], [0, 0, 1, 1], [], []>} : vector<271x32xbf16>, vector<32x32xbf16>, vector<271x32xf32> -> vector<271x32xf32>
    %cst_25 = arith.constant dense<0.000000e+00> : vector<271x32xf32>
    %33 = tpu.matmul %11, %18, %cst_25 {dimension_numbers = #tpu.dot_dimension_numbers<[1], [0], [0], [1], [0, 0, 1, 1], [], []>} : vector<271x32xbf16>, vector<32x32xbf16>, vector<271x32xf32> -> vector<271x32xf32>
    %34 = arith.addf %32, %33 : vector<271x32xf32>
    %cst_26 = arith.constant dense<0.000000e+00> : vector<271x32xf32>
    %35 = tpu.matmul %14, %20, %cst_26 {dimension_numbers = #tpu.dot_dimension_numbers<[1], [0], [0], [1], [0, 0, 1, 1], [], []>} : vector<271x32xbf16>, vector<32x32xbf16>, vector<271x32xf32> -> vector<271x32xf32>
    %36 = arith.addf %34, %35 : vector<271x32xf32>
    %37 = arith.maximumf %31, %36 : vector<271x32xf32>
    %c0_27 = arith.constant 0 : index
    %c0_28 = arith.constant 0 : index
    %c0_29 = arith.constant 0 : index
    %38 = vector.load %arg3[%c0_27, %c0_28, %c0_29] : memref<5x1x32xf32, #tpu.memory_space<vmem>>, vector<1x1x32xf32>
    %39 = vector.shape_cast %38 : vector<1x1x32xf32> to vector<1x32xf32>
    %40 = vector.broadcast %39 : vector<1x32xf32> to vector<271x32xf32>
    %41 = arith.mulf %37, %40 : vector<271x32xf32>
    %c0_30 = arith.constant 0 : index
    %c0_31 = arith.constant 0 : index
    %c0_32 = arith.constant 0 : index
    %42 = vector.load %arg4[%c0_30, %c0_31, %c0_32] : memref<5x1x32xf32, #tpu.memory_space<vmem>>, vector<1x1x32xf32>
    %43 = vector.shape_cast %42 : vector<1x1x32xf32> to vector<1x32xf32>
    %44 = vector.broadcast %43 : vector<1x32xf32> to vector<271x32xf32>
    %45 = arith.addf %41, %44 : vector<271x32xf32>
    %cst_33 = arith.constant 0.000000e+00 : f32
    %46 = vector.broadcast %cst_33 : f32 to vector<271x32xf32>
    %47 = arith.cmpf oge, %45, %46 : vector<271x32xf32>
    %cst_34 = arith.constant 0.00999999977 : f32
    %48 = vector.broadcast %cst_34 : f32 to vector<271x32xf32>
    %49 = arith.mulf %48, %45 : vector<271x32xf32>
    %50 = arith.select %47, %45, %49 : vector<271x32xi1>, vector<271x32xf32>
    %cst_35 = arith.constant 0.000000e+00 : f32
    %51 = vector.broadcast %cst_35 : f32 to vector<1x32xf32>
    %c0_36 = arith.constant 0 : index
    %c0_37 = arith.constant 0 : index
    %52 = vector.load %arg10[%c0_36, %c0_37] : memref<273x32xf32, #tpu.memory_space<vmem>>, vector<1x32xf32>
    tpu.vector_store %arg10[%c0_36, %c0_37], %51 {strides = array<i32>} : memref<273x32xf32, #tpu.memory_space<vmem>>, vector<1x32xf32>,
    %c272 = arith.constant 272 : index
    %c0_38 = arith.constant 0 : index
    %53 = vector.load %arg10[%c272, %c0_38] : memref<273x32xf32, #tpu.memory_space<vmem>>, vector<1x32xf32>
    tpu.vector_store %arg10[%c272, %c0_38], %51 {strides = array<i32>} : memref<273x32xf32, #tpu.memory_space<vmem>>, vector<1x32xf32>,
    %c1_39 = arith.constant 1 : index
    %c0_40 = arith.constant 0 : index
    %54 = vector.load %arg10[%c1_39, %c0_40] : memref<273x32xf32, #tpu.memory_space<vmem>>, vector<271x32xf32>
    tpu.vector_store %arg10[%c1_39, %c0_40], %50 {strides = array<i32>} : memref<273x32xf32, #tpu.memory_space<vmem>>, vector<271x32xf32>,
    %c0_41 = arith.constant 0 : index
    %c0_42 = arith.constant 0 : index
    %55 = tpu.strided_load %arg10[%c0_41, %c0_42] {strides = array<i32: 2, 1>} : memref<273x32xf32, #tpu.memory_space<vmem>>, vector<135x32xf32>
    %56 = arith.truncf %55 : vector<135x32xf32> to vector<135x32xbf16>
    %c1_43 = arith.constant 1 : index
    %c0_44 = arith.constant 0 : index
    %57 = tpu.strided_load %arg10[%c1_43, %c0_44] {strides = array<i32: 2, 1>} : memref<273x32xf32, #tpu.memory_space<vmem>>, vector<135x32xf32>
    %58 = arith.truncf %57 : vector<135x32xf32> to vector<135x32xbf16>
    %c2_45 = arith.constant 2 : index
    %c0_46 = arith.constant 0 : index
    %59 = tpu.strided_load %arg10[%c2_45, %c0_46] {strides = array<i32: 2, 1>} : memref<273x32xf32, #tpu.memory_space<vmem>>, vector<135x32xf32>
    %60 = arith.truncf %59 : vector<135x32xf32> to vector<135x32xbf16>
    %c3_47 = arith.constant 3 : index
    %c0_48 = arith.constant 0 : index
    %61 = tpu.strided_load %arg10[%c3_47, %c0_48] {strides = array<i32: 2, 1>} : memref<273x32xf32, #tpu.memory_space<vmem>>, vector<135x32xf32>
    %62 = arith.truncf %61 : vector<135x32xf32> to vector<135x32xbf16>
    %c4_49 = arith.constant 4 : index
    %c0_50 = arith.constant 0 : index
    %63 = tpu.strided_load %arg10[%c4_49, %c0_50] {strides = array<i32: 2, 1>} : memref<273x32xf32, #tpu.memory_space<vmem>>, vector<135x32xf32>
    %64 = arith.truncf %63 : vector<135x32xf32> to vector<135x32xbf16>
    %c3_51 = arith.constant 3 : index
    %c0_52 = arith.constant 0 : index
    %c0_53 = arith.constant 0 : index
    %65 = vector.load %arg2[%c3_51, %c0_52, %c0_53] : memref<15x32x32xbf16, #tpu.memory_space<vmem>>, vector<1x32x32xbf16>
    %66 = vector.shape_cast %65 : vector<1x32x32xbf16> to vector<32x32xbf16>
    %c4_54 = arith.constant 4 : index
    %c0_55 = arith.constant 0 : index
    %c0_56 = arith.constant 0 : index
    %67 = vector.load %arg2[%c4_54, %c0_55, %c0_56] : memref<15x32x32xbf16, #tpu.memory_space<vmem>>, vector<1x32x32xbf16>
    %68 = vector.shape_cast %67 : vector<1x32x32xbf16> to vector<32x32xbf16>
    %c5 = arith.constant 5 : index
    %c0_57 = arith.constant 0 : index
    %c0_58 = arith.constant 0 : index
    %69 = vector.load %arg2[%c5, %c0_57, %c0_58] : memref<15x32x32xbf16, #tpu.memory_space<vmem>>, vector<1x32x32xbf16>
    %70 = vector.shape_cast %69 : vector<1x32x32xbf16> to vector<32x32xbf16>
    %cst_59 = arith.constant dense<0.000000e+00> : vector<135x32xf32>
    %71 = tpu.matmul %56, %66, %cst_59 {dimension_numbers = #tpu.dot_dimension_numbers<[1], [0], [0], [1], [0, 0, 1, 1], [], []>} : vector<135x32xbf16>, vector<32x32xbf16>, vector<135x32xf32> -> vector<135x32xf32>
    %cst_60 = arith.constant dense<0.000000e+00> : vector<135x32xf32>
    %72 = tpu.matmul %58, %68, %cst_60 {dimension_numbers = #tpu.dot_dimension_numbers<[1], [0], [0], [1], [0, 0, 1, 1], [], []>} : vector<135x32xbf16>, vector<32x32xbf16>, vector<135x32xf32> -> vector<135x32xf32>
    %73 = arith.addf %71, %72 : vector<135x32xf32>
    %cst_61 = arith.constant dense<0.000000e+00> : vector<135x32xf32>
    %74 = tpu.matmul %60, %70, %cst_61 {dimension_numbers = #tpu.dot_dimension_numbers<[1], [0], [0], [1], [0, 0, 1, 1], [], []>} : vector<135x32xbf16>, vector<32x32xbf16>, vector<135x32xf32> -> vector<135x32xf32>
    %75 = arith.addf %73, %74 : vector<135x32xf32>
    %cst_62 = arith.constant dense<0.000000e+00> : vector<135x32xf32>
    %76 = tpu.matmul %58, %66, %cst_62 {dimension_numbers = #tpu.dot_dimension_numbers<[1], [0], [0], [1], [0, 0, 1, 1], [], []>} : vector<135x32xbf16>, vector<32x32xbf16>, vector<135x32xf32> -> vector<135x32xf32>
    %cst_63 = arith.constant dense<0.000000e+00> : vector<135x32xf32>
    %77 = tpu.matmul %60, %68, %cst_63 {dimension_numbers = #tpu.dot_dimension_numbers<[1], [0], [0], [1], [0, 0, 1, 1], [], []>} : vector<135x32xbf16>, vector<32x32xbf16>, vector<135x32xf32> -> vector<135x32xf32>
    %78 = arith.addf %76, %77 : vector<135x32xf32>
    %cst_64 = arith.constant dense<0.000000e+00> : vector<135x32xf32>
    %79 = tpu.matmul %62, %70, %cst_64 {dimension_numbers = #tpu.dot_dimension_numbers<[1], [0], [0], [1], [0, 0, 1, 1], [], []>} : vector<135x32xbf16>, vector<32x32xbf16>, vector<135x32xf32> -> vector<135x32xf32>
    %80 = arith.addf %78, %79 : vector<135x32xf32>
    %81 = arith.maximumf %75, %80 : vector<135x32xf32>
    %cst_65 = arith.constant dense<0.000000e+00> : vector<135x32xf32>
    %82 = tpu.matmul %60, %66, %cst_65 {dimension_numbers = #tpu.dot_dimension_numbers<[1], [0], [0], [1], [0, 0, 1, 1], [], []>} : vector<135x32xbf16>, vector<32x32xbf16>, vector<135x32xf32> -> vector<135x32xf32>
    %cst_66 = arith.constant dense<0.000000e+00> : vector<135x32xf32>
    %83 = tpu.matmul %62, %68, %cst_66 {dimension_numbers = #tpu.dot_dimension_numbers<[1], [0], [0], [1], [0, 0, 1, 1], [], []>} : vector<135x32xbf16>, vector<32x32xbf16>, vector<135x32xf32> -> vector<135x32xf32>
    %84 = arith.addf %82, %83 : vector<135x32xf32>
    %cst_67 = arith.constant dense<0.000000e+00> : vector<135x32xf32>
    %85 = tpu.matmul %64, %70, %cst_67 {dimension_numbers = #tpu.dot_dimension_numbers<[1], [0], [0], [1], [0, 0, 1, 1], [], []>} : vector<135x32xbf16>, vector<32x32xbf16>, vector<135x32xf32> -> vector<135x32xf32>
    %86 = arith.addf %84, %85 : vector<135x32xf32>
    %87 = arith.maximumf %81, %86 : vector<135x32xf32>
    %c1_68 = arith.constant 1 : index
    %c0_69 = arith.constant 0 : index
    %c0_70 = arith.constant 0 : index
    %88 = vector.load %arg3[%c1_68, %c0_69, %c0_70] : memref<5x1x32xf32, #tpu.memory_space<vmem>>, vector<1x1x32xf32>
    %89 = vector.shape_cast %88 : vector<1x1x32xf32> to vector<1x32xf32>
    %90 = vector.broadcast %89 : vector<1x32xf32> to vector<135x32xf32>
    %91 = arith.mulf %87, %90 : vector<135x32xf32>
    %c1_71 = arith.constant 1 : index
    %c0_72 = arith.constant 0 : index
    %c0_73 = arith.constant 0 : index
    %92 = vector.load %arg4[%c1_71, %c0_72, %c0_73] : memref<5x1x32xf32, #tpu.memory_space<vmem>>, vector<1x1x32xf32>
    %93 = vector.shape_cast %92 : vector<1x1x32xf32> to vector<1x32xf32>
    %94 = vector.broadcast %93 : vector<1x32xf32> to vector<135x32xf32>
    %95 = arith.addf %91, %94 : vector<135x32xf32>
    %cst_74 = arith.constant 0.000000e+00 : f32
    %96 = vector.broadcast %cst_74 : f32 to vector<135x32xf32>
    %97 = arith.cmpf oge, %95, %96 : vector<135x32xf32>
    %cst_75 = arith.constant 0.00999999977 : f32
    %98 = vector.broadcast %cst_75 : f32 to vector<135x32xf32>
    %99 = arith.mulf %98, %95 : vector<135x32xf32>
    %100 = arith.select %97, %95, %99 : vector<135x32xi1>, vector<135x32xf32>
    %cst_76 = arith.constant 0.000000e+00 : f32
    %101 = vector.broadcast %cst_76 : f32 to vector<1x32xf32>
    %c0_77 = arith.constant 0 : index
    %c0_78 = arith.constant 0 : index
    %102 = vector.load %arg11[%c0_77, %c0_78] : memref<137x32xf32, #tpu.memory_space<vmem>>, vector<1x32xf32>
    tpu.vector_store %arg11[%c0_77, %c0_78], %101 {strides = array<i32>} : memref<137x32xf32, #tpu.memory_space<vmem>>, vector<1x32xf32>,
    %c136 = arith.constant 136 : index
    %c0_79 = arith.constant 0 : index
    %103 = vector.load %arg11[%c136, %c0_79] : memref<137x32xf32, #tpu.memory_space<vmem>>, vector<1x32xf32>
    tpu.vector_store %arg11[%c136, %c0_79], %101 {strides = array<i32>} : memref<137x32xf32, #tpu.memory_space<vmem>>, vector<1x32xf32>,
    %c1_80 = arith.constant 1 : index
    %c0_81 = arith.constant 0 : index
    %104 = vector.load %arg11[%c1_80, %c0_81] : memref<137x32xf32, #tpu.memory_space<vmem>>, vector<135x32xf32>
    tpu.vector_store %arg11[%c1_80, %c0_81], %100 {strides = array<i32>} : memref<137x32xf32, #tpu.memory_space<vmem>>, vector<135x32xf32>,
    %c0_82 = arith.constant 0 : index
    %c0_83 = arith.constant 0 : index
    %105 = tpu.strided_load %arg11[%c0_82, %c0_83] {strides = array<i32: 2, 1>} : memref<137x32xf32, #tpu.memory_space<vmem>>, vector<67x32xf32>
    %106 = arith.truncf %105 : vector<67x32xf32> to vector<67x32xbf16>
    %c1_84 = arith.constant 1 : index
    %c0_85 = arith.constant 0 : index
    %107 = tpu.strided_load %arg11[%c1_84, %c0_85] {strides = array<i32: 2, 1>} : memref<137x32xf32, #tpu.memory_space<vmem>>, vector<67x32xf32>
    %108 = arith.truncf %107 : vector<67x32xf32> to vector<67x32xbf16>
    %c2_86 = arith.constant 2 : index
    %c0_87 = arith.constant 0 : index
    %109 = tpu.strided_load %arg11[%c2_86, %c0_87] {strides = array<i32: 2, 1>} : memref<137x32xf32, #tpu.memory_space<vmem>>, vector<67x32xf32>
    %110 = arith.truncf %109 : vector<67x32xf32> to vector<67x32xbf16>
    %c3_88 = arith.constant 3 : index
    %c0_89 = arith.constant 0 : index
    %111 = tpu.strided_load %arg11[%c3_88, %c0_89] {strides = array<i32: 2, 1>} : memref<137x32xf32, #tpu.memory_space<vmem>>, vector<67x32xf32>
    %112 = arith.truncf %111 : vector<67x32xf32> to vector<67x32xbf16>
    %c4_90 = arith.constant 4 : index
    %c0_91 = arith.constant 0 : index
    %113 = tpu.strided_load %arg11[%c4_90, %c0_91] {strides = array<i32: 2, 1>} : memref<137x32xf32, #tpu.memory_space<vmem>>, vector<67x32xf32>
    %114 = arith.truncf %113 : vector<67x32xf32> to vector<67x32xbf16>
    %c6 = arith.constant 6 : index
    %c0_92 = arith.constant 0 : index
    %c0_93 = arith.constant 0 : index
    %115 = vector.load %arg2[%c6, %c0_92, %c0_93] : memref<15x32x32xbf16, #tpu.memory_space<vmem>>, vector<1x32x32xbf16>
    %116 = vector.shape_cast %115 : vector<1x32x32xbf16> to vector<32x32xbf16>
    %c7 = arith.constant 7 : index
    %c0_94 = arith.constant 0 : index
    %c0_95 = arith.constant 0 : index
    %117 = vector.load %arg2[%c7, %c0_94, %c0_95] : memref<15x32x32xbf16, #tpu.memory_space<vmem>>, vector<1x32x32xbf16>
    %118 = vector.shape_cast %117 : vector<1x32x32xbf16> to vector<32x32xbf16>
    %c8 = arith.constant 8 : index
    %c0_96 = arith.constant 0 : index
    %c0_97 = arith.constant 0 : index
    %119 = vector.load %arg2[%c8, %c0_96, %c0_97] : memref<15x32x32xbf16, #tpu.memory_space<vmem>>, vector<1x32x32xbf16>
    %120 = vector.shape_cast %119 : vector<1x32x32xbf16> to vector<32x32xbf16>
    %cst_98 = arith.constant dense<0.000000e+00> : vector<67x32xf32>
    %121 = tpu.matmul %106, %116, %cst_98 {dimension_numbers = #tpu.dot_dimension_numbers<[1], [0], [0], [1], [0, 0, 1, 1], [], []>} : vector<67x32xbf16>, vector<32x32xbf16>, vector<67x32xf32> -> vector<67x32xf32>
    %cst_99 = arith.constant dense<0.000000e+00> : vector<67x32xf32>
    %122 = tpu.matmul %108, %118, %cst_99 {dimension_numbers = #tpu.dot_dimension_numbers<[1], [0], [0], [1], [0, 0, 1, 1], [], []>} : vector<67x32xbf16>, vector<32x32xbf16>, vector<67x32xf32> -> vector<67x32xf32>
    %123 = arith.addf %121, %122 : vector<67x32xf32>
    %cst_100 = arith.constant dense<0.000000e+00> : vector<67x32xf32>
    %124 = tpu.matmul %110, %120, %cst_100 {dimension_numbers = #tpu.dot_dimension_numbers<[1], [0], [0], [1], [0, 0, 1, 1], [], []>} : vector<67x32xbf16>, vector<32x32xbf16>, vector<67x32xf32> -> vector<67x32xf32>
    %125 = arith.addf %123, %124 : vector<67x32xf32>
    %cst_101 = arith.constant dense<0.000000e+00> : vector<67x32xf32>
    %126 = tpu.matmul %108, %116, %cst_101 {dimension_numbers = #tpu.dot_dimension_numbers<[1], [0], [0], [1], [0, 0, 1, 1], [], []>} : vector<67x32xbf16>, vector<32x32xbf16>, vector<67x32xf32> -> vector<67x32xf32>
    %cst_102 = arith.constant dense<0.000000e+00> : vector<67x32xf32>
    %127 = tpu.matmul %110, %118, %cst_102 {dimension_numbers = #tpu.dot_dimension_numbers<[1], [0], [0], [1], [0, 0, 1, 1], [], []>} : vector<67x32xbf16>, vector<32x32xbf16>, vector<67x32xf32> -> vector<67x32xf32>
    %128 = arith.addf %126, %127 : vector<67x32xf32>
    %cst_103 = arith.constant dense<0.000000e+00> : vector<67x32xf32>
    %129 = tpu.matmul %112, %120, %cst_103 {dimension_numbers = #tpu.dot_dimension_numbers<[1], [0], [0], [1], [0, 0, 1, 1], [], []>} : vector<67x32xbf16>, vector<32x32xbf16>, vector<67x32xf32> -> vector<67x32xf32>
    %130 = arith.addf %128, %129 : vector<67x32xf32>
    %131 = arith.maximumf %125, %130 : vector<67x32xf32>
    %cst_104 = arith.constant dense<0.000000e+00> : vector<67x32xf32>
    %132 = tpu.matmul %110, %116, %cst_104 {dimension_numbers = #tpu.dot_dimension_numbers<[1], [0], [0], [1], [0, 0, 1, 1], [], []>} : vector<67x32xbf16>, vector<32x32xbf16>, vector<67x32xf32> -> vector<67x32xf32>
    %cst_105 = arith.constant dense<0.000000e+00> : vector<67x32xf32>
    %133 = tpu.matmul %112, %118, %cst_105 {dimension_numbers = #tpu.dot_dimension_numbers<[1], [0], [0], [1], [0, 0, 1, 1], [], []>} : vector<67x32xbf16>, vector<32x32xbf16>, vector<67x32xf32> -> vector<67x32xf32>
    %134 = arith.addf %132, %133 : vector<67x32xf32>
    %cst_106 = arith.constant dense<0.000000e+00> : vector<67x32xf32>
    %135 = tpu.matmul %114, %120, %cst_106 {dimension_numbers = #tpu.dot_dimension_numbers<[1], [0], [0], [1], [0, 0, 1, 1], [], []>} : vector<67x32xbf16>, vector<32x32xbf16>, vector<67x32xf32> -> vector<67x32xf32>
    %136 = arith.addf %134, %135 : vector<67x32xf32>
    %137 = arith.maximumf %131, %136 : vector<67x32xf32>
    %c2_107 = arith.constant 2 : index
    %c0_108 = arith.constant 0 : index
    %c0_109 = arith.constant 0 : index
    %138 = vector.load %arg3[%c2_107, %c0_108, %c0_109] : memref<5x1x32xf32, #tpu.memory_space<vmem>>, vector<1x1x32xf32>
    %139 = vector.shape_cast %138 : vector<1x1x32xf32> to vector<1x32xf32>
    %140 = vector.broadcast %139 : vector<1x32xf32> to vector<67x32xf32>
    %141 = arith.mulf %137, %140 : vector<67x32xf32>
    %c2_110 = arith.constant 2 : index
    %c0_111 = arith.constant 0 : index
    %c0_112 = arith.constant 0 : index
    %142 = vector.load %arg4[%c2_110, %c0_111, %c0_112] : memref<5x1x32xf32, #tpu.memory_space<vmem>>, vector<1x1x32xf32>
    %143 = vector.shape_cast %142 : vector<1x1x32xf32> to vector<1x32xf32>
    %144 = vector.broadcast %143 : vector<1x32xf32> to vector<67x32xf32>
    %145 = arith.addf %141, %144 : vector<67x32xf32>
    %cst_113 = arith.constant 0.000000e+00 : f32
    %146 = vector.broadcast %cst_113 : f32 to vector<67x32xf32>
    %147 = arith.cmpf oge, %145, %146 : vector<67x32xf32>
    %cst_114 = arith.constant 0.00999999977 : f32
    %148 = vector.broadcast %cst_114 : f32 to vector<67x32xf32>
    %149 = arith.mulf %148, %145 : vector<67x32xf32>
    %150 = arith.select %147, %145, %149 : vector<67x32xi1>, vector<67x32xf32>
    %cst_115 = arith.constant 0.000000e+00 : f32
    %151 = vector.broadcast %cst_115 : f32 to vector<1x32xf32>
    %c0_116 = arith.constant 0 : index
    %c0_117 = arith.constant 0 : index
    %152 = vector.load %arg12[%c0_116, %c0_117] : memref<69x32xf32, #tpu.memory_space<vmem>>, vector<1x32xf32>
    tpu.vector_store %arg12[%c0_116, %c0_117], %151 {strides = array<i32>} : memref<69x32xf32, #tpu.memory_space<vmem>>, vector<1x32xf32>,
    %c68 = arith.constant 68 : index
    %c0_118 = arith.constant 0 : index
    %153 = vector.load %arg12[%c68, %c0_118] : memref<69x32xf32, #tpu.memory_space<vmem>>, vector<1x32xf32>
    tpu.vector_store %arg12[%c68, %c0_118], %151 {strides = array<i32>} : memref<69x32xf32, #tpu.memory_space<vmem>>, vector<1x32xf32>,
    %c1_119 = arith.constant 1 : index
    %c0_120 = arith.constant 0 : index
    %154 = vector.load %arg12[%c1_119, %c0_120] : memref<69x32xf32, #tpu.memory_space<vmem>>, vector<67x32xf32>
    tpu.vector_store %arg12[%c1_119, %c0_120], %150 {strides = array<i32>} : memref<69x32xf32, #tpu.memory_space<vmem>>, vector<67x32xf32>,
    %c0_121 = arith.constant 0 : index
    %c0_122 = arith.constant 0 : index
    %155 = tpu.strided_load %arg12[%c0_121, %c0_122] {strides = array<i32: 2, 1>} : memref<69x32xf32, #tpu.memory_space<vmem>>, vector<33x32xf32>
    %156 = arith.truncf %155 : vector<33x32xf32> to vector<33x32xbf16>
    %c1_123 = arith.constant 1 : index
    %c0_124 = arith.constant 0 : index
    %157 = tpu.strided_load %arg12[%c1_123, %c0_124] {strides = array<i32: 2, 1>} : memref<69x32xf32, #tpu.memory_space<vmem>>, vector<33x32xf32>
    %158 = arith.truncf %157 : vector<33x32xf32> to vector<33x32xbf16>
    %c2_125 = arith.constant 2 : index
    %c0_126 = arith.constant 0 : index
    %159 = tpu.strided_load %arg12[%c2_125, %c0_126] {strides = array<i32: 2, 1>} : memref<69x32xf32, #tpu.memory_space<vmem>>, vector<33x32xf32>
    %160 = arith.truncf %159 : vector<33x32xf32> to vector<33x32xbf16>
    %c3_127 = arith.constant 3 : index
    %c0_128 = arith.constant 0 : index
    %161 = tpu.strided_load %arg12[%c3_127, %c0_128] {strides = array<i32: 2, 1>} : memref<69x32xf32, #tpu.memory_space<vmem>>, vector<33x32xf32>
    %162 = arith.truncf %161 : vector<33x32xf32> to vector<33x32xbf16>
    %c4_129 = arith.constant 4 : index
    %c0_130 = arith.constant 0 : index
    %163 = tpu.strided_load %arg12[%c4_129, %c0_130] {strides = array<i32: 2, 1>} : memref<69x32xf32, #tpu.memory_space<vmem>>, vector<33x32xf32>
    %164 = arith.truncf %163 : vector<33x32xf32> to vector<33x32xbf16>
    %c9 = arith.constant 9 : index
    %c0_131 = arith.constant 0 : index
    %c0_132 = arith.constant 0 : index
    %165 = vector.load %arg2[%c9, %c0_131, %c0_132] : memref<15x32x32xbf16, #tpu.memory_space<vmem>>, vector<1x32x32xbf16>
    %166 = vector.shape_cast %165 : vector<1x32x32xbf16> to vector<32x32xbf16>
    %c10 = arith.constant 10 : index
    %c0_133 = arith.constant 0 : index
    %c0_134 = arith.constant 0 : index
    %167 = vector.load %arg2[%c10, %c0_133, %c0_134] : memref<15x32x32xbf16, #tpu.memory_space<vmem>>, vector<1x32x32xbf16>
    %168 = vector.shape_cast %167 : vector<1x32x32xbf16> to vector<32x32xbf16>
    %c11 = arith.constant 11 : index
    %c0_135 = arith.constant 0 : index
    %c0_136 = arith.constant 0 : index
    %169 = vector.load %arg2[%c11, %c0_135, %c0_136] : memref<15x32x32xbf16, #tpu.memory_space<vmem>>, vector<1x32x32xbf16>
    %170 = vector.shape_cast %169 : vector<1x32x32xbf16> to vector<32x32xbf16>
    %cst_137 = arith.constant dense<0.000000e+00> : vector<33x32xf32>
    %171 = tpu.matmul %156, %166, %cst_137 {dimension_numbers = #tpu.dot_dimension_numbers<[1], [0], [0], [1], [0, 0, 1, 1], [], []>} : vector<33x32xbf16>, vector<32x32xbf16>, vector<33x32xf32> -> vector<33x32xf32>
    %cst_138 = arith.constant dense<0.000000e+00> : vector<33x32xf32>
    %172 = tpu.matmul %158, %168, %cst_138 {dimension_numbers = #tpu.dot_dimension_numbers<[1], [0], [0], [1], [0, 0, 1, 1], [], []>} : vector<33x32xbf16>, vector<32x32xbf16>, vector<33x32xf32> -> vector<33x32xf32>
    %173 = arith.addf %171, %172 : vector<33x32xf32>
    %cst_139 = arith.constant dense<0.000000e+00> : vector<33x32xf32>
    %174 = tpu.matmul %160, %170, %cst_139 {dimension_numbers = #tpu.dot_dimension_numbers<[1], [0], [0], [1], [0, 0, 1, 1], [], []>} : vector<33x32xbf16>, vector<32x32xbf16>, vector<33x32xf32> -> vector<33x32xf32>
    %175 = arith.addf %173, %174 : vector<33x32xf32>
    %cst_140 = arith.constant dense<0.000000e+00> : vector<33x32xf32>
    %176 = tpu.matmul %158, %166, %cst_140 {dimension_numbers = #tpu.dot_dimension_numbers<[1], [0], [0], [1], [0, 0, 1, 1], [], []>} : vector<33x32xbf16>, vector<32x32xbf16>, vector<33x32xf32> -> vector<33x32xf32>
    %cst_141 = arith.constant dense<0.000000e+00> : vector<33x32xf32>
    %177 = tpu.matmul %160, %168, %cst_141 {dimension_numbers = #tpu.dot_dimension_numbers<[1], [0], [0], [1], [0, 0, 1, 1], [], []>} : vector<33x32xbf16>, vector<32x32xbf16>, vector<33x32xf32> -> vector<33x32xf32>
    %178 = arith.addf %176, %177 : vector<33x32xf32>
    %cst_142 = arith.constant dense<0.000000e+00> : vector<33x32xf32>
    %179 = tpu.matmul %162, %170, %cst_142 {dimension_numbers = #tpu.dot_dimension_numbers<[1], [0], [0], [1], [0, 0, 1, 1], [], []>} : vector<33x32xbf16>, vector<32x32xbf16>, vector<33x32xf32> -> vector<33x32xf32>
    %180 = arith.addf %178, %179 : vector<33x32xf32>
    %181 = arith.maximumf %175, %180 : vector<33x32xf32>
    %cst_143 = arith.constant dense<0.000000e+00> : vector<33x32xf32>
    %182 = tpu.matmul %160, %166, %cst_143 {dimension_numbers = #tpu.dot_dimension_numbers<[1], [0], [0], [1], [0, 0, 1, 1], [], []>} : vector<33x32xbf16>, vector<32x32xbf16>, vector<33x32xf32> -> vector<33x32xf32>
    %cst_144 = arith.constant dense<0.000000e+00> : vector<33x32xf32>
    %183 = tpu.matmul %162, %168, %cst_144 {dimension_numbers = #tpu.dot_dimension_numbers<[1], [0], [0], [1], [0, 0, 1, 1], [], []>} : vector<33x32xbf16>, vector<32x32xbf16>, vector<33x32xf32> -> vector<33x32xf32>
    %184 = arith.addf %182, %183 : vector<33x32xf32>
    %cst_145 = arith.constant dense<0.000000e+00> : vector<33x32xf32>
    %185 = tpu.matmul %164, %170, %cst_145 {dimension_numbers = #tpu.dot_dimension_numbers<[1], [0], [0], [1], [0, 0, 1, 1], [], []>} : vector<33x32xbf16>, vector<32x32xbf16>, vector<33x32xf32> -> vector<33x32xf32>
    %186 = arith.addf %184, %185 : vector<33x32xf32>
    %187 = arith.maximumf %181, %186 : vector<33x32xf32>
    %c3_146 = arith.constant 3 : index
    %c0_147 = arith.constant 0 : index
    %c0_148 = arith.constant 0 : index
    %188 = vector.load %arg3[%c3_146, %c0_147, %c0_148] : memref<5x1x32xf32, #tpu.memory_space<vmem>>, vector<1x1x32xf32>
    %189 = vector.shape_cast %188 : vector<1x1x32xf32> to vector<1x32xf32>
    %190 = vector.broadcast %189 : vector<1x32xf32> to vector<33x32xf32>
    %191 = arith.mulf %187, %190 : vector<33x32xf32>
    %c3_149 = arith.constant 3 : index
    %c0_150 = arith.constant 0 : index
    %c0_151 = arith.constant 0 : index
    %192 = vector.load %arg4[%c3_149, %c0_150, %c0_151] : memref<5x1x32xf32, #tpu.memory_space<vmem>>, vector<1x1x32xf32>
    %193 = vector.shape_cast %192 : vector<1x1x32xf32> to vector<1x32xf32>
    %194 = vector.broadcast %193 : vector<1x32xf32> to vector<33x32xf32>
    %195 = arith.addf %191, %194 : vector<33x32xf32>
    %cst_152 = arith.constant 0.000000e+00 : f32
    %196 = vector.broadcast %cst_152 : f32 to vector<33x32xf32>
    %197 = arith.cmpf oge, %195, %196 : vector<33x32xf32>
    %cst_153 = arith.constant 0.00999999977 : f32
    %198 = vector.broadcast %cst_153 : f32 to vector<33x32xf32>
    %199 = arith.mulf %198, %195 : vector<33x32xf32>
    %200 = arith.select %197, %195, %199 : vector<33x32xi1>, vector<33x32xf32>
    %cst_154 = arith.constant 0.000000e+00 : f32
    %201 = vector.broadcast %cst_154 : f32 to vector<1x32xf32>
    %c0_155 = arith.constant 0 : index
    %c0_156 = arith.constant 0 : index
    %202 = vector.load %arg13[%c0_155, %c0_156] : memref<35x32xf32, #tpu.memory_space<vmem>>, vector<1x32xf32>
    tpu.vector_store %arg13[%c0_155, %c0_156], %201 {strides = array<i32>} : memref<35x32xf32, #tpu.memory_space<vmem>>, vector<1x32xf32>,
    %c34 = arith.constant 34 : index
    %c0_157 = arith.constant 0 : index
    %203 = vector.load %arg13[%c34, %c0_157] : memref<35x32xf32, #tpu.memory_space<vmem>>, vector<1x32xf32>
    tpu.vector_store %arg13[%c34, %c0_157], %201 {strides = array<i32>} : memref<35x32xf32, #tpu.memory_space<vmem>>, vector<1x32xf32>,
    %c1_158 = arith.constant 1 : index
    %c0_159 = arith.constant 0 : index
    %204 = vector.load %arg13[%c1_158, %c0_159] : memref<35x32xf32, #tpu.memory_space<vmem>>, vector<33x32xf32>
    tpu.vector_store %arg13[%c1_158, %c0_159], %200 {strides = array<i32>} : memref<35x32xf32, #tpu.memory_space<vmem>>, vector<33x32xf32>,
    %c0_160 = arith.constant 0 : index
    %c0_161 = arith.constant 0 : index
    %205 = tpu.strided_load %arg13[%c0_160, %c0_161] {strides = array<i32: 2, 1>} : memref<35x32xf32, #tpu.memory_space<vmem>>, vector<16x32xf32>
    %206 = arith.truncf %205 : vector<16x32xf32> to vector<16x32xbf16>
    %c1_162 = arith.constant 1 : index
    %c0_163 = arith.constant 0 : index
    %207 = tpu.strided_load %arg13[%c1_162, %c0_163] {strides = array<i32: 2, 1>} : memref<35x32xf32, #tpu.memory_space<vmem>>, vector<16x32xf32>
    %208 = arith.truncf %207 : vector<16x32xf32> to vector<16x32xbf16>
    %c2_164 = arith.constant 2 : index
    %c0_165 = arith.constant 0 : index
    %209 = tpu.strided_load %arg13[%c2_164, %c0_165] {strides = array<i32: 2, 1>} : memref<35x32xf32, #tpu.memory_space<vmem>>, vector<16x32xf32>
    %210 = arith.truncf %209 : vector<16x32xf32> to vector<16x32xbf16>
    %c3_166 = arith.constant 3 : index
    %c0_167 = arith.constant 0 : index
    %211 = tpu.strided_load %arg13[%c3_166, %c0_167] {strides = array<i32: 2, 1>} : memref<35x32xf32, #tpu.memory_space<vmem>>, vector<16x32xf32>
    %212 = arith.truncf %211 : vector<16x32xf32> to vector<16x32xbf16>
    %c4_168 = arith.constant 4 : index
    %c0_169 = arith.constant 0 : index
    %213 = tpu.strided_load %arg13[%c4_168, %c0_169] {strides = array<i32: 2, 1>} : memref<35x32xf32, #tpu.memory_space<vmem>>, vector<16x32xf32>
    %214 = arith.truncf %213 : vector<16x32xf32> to vector<16x32xbf16>
    %c12 = arith.constant 12 : index
    %c0_170 = arith.constant 0 : index
    %c0_171 = arith.constant 0 : index
    %215 = vector.load %arg2[%c12, %c0_170, %c0_171] : memref<15x32x32xbf16, #tpu.memory_space<vmem>>, vector<1x32x32xbf16>
    %216 = vector.shape_cast %215 : vector<1x32x32xbf16> to vector<32x32xbf16>
    %c13 = arith.constant 13 : index
    %c0_172 = arith.constant 0 : index
    %c0_173 = arith.constant 0 : index
    %217 = vector.load %arg2[%c13, %c0_172, %c0_173] : memref<15x32x32xbf16, #tpu.memory_space<vmem>>, vector<1x32x32xbf16>
    %218 = vector.shape_cast %217 : vector<1x32x32xbf16> to vector<32x32xbf16>
    %c14 = arith.constant 14 : index
    %c0_174 = arith.constant 0 : index
    %c0_175 = arith.constant 0 : index
    %219 = vector.load %arg2[%c14, %c0_174, %c0_175] : memref<15x32x32xbf16, #tpu.memory_space<vmem>>, vector<1x32x32xbf16>
    %220 = vector.shape_cast %219 : vector<1x32x32xbf16> to vector<32x32xbf16>
    %cst_176 = arith.constant dense<0.000000e+00> : vector<16x32xf32>
    %221 = tpu.matmul %206, %216, %cst_176 {dimension_numbers = #tpu.dot_dimension_numbers<[1], [0], [0], [1], [0, 0, 1, 1], [], []>} : vector<16x32xbf16>, vector<32x32xbf16>, vector<16x32xf32> -> vector<16x32xf32>
    %cst_177 = arith.constant dense<0.000000e+00> : vector<16x32xf32>
    %222 = tpu.matmul %208, %218, %cst_177 {dimension_numbers = #tpu.dot_dimension_numbers<[1], [0], [0], [1], [0, 0, 1, 1], [], []>} : vector<16x32xbf16>, vector<32x32xbf16>, vector<16x32xf32> -> vector<16x32xf32>
    %223 = arith.addf %221, %222 : vector<16x32xf32>
    %cst_178 = arith.constant dense<0.000000e+00> : vector<16x32xf32>
    %224 = tpu.matmul %210, %220, %cst_178 {dimension_numbers = #tpu.dot_dimension_numbers<[1], [0], [0], [1], [0, 0, 1, 1], [], []>} : vector<16x32xbf16>, vector<32x32xbf16>, vector<16x32xf32> -> vector<16x32xf32>
    %225 = arith.addf %223, %224 : vector<16x32xf32>
    %cst_179 = arith.constant dense<0.000000e+00> : vector<16x32xf32>
    %226 = tpu.matmul %208, %216, %cst_179 {dimension_numbers = #tpu.dot_dimension_numbers<[1], [0], [0], [1], [0, 0, 1, 1], [], []>} : vector<16x32xbf16>, vector<32x32xbf16>, vector<16x32xf32> -> vector<16x32xf32>
    %cst_180 = arith.constant dense<0.000000e+00> : vector<16x32xf32>
    %227 = tpu.matmul %210, %218, %cst_180 {dimension_numbers = #tpu.dot_dimension_numbers<[1], [0], [0], [1], [0, 0, 1, 1], [], []>} : vector<16x32xbf16>, vector<32x32xbf16>, vector<16x32xf32> -> vector<16x32xf32>
    %228 = arith.addf %226, %227 : vector<16x32xf32>
    %cst_181 = arith.constant dense<0.000000e+00> : vector<16x32xf32>
    %229 = tpu.matmul %212, %220, %cst_181 {dimension_numbers = #tpu.dot_dimension_numbers<[1], [0], [0], [1], [0, 0, 1, 1], [], []>} : vector<16x32xbf16>, vector<32x32xbf16>, vector<16x32xf32> -> vector<16x32xf32>
    %230 = arith.addf %228, %229 : vector<16x32xf32>
    %231 = arith.maximumf %225, %230 : vector<16x32xf32>
    %cst_182 = arith.constant dense<0.000000e+00> : vector<16x32xf32>
    %232 = tpu.matmul %210, %216, %cst_182 {dimension_numbers = #tpu.dot_dimension_numbers<[1], [0], [0], [1], [0, 0, 1, 1], [], []>} : vector<16x32xbf16>, vector<32x32xbf16>, vector<16x32xf32> -> vector<16x32xf32>
    %cst_183 = arith.constant dense<0.000000e+00> : vector<16x32xf32>
    %233 = tpu.matmul %212, %218, %cst_183 {dimension_numbers = #tpu.dot_dimension_numbers<[1], [0], [0], [1], [0, 0, 1, 1], [], []>} : vector<16x32xbf16>, vector<32x32xbf16>, vector<16x32xf32> -> vector<16x32xf32>
    %234 = arith.addf %232, %233 : vector<16x32xf32>
    %cst_184 = arith.constant dense<0.000000e+00> : vector<16x32xf32>
    %235 = tpu.matmul %214, %220, %cst_184 {dimension_numbers = #tpu.dot_dimension_numbers<[1], [0], [0], [1], [0, 0, 1, 1], [], []>} : vector<16x32xbf16>, vector<32x32xbf16>, vector<16x32xf32> -> vector<16x32xf32>
    %236 = arith.addf %234, %235 : vector<16x32xf32>
    %237 = arith.maximumf %231, %236 : vector<16x32xf32>
    %c4_185 = arith.constant 4 : index
    %c0_186 = arith.constant 0 : index
    %c0_187 = arith.constant 0 : index
    %238 = vector.load %arg3[%c4_185, %c0_186, %c0_187] : memref<5x1x32xf32, #tpu.memory_space<vmem>>, vector<1x1x32xf32>
    %239 = vector.shape_cast %238 : vector<1x1x32xf32> to vector<1x32xf32>
    %240 = vector.broadcast %239 : vector<1x32xf32> to vector<16x32xf32>
    %241 = arith.mulf %237, %240 : vector<16x32xf32>
    %c4_188 = arith.constant 4 : index
    %c0_189 = arith.constant 0 : index
    %c0_190 = arith.constant 0 : index
    %242 = vector.load %arg4[%c4_188, %c0_189, %c0_190] : memref<5x1x32xf32, #tpu.memory_space<vmem>>, vector<1x1x32xf32>
    %243 = vector.shape_cast %242 : vector<1x1x32xf32> to vector<1x32xf32>
    %244 = vector.broadcast %243 : vector<1x32xf32> to vector<16x32xf32>
    %245 = arith.addf %241, %244 : vector<16x32xf32>
    %cst_191 = arith.constant 0.000000e+00 : f32
    %246 = vector.broadcast %cst_191 : f32 to vector<16x32xf32>
    %247 = arith.cmpf oge, %245, %246 : vector<16x32xf32>
    %cst_192 = arith.constant 0.00999999977 : f32
    %248 = vector.broadcast %cst_192 : f32 to vector<16x32xf32>
    %249 = arith.mulf %248, %245 : vector<16x32xf32>
    %250 = arith.select %247, %245, %249 : vector<16x32xi1>, vector<16x32xf32>
    %c0_193 = arith.constant 0 : index
    %c0_194 = arith.constant 0 : index
    %251 = vector.load %arg6[%c0_193, %c0_194] : memref<1x128xf32, #tpu.memory_space<vmem>>, vector<1x128xf32>
    %252 = vector.extract_strided_slice %250 {offsets = [0, 0], sizes = [1, 32], strides = [1, 1]} : vector<16x32xf32> to vector<1x32xf32>
    %253 = arith.truncf %252 : vector<1x32xf32> to vector<1x32xbf16>
    %c0_195 = arith.constant 0 : index
    %c0_196 = arith.constant 0 : index
    %c0_197 = arith.constant 0 : index
    %254 = vector.load %arg5[%c0_195, %c0_196, %c0_197] : memref<16x32x128xbf16, #tpu.memory_space<vmem>>, vector<1x32x128xbf16>
    %255 = vector.shape_cast %254 : vector<1x32x128xbf16> to vector<32x128xbf16>
    %cst_198 = arith.constant dense<0.000000e+00> : vector<1x128xf32>
    %256 = tpu.matmul %253, %255, %cst_198 {dimension_numbers = #tpu.dot_dimension_numbers<[1], [0], [0], [1], [0, 0, 1, 1], [], []>} : vector<1x32xbf16>, vector<32x128xbf16>, vector<1x128xf32> -> vector<1x128xf32>
    %257 = arith.addf %251, %256 : vector<1x128xf32>
    %258 = vector.extract_strided_slice %250 {offsets = [1, 0], sizes = [1, 32], strides = [1, 1]} : vector<16x32xf32> to vector<1x32xf32>
    %259 = arith.truncf %258 : vector<1x32xf32> to vector<1x32xbf16>
    %c1_199 = arith.constant 1 : index
    %c0_200 = arith.constant 0 : index
    %c0_201 = arith.constant 0 : index
    %260 = vector.load %arg5[%c1_199, %c0_200, %c0_201] : memref<16x32x128xbf16, #tpu.memory_space<vmem>>, vector<1x32x128xbf16>
    %261 = vector.shape_cast %260 : vector<1x32x128xbf16> to vector<32x128xbf16>
    %cst_202 = arith.constant dense<0.000000e+00> : vector<1x128xf32>
    %262 = tpu.matmul %259, %261, %cst_202 {dimension_numbers = #tpu.dot_dimension_numbers<[1], [0], [0], [1], [0, 0, 1, 1], [], []>} : vector<1x32xbf16>, vector<32x128xbf16>, vector<1x128xf32> -> vector<1x128xf32>
    %263 = arith.addf %257, %262 : vector<1x128xf32>
    %264 = vector.extract_strided_slice %250 {offsets = [2, 0], sizes = [1, 32], strides = [1, 1]} : vector<16x32xf32> to vector<1x32xf32>
    %265 = arith.truncf %264 : vector<1x32xf32> to vector<1x32xbf16>
    %c2_203 = arith.constant 2 : index
    %c0_204 = arith.constant 0 : index
    %c0_205 = arith.constant 0 : index
    %266 = vector.load %arg5[%c2_203, %c0_204, %c0_205] : memref<16x32x128xbf16, #tpu.memory_space<vmem>>, vector<1x32x128xbf16>
    %267 = vector.shape_cast %266 : vector<1x32x128xbf16> to vector<32x128xbf16>
    %cst_206 = arith.constant dense<0.000000e+00> : vector<1x128xf32>
    %268 = tpu.matmul %265, %267, %cst_206 {dimension_numbers = #tpu.dot_dimension_numbers<[1], [0], [0], [1], [0, 0, 1, 1], [], []>} : vector<1x32xbf16>, vector<32x128xbf16>, vector<1x128xf32> -> vector<1x128xf32>
    %269 = arith.addf %263, %268 : vector<1x128xf32>
    %270 = vector.extract_strided_slice %250 {offsets = [3, 0], sizes = [1, 32], strides = [1, 1]} : vector<16x32xf32> to vector<1x32xf32>
    %271 = arith.truncf %270 : vector<1x32xf32> to vector<1x32xbf16>
    %c3_207 = arith.constant 3 : index
    %c0_208 = arith.constant 0 : index
    %c0_209 = arith.constant 0 : index
    %272 = vector.load %arg5[%c3_207, %c0_208, %c0_209] : memref<16x32x128xbf16, #tpu.memory_space<vmem>>, vector<1x32x128xbf16>
    %273 = vector.shape_cast %272 : vector<1x32x128xbf16> to vector<32x128xbf16>
    %cst_210 = arith.constant dense<0.000000e+00> : vector<1x128xf32>
    %274 = tpu.matmul %271, %273, %cst_210 {dimension_numbers = #tpu.dot_dimension_numbers<[1], [0], [0], [1], [0, 0, 1, 1], [], []>} : vector<1x32xbf16>, vector<32x128xbf16>, vector<1x128xf32> -> vector<1x128xf32>
    %275 = arith.addf %269, %274 : vector<1x128xf32>
    %276 = vector.extract_strided_slice %250 {offsets = [4, 0], sizes = [1, 32], strides = [1, 1]} : vector<16x32xf32> to vector<1x32xf32>
    %277 = arith.truncf %276 : vector<1x32xf32> to vector<1x32xbf16>
    %c4_211 = arith.constant 4 : index
    %c0_212 = arith.constant 0 : index
    %c0_213 = arith.constant 0 : index
    %278 = vector.load %arg5[%c4_211, %c0_212, %c0_213] : memref<16x32x128xbf16, #tpu.memory_space<vmem>>, vector<1x32x128xbf16>
    %279 = vector.shape_cast %278 : vector<1x32x128xbf16> to vector<32x128xbf16>
    %cst_214 = arith.constant dense<0.000000e+00> : vector<1x128xf32>
    %280 = tpu.matmul %277, %279, %cst_214 {dimension_numbers = #tpu.dot_dimension_numbers<[1], [0], [0], [1], [0, 0, 1, 1], [], []>} : vector<1x32xbf16>, vector<32x128xbf16>, vector<1x128xf32> -> vector<1x128xf32>
    %281 = arith.addf %275, %280 : vector<1x128xf32>
    %282 = vector.extract_strided_slice %250 {offsets = [5, 0], sizes = [1, 32], strides = [1, 1]} : vector<16x32xf32> to vector<1x32xf32>
    %283 = arith.truncf %282 : vector<1x32xf32> to vector<1x32xbf16>
    %c5_215 = arith.constant 5 : index
    %c0_216 = arith.constant 0 : index
    %c0_217 = arith.constant 0 : index
    %284 = vector.load %arg5[%c5_215, %c0_216, %c0_217] : memref<16x32x128xbf16, #tpu.memory_space<vmem>>, vector<1x32x128xbf16>
    %285 = vector.shape_cast %284 : vector<1x32x128xbf16> to vector<32x128xbf16>
    %cst_218 = arith.constant dense<0.000000e+00> : vector<1x128xf32>
    %286 = tpu.matmul %283, %285, %cst_218 {dimension_numbers = #tpu.dot_dimension_numbers<[1], [0], [0], [1], [0, 0, 1, 1], [], []>} : vector<1x32xbf16>, vector<32x128xbf16>, vector<1x128xf32> -> vector<1x128xf32>
    %287 = arith.addf %281, %286 : vector<1x128xf32>
    %288 = vector.extract_strided_slice %250 {offsets = [6, 0], sizes = [1, 32], strides = [1, 1]} : vector<16x32xf32> to vector<1x32xf32>
    %289 = arith.truncf %288 : vector<1x32xf32> to vector<1x32xbf16>
    %c6_219 = arith.constant 6 : index
    %c0_220 = arith.constant 0 : index
    %c0_221 = arith.constant 0 : index
    %290 = vector.load %arg5[%c6_219, %c0_220, %c0_221] : memref<16x32x128xbf16, #tpu.memory_space<vmem>>, vector<1x32x128xbf16>
    %291 = vector.shape_cast %290 : vector<1x32x128xbf16> to vector<32x128xbf16>
    %cst_222 = arith.constant dense<0.000000e+00> : vector<1x128xf32>
    %292 = tpu.matmul %289, %291, %cst_222 {dimension_numbers = #tpu.dot_dimension_numbers<[1], [0], [0], [1], [0, 0, 1, 1], [], []>} : vector<1x32xbf16>, vector<32x128xbf16>, vector<1x128xf32> -> vector<1x128xf32>
    %293 = arith.addf %287, %292 : vector<1x128xf32>
    %294 = vector.extract_strided_slice %250 {offsets = [7, 0], sizes = [1, 32], strides = [1, 1]} : vector<16x32xf32> to vector<1x32xf32>
    %295 = arith.truncf %294 : vector<1x32xf32> to vector<1x32xbf16>
    %c7_223 = arith.constant 7 : index
    %c0_224 = arith.constant 0 : index
    %c0_225 = arith.constant 0 : index
    %296 = vector.load %arg5[%c7_223, %c0_224, %c0_225] : memref<16x32x128xbf16, #tpu.memory_space<vmem>>, vector<1x32x128xbf16>
    %297 = vector.shape_cast %296 : vector<1x32x128xbf16> to vector<32x128xbf16>
    %cst_226 = arith.constant dense<0.000000e+00> : vector<1x128xf32>
    %298 = tpu.matmul %295, %297, %cst_226 {dimension_numbers = #tpu.dot_dimension_numbers<[1], [0], [0], [1], [0, 0, 1, 1], [], []>} : vector<1x32xbf16>, vector<32x128xbf16>, vector<1x128xf32> -> vector<1x128xf32>
    %299 = arith.addf %293, %298 : vector<1x128xf32>
    %300 = vector.extract_strided_slice %250 {offsets = [8, 0], sizes = [1, 32], strides = [1, 1]} : vector<16x32xf32> to vector<1x32xf32>
    %301 = arith.truncf %300 : vector<1x32xf32> to vector<1x32xbf16>
    %c8_227 = arith.constant 8 : index
    %c0_228 = arith.constant 0 : index
    %c0_229 = arith.constant 0 : index
    %302 = vector.load %arg5[%c8_227, %c0_228, %c0_229] : memref<16x32x128xbf16, #tpu.memory_space<vmem>>, vector<1x32x128xbf16>
    %303 = vector.shape_cast %302 : vector<1x32x128xbf16> to vector<32x128xbf16>
    %cst_230 = arith.constant dense<0.000000e+00> : vector<1x128xf32>
    %304 = tpu.matmul %301, %303, %cst_230 {dimension_numbers = #tpu.dot_dimension_numbers<[1], [0], [0], [1], [0, 0, 1, 1], [], []>} : vector<1x32xbf16>, vector<32x128xbf16>, vector<1x128xf32> -> vector<1x128xf32>
    %305 = arith.addf %299, %304 : vector<1x128xf32>
    %306 = vector.extract_strided_slice %250 {offsets = [9, 0], sizes = [1, 32], strides = [1, 1]} : vector<16x32xf32> to vector<1x32xf32>
    %307 = arith.truncf %306 : vector<1x32xf32> to vector<1x32xbf16>
    %c9_231 = arith.constant 9 : index
    %c0_232 = arith.constant 0 : index
    %c0_233 = arith.constant 0 : index
    %308 = vector.load %arg5[%c9_231, %c0_232, %c0_233] : memref<16x32x128xbf16, #tpu.memory_space<vmem>>, vector<1x32x128xbf16>
    %309 = vector.shape_cast %308 : vector<1x32x128xbf16> to vector<32x128xbf16>
    %cst_234 = arith.constant dense<0.000000e+00> : vector<1x128xf32>
    %310 = tpu.matmul %307, %309, %cst_234 {dimension_numbers = #tpu.dot_dimension_numbers<[1], [0], [0], [1], [0, 0, 1, 1], [], []>} : vector<1x32xbf16>, vector<32x128xbf16>, vector<1x128xf32> -> vector<1x128xf32>
    %311 = arith.addf %305, %310 : vector<1x128xf32>
    %312 = vector.extract_strided_slice %250 {offsets = [10, 0], sizes = [1, 32], strides = [1, 1]} : vector<16x32xf32> to vector<1x32xf32>
    %313 = arith.truncf %312 : vector<1x32xf32> to vector<1x32xbf16>
    %c10_235 = arith.constant 10 : index
    %c0_236 = arith.constant 0 : index
    %c0_237 = arith.constant 0 : index
    %314 = vector.load %arg5[%c10_235, %c0_236, %c0_237] : memref<16x32x128xbf16, #tpu.memory_space<vmem>>, vector<1x32x128xbf16>
    %315 = vector.shape_cast %314 : vector<1x32x128xbf16> to vector<32x128xbf16>
    %cst_238 = arith.constant dense<0.000000e+00> : vector<1x128xf32>
    %316 = tpu.matmul %313, %315, %cst_238 {dimension_numbers = #tpu.dot_dimension_numbers<[1], [0], [0], [1], [0, 0, 1, 1], [], []>} : vector<1x32xbf16>, vector<32x128xbf16>, vector<1x128xf32> -> vector<1x128xf32>
    %317 = arith.addf %311, %316 : vector<1x128xf32>
    %318 = vector.extract_strided_slice %250 {offsets = [11, 0], sizes = [1, 32], strides = [1, 1]} : vector<16x32xf32> to vector<1x32xf32>
    %319 = arith.truncf %318 : vector<1x32xf32> to vector<1x32xbf16>
    %c11_239 = arith.constant 11 : index
    %c0_240 = arith.constant 0 : index
    %c0_241 = arith.constant 0 : index
    %320 = vector.load %arg5[%c11_239, %c0_240, %c0_241] : memref<16x32x128xbf16, #tpu.memory_space<vmem>>, vector<1x32x128xbf16>
    %321 = vector.shape_cast %320 : vector<1x32x128xbf16> to vector<32x128xbf16>
    %cst_242 = arith.constant dense<0.000000e+00> : vector<1x128xf32>
    %322 = tpu.matmul %319, %321, %cst_242 {dimension_numbers = #tpu.dot_dimension_numbers<[1], [0], [0], [1], [0, 0, 1, 1], [], []>} : vector<1x32xbf16>, vector<32x128xbf16>, vector<1x128xf32> -> vector<1x128xf32>
    %323 = arith.addf %317, %322 : vector<1x128xf32>
    %324 = vector.extract_strided_slice %250 {offsets = [12, 0], sizes = [1, 32], strides = [1, 1]} : vector<16x32xf32> to vector<1x32xf32>
    %325 = arith.truncf %324 : vector<1x32xf32> to vector<1x32xbf16>
    %c12_243 = arith.constant 12 : index
    %c0_244 = arith.constant 0 : index
    %c0_245 = arith.constant 0 : index
    %326 = vector.load %arg5[%c12_243, %c0_244, %c0_245] : memref<16x32x128xbf16, #tpu.memory_space<vmem>>, vector<1x32x128xbf16>
    %327 = vector.shape_cast %326 : vector<1x32x128xbf16> to vector<32x128xbf16>
    %cst_246 = arith.constant dense<0.000000e+00> : vector<1x128xf32>
    %328 = tpu.matmul %325, %327, %cst_246 {dimension_numbers = #tpu.dot_dimension_numbers<[1], [0], [0], [1], [0, 0, 1, 1], [], []>} : vector<1x32xbf16>, vector<32x128xbf16>, vector<1x128xf32> -> vector<1x128xf32>
    %329 = arith.addf %323, %328 : vector<1x128xf32>
    %330 = vector.extract_strided_slice %250 {offsets = [13, 0], sizes = [1, 32], strides = [1, 1]} : vector<16x32xf32> to vector<1x32xf32>
    %331 = arith.truncf %330 : vector<1x32xf32> to vector<1x32xbf16>
    %c13_247 = arith.constant 13 : index
    %c0_248 = arith.constant 0 : index
    %c0_249 = arith.constant 0 : index
    %332 = vector.load %arg5[%c13_247, %c0_248, %c0_249] : memref<16x32x128xbf16, #tpu.memory_space<vmem>>, vector<1x32x128xbf16>
    %333 = vector.shape_cast %332 : vector<1x32x128xbf16> to vector<32x128xbf16>
    %cst_250 = arith.constant dense<0.000000e+00> : vector<1x128xf32>
    %334 = tpu.matmul %331, %333, %cst_250 {dimension_numbers = #tpu.dot_dimension_numbers<[1], [0], [0], [1], [0, 0, 1, 1], [], []>} : vector<1x32xbf16>, vector<32x128xbf16>, vector<1x128xf32> -> vector<1x128xf32>
    %335 = arith.addf %329, %334 : vector<1x128xf32>
    %336 = vector.extract_strided_slice %250 {offsets = [14, 0], sizes = [1, 32], strides = [1, 1]} : vector<16x32xf32> to vector<1x32xf32>
    %337 = arith.truncf %336 : vector<1x32xf32> to vector<1x32xbf16>
    %c14_251 = arith.constant 14 : index
    %c0_252 = arith.constant 0 : index
    %c0_253 = arith.constant 0 : index
    %338 = vector.load %arg5[%c14_251, %c0_252, %c0_253] : memref<16x32x128xbf16, #tpu.memory_space<vmem>>, vector<1x32x128xbf16>
    %339 = vector.shape_cast %338 : vector<1x32x128xbf16> to vector<32x128xbf16>
    %cst_254 = arith.constant dense<0.000000e+00> : vector<1x128xf32>
    %340 = tpu.matmul %337, %339, %cst_254 {dimension_numbers = #tpu.dot_dimension_numbers<[1], [0], [0], [1], [0, 0, 1, 1], [], []>} : vector<1x32xbf16>, vector<32x128xbf16>, vector<1x128xf32> -> vector<1x128xf32>
    %341 = arith.addf %335, %340 : vector<1x128xf32>
    %342 = vector.extract_strided_slice %250 {offsets = [15, 0], sizes = [1, 32], strides = [1, 1]} : vector<16x32xf32> to vector<1x32xf32>
    %343 = arith.truncf %342 : vector<1x32xf32> to vector<1x32xbf16>
    %c15 = arith.constant 15 : index
    %c0_255 = arith.constant 0 : index
    %c0_256 = arith.constant 0 : index
    %344 = vector.load %arg5[%c15, %c0_255, %c0_256] : memref<16x32x128xbf16, #tpu.memory_space<vmem>>, vector<1x32x128xbf16>
    %345 = vector.shape_cast %344 : vector<1x32x128xbf16> to vector<32x128xbf16>
    %cst_257 = arith.constant dense<0.000000e+00> : vector<1x128xf32>
    %346 = tpu.matmul %343, %345, %cst_257 {dimension_numbers = #tpu.dot_dimension_numbers<[1], [0], [0], [1], [0, 0, 1, 1], [], []>} : vector<1x32xbf16>, vector<32x128xbf16>, vector<1x128xf32> -> vector<1x128xf32>
    %347 = arith.addf %341, %346 : vector<1x128xf32>
    %cst_258 = arith.constant 0.000000e+00 : f32
    %348 = vector.broadcast %cst_258 : f32 to vector<1x128xf32>
    %349 = arith.cmpf oge, %347, %348 : vector<1x128xf32>
    %cst_259 = arith.constant 0.00999999977 : f32
    %350 = vector.broadcast %cst_259 : f32 to vector<1x128xf32>
    %351 = arith.mulf %350, %347 : vector<1x128xf32>
    %352 = arith.select %349, %347, %351 : vector<1x128xi1>, vector<1x128xf32>
    %353 = arith.truncf %352 : vector<1x128xf32> to vector<1x128xbf16>
    %c0_260 = arith.constant 0 : index
    %c0_261 = arith.constant 0 : index
    %354 = vector.load %arg7[%c0_260, %c0_261] : memref<128x4xbf16, #tpu.memory_space<vmem>>, vector<128x4xbf16>
    %cst_262 = arith.constant dense<0.000000e+00> : vector<1x4xf32>
    %355 = tpu.matmul %353, %354, %cst_262 {dimension_numbers = #tpu.dot_dimension_numbers<[1], [0], [0], [1], [0, 0, 1, 1], [], []>} : vector<1x128xbf16>, vector<128x4xbf16>, vector<1x4xf32> -> vector<1x4xf32>
    %c0_263 = arith.constant 0 : index
    %c0_264 = arith.constant 0 : index
    %356 = vector.load %arg8[%c0_263, %c0_264] : memref<1x4xf32, #tpu.memory_space<vmem>>, vector<1x4xf32>
    %357 = arith.addf %355, %356 : vector<1x4xf32>
    %c0_265 = arith.constant 0 : index
    %c0_266 = arith.constant 0 : index
    %c0_267 = arith.constant 0 : index
    %358 = vector.load %arg9[%c0_265, %c0_266, %c0_267] : memref<1x1x4xf32, #tpu.memory_space<vmem>>, vector<1x1x4xf32>
    %359 = vector.shape_cast %358 : vector<1x1x4xf32> to vector<1x4xf32>
    %360 = vector.shape_cast %357 : vector<1x4xf32> to vector<1x1x4xf32>
    tpu.vector_store %arg9[%c0_265, %c0_266, %c0_267], %360 {strides = array<i32>} : memref<1x1x4xf32, #tpu.memory_space<vmem>>, vector<1x1x4xf32>,
    return
  }
  func.func @transform_0(%arg0: i32) -> (i32, i32, i32) {
    %c0_i32 = arith.constant 0 : i32
    %c0_i32_0 = arith.constant 0 : i32
    %c0_i32_1 = arith.constant 0 : i32
    return %arg0, %c0_i32, %c0_i32_0 : i32, i32, i32
  }
  func.func @transform_1(%arg0: i32) -> (i32, i32, i32) {
    %c0_i32 = arith.constant 0 : i32
    %c0_i32_0 = arith.constant 0 : i32
    %c0_i32_1 = arith.constant 0 : i32
    %c0_i32_2 = arith.constant 0 : i32
    return %c0_i32, %c0_i32_0, %c0_i32_1 : i32, i32, i32
  }
  func.func @transform_2(%arg0: i32) -> (i32, i32, i32) {
    %c0_i32 = arith.constant 0 : i32
    %c0_i32_0 = arith.constant 0 : i32
    %c0_i32_1 = arith.constant 0 : i32
    %c0_i32_2 = arith.constant 0 : i32
    return %c0_i32, %c0_i32_0, %c0_i32_1 : i32, i32, i32
  }
  func.func @transform_3(%arg0: i32) -> (i32, i32, i32) {
    %c0_i32 = arith.constant 0 : i32
    %c0_i32_0 = arith.constant 0 : i32
    %c0_i32_1 = arith.constant 0 : i32
    %c0_i32_2 = arith.constant 0 : i32
    return %c0_i32, %c0_i32_0, %c0_i32_1 : i32, i32, i32
  }
  func.func @transform_4(%arg0: i32) -> (i32, i32, i32) {
    %c0_i32 = arith.constant 0 : i32
    %c0_i32_0 = arith.constant 0 : i32
    %c0_i32_1 = arith.constant 0 : i32
    %c0_i32_2 = arith.constant 0 : i32
    return %c0_i32, %c0_i32_0, %c0_i32_1 : i32, i32, i32
  }
  func.func @transform_5(%arg0: i32) -> (i32, i32) {
    %c0_i32 = arith.constant 0 : i32
    %c0_i32_0 = arith.constant 0 : i32
    %c0_i32_1 = arith.constant 0 : i32
    return %c0_i32, %c0_i32_0 : i32, i32
  }
  func.func @transform_6(%arg0: i32) -> (i32, i32) {
    %c0_i32 = arith.constant 0 : i32
    %c0_i32_0 = arith.constant 0 : i32
    %c0_i32_1 = arith.constant 0 : i32
    return %c0_i32, %c0_i32_0 : i32, i32
  }
  func.func @transform_7(%arg0: i32) -> (i32, i32) {
    %c0_i32 = arith.constant 0 : i32
    %c0_i32_0 = arith.constant 0 : i32
    %c0_i32_1 = arith.constant 0 : i32
    return %c0_i32, %c0_i32_0 : i32, i32
  }
  func.func @transform_8(%arg0: i32) -> (i32, i32, i32) {
    %c0_i32 = arith.constant 0 : i32
    %c0_i32_0 = arith.constant 0 : i32
    %c0_i32_1 = arith.constant 0 : i32
    return %arg0, %c0_i32, %c0_i32_0 : i32, i32, i32
  }
}

</mosaic_0001>

<llo_original>
// kernel: cnn_simple2_forward.1
$region0: #{cnn_simple2_forward.1}
  #allocation0 [shape = 'u32[]', space=smem, size = 0x4, offset = 0x4, fixed_abs, tag = 'smem constant byte address 0x4 - core index']
  #allocation1 [shape = 'u32[144,128]{1,0:T(1,128)}', space=vmem, size = 0x12000, scoped, tag = 'internal scratch']
  #allocation2 [shape = 'f32[273,32]{1,0:T(8,128)}', space=vmem, size = 0x23000, scoped, tag = 'scratch operand']
  #allocation3 [shape = 'f32[137,32]{1,0:T(8,128)}', space=vmem, size = 0x12000, scoped, tag = 'scratch operand']
  #allocation4 [shape = 'f32[69,32]{1,0:T(8,128)}', space=vmem, size = 0x9000, scoped, tag = 'scratch operand']
  #allocation5 [shape = 'f32[35,32]{1,0:T(8,128)}', space=vmem, size = 0x5000, scoped, tag = 'scratch operand']
  %s0 = inlined_call_operand.vmem [shape: f32[2,546,32], index: 0, kind: input, shape index: {}]
  %s1 = inlined_call_operand.vmem [shape: bf16[15,32,32], index: 1, kind: input, shape index: {}]
  %s2 = inlined_call_operand.vmem [shape: f32[5,1,32], index: 2, kind: input, shape index: {}]
  %s3 = inlined_call_operand.vmem [shape: f32[5,1,32], index: 3, kind: input, shape index: {}]
  %s4 = inlined_call_operand.vmem [shape: bf16[16,32,128], index: 4, kind: input, shape index: {}]
  %s5 = inlined_call_operand.vmem [shape: f32[1,128], index: 5, kind: input, shape index: {}]
  %s6 = inlined_call_operand.vmem [shape: bf16[128,4], index: 6, kind: input, shape index: {}]
  %s7 = inlined_call_operand.vmem [shape: f32[1,4], index: 7, kind: input, shape index: {}]
  %s8 = inlined_call_operand.hbm [shape: f32[2,1,4], index: 8, kind: output, shape index: {}]
  %s9 = sld [smem:[#allocation0]]
  $region65: #{cnn_simple2_forward.1} parent=0
    _
  %s11 = ssub.s32 1, %s9
  %s12 = scalar_select 0, %s11, %s9
  $region1: #{cnn_simple2_forward.1} parent=0
    #allocation6 [shape = 'u8[1024]{0}', space=vmem, size = 0x400, scoped, tag = 'output window, operand 0']
    #allocation7 [shape = 's32[2]{0}', space=sflag, size = 0x8, scoped, tag = 'scoped memory for cnn_simple2_forward.1']
    %13 = vsyncpa [#allocation7], 0
    %s14 = scalar_lea.sflag [#allocation7], 1
    %15 = vsyncpa %s14, 0
    loop: start=0, step=1, limit=4
    $region2: #{cnn_simple2_forward.1} parent=1 // loop_pre_header
      _
    $region3: #{cnn_simple2_forward.1} parent=1 // loop_header
      %s17 = sphi 0, %s21
      %p18 = scmp.ge.s32.totalorder %s17, 4
      %s27 = sphi 0, %s29
      %s30 = sphi 0, %s27
      %s31 = sphi 0, %s30
      %s47 = sphi 0, %s31
      %s51 = sphi 0, %s51
      %s53 = sphi 0, %s51
      %s54 = sphi 0, %s53
      %s68 = sphi 0, %s54
      %s72 = sphi 0, %s72
      %s74 = sphi 0, %s72
      %s75 = sphi 0, %s74
      %s89 = sphi 0, %s75
      %s93 = sphi 0, %s93
      %s95 = sphi 0, %s93
      %s96 = sphi 0, %s95
      %s110 = sphi 0, %s96
      %s114 = sphi 0, %s114
      %s116 = sphi 0, %s114
      %s117 = sphi 0, %s116
      %s131 = sphi 0, %s117
      %s135 = sphi 0, %s135
      %s137 = sphi 0, %s135
      %s138 = sphi 0, %s137
      %s152 = sphi 0, %s138
      %s156 = sphi 0, %s156
      %s158 = sphi 0, %s156
      %s159 = sphi 0, %s158
      %s173 = sphi 0, %s159
      %s177 = sphi 0, %s177
      %s179 = sphi 0, %s177
      %s180 = sphi 0, %s179
      %s194 = sphi 0, %s180
      %s200 = sphi 0, %s202
      %s203 = sphi 0, %s200
      %s204 = sphi 0, %s203
      %s220 = sphi 0, %s204
    $region4: #{cnn_simple2_forward.1} parent=1 // loop_header_branch
      %20 = sbr.rel (%p18) target = $region8
    $region5: #{cnn_simple2_forward.1} parent=1 // loop_body
      %s22 = ssub.s32 %s17, 1
      %s23 = ssub.s32 %s17, 2
      %s24 = sadd.s32 %s17, 1
      %s25 = ssub.s32 %s17, %s24
      %p26 = scmp.eq.s32.totalorder %s25, 0
      %s28 = sadd.s32 %s27, 1
      %s29 = scalar_select %p26, %s27, %s28
      %p32 = pneg %p26
      %p33 = scmp.eq.s32.totalorder %s17, 1
      %p34 = por %p32, %p33
      %p35 = scmp.ne.s32.totalorder %s27, %s30
      %p36 = scmp.eq.s32.totalorder %s17, 0
      %p37 = por %p35, %p36
      %p38 = scmp.ne.s32.totalorder %s27, %s30
      %p39 = scmp.eq.s32.totalorder %s22, 1
      %p40 = por %p38, %p39
      %p41 = scmp.ne.s32.totalorder %s30, %s31
      %p42 = scmp.eq.s32.totalorder %s22, 0
      %p43 = por %p41, %p42
      %p44 = scmp.ne.s32.totalorder %s30, %s31
      %p45 = scmp.eq.s32.totalorder %s23, 1
      %p46 = por %p44, %p45
      %p48 = scmp.ne.s32.totalorder %s31, %s47
      %p49 = scmp.eq.s32.totalorder %s23, 0
      %p50 = por %p48, %p49
      %s52 = sadd.s32 %s51, 1
      %p55 = scmp.eq.s32.totalorder %s17, 1
      %p56 = scmp.ne.s32.totalorder %s51, %s53
      %p57 = scmp.eq.s32.totalorder %s17, 0
      %p58 = por %p56, %p57
      %p59 = scmp.ne.s32.totalorder %s51, %s53
      %p60 = scmp.eq.s32.totalorder %s22, 1
      %p61 = por %p59, %p60
      %p62 = scmp.ne.s32.totalorder %s53, %s54
      %p63 = scmp.eq.s32.totalorder %s22, 0
      %p64 = por %p62, %p63
      %p65 = scmp.ne.s32.totalorder %s53, %s54
      %p66 = scmp.eq.s32.totalorder %s23, 1
      %p67 = por %p65, %p66
      %p69 = scmp.ne.s32.totalorder %s54, %s68
      %p70 = scmp.eq.s32.totalorder %s23, 0
      %p71 = por %p69, %p70
      %s73 = sadd.s32 %s72, 1
      %p76 = scmp.eq.s32.totalorder %s17, 1
      %p77 = scmp.ne.s32.totalorder %s72, %s74
      %p78 = scmp.eq.s32.totalorder %s17, 0
      %p79 = por %p77, %p78
      %p80 = scmp.ne.s32.totalorder %s72, %s74
      %p81 = scmp.eq.s32.totalorder %s22, 1
      %p82 = por %p80, %p81
      %p83 = scmp.ne.s32.totalorder %s74, %s75
      %p84 = scmp.eq.s32.totalorder %s22, 0
      %p85 = por %p83, %p84
      %p86 = scmp.ne.s32.totalorder %s74, %s75
      %p87 = scmp.eq.s32.totalorder %s23, 1
      %p88 = por %p86, %p87
      %p90 = scmp.ne.s32.totalorder %s75, %s89
      %p91 = scmp.eq.s32.totalorder %s23, 0
      %p92 = por %p90, %p91
      %s94 = sadd.s32 %s93, 1
      %p97 = scmp.eq.s32.totalorder %s17, 1
      %p98 = scmp.ne.s32.totalorder %s93, %s95
      %p99 = scmp.eq.s32.totalorder %s17, 0
      %p100 = por %p98, %p99
      %p101 = scmp.ne.s32.totalorder %s93, %s95
      %p102 = scmp.eq.s32.totalorder %s22, 1
      %p103 = por %p101, %p102
      %p104 = scmp.ne.s32.totalorder %s95, %s96
      %p105 = scmp.eq.s32.totalorder %s22, 0
      %p106 = por %p104, %p105
      %p107 = scmp.ne.s32.totalorder %s95, %s96
      %p108 = scmp.eq.s32.totalorder %s23, 1
      %p109 = por %p107, %p108
      %p111 = scmp.ne.s32.totalorder %s96, %s110
      %p112 = scmp.eq.s32.totalorder %s23, 0
      %p113 = por %p111, %p112
      %s115 = sadd.s32 %s114, 1
      %p118 = scmp.eq.s32.totalorder %s17, 1
      %p119 = scmp.ne.s32.totalorder %s114, %s116
      %p120 = scmp.eq.s32.totalorder %s17, 0
      %p121 = por %p119, %p120
      %p122 = scmp.ne.s32.totalorder %s114, %s116
      %p123 = scmp.eq.s32.totalorder %s22, 1
      %p124 = por %p122, %p123
      %p125 = scmp.ne.s32.totalorder %s116, %s117
      %p126 = scmp.eq.s32.totalorder %s22, 0
      %p127 = por %p125, %p126
      %p128 = scmp.ne.s32.totalorder %s116, %s117
      %p129 = scmp.eq.s32.totalorder %s23, 1
      %p130 = por %p128, %p129
      %p132 = scmp.ne.s32.totalorder %s117, %s131
      %p133 = scmp.eq.s32.totalorder %s23, 0
      %p134 = por %p132, %p133
      %s136 = sadd.s32 %s135, 1
      %p139 = scmp.eq.s32.totalorder %s17, 1
      %p140 = scmp.ne.s32.totalorder %s135, %s137
      %p141 = scmp.eq.s32.totalorder %s17, 0
      %p142 = por %p140, %p141
      %p143 = scmp.ne.s32.totalorder %s135, %s137
      %p144 = scmp.eq.s32.totalorder %s22, 1
      %p145 = por %p143, %p144
      %p146 = scmp.ne.s32.totalorder %s137, %s138
      %p147 = scmp.eq.s32.totalorder %s22, 0
      %p148 = por %p146, %p147
      %p149 = scmp.ne.s32.totalorder %s137, %s138
      %p150 = scmp.eq.s32.totalorder %s23, 1
      %p151 = por %p149, %p150
      %p153 = scmp.ne.s32.totalorder %s138, %s152
      %p154 = scmp.eq.s32.totalorder %s23, 0
      %p155 = por %p153, %p154
      %s157 = sadd.s32 %s156, 1
      %p160 = scmp.eq.s32.totalorder %s17, 1
      %p161 = scmp.ne.s32.totalorder %s156, %s158
      %p162 = scmp.eq.s32.totalorder %s17, 0
      %p163 = por %p161, %p162
      %p164 = scmp.ne.s32.totalorder %s156, %s158
      %p165 = scmp.eq.s32.totalorder %s22, 1
      %p166 = por %p164, %p165
      %p167 = scmp.ne.s32.totalorder %s158, %s159
      %p168 = scmp.eq.s32.totalorder %s22, 0
      %p169 = por %p167, %p168
      %p170 = scmp.ne.s32.totalorder %s158, %s159
      %p171 = scmp.eq.s32.totalorder %s23, 1
      %p172 = por %p170, %p171
      %p174 = scmp.ne.s32.totalorder %s159, %s173
      %p175 = scmp.eq.s32.totalorder %s23, 0
      %p176 = por %p174, %p175
      %s178 = sadd.s32 %s177, 1
      %p181 = scmp.eq.s32.totalorder %s17, 1
      %p182 = scmp.ne.s32.totalorder %s177, %s179
      %p183 = scmp.eq.s32.totalorder %s17, 0
      %p184 = por %p182, %p183
      %p185 = scmp.ne.s32.totalorder %s177, %s179
      %p186 = scmp.eq.s32.totalorder %s22, 1
      %p187 = por %p185, %p186
      %p188 = scmp.ne.s32.totalorder %s179, %s180
      %p189 = scmp.eq.s32.totalorder %s22, 0
      %p190 = por %p188, %p189
      %p191 = scmp.ne.s32.totalorder %s179, %s180
      %p192 = scmp.eq.s32.totalorder %s23, 1
      %p193 = por %p191, %p192
      %p195 = scmp.ne.s32.totalorder %s180, %s194
      %p196 = scmp.eq.s32.totalorder %s23, 0
      %p197 = por %p195, %p196
      %s198 = ssub.s32 %s17, %s24
      %p199 = scmp.eq.s32.totalorder %s198, 0
      %s201 = sadd.s32 %s200, 1
      %s202 = scalar_select %p199, %s200, %s201
      %p205 = pneg %p199
      %p206 = scmp.eq.s32.totalorder %s17, 1
      %p207 = por %p205, %p206
      %p208 = scmp.ne.s32.totalorder %s200, %s203
      %p209 = scmp.eq.s32.totalorder %s17, 0
      %p210 = por %p208, %p209
      %p211 = scmp.ne.s32.totalorder %s200, %s203
      %p212 = scmp.eq.s32.totalorder %s22, 1
      %p213 = por %p211, %p212
      %p214 = scmp.ne.s32.totalorder %s203, %s204
      %p215 = scmp.eq.s32.totalorder %s22, 0
      %p216 = por %p214, %p215
      %p217 = scmp.ne.s32.totalorder %s203, %s204
      %p218 = scmp.eq.s32.totalorder %s23, 1
      %p219 = por %p217, %p218
      %p221 = scmp.ne.s32.totalorder %s204, %s220
      %p222 = scmp.eq.s32.totalorder %s23, 0
      %p223 = por %p221, %p222
      %p224 = scmp.le.s32.totalorder 1, %s17
      %p225 = scmp.lt.s32.totalorder %s17, 3
      %p226 = pnand %p224, %p225
      %p227 = pneg %p226
      // Predicated region
      $region9: #{cnn_simple2_forward.1} parent=5 // pred_check
        _
      $region10: #{cnn_simple2_forward.1} parent=5 // pred_check_branch
        %229 = sbr.rel (%p226) target = $region12
      $region11: #{cnn_simple2_forward.1} parent=5 // pred_region
        %s230 = ssub.s32 %s17, 1
        // Predicated region
        $region13: #{cnn_simple2_forward.1} parent=11 // pred_check
          %p231 = pneg %p64
        $region14: #{cnn_simple2_forward.1} parent=11 // pred_check_branch
          %233 = sbr.rel (%p231) target = $region16
        $region15: #{cnn_simple2_forward.1} parent=11 // pred_region
          _
        $region16: #{cnn_simple2_forward.1} parent=11 // pred_fallthru
          _
        // Predicated region
        $region17: #{cnn_simple2_forward.1} parent=11 // pred_check
          %p234 = pneg %p85
        $region18: #{cnn_simple2_forward.1} parent=11 // pred_check_branch
          %236 = sbr.rel (%p234) target = $region20
        $region19: #{cnn_simple2_forward.1} parent=11 // pred_region
          _
        $region20: #{cnn_simple2_forward.1} parent=11 // pred_fallthru
          _
        // Predicated region
        $region21: #{cnn_simple2_forward.1} parent=11 // pred_check
          %p237 = pneg %p106
        $region22: #{cnn_simple2_forward.1} parent=11 // pred_check_branch
          %239 = sbr.rel (%p237) target = $region24
        $region23: #{cnn_simple2_forward.1} parent=11 // pred_region
          _
        $region24: #{cnn_simple2_forward.1} parent=11 // pred_fallthru
          _
        // Predicated region
        $region25: #{cnn_simple2_forward.1} parent=11 // pred_check
          %p240 = pneg %p127
        $region26: #{cnn_simple2_forward.1} parent=11 // pred_check_branch
          %242 = sbr.rel (%p240) target = $region28
        $region27: #{cnn_simple2_forward.1} parent=11 // pred_region
          _
        $region28: #{cnn_simple2_forward.1} parent=11 // pred_fallthru
          _
        // Predicated region
        $region29: #{cnn_simple2_forward.1} parent=11 // pred_check
          %p243 = pneg %p148
        $region30: #{cnn_simple2_forward.1} parent=11 // pred_check_branch
          %245 = sbr.rel (%p243) target = $region32
        $region31: #{cnn_simple2_forward.1} parent=11 // pred_region
          _
        $region32: #{cnn_simple2_forward.1} parent=11 // pred_fallthru
          _
        // Predicated region
        $region33: #{cnn_simple2_forward.1} parent=11 // pred_check
          %p246 = pneg %p169
        $region34: #{cnn_simple2_forward.1} parent=11 // pred_check_branch
          %248 = sbr.rel (%p246) target = $region36
        $region35: #{cnn_simple2_forward.1} parent=11 // pred_region
          _
        $region36: #{cnn_simple2_forward.1} parent=11 // pred_fallthru
          _
        // Predicated region
        $region37: #{cnn_simple2_forward.1} parent=11 // pred_check
          %p249 = pneg %p190
        $region38: #{cnn_simple2_forward.1} parent=11 // pred_check_branch
          %251 = sbr.rel (%p249) target = $region40
        $region39: #{cnn_simple2_forward.1} parent=11 // pred_region
          _
        $region40: #{cnn_simple2_forward.1} parent=11 // pred_fallthru
          _
      $region12: #{cnn_simple2_forward.1} parent=5 // pred_fallthru
        _
      %p252 = scmp.lt.s32.totalorder %s17, 2
      // Predicated region
      $region41: #{cnn_simple2_forward.1} parent=5 // pred_check
        %p253 = pneg %p252
      $region42: #{cnn_simple2_forward.1} parent=5 // pred_check_branch
        %255 = sbr.rel (%p253) target = $region44
      $region43: #{cnn_simple2_forward.1} parent=5 // pred_region
        // Predicated region
        $region45: #{cnn_simple2_forward.1} parent=43 // pred_check
          %p256 = pneg %p37
        $region46: #{cnn_simple2_forward.1} parent=43 // pred_check_branch
          %258 = sbr.rel (%p256) target = $region48
        $region47: #{cnn_simple2_forward.1} parent=43 // pred_region
          %p259 = scmp.lt.s32.totalorder %s17, 1
          %s260 = scalar_select %p259, %s17, 1
          %s261 = smul.addr %s260, 69
          %s262 = smul.addr %s261, 8
          %s263 = scalar_lea.vmem %s0, %s262
        $region48: #{cnn_simple2_forward.1} parent=43 // pred_fallthru
          _
      $region44: #{cnn_simple2_forward.1} parent=5 // pred_fallthru
        _
      %p264 = scmp.le.s32.totalorder 1, %s17
      %p265 = scmp.lt.s32.totalorder %s17, 3
      %p266 = pnand %p264, %p265
      %p267 = pneg %p266
      // Predicated region
      $region49: #{cnn_simple2_forward.1} parent=5 // pred_check
        _
      $region50: #{cnn_simple2_forward.1} parent=5 // pred_check_branch
        %269 = sbr.rel (%p266) target = $region52
      $region51: #{cnn_simple2_forward.1} parent=5 // pred_region
        %s270 = ssub.s32 %s17, 1
        %p271 = scmp.lt.s32.totalorder %s22, 1
        %s272 = scalar_select %p271, %s22, 1
        %s273 = smul.addr %s272, 69
        %s274 = smul.addr %s273, 8
        %s275 = scalar_lea.vmem %s0, %s274
        %p276 = pneg %p43
        %p277 = pneg %p40
        %p278 = pneg %p64
        %p279 = pneg %p61
        %p280 = pneg %p85
        %p281 = pneg %p82
        %p282 = pneg %p106
        %p283 = pneg %p103
        %p284 = pneg %p127
        %p285 = pneg %p124
        %p286 = pneg %p148
        %p287 = pneg %p145
        %p288 = pneg %p169
        %p289 = pneg %p166
        %p290 = pneg %p190
        %p291 = pneg %p187
        %p292 = pneg %p216
        %p293 = pneg %p213
        %s294 = sand.u32 %s203, 1
        %s295 = scalar_lea.sflag [#allocation7], %s294
        %s296 = sand.u32 %s203, 1
        %s297 = scalar_lea.vmem [#allocation6], %s296
        %p298 = scmp.lt.s32.totalorder %s22, 1
        %s299 = scalar_select %p298, %s22, 1
        %s300 = smul.addr %s299, 69
        %s301 = smul.addr %s300, 8
        %s302 = scalar_lea.vmem %s0, %s301
        %v304 = vld [vmem:[%s302] ss:$2 sm:$0xff]
        %s305 = scalar_lea.vmem %s302, 16
        %v306 = vld [vmem:[%s305] ss:$2 sm:$0xff]
        %s307 = scalar_lea.vmem %s302, 32
        %v308 = vld [vmem:[%s307] ss:$2 sm:$0xff]
        %s309 = scalar_lea.vmem %s302, 48
        %v310 = vld [vmem:[%s309] ss:$2 sm:$0xff]
        %s311 = scalar_lea.vmem %s302, 64
        %v312 = vld [vmem:[%s311] ss:$2 sm:$0xff]
        %s313 = scalar_lea.vmem %s302, 80
        %v314 = vld [vmem:[%s313] ss:$2 sm:$0xff]
        %s315 = scalar_lea.vmem %s302, 96
        %v316 = vld [vmem:[%s315] ss:$2 sm:$0xff]
        %s317 = scalar_lea.vmem %s302, 112
        %v318 = vld [vmem:[%s317] ss:$2 sm:$0xff]
        %s319 = scalar_lea.vmem %s302, 128
        %v320 = vld [vmem:[%s319] ss:$2 sm:$0xff]
        %s321 = scalar_lea.vmem %s302, 144
        %v322 = vld [vmem:[%s321] ss:$2 sm:$0xff]
        %s323 = scalar_lea.vmem %s302, 160
        %v324 = vld [vmem:[%s323] ss:$2 sm:$0xff]
        %s325 = scalar_lea.vmem %s302, 176
        %v326 = vld [vmem:[%s325] ss:$2 sm:$0xff]
        %s327 = scalar_lea.vmem %s302, 192
        %v328 = vld [vmem:[%s327] ss:$2 sm:$0xff]
        %s329 = scalar_lea.vmem %s302, 208
        %v330 = vld [vmem:[%s329] ss:$2 sm:$0xff]
        %s331 = scalar_lea.vmem %s302, 224
        %v332 = vld [vmem:[%s331] ss:$2 sm:$0xff]
        %s333 = scalar_lea.vmem %s302, 240
        %v334 = vld [vmem:[%s333] ss:$2 sm:$0xff]
        %s335 = scalar_lea.vmem %s302, 256
        %v336 = vld [vmem:[%s335] ss:$2 sm:$0xff]
        %s337 = scalar_lea.vmem %s302, 272
        %v338 = vld [vmem:[%s337] ss:$2 sm:$0xff]
        %s339 = scalar_lea.vmem %s302, 288
        %v340 = vld [vmem:[%s339] ss:$2 sm:$0xff]
        %s341 = scalar_lea.vmem %s302, 304
        %v342 = vld [vmem:[%s341] ss:$2 sm:$0xff]
        %s343 = scalar_lea.vmem %s302, 320
        %v344 = vld [vmem:[%s343] ss:$2 sm:$0xff]
        %s345 = scalar_lea.vmem %s302, 336
        %v346 = vld [vmem:[%s345] ss:$2 sm:$0xff]
        %s347 = scalar_lea.vmem %s302, 352
        %v348 = vld [vmem:[%s347] ss:$2 sm:$0xff]
        %s349 = scalar_lea.vmem %s302, 368
        %v350 = vld [vmem:[%s349] ss:$2 sm:$0xff]
        %s351 = scalar_lea.vmem %s302, 384
        %v352 = vld [vmem:[%s351] ss:$2 sm:$0xff]
        %s353 = scalar_lea.vmem %s302, 400
        %v354 = vld [vmem:[%s353] ss:$2 sm:$0xff]
        %s355 = scalar_lea.vmem %s302, 416
        %v356 = vld [vmem:[%s355] ss:$2 sm:$0xff]
        %s357 = scalar_lea.vmem %s302, 432
        %v358 = vld [vmem:[%s357] ss:$2 sm:$0xff]
        %s359 = scalar_lea.vmem %s302, 448
        %v360 = vld [vmem:[%s359] ss:$2 sm:$0xff]
        %s361 = scalar_lea.vmem %s302, 464
        %v362 = vld [vmem:[%s361] ss:$2 sm:$0xff]
        %s363 = scalar_lea.vmem %s302, 480
        %v364 = vld [vmem:[%s363] ss:$2 sm:$0xff]
        %s365 = scalar_lea.vmem %s302, 496
        %v366 = vld [vmem:[%s365] ss:$2 sm:$0xff]
        %s367 = scalar_lea.vmem %s302, 512
        %v368 = vld [vmem:[%s367] ss:$2 sm:$0xff]
        %s369 = scalar_lea.vmem %s302, 528
        %v370 = vld [vmem:[%s369] ss:$2 sm:$0x7f]
        %v371 = vpack.c.bf16 %v306, %v304
        %v372 = vpack.c.bf16 %v310, %v308
        %v373 = vpack.c.bf16 %v314, %v312
        %v374 = vpack.c.bf16 %v318, %v316
        %v375 = vpack.c.bf16 %v322, %v320
        %v376 = vpack.c.bf16 %v326, %v324
        %v377 = vpack.c.bf16 %v330, %v328
        %v378 = vpack.c.bf16 %v334, %v332
        %v379 = vpack.c.bf16 %v338, %v336
        %v380 = vpack.c.bf16 %v342, %v340
        %v381 = vpack.c.bf16 %v346, %v344
        %v382 = vpack.c.bf16 %v350, %v348
        %v383 = vpack.c.bf16 %v354, %v352
        %v384 = vpack.c.bf16 %v358, %v356
        %v385 = vpack.c.bf16 %v362, %v360
        %v386 = vpack.c.bf16 %v366, %v364
        %v387 = vpack.c.bf16 %v370, %v368
        %s388 = scalar_lea.vmem %s302, 1
        %v389 = vld [vmem:[%s388] ss:$2 sm:$0xff]
        %s390 = scalar_lea.vmem %s302, 17
        %v391 = vld [vmem:[%s390] ss:$2 sm:$0xff]
        %s392 = scalar_lea.vmem %s302, 33
        %v393 = vld [vmem:[%s392] ss:$2 sm:$0xff]
        %s394 = scalar_lea.vmem %s302, 49
        %v395 = vld [vmem:[%s394] ss:$2 sm:$0xff]
        %s396 = scalar_lea.vmem %s302, 65
        %v397 = vld [vmem:[%s396] ss:$2 sm:$0xff]
        %s398 = scalar_lea.vmem %s302, 81
        %v399 = vld [vmem:[%s398] ss:$2 sm:$0xff]
        %s400 = scalar_lea.vmem %s302, 97
        %v401 = vld [vmem:[%s400] ss:$2 sm:$0xff]
        %s402 = scalar_lea.vmem %s302, 113
        %v403 = vld [vmem:[%s402] ss:$2 sm:$0xff]
        %s404 = scalar_lea.vmem %s302, 129
        %v405 = vld [vmem:[%s404] ss:$2 sm:$0xff]
        %s406 = scalar_lea.vmem %s302, 145
        %v407 = vld [vmem:[%s406] ss:$2 sm:$0xff]
        %s408 = scalar_lea.vmem %s302, 161
        %v409 = vld [vmem:[%s408] ss:$2 sm:$0xff]
        %s410 = scalar_lea.vmem %s302, 177
        %v411 = vld [vmem:[%s410] ss:$2 sm:$0xff]
        %s412 = scalar_lea.vmem %s302, 193
        %v413 = vld [vmem:[%s412] ss:$2 sm:$0xff]
        %s414 = scalar_lea.vmem %s302, 209
        %v415 = vld [vmem:[%s414] ss:$2 sm:$0xff]
        %s416 = scalar_lea.vmem %s302, 225
        %v417 = vld [vmem:[%s416] ss:$2 sm:$0xff]
        %s418 = scalar_lea.vmem %s302, 241
        %v419 = vld [vmem:[%s418] ss:$2 sm:$0xff]
        %s420 = scalar_lea.vmem %s302, 257
        %v421 = vld [vmem:[%s420] ss:$2 sm:$0xff]
        %s422 = scalar_lea.vmem %s302, 273
        %v423 = vld [vmem:[%s422] ss:$2 sm:$0xff]
        %s424 = scalar_lea.vmem %s302, 289
        %v425 = vld [vmem:[%s424] ss:$2 sm:$0xff]
        %s426 = scalar_lea.vmem %s302, 305
        %v427 = vld [vmem:[%s426] ss:$2 sm:$0xff]
        %s428 = scalar_lea.vmem %s302, 321
        %v429 = vld [vmem:[%s428] ss:$2 sm:$0xff]
        %s430 = scalar_lea.vmem %s302, 337
        %v431 = vld [vmem:[%s430] ss:$2 sm:$0xff]
        %s432 = scalar_lea.vmem %s302, 353
        %v433 = vld [vmem:[%s432] ss:$2 sm:$0xff]
        %s434 = scalar_lea.vmem %s302, 369
        %v435 = vld [vmem:[%s434] ss:$2 sm:$0xff]
        %s436 = scalar_lea.vmem %s302, 385
        %v437 = vld [vmem:[%s436] ss:$2 sm:$0xff]
        %s438 = scalar_lea.vmem %s302, 401
        %v439 = vld [vmem:[%s438] ss:$2 sm:$0xff]
        %s440 = scalar_lea.vmem %s302, 417
        %v441 = vld [vmem:[%s440] ss:$2 sm:$0xff]
        %s442 = scalar_lea.vmem %s302, 433
        %v443 = vld [vmem:[%s442] ss:$2 sm:$0xff]
        %s444 = scalar_lea.vmem %s302, 449
        %v445 = vld [vmem:[%s444] ss:$2 sm:$0xff]
        %s446 = scalar_lea.vmem %s302, 465
        %v447 = vld [vmem:[%s446] ss:$2 sm:$0xff]
        %s448 = scalar_lea.vmem %s302, 481
        %v449 = vld [vmem:[%s448] ss:$2 sm:$0xff]
        %s450 = scalar_lea.vmem %s302, 497
        %v451 = vld [vmem:[%s450] ss:$2 sm:$0xff]
        %s452 = scalar_lea.vmem %s302, 513
        %v453 = vld [vmem:[%s452] ss:$2 sm:$0xff]
        %s454 = scalar_lea.vmem %s302, 529
        %v455 = vld [vmem:[%s454] ss:$2 sm:$0x7f]
        %v456 = vpack.c.bf16 %v391, %v389
        %v457 = vpack.c.bf16 %v395, %v393
        %v458 = vpack.c.bf16 %v399, %v397
        %v459 = vpack.c.bf16 %v403, %v401
        %v460 = vpack.c.bf16 %v407, %v405
        %v461 = vpack.c.bf16 %v411, %v409
        %v462 = vpack.c.bf16 %v415, %v413
        %v463 = vpack.c.bf16 %v419, %v417
        %v464 = vpack.c.bf16 %v423, %v421
        %v465 = vpack.c.bf16 %v427, %v425
        %v466 = vpack.c.bf16 %v431, %v429
        %v467 = vpack.c.bf16 %v435, %v433
        %v468 = vpack.c.bf16 %v439, %v437
        %v469 = vpack.c.bf16 %v443, %v441
        %v470 = vpack.c.bf16 %v447, %v445
        %v471 = vpack.c.bf16 %v451, %v449
        %v472 = vpack.c.bf16 %v455, %v453
        %s473 = scalar_lea.vmem %s302, 2
        %v474 = vld [vmem:[%s473] ss:$2 sm:$0xff]
        %s475 = scalar_lea.vmem %s302, 18
        %v476 = vld [vmem:[%s475] ss:$2 sm:$0xff]
        %s477 = scalar_lea.vmem %s302, 34
        %v478 = vld [vmem:[%s477] ss:$2 sm:$0xff]
        %s479 = scalar_lea.vmem %s302, 50
        %v480 = vld [vmem:[%s479] ss:$2 sm:$0xff]
        %s481 = scalar_lea.vmem %s302, 66
        %v482 = vld [vmem:[%s481] ss:$2 sm:$0xff]
        %s483 = scalar_lea.vmem %s302, 82
        %v484 = vld [vmem:[%s483] ss:$2 sm:$0xff]
        %s485 = scalar_lea.vmem %s302, 98
        %v486 = vld [vmem:[%s485] ss:$2 sm:$0xff]
        %s487 = scalar_lea.vmem %s302, 114
        %v488 = vld [vmem:[%s487] ss:$2 sm:$0xff]
        %s489 = scalar_lea.vmem %s302, 130
        %v490 = vld [vmem:[%s489] ss:$2 sm:$0xff]
        %s491 = scalar_lea.vmem %s302, 146
        %v492 = vld [vmem:[%s491] ss:$2 sm:$0xff]
        %s493 = scalar_lea.vmem %s302, 162
        %v494 = vld [vmem:[%s493] ss:$2 sm:$0xff]
        %s495 = scalar_lea.vmem %s302, 178
        %v496 = vld [vmem:[%s495] ss:$2 sm:$0xff]
        %s497 = scalar_lea.vmem %s302, 194
        %v498 = vld [vmem:[%s497] ss:$2 sm:$0xff]
        %s499 = scalar_lea.vmem %s302, 210
        %v500 = vld [vmem:[%s499] ss:$2 sm:$0xff]
        %s501 = scalar_lea.vmem %s302, 226
        %v502 = vld [vmem:[%s501] ss:$2 sm:$0xff]
        %s503 = scalar_lea.vmem %s302, 242
        %v504 = vld [vmem:[%s503] ss:$2 sm:$0xff]
        %s505 = scalar_lea.vmem %s302, 258
        %v506 = vld [vmem:[%s505] ss:$2 sm:$0xff]
        %s507 = scalar_lea.vmem %s302, 274
        %v508 = vld [vmem:[%s507] ss:$2 sm:$0xff]
        %s509 = scalar_lea.vmem %s302, 290
        %v510 = vld [vmem:[%s509] ss:$2 sm:$0xff]
        %s511 = scalar_lea.vmem %s302, 306
        %v512 = vld [vmem:[%s511] ss:$2 sm:$0xff]
        %s513 = scalar_lea.vmem %s302, 322
        %v514 = vld [vmem:[%s513] ss:$2 sm:$0xff]
        %s515 = scalar_lea.vmem %s302, 338
        %v516 = vld [vmem:[%s515] ss:$2 sm:$0xff]
        %s517 = scalar_lea.vmem %s302, 354
        %v518 = vld [vmem:[%s517] ss:$2 sm:$0xff]
        %s519 = scalar_lea.vmem %s302, 370
        %v520 = vld [vmem:[%s519] ss:$2 sm:$0xff]
        %s521 = scalar_lea.vmem %s302, 386
        %v522 = vld [vmem:[%s521] ss:$2 sm:$0xff]
        %s523 = scalar_lea.vmem %s302, 402
        %v524 = vld [vmem:[%s523] ss:$2 sm:$0xff]
        %s525 = scalar_lea.vmem %s302, 418
        %v526 = vld [vmem:[%s525] ss:$2 sm:$0xff]
        %s527 = scalar_lea.vmem %s302, 434
        %v528 = vld [vmem:[%s527] ss:$2 sm:$0xff]
        %s529 = scalar_lea.vmem %s302, 450
        %v530 = vld [vmem:[%s529] ss:$2 sm:$0xff]
        %s531 = scalar_lea.vmem %s302, 466
        %v532 = vld [vmem:[%s531] ss:$2 sm:$0xff]
        %s533 = scalar_lea.vmem %s302, 482
        %v534 = vld [vmem:[%s533] ss:$2 sm:$0xff]
        %s535 = scalar_lea.vmem %s302, 498
        %v536 = vld [vmem:[%s535] ss:$2 sm:$0xff]
        %s537 = scalar_lea.vmem %s302, 514
        %v538 = vld [vmem:[%s537] ss:$2 sm:$0xff]
        %s539 = scalar_lea.vmem %s302, 530
        %v540 = vld [vmem:[%s539] ss:$2 sm:$0x7f]
        %v541 = vpack.c.bf16 %v476, %v474
        %v542 = vpack.c.bf16 %v480, %v478
        %v543 = vpack.c.bf16 %v484, %v482
        %v544 = vpack.c.bf16 %v488, %v486
        %v545 = vpack.c.bf16 %v492, %v490
        %v546 = vpack.c.bf16 %v496, %v494
        %v547 = vpack.c.bf16 %v500, %v498
        %v548 = vpack.c.bf16 %v504, %v502
        %v549 = vpack.c.bf16 %v508, %v506
        %v550 = vpack.c.bf16 %v512, %v510
        %v551 = vpack.c.bf16 %v516, %v514
        %v552 = vpack.c.bf16 %v520, %v518
        %v553 = vpack.c.bf16 %v524, %v522
        %v554 = vpack.c.bf16 %v528, %v526
        %v555 = vpack.c.bf16 %v532, %v530
        %v556 = vpack.c.bf16 %v536, %v534
        %v557 = vpack.c.bf16 %v540, %v538
        %s558 = scalar_lea.vmem %s302, 3
        %v559 = vld [vmem:[%s558] ss:$2 sm:$0xff]
        %s560 = scalar_lea.vmem %s302, 19
        %v561 = vld [vmem:[%s560] ss:$2 sm:$0xff]
        %s562 = scalar_lea.vmem %s302, 35
        %v563 = vld [vmem:[%s562] ss:$2 sm:$0xff]
        %s564 = scalar_lea.vmem %s302, 51
        %v565 = vld [vmem:[%s564] ss:$2 sm:$0xff]
        %s566 = scalar_lea.vmem %s302, 67
        %v567 = vld [vmem:[%s566] ss:$2 sm:$0xff]
        %s568 = scalar_lea.vmem %s302, 83
        %v569 = vld [vmem:[%s568] ss:$2 sm:$0xff]
        %s570 = scalar_lea.vmem %s302, 99
        %v571 = vld [vmem:[%s570] ss:$2 sm:$0xff]
        %s572 = scalar_lea.vmem %s302, 115
        %v573 = vld [vmem:[%s572] ss:$2 sm:$0xff]
        %s574 = scalar_lea.vmem %s302, 131
        %v575 = vld [vmem:[%s574] ss:$2 sm:$0xff]
        %s576 = scalar_lea.vmem %s302, 147
        %v577 = vld [vmem:[%s576] ss:$2 sm:$0xff]
        %s578 = scalar_lea.vmem %s302, 163
        %v579 = vld [vmem:[%s578] ss:$2 sm:$0xff]
        %s580 = scalar_lea.vmem %s302, 179
        %v581 = vld [vmem:[%s580] ss:$2 sm:$0xff]
        %s582 = scalar_lea.vmem %s302, 195
        %v583 = vld [vmem:[%s582] ss:$2 sm:$0xff]
        %s584 = scalar_lea.vmem %s302, 211
        %v585 = vld [vmem:[%s584] ss:$2 sm:$0xff]
        %s586 = scalar_lea.vmem %s302, 227
        %v587 = vld [vmem:[%s586] ss:$2 sm:$0xff]
        %s588 = scalar_lea.vmem %s302, 243
        %v589 = vld [vmem:[%s588] ss:$2 sm:$0xff]
        %s590 = scalar_lea.vmem %s302, 259
        %v591 = vld [vmem:[%s590] ss:$2 sm:$0xff]
        %s592 = scalar_lea.vmem %s302, 275
        %v593 = vld [vmem:[%s592] ss:$2 sm:$0xff]
        %s594 = scalar_lea.vmem %s302, 291
        %v595 = vld [vmem:[%s594] ss:$2 sm:$0xff]
        %s596 = scalar_lea.vmem %s302, 307
        %v597 = vld [vmem:[%s596] ss:$2 sm:$0xff]
        %s598 = scalar_lea.vmem %s302, 323
        %v599 = vld [vmem:[%s598] ss:$2 sm:$0xff]
        %s600 = scalar_lea.vmem %s302, 339
        %v601 = vld [vmem:[%s600] ss:$2 sm:$0xff]
        %s602 = scalar_lea.vmem %s302, 355
        %v603 = vld [vmem:[%s602] ss:$2 sm:$0xff]
        %s604 = scalar_lea.vmem %s302, 371
        %v605 = vld [vmem:[%s604] ss:$2 sm:$0xff]
        %s606 = scalar_lea.vmem %s302, 387
        %v607 = vld [vmem:[%s606] ss:$2 sm:$0xff]
        %s608 = scalar_lea.vmem %s302, 403
        %v609 = vld [vmem:[%s608] ss:$2 sm:$0xff]
        %s610 = scalar_lea.vmem %s302, 419
        %v611 = vld [vmem:[%s610] ss:$2 sm:$0xff]
        %s612 = scalar_lea.vmem %s302, 435
        %v613 = vld [vmem:[%s612] ss:$2 sm:$0xff]
        %s614 = scalar_lea.vmem %s302, 451
        %v615 = vld [vmem:[%s614] ss:$2 sm:$0xff]
        %s616 = scalar_lea.vmem %s302, 467
        %v617 = vld [vmem:[%s616] ss:$2 sm:$0xff]
        %s618 = scalar_lea.vmem %s302, 483
        %v619 = vld [vmem:[%s618] ss:$2 sm:$0xff]
        %s620 = scalar_lea.vmem %s302, 499
        %v621 = vld [vmem:[%s620] ss:$2 sm:$0xff]
        %s622 = scalar_lea.vmem %s302, 515
        %v623 = vld [vmem:[%s622] ss:$2 sm:$0xff]
        %s624 = scalar_lea.vmem %s302, 531
        %v625 = vld [vmem:[%s624] ss:$2 sm:$0x7f]
        %v626 = vpack.c.bf16 %v561, %v559
        %v627 = vpack.c.bf16 %v565, %v563
        %v628 = vpack.c.bf16 %v569, %v567
        %v629 = vpack.c.bf16 %v573, %v571
        %v630 = vpack.c.bf16 %v577, %v575
        %v631 = vpack.c.bf16 %v581, %v579
        %v632 = vpack.c.bf16 %v585, %v583
        %v633 = vpack.c.bf16 %v589, %v587
        %v634 = vpack.c.bf16 %v593, %v591
        %v635 = vpack.c.bf16 %v597, %v595
        %v636 = vpack.c.bf16 %v601, %v599
        %v637 = vpack.c.bf16 %v605, %v603
        %v638 = vpack.c.bf16 %v609, %v607
        %v639 = vpack.c.bf16 %v613, %v611
        %v640 = vpack.c.bf16 %v617, %v615
        %v641 = vpack.c.bf16 %v621, %v619
        %v642 = vpack.c.bf16 %v625, %v623
        %s643 = scalar_lea.vmem %s302, 4
        %v644 = vld [vmem:[%s643] ss:$2 sm:$0xff]
        %s645 = scalar_lea.vmem %s302, 20
        %v646 = vld [vmem:[%s645] ss:$2 sm:$0xff]
        %s647 = scalar_lea.vmem %s302, 36
        %v648 = vld [vmem:[%s647] ss:$2 sm:$0xff]
        %s649 = scalar_lea.vmem %s302, 52
        %v650 = vld [vmem:[%s649] ss:$2 sm:$0xff]
        %s651 = scalar_lea.vmem %s302, 68
        %v652 = vld [vmem:[%s651] ss:$2 sm:$0xff]
        %s653 = scalar_lea.vmem %s302, 84
        %v654 = vld [vmem:[%s653] ss:$2 sm:$0xff]
        %s655 = scalar_lea.vmem %s302, 100
        %v656 = vld [vmem:[%s655] ss:$2 sm:$0xff]
        %s657 = scalar_lea.vmem %s302, 116
        %v658 = vld [vmem:[%s657] ss:$2 sm:$0xff]
        %s659 = scalar_lea.vmem %s302, 132
        %v660 = vld [vmem:[%s659] ss:$2 sm:$0xff]
        %s661 = scalar_lea.vmem %s302, 148
        %v662 = vld [vmem:[%s661] ss:$2 sm:$0xff]
        %s663 = scalar_lea.vmem %s302, 164
        %v664 = vld [vmem:[%s663] ss:$2 sm:$0xff]
        %s665 = scalar_lea.vmem %s302, 180
        %v666 = vld [vmem:[%s665] ss:$2 sm:$0xff]
        %s667 = scalar_lea.vmem %s302, 196
        %v668 = vld [vmem:[%s667] ss:$2 sm:$0xff]
        %s669 = scalar_lea.vmem %s302, 212
        %v670 = vld [vmem:[%s669] ss:$2 sm:$0xff]
        %s671 = scalar_lea.vmem %s302, 228
        %v672 = vld [vmem:[%s671] ss:$2 sm:$0xff]
        %s673 = scalar_lea.vmem %s302, 244
        %v674 = vld [vmem:[%s673] ss:$2 sm:$0xff]
        %s675 = scalar_lea.vmem %s302, 260
        %v676 = vld [vmem:[%s675] ss:$2 sm:$0xff]
        %s677 = scalar_lea.vmem %s302, 276
        %v678 = vld [vmem:[%s677] ss:$2 sm:$0xff]
        %s679 = scalar_lea.vmem %s302, 292
        %v680 = vld [vmem:[%s679] ss:$2 sm:$0xff]
        %s681 = scalar_lea.vmem %s302, 308
        %v682 = vld [vmem:[%s681] ss:$2 sm:$0xff]
        %s683 = scalar_lea.vmem %s302, 324
        %v684 = vld [vmem:[%s683] ss:$2 sm:$0xff]
        %s685 = scalar_lea.vmem %s302, 340
        %v686 = vld [vmem:[%s685] ss:$2 sm:$0xff]
        %s687 = scalar_lea.vmem %s302, 356
        %v688 = vld [vmem:[%s687] ss:$2 sm:$0xff]
        %s689 = scalar_lea.vmem %s302, 372
        %v690 = vld [vmem:[%s689] ss:$2 sm:$0xff]
        %s691 = scalar_lea.vmem %s302, 388
        %v692 = vld [vmem:[%s691] ss:$2 sm:$0xff]
        %s693 = scalar_lea.vmem %s302, 404
        %v694 = vld [vmem:[%s693] ss:$2 sm:$0xff]
        %s695 = scalar_lea.vmem %s302, 420
        %v696 = vld [vmem:[%s695] ss:$2 sm:$0xff]
        %s697 = scalar_lea.vmem %s302, 436
        %v698 = vld [vmem:[%s697] ss:$2 sm:$0xff]
        %s699 = scalar_lea.vmem %s302, 452
        %v700 = vld [vmem:[%s699] ss:$2 sm:$0xff]
        %s701 = scalar_lea.vmem %s302, 468
        %v702 = vld [vmem:[%s701] ss:$2 sm:$0xff]
        %s703 = scalar_lea.vmem %s302, 484
        %v704 = vld [vmem:[%s703] ss:$2 sm:$0xff]
        %s705 = scalar_lea.vmem %s302, 500
        %v706 = vld [vmem:[%s705] ss:$2 sm:$0xff]
        %s707 = scalar_lea.vmem %s302, 516
        %v708 = vld [vmem:[%s707] ss:$2 sm:$0xff]
        %s709 = scalar_lea.vmem %s302, 532
        %v710 = vld [vmem:[%s709] ss:$2 sm:$0x7f]
        %v711 = vpack.c.bf16 %v646, %v644
        %v712 = vpack.c.bf16 %v650, %v648
        %v713 = vpack.c.bf16 %v654, %v652
        %v714 = vpack.c.bf16 %v658, %v656
        %v715 = vpack.c.bf16 %v662, %v660
        %v716 = vpack.c.bf16 %v666, %v664
        %v717 = vpack.c.bf16 %v670, %v668
        %v718 = vpack.c.bf16 %v674, %v672
        %v719 = vpack.c.bf16 %v678, %v676
        %v720 = vpack.c.bf16 %v682, %v680
        %v721 = vpack.c.bf16 %v686, %v684
        %v722 = vpack.c.bf16 %v690, %v688
        %v723 = vpack.c.bf16 %v694, %v692
        %v724 = vpack.c.bf16 %v698, %v696
        %v725 = vpack.c.bf16 %v702, %v700
        %v726 = vpack.c.bf16 %v706, %v704
        %v727 = vpack.c.bf16 %v710, %v708
        %v728 = vld [vmem:[%s1] sm:$0xf]
        %v729 = vld [vmem:[%s1 + $0x4] sm:$0xf]
        %v730 = vld [vmem:[%s1 + $0x8] sm:$0xf]
        %v731 = vld [vmem:[%s1 + $0xc] sm:$0xf]
        %s732 = scalar_lea.vmem %s1, 16
        %v733 = vld [vmem:[%s732] sm:$0xf]
        %v734 = vld [vmem:[%s732 + $0x4] sm:$0xf]
        %v735 = vld [vmem:[%s732 + $0x8] sm:$0xf]
        %v736 = vld [vmem:[%s732 + $0xc] sm:$0xf]
        %s737 = scalar_lea.vmem %s1, 32
        %v738 = vld [vmem:[%s737] sm:$0xf]
        %v739 = vld [vmem:[%s737 + $0x4] sm:$0xf]
        %v740 = vld [vmem:[%s737 + $0x8] sm:$0xf]
        %v741 = vld [vmem:[%s737 + $0xc] sm:$0xf]
        %v746 = vunpack.c.l.b16 %v733
        %v747 = vunpack.c.l.b16 %v734
        %v748 = vunpack.c.l.b16 %v735
        %v749 = vunpack.c.l.b16 %v736
        %v750 = vpack.c.b16 %v747, %v746
        %v751 = vpack.c.b16 %v749, %v748
        %vm754 = vcmask 261120
        %v756 = vsel %vm754, %v456, 0
        %v759 = vsel %vm754, %v457, 0
        %v762 = vsel %vm754, %v458, 0
        %v765 = vsel %vm754, %v459, 0
        %v768 = vsel %vm754, %v460, 0
        %v771 = vsel %vm754, %v461, 0
        %v774 = vsel %vm754, %v462, 0
        %v777 = vsel %vm754, %v463, 0
        %v780 = vsel %vm754, %v464, 0
        %v783 = vsel %vm754, %v465, 0
        %v786 = vsel %vm754, %v466, 0
        %v789 = vsel %vm754, %v467, 0
        %v792 = vsel %vm754, %v468, 0
        %v795 = vsel %vm754, %v469, 0
        %v798 = vsel %vm754, %v470, 0
        %v801 = vsel %vm754, %v471, 0
        %v804 = vsel %vm754, %v472, 0
        %806 = vmatprep.subr.bf16.mxu0 0
        %807 = vmatpush1.bf16.msra.mxu0 %v750
        %808 = vmatprep.subr.bf16.mxu0 0
        %809 = vmatpush1.bf16.msra.mxu0 %v751
        %810 = vmatprep.subr.bf16.mxu0 0
        %811 = vmatpush1.bf16.msra.mxu0 0
        %812 = vmatprep.subr.bf16.mxu0 0
        %813 = vmatpush1.bf16.msra.mxu0 0
        %814 = vmatprep.subr.bf16.mxu0 0
        %815 = vmatpush1.bf16.msra.mxu0 0
        %816 = vmatprep.subr.bf16.mxu0 0
        %817 = vmatpush1.bf16.msra.mxu0 0
        %818 = vmatprep.subr.bf16.mxu0 0
        %819 = vmatpush1.bf16.msra.mxu0 0
        %820 = vmatprep.subr.bf16.mxu0 0
        %821 = vmatpush1.bf16.msra.mxu0 0
        %822 = vmatprep.subr.bf16.mxu0 0
        %823 = vmatpush1.bf16.msra.mxu0 0
        %824 = vmatprep.subr.bf16.mxu0 0
        %825 = vmatpush1.bf16.msra.mxu0 0
        %826 = vmatprep.subr.bf16.mxu0 0
        %827 = vmatpush1.bf16.msra.mxu0 0
        %828 = vmatprep.subr.bf16.mxu0 0
        %829 = vmatpush1.bf16.msra.mxu0 0
        %830 = vmatprep.subr.bf16.mxu0 0
        %831 = vmatpush1.bf16.msra.mxu0 0
        %832 = vmatprep.subr.bf16.mxu0 0
        %833 = vmatpush1.bf16.msra.mxu0 0
        %834 = vmatprep.subr.bf16.mxu0 0
        %835 = vmatpush1.bf16.msra.mxu0 0
        %836 = vmatprep.subr.bf16.mxu0 0
        %837 = vmatpush1.bf16.msra.mxu0 0
        %838 = vmatprep.mubr.bf16.mxu0 0
        %839 = vmatmul.mubr.bf16.gmra.mrb[0].mxu0 %v756
        %v840 = vpop.f32.mrb[0].mxu0
        %v841 = vadd.f32 0.0, %v840
        %v842 = vpop.f32.mrb[0].mxu0
        %v843 = vpop.f32.mrb[0].mxu0
        %v844 = vadd.f32 0.0, %v843
        %v845 = vpop.f32.mrb[0].mxu0
        %846 = vmatprep.mubr.bf16.mxu0 0
        %847 = vmatmul.mubr.bf16.gmra.mrb[0].mxu0 %v759
        %v848 = vpop.f32.mrb[0].mxu0
        %v849 = vadd.f32 0.0, %v848
        %v850 = vpop.f32.mrb[0].mxu0
        %v851 = vpop.f32.mrb[0].mxu0
        %v852 = vadd.f32 0.0, %v851
        %v853 = vpop.f32.mrb[0].mxu0
        %854 = vmatprep.mubr.bf16.mxu0 0
        %855 = vmatmul.mubr.bf16.gmra.mrb[0].mxu0 %v762
        %v856 = vpop.f32.mrb[0].mxu0
        %v857 = vadd.f32 0.0, %v856
        %v858 = vpop.f32.mrb[0].mxu0
        %v859 = vpop.f32.mrb[0].mxu0
        %v860 = vadd.f32 0.0, %v859
        %v861 = vpop.f32.mrb[0].mxu0
        %862 = vmatprep.mubr.bf16.mxu0 0
        %863 = vmatmul.mubr.bf16.gmra.mrb[0].mxu0 %v765
        %v864 = vpop.f32.mrb[0].mxu0
        %v865 = vadd.f32 0.0, %v864
        %v866 = vpop.f32.mrb[0].mxu0
        %v867 = vpop.f32.mrb[0].mxu0
        %v868 = vadd.f32 0.0, %v867
        %v869 = vpop.f32.mrb[0].mxu0
        %870 = vmatprep.mubr.bf16.mxu0 0
        %871 = vmatmul.mubr.bf16.gmra.mrb[0].mxu0 %v768
        %v872 = vpop.f32.mrb[0].mxu0
        %v873 = vadd.f32 0.0, %v872
        %v874 = vpop.f32.mrb[0].mxu0
        %v875 = vpop.f32.mrb[0].mxu0
        %v876 = vadd.f32 0.0, %v875
        %v877 = vpop.f32.mrb[0].mxu0
        %878 = vmatprep.mubr.bf16.mxu0 0
        %879 = vmatmul.mubr.bf16.gmra.mrb[0].mxu0 %v771
        %v880 = vpop.f32.mrb[0].mxu0
        %v881 = vadd.f32 0.0, %v880
        %v882 = vpop.f32.mrb[0].mxu0
        %v883 = vpop.f32.mrb[0].mxu0
        %v884 = vadd.f32 0.0, %v883
        %v885 = vpop.f32.mrb[0].mxu0
        %886 = vmatprep.mubr.bf16.mxu0 0
        %887 = vmatmul.mubr.bf16.gmra.mrb[0].mxu0 %v774
        %v888 = vpop.f32.mrb[0].mxu0
        %v889 = vadd.f32 0.0, %v888
        %v890 = vpop.f32.mrb[0].mxu0
        %v891 = vpop.f32.mrb[0].mxu0
        %v892 = vadd.f32 0.0, %v891
        %v893 = vpop.f32.mrb[0].mxu0
        %894 = vmatprep.mubr.bf16.mxu0 0
        %895 = vmatmul.mubr.bf16.gmra.mrb[0].mxu0 %v777
        %v896 = vpop.f32.mrb[0].mxu0
        %v897 = vadd.f32 0.0, %v896
        %v898 = vpop.f32.mrb[0].mxu0
        %v899 = vpop.f32.mrb[0].mxu0
        %v900 = vadd.f32 0.0, %v899
        %v901 = vpop.f32.mrb[0].mxu0
        %902 = vmatprep.mubr.bf16.mxu0 0
        %903 = vmatmul.mubr.bf16.gmra.mrb[0].mxu0 %v780
        %v904 = vpop.f32.mrb[0].mxu0
        %v905 = vadd.f32 0.0, %v904
        %v906 = vpop.f32.mrb[0].mxu0
        %v907 = vpop.f32.mrb[0].mxu0
        %v908 = vadd.f32 0.0, %v907
        %v909 = vpop.f32.mrb[0].mxu0
        %910 = vmatprep.mubr.bf16.mxu0 0
        %911 = vmatmul.mubr.bf16.gmra.mrb[0].mxu0 %v783
        %v912 = vpop.f32.mrb[0].mxu0
        %v913 = vadd.f32 0.0, %v912
        %v914 = vpop.f32.mrb[0].mxu0
        %v915 = vpop.f32.mrb[0].mxu0
        %v916 = vadd.f32 0.0, %v915
        %v917 = vpop.f32.mrb[0].mxu0
        %918 = vmatprep.mubr.bf16.mxu0 0
        %919 = vmatmul.mubr.bf16.gmra.mrb[0].mxu0 %v786
        %v920 = vpop.f32.mrb[0].mxu0
        %v921 = vadd.f32 0.0, %v920
        %v922 = vpop.f32.mrb[0].mxu0
        %v923 = vpop.f32.mrb[0].mxu0
        %v924 = vadd.f32 0.0, %v923
        %v925 = vpop.f32.mrb[0].mxu0
        %926 = vmatprep.mubr.bf16.mxu0 0
        %927 = vmatmul.mubr.bf16.gmra.mrb[0].mxu0 %v789
        %v928 = vpop.f32.mrb[0].mxu0
        %v929 = vadd.f32 0.0, %v928
        %v930 = vpop.f32.mrb[0].mxu0
        %v931 = vpop.f32.mrb[0].mxu0
        %v932 = vadd.f32 0.0, %v931
        %v933 = vpop.f32.mrb[0].mxu0
        %934 = vmatprep.mubr.bf16.mxu0 0
        %935 = vmatmul.mubr.bf16.gmra.mrb[0].mxu0 %v792
        %v936 = vpop.f32.mrb[0].mxu0
        %v937 = vadd.f32 0.0, %v936
        %v938 = vpop.f32.mrb[0].mxu0
        %v939 = vpop.f32.mrb[0].mxu0
        %v940 = vadd.f32 0.0, %v939
        %v941 = vpop.f32.mrb[0].mxu0
        %942 = vmatprep.mubr.bf16.mxu0 0
        %943 = vmatmul.mubr.bf16.gmra.mrb[0].mxu0 %v795
        %v944 = vpop.f32.mrb[0].mxu0
        %v945 = vadd.f32 0.0, %v944
        %v946 = vpop.f32.mrb[0].mxu0
        %v947 = vpop.f32.mrb[0].mxu0
        %v948 = vadd.f32 0.0, %v947
        %v949 = vpop.f32.mrb[0].mxu0
        %950 = vmatprep.mubr.bf16.mxu0 0
        %951 = vmatmul.mubr.bf16.gmra.mrb[0].mxu0 %v798
        %v952 = vpop.f32.mrb[0].mxu0
        %v953 = vadd.f32 0.0, %v952
        %v954 = vpop.f32.mrb[0].mxu0
        %v955 = vpop.f32.mrb[0].mxu0
        %v956 = vadd.f32 0.0, %v955
        %v957 = vpop.f32.mrb[0].mxu0
        %958 = vmatprep.mubr.bf16.mxu0 0
        %959 = vmatmul.mubr.bf16.gmra.mrb[0].mxu0 %v801
        %v960 = vpop.f32.mrb[0].mxu0
        %v961 = vadd.f32 0.0, %v960
        %v962 = vpop.f32.mrb[0].mxu0
        %v963 = vpop.f32.mrb[0].mxu0
        %v964 = vadd.f32 0.0, %v963
        %v965 = vpop.f32.mrb[0].mxu0
        %966 = vmatprep.mubr.bf16.mxu0 0
        %967 = vmatmul.mubr.bf16.gmra.mrb[0].mxu0 %v804
        %v968 = vpop.f32.mrb[0].mxu0
        %v969 = vadd.f32 0.0, %v968
        %v970 = vpop.f32.mrb[0].mxu0
        %v971 = vpop.f32.mrb[0].mxu0
        %v972 = vadd.f32 0.0, %v971
        %v973 = vpop.f32.mrb[0].mxu0
        %974 = vdwg.mxu0
        %v979 = vunpack.c.l.b16 %v728
        %v980 = vunpack.c.l.b16 %v729
        %v981 = vunpack.c.l.b16 %v730
        %v982 = vunpack.c.l.b16 %v731
        %v983 = vpack.c.b16 %v980, %v979
        %v984 = vpack.c.b16 %v982, %v981
        %v988 = vsel %vm754, %v371, 0
        %v991 = vsel %vm754, %v372, 0
        %v994 = vsel %vm754, %v373, 0
        %v997 = vsel %vm754, %v374, 0
        %v1000 = vsel %vm754, %v375, 0
        %v1003 = vsel %vm754, %v376, 0
        %v1006 = vsel %vm754, %v377, 0
        %v1009 = vsel %vm754, %v378, 0
        %v1012 = vsel %vm754, %v379, 0
        %v1015 = vsel %vm754, %v380, 0
        %v1018 = vsel %vm754, %v381, 0
        %v1021 = vsel %vm754, %v382, 0
        %v1024 = vsel %vm754, %v383, 0
        %v1027 = vsel %vm754, %v384, 0
        %v1030 = vsel %vm754, %v385, 0
        %v1033 = vsel %vm754, %v386, 0
        %v1036 = vsel %vm754, %v387, 0
        %1038 = vmatprep.subr.bf16.mxu0 0
        %1039 = vmatpush1.bf16.msra.mxu0 %v983
        %1040 = vmatprep.subr.bf16.mxu0 0
        %1041 = vmatpush1.bf16.msra.mxu0 %v984
        %1042 = vmatprep.subr.bf16.mxu0 0
        %1043 = vmatpush1.bf16.msra.mxu0 0
        %1044 = vmatprep.subr.bf16.mxu0 0
        %1045 = vmatpush1.bf16.msra.mxu0 0
        %1046 = vmatprep.subr.bf16.mxu0 0
        %1047 = vmatpush1.bf16.msra.mxu0 0
        %1048 = vmatprep.subr.bf16.mxu0 0
        %1049 = vmatpush1.bf16.msra.mxu0 0
        %1050 = vmatprep.subr.bf16.mxu0 0
        %1051 = vmatpush1.bf16.msra.mxu0 0
        %1052 = vmatprep.subr.bf16.mxu0 0
        %1053 = vmatpush1.bf16.msra.mxu0 0
        %1054 = vmatprep.subr.bf16.mxu0 0
        %1055 = vmatpush1.bf16.msra.mxu0 0
        %1056 = vmatprep.subr.bf16.mxu0 0
        %1057 = vmatpush1.bf16.msra.mxu0 0
        %1058 = vmatprep.subr.bf16.mxu0 0
        %1059 = vmatpush1.bf16.msra.mxu0 0
        %1060 = vmatprep.subr.bf16.mxu0 0
        %1061 = vmatpush1.bf16.msra.mxu0 0
        %1062 = vmatprep.subr.bf16.mxu0 0
        %1063 = vmatpush1.bf16.msra.mxu0 0
        %1064 = vmatprep.subr.bf16.mxu0 0
        %1065 = vmatpush1.bf16.msra.mxu0 0
        %1066 = vmatprep.subr.bf16.mxu0 0
        %1067 = vmatpush1.bf16.msra.mxu0 0
        %1068 = vmatprep.subr.bf16.mxu0 0
        %1069 = vmatpush1.bf16.msra.mxu0 0
        %1070 = vmatprep.mubr.bf16.mxu0 0
        %1071 = vmatmul.mubr.bf16.gmra.mrb[0].mxu0 %v988
        %v1072 = vpop.f32.mrb[0].mxu0
        %v1073 = vadd.f32 %v841, %v1072
        %v1074 = vpop.f32.mrb[0].mxu0
        %v1075 = vpop.f32.mrb[0].mxu0
        %v1076 = vadd.f32 %v844, %v1075
        %v1077 = vpop.f32.mrb[0].mxu0
        %1078 = vmatprep.mubr.bf16.mxu0 0
        %1079 = vmatmul.mubr.bf16.gmra.mrb[0].mxu0 %v991
        %v1080 = vpop.f32.mrb[0].mxu0
        %v1081 = vadd.f32 %v849, %v1080
        %v1082 = vpop.f32.mrb[0].mxu0
        %v1083 = vpop.f32.mrb[0].mxu0
        %v1084 = vadd.f32 %v852, %v1083
        %v1085 = vpop.f32.mrb[0].mxu0
        %1086 = vmatprep.mubr.bf16.mxu0 0
        %1087 = vmatmul.mubr.bf16.gmra.mrb[0].mxu0 %v994
        %v1088 = vpop.f32.mrb[0].mxu0
        %v1089 = vadd.f32 %v857, %v1088
        %v1090 = vpop.f32.mrb[0].mxu0
        %v1091 = vpop.f32.mrb[0].mxu0
        %v1092 = vadd.f32 %v860, %v1091
        %v1093 = vpop.f32.mrb[0].mxu0
        %1094 = vmatprep.mubr.bf16.mxu0 0
        %1095 = vmatmul.mubr.bf16.gmra.mrb[0].mxu0 %v997
        %v1096 = vpop.f32.mrb[0].mxu0
        %v1097 = vadd.f32 %v865, %v1096
        %v1098 = vpop.f32.mrb[0].mxu0
        %v1099 = vpop.f32.mrb[0].mxu0
        %v1100 = vadd.f32 %v868, %v1099
        %v1101 = vpop.f32.mrb[0].mxu0
        %1102 = vmatprep.mubr.bf16.mxu0 0
        %1103 = vmatmul.mubr.bf16.gmra.mrb[0].mxu0 %v1000
        %v1104 = vpop.f32.mrb[0].mxu0
        %v1105 = vadd.f32 %v873, %v1104
        %v1106 = vpop.f32.mrb[0].mxu0
        %v1107 = vpop.f32.mrb[0].mxu0
        %v1108 = vadd.f32 %v876, %v1107
        %v1109 = vpop.f32.mrb[0].mxu0
        %1110 = vmatprep.mubr.bf16.mxu0 0
        %1111 = vmatmul.mubr.bf16.gmra.mrb[0].mxu0 %v1003
        %v1112 = vpop.f32.mrb[0].mxu0
        %v1113 = vadd.f32 %v881, %v1112
        %v1114 = vpop.f32.mrb[0].mxu0
        %v1115 = vpop.f32.mrb[0].mxu0
        %v1116 = vadd.f32 %v884, %v1115
        %v1117 = vpop.f32.mrb[0].mxu0
        %1118 = vmatprep.mubr.bf16.mxu0 0
        %1119 = vmatmul.mubr.bf16.gmra.mrb[0].mxu0 %v1006
        %v1120 = vpop.f32.mrb[0].mxu0
        %v1121 = vadd.f32 %v889, %v1120
        %v1122 = vpop.f32.mrb[0].mxu0
        %v1123 = vpop.f32.mrb[0].mxu0
        %v1124 = vadd.f32 %v892, %v1123
        %v1125 = vpop.f32.mrb[0].mxu0
        %1126 = vmatprep.mubr.bf16.mxu0 0
        %1127 = vmatmul.mubr.bf16.gmra.mrb[0].mxu0 %v1009
        %v1128 = vpop.f32.mrb[0].mxu0
        %v1129 = vadd.f32 %v897, %v1128
        %v1130 = vpop.f32.mrb[0].mxu0
        %v1131 = vpop.f32.mrb[0].mxu0
        %v1132 = vadd.f32 %v900, %v1131
        %v1133 = vpop.f32.mrb[0].mxu0
        %1134 = vmatprep.mubr.bf16.mxu0 0
        %1135 = vmatmul.mubr.bf16.gmra.mrb[0].mxu0 %v1012
        %v1136 = vpop.f32.mrb[0].mxu0
        %v1137 = vadd.f32 %v905, %v1136
        %v1138 = vpop.f32.mrb[0].mxu0
        %v1139 = vpop.f32.mrb[0].mxu0
        %v1140 = vadd.f32 %v908, %v1139
        %v1141 = vpop.f32.mrb[0].mxu0
        %1142 = vmatprep.mubr.bf16.mxu0 0
        %1143 = vmatmul.mubr.bf16.gmra.mrb[0].mxu0 %v1015
        %v1144 = vpop.f32.mrb[0].mxu0
        %v1145 = vadd.f32 %v913, %v1144
        %v1146 = vpop.f32.mrb[0].mxu0
        %v1147 = vpop.f32.mrb[0].mxu0
        %v1148 = vadd.f32 %v916, %v1147
        %v1149 = vpop.f32.mrb[0].mxu0
        %1150 = vmatprep.mubr.bf16.mxu0 0
        %1151 = vmatmul.mubr.bf16.gmra.mrb[0].mxu0 %v1018
        %v1152 = vpop.f32.mrb[0].mxu0
        %v1153 = vadd.f32 %v921, %v1152
        %v1154 = vpop.f32.mrb[0].mxu0
        %v1155 = vpop.f32.mrb[0].mxu0
        %v1156 = vadd.f32 %v924, %v1155
        %v1157 = vpop.f32.mrb[0].mxu0
        %1158 = vmatprep.mubr.bf16.mxu0 0
        %1159 = vmatmul.mubr.bf16.gmra.mrb[0].mxu0 %v1021
        %v1160 = vpop.f32.mrb[0].mxu0
        %v1161 = vadd.f32 %v929, %v1160
        %v1162 = vpop.f32.mrb[0].mxu0
        %v1163 = vpop.f32.mrb[0].mxu0
        %v1164 = vadd.f32 %v932, %v1163
        %v1165 = vpop.f32.mrb[0].mxu0
        %1166 = vmatprep.mubr.bf16.mxu0 0
        %1167 = vmatmul.mubr.bf16.gmra.mrb[0].mxu0 %v1024
        %v1168 = vpop.f32.mrb[0].mxu0
        %v1169 = vadd.f32 %v937, %v1168
        %v1170 = vpop.f32.mrb[0].mxu0
        %v1171 = vpop.f32.mrb[0].mxu0
        %v1172 = vadd.f32 %v940, %v1171
        %v1173 = vpop.f32.mrb[0].mxu0
        %1174 = vmatprep.mubr.bf16.mxu0 0
        %1175 = vmatmul.mubr.bf16.gmra.mrb[0].mxu0 %v1027
        %v1176 = vpop.f32.mrb[0].mxu0
        %v1177 = vadd.f32 %v945, %v1176
        %v1178 = vpop.f32.mrb[0].mxu0
        %v1179 = vpop.f32.mrb[0].mxu0
        %v1180 = vadd.f32 %v948, %v1179
        %v1181 = vpop.f32.mrb[0].mxu0
        %1182 = vmatprep.mubr.bf16.mxu0 0
        %1183 = vmatmul.mubr.bf16.gmra.mrb[0].mxu0 %v1030
        %v1184 = vpop.f32.mrb[0].mxu0
        %v1185 = vadd.f32 %v953, %v1184
        %v1186 = vpop.f32.mrb[0].mxu0
        %v1187 = vpop.f32.mrb[0].mxu0
        %v1188 = vadd.f32 %v956, %v1187
        %v1189 = vpop.f32.mrb[0].mxu0
        %1190 = vmatprep.mubr.bf16.mxu0 0
        %1191 = vmatmul.mubr.bf16.gmra.mrb[0].mxu0 %v1033
        %v1192 = vpop.f32.mrb[0].mxu0
        %v1193 = vadd.f32 %v961, %v1192
        %v1194 = vpop.f32.mrb[0].mxu0
        %v1195 = vpop.f32.mrb[0].mxu0
        %v1196 = vadd.f32 %v964, %v1195
        %v1197 = vpop.f32.mrb[0].mxu0
        %1198 = vmatprep.mubr.bf16.mxu0 0
        %1199 = vmatmul.mubr.bf16.gmra.mrb[0].mxu0 %v1036
        %v1200 = vpop.f32.mrb[0].mxu0
        %v1201 = vadd.f32 %v969, %v1200
        %v1202 = vpop.f32.mrb[0].mxu0
        %v1203 = vpop.f32.mrb[0].mxu0
        %v1204 = vadd.f32 %v972, %v1203
        %v1205 = vpop.f32.mrb[0].mxu0
        %1206 = vdwg.mxu0
        %v1211 = vunpack.c.l.b16 %v738
        %v1212 = vunpack.c.l.b16 %v739
        %v1213 = vunpack.c.l.b16 %v740
        %v1214 = vunpack.c.l.b16 %v741
        %v1215 = vpack.c.b16 %v1212, %v1211
        %v1216 = vpack.c.b16 %v1214, %v1213
        %v1220 = vsel %vm754, %v541, 0
        %v1223 = vsel %vm754, %v542, 0
        %v1226 = vsel %vm754, %v543, 0
        %v1229 = vsel %vm754, %v544, 0
        %v1232 = vsel %vm754, %v545, 0
        %v1235 = vsel %vm754, %v546, 0
        %v1238 = vsel %vm754, %v547, 0
        %v1241 = vsel %vm754, %v548, 0
        %v1244 = vsel %vm754, %v549, 0
        %v1247 = vsel %vm754, %v550, 0
        %v1250 = vsel %vm754, %v551, 0
        %v1253 = vsel %vm754, %v552, 0
        %v1256 = vsel %vm754, %v553, 0
        %v1259 = vsel %vm754, %v554, 0
        %v1262 = vsel %vm754, %v555, 0
        %v1265 = vsel %vm754, %v556, 0
        %v1268 = vsel %vm754, %v557, 0
        %1270 = vmatprep.subr.bf16.mxu0 0
        %1271 = vmatpush1.bf16.msra.mxu0 %v1215
        %1272 = vmatprep.subr.bf16.mxu0 0
        %1273 = vmatpush1.bf16.msra.mxu0 %v1216
        %1274 = vmatprep.subr.bf16.mxu0 0
        %1275 = vmatpush1.bf16.msra.mxu0 0
        %1276 = vmatprep.subr.bf16.mxu0 0
        %1277 = vmatpush1.bf16.msra.mxu0 0
        %1278 = vmatprep.subr.bf16.mxu0 0
        %1279 = vmatpush1.bf16.msra.mxu0 0
        %1280 = vmatprep.subr.bf16.mxu0 0
        %1281 = vmatpush1.bf16.msra.mxu0 0
        %1282 = vmatprep.subr.bf16.mxu0 0
        %1283 = vmatpush1.bf16.msra.mxu0 0
        %1284 = vmatprep.subr.bf16.mxu0 0
        %1285 = vmatpush1.bf16.msra.mxu0 0
        %1286 = vmatprep.subr.bf16.mxu0 0
        %1287 = vmatpush1.bf16.msra.mxu0 0
        %1288 = vmatprep.subr.bf16.mxu0 0
        %1289 = vmatpush1.bf16.msra.mxu0 0
        %1290 = vmatprep.subr.bf16.mxu0 0
        %1291 = vmatpush1.bf16.msra.mxu0 0
        %1292 = vmatprep.subr.bf16.mxu0 0
        %1293 = vmatpush1.bf16.msra.mxu0 0
        %1294 = vmatprep.subr.bf16.mxu0 0
        %1295 = vmatpush1.bf16.msra.mxu0 0
        %1296 = vmatprep.subr.bf16.mxu0 0
        %1297 = vmatpush1.bf16.msra.mxu0 0
        %1298 = vmatprep.subr.bf16.mxu0 0
        %1299 = vmatpush1.bf16.msra.mxu0 0
        %1300 = vmatprep.subr.bf16.mxu0 0
        %1301 = vmatpush1.bf16.msra.mxu0 0
        %1302 = vmatprep.mubr.bf16.mxu0 0
        %1303 = vmatmul.mubr.bf16.gmra.mrb[0].mxu0 %v1220
        %v1304 = vpop.f32.mrb[0].mxu0
        %v1305 = vadd.f32 0.0, %v1304
        %v1306 = vpop.f32.mrb[0].mxu0
        %v1307 = vpop.f32.mrb[0].mxu0
        %v1308 = vadd.f32 0.0, %v1307
        %v1309 = vpop.f32.mrb[0].mxu0
        %1310 = vmatprep.mubr.bf16.mxu0 0
        %1311 = vmatmul.mubr.bf16.gmra.mrb[0].mxu0 %v1223
        %v1312 = vpop.f32.mrb[0].mxu0
        %v1313 = vadd.f32 0.0, %v1312
        %v1314 = vpop.f32.mrb[0].mxu0
        %v1315 = vpop.f32.mrb[0].mxu0
        %v1316 = vadd.f32 0.0, %v1315
        %v1317 = vpop.f32.mrb[0].mxu0
        %1318 = vmatprep.mubr.bf16.mxu0 0
        %1319 = vmatmul.mubr.bf16.gmra.mrb[0].mxu0 %v1226
        %v1320 = vpop.f32.mrb[0].mxu0
        %v1321 = vadd.f32 0.0, %v1320
        %v1322 = vpop.f32.mrb[0].mxu0
        %v1323 = vpop.f32.mrb[0].mxu0
        %v1324 = vadd.f32 0.0, %v1323
        %v1325 = vpop.f32.mrb[0].mxu0
        %1326 = vmatprep.mubr.bf16.mxu0 0
        %1327 = vmatmul.mubr.bf16.gmra.mrb[0].mxu0 %v1229
        %v1328 = vpop.f32.mrb[0].mxu0
        %v1329 = vadd.f32 0.0, %v1328
        %v1330 = vpop.f32.mrb[0].mxu0
        %v1331 = vpop.f32.mrb[0].mxu0
        %v1332 = vadd.f32 0.0, %v1331
        %v1333 = vpop.f32.mrb[0].mxu0
        %1334 = vmatprep.mubr.bf16.mxu0 0
        %1335 = vmatmul.mubr.bf16.gmra.mrb[0].mxu0 %v1232
        %v1336 = vpop.f32.mrb[0].mxu0
        %v1337 = vadd.f32 0.0, %v1336
        %v1338 = vpop.f32.mrb[0].mxu0
        %v1339 = vpop.f32.mrb[0].mxu0
        %v1340 = vadd.f32 0.0, %v1339
        %v1341 = vpop.f32.mrb[0].mxu0
        %1342 = vmatprep.mubr.bf16.mxu0 0
        %1343 = vmatmul.mubr.bf16.gmra.mrb[0].mxu0 %v1235
        %v1344 = vpop.f32.mrb[0].mxu0
        %v1345 = vadd.f32 0.0, %v1344
        %v1346 = vpop.f32.mrb[0].mxu0
        %v1347 = vpop.f32.mrb[0].mxu0
        %v1348 = vadd.f32 0.0, %v1347
        %v1349 = vpop.f32.mrb[0].mxu0
        %1350 = vmatprep.mubr.bf16.mxu0 0
        %1351 = vmatmul.mubr.bf16.gmra.mrb[0].mxu0 %v1238
        %v1352 = vpop.f32.mrb[0].mxu0
        %v1353 = vadd.f32 0.0, %v1352
        %v1354 = vpop.f32.mrb[0].mxu0
        %v1355 = vpop.f32.mrb[0].mxu0
        %v1356 = vadd.f32 0.0, %v1355
        %v1357 = vpop.f32.mrb[0].mxu0
        %1358 = vmatprep.mubr.bf16.mxu0 0
        %1359 = vmatmul.mubr.bf16.gmra.mrb[0].mxu0 %v1241
        %v1360 = vpop.f32.mrb[0].mxu0
        %v1361 = vadd.f32 0.0, %v1360
        %v1362 = vpop.f32.mrb[0].mxu0
        %v1363 = vpop.f32.mrb[0].mxu0
        %v1364 = vadd.f32 0.0, %v1363
        %v1365 = vpop.f32.mrb[0].mxu0
        %1366 = vmatprep.mubr.bf16.mxu0 0
        %1367 = vmatmul.mubr.bf16.gmra.mrb[0].mxu0 %v1244
        %v1368 = vpop.f32.mrb[0].mxu0
        %v1369 = vadd.f32 0.0, %v1368
        %v1370 = vpop.f32.mrb[0].mxu0
        %v1371 = vpop.f32.mrb[0].mxu0
        %v1372 = vadd.f32 0.0, %v1371
        %v1373 = vpop.f32.mrb[0].mxu0
        %1374 = vmatprep.mubr.bf16.mxu0 0
        %1375 = vmatmul.mubr.bf16.gmra.mrb[0].mxu0 %v1247
        %v1376 = vpop.f32.mrb[0].mxu0
        %v1377 = vadd.f32 0.0, %v1376
        %v1378 = vpop.f32.mrb[0].mxu0
        %v1379 = vpop.f32.mrb[0].mxu0
        %v1380 = vadd.f32 0.0, %v1379
        %v1381 = vpop.f32.mrb[0].mxu0
        %1382 = vmatprep.mubr.bf16.mxu0 0
        %1383 = vmatmul.mubr.bf16.gmra.mrb[0].mxu0 %v1250
        %v1384 = vpop.f32.mrb[0].mxu0
        %v1385 = vadd.f32 0.0, %v1384
        %v1386 = vpop.f32.mrb[0].mxu0
        %v1387 = vpop.f32.mrb[0].mxu0
        %v1388 = vadd.f32 0.0, %v1387
        %v1389 = vpop.f32.mrb[0].mxu0
        %1390 = vmatprep.mubr.bf16.mxu0 0
        %1391 = vmatmul.mubr.bf16.gmra.mrb[0].mxu0 %v1253
        %v1392 = vpop.f32.mrb[0].mxu0
        %v1393 = vadd.f32 0.0, %v1392
        %v1394 = vpop.f32.mrb[0].mxu0
        %v1395 = vpop.f32.mrb[0].mxu0
        %v1396 = vadd.f32 0.0, %v1395
        %v1397 = vpop.f32.mrb[0].mxu0
        %1398 = vmatprep.mubr.bf16.mxu0 0
        %1399 = vmatmul.mubr.bf16.gmra.mrb[0].mxu0 %v1256
        %v1400 = vpop.f32.mrb[0].mxu0
        %v1401 = vadd.f32 0.0, %v1400
        %v1402 = vpop.f32.mrb[0].mxu0
        %v1403 = vpop.f32.mrb[0].mxu0
        %v1404 = vadd.f32 0.0, %v1403
        %v1405 = vpop.f32.mrb[0].mxu0
        %1406 = vmatprep.mubr.bf16.mxu0 0
        %1407 = vmatmul.mubr.bf16.gmra.mrb[0].mxu0 %v1259
        %v1408 = vpop.f32.mrb[0].mxu0
        %v1409 = vadd.f32 0.0, %v1408
        %v1410 = vpop.f32.mrb[0].mxu0
        %v1411 = vpop.f32.mrb[0].mxu0
        %v1412 = vadd.f32 0.0, %v1411
        %v1413 = vpop.f32.mrb[0].mxu0
        %1414 = vmatprep.mubr.bf16.mxu0 0
        %1415 = vmatmul.mubr.bf16.gmra.mrb[0].mxu0 %v1262
        %v1416 = vpop.f32.mrb[0].mxu0
        %v1417 = vadd.f32 0.0, %v1416
        %v1418 = vpop.f32.mrb[0].mxu0
        %v1419 = vpop.f32.mrb[0].mxu0
        %v1420 = vadd.f32 0.0, %v1419
        %v1421 = vpop.f32.mrb[0].mxu0
        %1422 = vmatprep.mubr.bf16.mxu0 0
        %1423 = vmatmul.mubr.bf16.gmra.mrb[0].mxu0 %v1265
        %v1424 = vpop.f32.mrb[0].mxu0
        %v1425 = vadd.f32 0.0, %v1424
        %v1426 = vpop.f32.mrb[0].mxu0
        %v1427 = vpop.f32.mrb[0].mxu0
        %v1428 = vadd.f32 0.0, %v1427
        %v1429 = vpop.f32.mrb[0].mxu0
        %1430 = vmatprep.mubr.bf16.mxu0 0
        %1431 = vmatmul.mubr.bf16.gmra.mrb[0].mxu0 %v1268
        %v1432 = vpop.f32.mrb[0].mxu0
        %v1433 = vadd.f32 0.0, %v1432
        %v1434 = vpop.f32.mrb[0].mxu0
        %v1435 = vpop.f32.mrb[0].mxu0
        %v1436 = vadd.f32 0.0, %v1435
        %v1437 = vpop.f32.mrb[0].mxu0
        %1438 = vdwg.mxu0
        %v1439 = vadd.f32 %v1073, %v1305
        %v1440 = vadd.f32 %v1076, %v1308
        %v1441 = vadd.f32 %v1081, %v1313
        %v1442 = vadd.f32 %v1084, %v1316
        %v1443 = vadd.f32 %v1089, %v1321
        %v1444 = vadd.f32 %v1092, %v1324
        %v1445 = vadd.f32 %v1097, %v1329
        %v1446 = vadd.f32 %v1100, %v1332
        %v1447 = vadd.f32 %v1105, %v1337
        %v1448 = vadd.f32 %v1108, %v1340
        %v1449 = vadd.f32 %v1113, %v1345
        %v1450 = vadd.f32 %v1116, %v1348
        %v1451 = vadd.f32 %v1121, %v1353
        %v1452 = vadd.f32 %v1124, %v1356
        %v1453 = vadd.f32 %v1129, %v1361
        %v1454 = vadd.f32 %v1132, %v1364
        %v1455 = vadd.f32 %v1137, %v1369
        %v1456 = vadd.f32 %v1140, %v1372
        %v1457 = vadd.f32 %v1145, %v1377
        %v1458 = vadd.f32 %v1148, %v1380
        %v1459 = vadd.f32 %v1153, %v1385
        %v1460 = vadd.f32 %v1156, %v1388
        %v1461 = vadd.f32 %v1161, %v1393
        %v1462 = vadd.f32 %v1164, %v1396
        %v1463 = vadd.f32 %v1169, %v1401
        %v1464 = vadd.f32 %v1172, %v1404
        %v1465 = vadd.f32 %v1177, %v1409
        %v1466 = vadd.f32 %v1180, %v1412
        %v1467 = vadd.f32 %v1185, %v1417
        %v1468 = vadd.f32 %v1188, %v1420
        %v1469 = vadd.f32 %v1193, %v1425
        %v1470 = vadd.f32 %v1196, %v1428
        %v1471 = vadd.f32 %v1201, %v1433
        %v1472 = vadd.f32 %v1204, %v1436
        %1473 = vmatprep.subr.bf16.mxu0 0
        %1474 = vmatpush1.bf16.msra.mxu0 %v750
        %1475 = vmatprep.subr.bf16.mxu0 0
        %1476 = vmatpush1.bf16.msra.mxu0 %v751
        %1477 = vmatprep.subr.bf16.mxu0 0
        %1478 = vmatpush1.bf16.msra.mxu0 0
        %1479 = vmatprep.subr.bf16.mxu0 0
        %1480 = vmatpush1.bf16.msra.mxu0 0
        %1481 = vmatprep.subr.bf16.mxu0 0
        %1482 = vmatpush1.bf16.msra.mxu0 0
        %1483 = vmatprep.subr.bf16.mxu0 0
        %1484 = vmatpush1.bf16.msra.mxu0 0
        %1485 = vmatprep.subr.bf16.mxu0 0
        %1486 = vmatpush1.bf16.msra.mxu0 0
        %1487 = vmatprep.subr.bf16.mxu0 0
        %1488 = vmatpush1.bf16.msra.mxu0 0
        %1489 = vmatprep.subr.bf16.mxu0 0
        %1490 = vmatpush1.bf16.msra.mxu0 0
        %1491 = vmatprep.subr.bf16.mxu0 0
        %1492 = vmatpush1.bf16.msra.mxu0 0
        %1493 = vmatprep.subr.bf16.mxu0 0
        %1494 = vmatpush1.bf16.msra.mxu0 0
        %1495 = vmatprep.subr.bf16.mxu0 0
        %1496 = vmatpush1.bf16.msra.mxu0 0
        %1497 = vmatprep.subr.bf16.mxu0 0
        %1498 = vmatpush1.bf16.msra.mxu0 0
        %1499 = vmatprep.subr.bf16.mxu0 0
        %1500 = vmatpush1.bf16.msra.mxu0 0
        %1501 = vmatprep.subr.bf16.mxu0 0
        %1502 = vmatpush1.bf16.msra.mxu0 0
        %1503 = vmatprep.subr.bf16.mxu0 0
        %1504 = vmatpush1.bf16.msra.mxu0 0
        %1505 = vmatprep.mubr.bf16.mxu0 0
        %1506 = vmatmul.mubr.bf16.gmra.mrb[0].mxu0 %v1220
        %v1507 = vpop.f32.mrb[0].mxu0
        %v1508 = vadd.f32 0.0, %v1507
        %v1509 = vpop.f32.mrb[0].mxu0
        %v1510 = vpop.f32.mrb[0].mxu0
        %v1511 = vadd.f32 0.0, %v1510
        %v1512 = vpop.f32.mrb[0].mxu0
        %1513 = vmatprep.mubr.bf16.mxu0 0
        %1514 = vmatmul.mubr.bf16.gmra.mrb[0].mxu0 %v1223
        %v1515 = vpop.f32.mrb[0].mxu0
        %v1516 = vadd.f32 0.0, %v1515
        %v1517 = vpop.f32.mrb[0].mxu0
        %v1518 = vpop.f32.mrb[0].mxu0
        %v1519 = vadd.f32 0.0, %v1518
        %v1520 = vpop.f32.mrb[0].mxu0
        %1521 = vmatprep.mubr.bf16.mxu0 0
        %1522 = vmatmul.mubr.bf16.gmra.mrb[0].mxu0 %v1226
        %v1523 = vpop.f32.mrb[0].mxu0
        %v1524 = vadd.f32 0.0, %v1523
        %v1525 = vpop.f32.mrb[0].mxu0
        %v1526 = vpop.f32.mrb[0].mxu0
        %v1527 = vadd.f32 0.0, %v1526
        %v1528 = vpop.f32.mrb[0].mxu0
        %1529 = vmatprep.mubr.bf16.mxu0 0
        %1530 = vmatmul.mubr.bf16.gmra.mrb[0].mxu0 %v1229
        %v1531 = vpop.f32.mrb[0].mxu0
        %v1532 = vadd.f32 0.0, %v1531
        %v1533 = vpop.f32.mrb[0].mxu0
        %v1534 = vpop.f32.mrb[0].mxu0
        %v1535 = vadd.f32 0.0, %v1534
        %v1536 = vpop.f32.mrb[0].mxu0
        %1537 = vmatprep.mubr.bf16.mxu0 0
        %1538 = vmatmul.mubr.bf16.gmra.mrb[0].mxu0 %v1232
        %v1539 = vpop.f32.mrb[0].mxu0
        %v1540 = vadd.f32 0.0, %v1539
        %v1541 = vpop.f32.mrb[0].mxu0
        %v1542 = vpop.f32.mrb[0].mxu0
        %v1543 = vadd.f32 0.0, %v1542
        %v1544 = vpop.f32.mrb[0].mxu0
        %1545 = vmatprep.mubr.bf16.mxu0 0
        %1546 = vmatmul.mubr.bf16.gmra.mrb[0].mxu0 %v1235
        %v1547 = vpop.f32.mrb[0].mxu0
        %v1548 = vadd.f32 0.0, %v1547
        %v1549 = vpop.f32.mrb[0].mxu0
        %v1550 = vpop.f32.mrb[0].mxu0
        %v1551 = vadd.f32 0.0, %v1550
        %v1552 = vpop.f32.mrb[0].mxu0
        %1553 = vmatprep.mubr.bf16.mxu0 0
        %1554 = vmatmul.mubr.bf16.gmra.mrb[0].mxu0 %v1238
        %v1555 = vpop.f32.mrb[0].mxu0
        %v1556 = vadd.f32 0.0, %v1555
        %v1557 = vpop.f32.mrb[0].mxu0
        %v1558 = vpop.f32.mrb[0].mxu0
        %v1559 = vadd.f32 0.0, %v1558
        %v1560 = vpop.f32.mrb[0].mxu0
        %1561 = vmatprep.mubr.bf16.mxu0 0
        %1562 = vmatmul.mubr.bf16.gmra.mrb[0].mxu0 %v1241
        %v1563 = vpop.f32.mrb[0].mxu0
        %v1564 = vadd.f32 0.0, %v1563
        %v1565 = vpop.f32.mrb[0].mxu0
        %v1566 = vpop.f32.mrb[0].mxu0
        %v1567 = vadd.f32 0.0, %v1566
        %v1568 = vpop.f32.mrb[0].mxu0
        %1569 = vmatprep.mubr.bf16.mxu0 0
        %1570 = vmatmul.mubr.bf16.gmra.mrb[0].mxu0 %v1244
        %v1571 = vpop.f32.mrb[0].mxu0
        %v1572 = vadd.f32 0.0, %v1571
        %v1573 = vpop.f32.mrb[0].mxu0
        %v1574 = vpop.f32.mrb[0].mxu0
        %v1575 = vadd.f32 0.0, %v1574
        %v1576 = vpop.f32.mrb[0].mxu0
        %1577 = vmatprep.mubr.bf16.mxu0 0
        %1578 = vmatmul.mubr.bf16.gmra.mrb[0].mxu0 %v1247
        %v1579 = vpop.f32.mrb[0].mxu0
        %v1580 = vadd.f32 0.0, %v1579
        %v1581 = vpop.f32.mrb[0].mxu0
        %v1582 = vpop.f32.mrb[0].mxu0
        %v1583 = vadd.f32 0.0, %v1582
        %v1584 = vpop.f32.mrb[0].mxu0
        %1585 = vmatprep.mubr.bf16.mxu0 0
        %1586 = vmatmul.mubr.bf16.gmra.mrb[0].mxu0 %v1250
        %v1587 = vpop.f32.mrb[0].mxu0
        %v1588 = vadd.f32 0.0, %v1587
        %v1589 = vpop.f32.mrb[0].mxu0
        %v1590 = vpop.f32.mrb[0].mxu0
        %v1591 = vadd.f32 0.0, %v1590
        %v1592 = vpop.f32.mrb[0].mxu0
        %1593 = vmatprep.mubr.bf16.mxu0 0
        %1594 = vmatmul.mubr.bf16.gmra.mrb[0].mxu0 %v1253
        %v1595 = vpop.f32.mrb[0].mxu0
        %v1596 = vadd.f32 0.0, %v1595
        %v1597 = vpop.f32.mrb[0].mxu0
        %v1598 = vpop.f32.mrb[0].mxu0
        %v1599 = vadd.f32 0.0, %v1598
        %v1600 = vpop.f32.mrb[0].mxu0
        %1601 = vmatprep.mubr.bf16.mxu0 0
        %1602 = vmatmul.mubr.bf16.gmra.mrb[0].mxu0 %v1256
        %v1603 = vpop.f32.mrb[0].mxu0
        %v1604 = vadd.f32 0.0, %v1603
        %v1605 = vpop.f32.mrb[0].mxu0
        %v1606 = vpop.f32.mrb[0].mxu0
        %v1607 = vadd.f32 0.0, %v1606
        %v1608 = vpop.f32.mrb[0].mxu0
        %1609 = vmatprep.mubr.bf16.mxu0 0
        %1610 = vmatmul.mubr.bf16.gmra.mrb[0].mxu0 %v1259
        %v1611 = vpop.f32.mrb[0].mxu0
        %v1612 = vadd.f32 0.0, %v1611
        %v1613 = vpop.f32.mrb[0].mxu0
        %v1614 = vpop.f32.mrb[0].mxu0
        %v1615 = vadd.f32 0.0, %v1614
        %v1616 = vpop.f32.mrb[0].mxu0
        %1617 = vmatprep.mubr.bf16.mxu0 0
        %1618 = vmatmul.mubr.bf16.gmra.mrb[0].mxu0 %v1262
        %v1619 = vpop.f32.mrb[0].mxu0
        %v1620 = vadd.f32 0.0, %v1619
        %v1621 = vpop.f32.mrb[0].mxu0
        %v1622 = vpop.f32.mrb[0].mxu0
        %v1623 = vadd.f32 0.0, %v1622
        %v1624 = vpop.f32.mrb[0].mxu0
        %1625 = vmatprep.mubr.bf16.mxu0 0
        %1626 = vmatmul.mubr.bf16.gmra.mrb[0].mxu0 %v1265
        %v1627 = vpop.f32.mrb[0].mxu0
        %v1628 = vadd.f32 0.0, %v1627
        %v1629 = vpop.f32.mrb[0].mxu0
        %v1630 = vpop.f32.mrb[0].mxu0
        %v1631 = vadd.f32 0.0, %v1630
        %v1632 = vpop.f32.mrb[0].mxu0
        %1633 = vmatprep.mubr.bf16.mxu0 0
        %1634 = vmatmul.mubr.bf16.gmra.mrb[0].mxu0 %v1268
        %v1635 = vpop.f32.mrb[0].mxu0
        %v1636 = vadd.f32 0.0, %v1635
        %v1637 = vpop.f32.mrb[0].mxu0
        %v1638 = vpop.f32.mrb[0].mxu0
        %v1639 = vadd.f32 0.0, %v1638
        %v1640 = vpop.f32.mrb[0].mxu0
        %1641 = vdwg.mxu0
        %1642 = vmatprep.subr.bf16.mxu0 0
        %1643 = vmatpush1.bf16.msra.mxu0 %v983
        %1644 = vmatprep.subr.bf16.mxu0 0
        %1645 = vmatpush1.bf16.msra.mxu0 %v984
        %1646 = vmatprep.subr.bf16.mxu0 0
        %1647 = vmatpush1.bf16.msra.mxu0 0
        %1648 = vmatprep.subr.bf16.mxu0 0
        %1649 = vmatpush1.bf16.msra.mxu0 0
        %1650 = vmatprep.subr.bf16.mxu0 0
        %1651 = vmatpush1.bf16.msra.mxu0 0
        %1652 = vmatprep.subr.bf16.mxu0 0
        %1653 = vmatpush1.bf16.msra.mxu0 0
        %1654 = vmatprep.subr.bf16.mxu0 0
        %1655 = vmatpush1.bf16.msra.mxu0 0
        %1656 = vmatprep.subr.bf16.mxu0 0
        %1657 = vmatpush1.bf16.msra.mxu0 0
        %1658 = vmatprep.subr.bf16.mxu0 0
        %1659 = vmatpush1.bf16.msra.mxu0 0
        %1660 = vmatprep.subr.bf16.mxu0 0
        %1661 = vmatpush1.bf16.msra.mxu0 0
        %1662 = vmatprep.subr.bf16.mxu0 0
        %1663 = vmatpush1.bf16.msra.mxu0 0
        %1664 = vmatprep.subr.bf16.mxu0 0
        %1665 = vmatpush1.bf16.msra.mxu0 0
        %1666 = vmatprep.subr.bf16.mxu0 0
        %1667 = vmatpush1.bf16.msra.mxu0 0
        %1668 = vmatprep.subr.bf16.mxu0 0
        %1669 = vmatpush1.bf16.msra.mxu0 0
        %1670 = vmatprep.subr.bf16.mxu0 0
        %1671 = vmatpush1.bf16.msra.mxu0 0
        %1672 = vmatprep.subr.bf16.mxu0 0
        %1673 = vmatpush1.bf16.msra.mxu0 0
        %1674 = vmatprep.mubr.bf16.mxu0 0
        %1675 = vmatmul.mubr.bf16.gmra.mrb[0].mxu0 %v756
        %v1676 = vpop.f32.mrb[0].mxu0
        %v1677 = vadd.f32 %v1508, %v1676
        %v1678 = vpop.f32.mrb[0].mxu0
        %v1679 = vpop.f32.mrb[0].mxu0
        %v1680 = vadd.f32 %v1511, %v1679
        %v1681 = vpop.f32.mrb[0].mxu0
        %1682 = vmatprep.mubr.bf16.mxu0 0
        %1683 = vmatmul.mubr.bf16.gmra.mrb[0].mxu0 %v759
        %v1684 = vpop.f32.mrb[0].mxu0
        %v1685 = vadd.f32 %v1516, %v1684
        %v1686 = vpop.f32.mrb[0].mxu0
        %v1687 = vpop.f32.mrb[0].mxu0
        %v1688 = vadd.f32 %v1519, %v1687
        %v1689 = vpop.f32.mrb[0].mxu0
        %1690 = vmatprep.mubr.bf16.mxu0 0
        %1691 = vmatmul.mubr.bf16.gmra.mrb[0].mxu0 %v762
        %v1692 = vpop.f32.mrb[0].mxu0
        %v1693 = vadd.f32 %v1524, %v1692
        %v1694 = vpop.f32.mrb[0].mxu0
        %v1695 = vpop.f32.mrb[0].mxu0
        %v1696 = vadd.f32 %v1527, %v1695
        %v1697 = vpop.f32.mrb[0].mxu0
        %1698 = vmatprep.mubr.bf16.mxu0 0
        %1699 = vmatmul.mubr.bf16.gmra.mrb[0].mxu0 %v765
        %v1700 = vpop.f32.mrb[0].mxu0
        %v1701 = vadd.f32 %v1532, %v1700
        %v1702 = vpop.f32.mrb[0].mxu0
        %v1703 = vpop.f32.mrb[0].mxu0
        %v1704 = vadd.f32 %v1535, %v1703
        %v1705 = vpop.f32.mrb[0].mxu0
        %1706 = vmatprep.mubr.bf16.mxu0 0
        %1707 = vmatmul.mubr.bf16.gmra.mrb[0].mxu0 %v768
        %v1708 = vpop.f32.mrb[0].mxu0
        %v1709 = vadd.f32 %v1540, %v1708
        %v1710 = vpop.f32.mrb[0].mxu0
        %v1711 = vpop.f32.mrb[0].mxu0
        %v1712 = vadd.f32 %v1543, %v1711
        %v1713 = vpop.f32.mrb[0].mxu0
        %1714 = vmatprep.mubr.bf16.mxu0 0
        %1715 = vmatmul.mubr.bf16.gmra.mrb[0].mxu0 %v771
        %v1716 = vpop.f32.mrb[0].mxu0
        %v1717 = vadd.f32 %v1548, %v1716
        %v1718 = vpop.f32.mrb[0].mxu0
        %v1719 = vpop.f32.mrb[0].mxu0
        %v1720 = vadd.f32 %v1551, %v1719
        %v1721 = vpop.f32.mrb[0].mxu0
        %1722 = vmatprep.mubr.bf16.mxu0 0
        %1723 = vmatmul.mubr.bf16.gmra.mrb[0].mxu0 %v774
        %v1724 = vpop.f32.mrb[0].mxu0
        %v1725 = vadd.f32 %v1556, %v1724
        %v1726 = vpop.f32.mrb[0].mxu0
        %v1727 = vpop.f32.mrb[0].mxu0
        %v1728 = vadd.f32 %v1559, %v1727
        %v1729 = vpop.f32.mrb[0].mxu0
        %1730 = vmatprep.mubr.bf16.mxu0 0
        %1731 = vmatmul.mubr.bf16.gmra.mrb[0].mxu0 %v777
        %v1732 = vpop.f32.mrb[0].mxu0
        %v1733 = vadd.f32 %v1564, %v1732
        %v1734 = vpop.f32.mrb[0].mxu0
        %v1735 = vpop.f32.mrb[0].mxu0
        %v1736 = vadd.f32 %v1567, %v1735
        %v1737 = vpop.f32.mrb[0].mxu0
        %1738 = vmatprep.mubr.bf16.mxu0 0
        %1739 = vmatmul.mubr.bf16.gmra.mrb[0].mxu0 %v780
        %v1740 = vpop.f32.mrb[0].mxu0
        %v1741 = vadd.f32 %v1572, %v1740
        %v1742 = vpop.f32.mrb[0].mxu0
        %v1743 = vpop.f32.mrb[0].mxu0
        %v1744 = vadd.f32 %v1575, %v1743
        %v1745 = vpop.f32.mrb[0].mxu0
        %1746 = vmatprep.mubr.bf16.mxu0 0
        %1747 = vmatmul.mubr.bf16.gmra.mrb[0].mxu0 %v783
        %v1748 = vpop.f32.mrb[0].mxu0
        %v1749 = vadd.f32 %v1580, %v1748
        %v1750 = vpop.f32.mrb[0].mxu0
        %v1751 = vpop.f32.mrb[0].mxu0
        %v1752 = vadd.f32 %v1583, %v1751
        %v1753 = vpop.f32.mrb[0].mxu0
        %1754 = vmatprep.mubr.bf16.mxu0 0
        %1755 = vmatmul.mubr.bf16.gmra.mrb[0].mxu0 %v786
        %v1756 = vpop.f32.mrb[0].mxu0
        %v1757 = vadd.f32 %v1588, %v1756
        %v1758 = vpop.f32.mrb[0].mxu0
        %v1759 = vpop.f32.mrb[0].mxu0
        %v1760 = vadd.f32 %v1591, %v1759
        %v1761 = vpop.f32.mrb[0].mxu0
        %1762 = vmatprep.mubr.bf16.mxu0 0
        %1763 = vmatmul.mubr.bf16.gmra.mrb[0].mxu0 %v789
        %v1764 = vpop.f32.mrb[0].mxu0
        %v1765 = vadd.f32 %v1596, %v1764
        %v1766 = vpop.f32.mrb[0].mxu0
        %v1767 = vpop.f32.mrb[0].mxu0
        %v1768 = vadd.f32 %v1599, %v1767
        %v1769 = vpop.f32.mrb[0].mxu0
        %1770 = vmatprep.mubr.bf16.mxu0 0
        %1771 = vmatmul.mubr.bf16.gmra.mrb[0].mxu0 %v792
        %v1772 = vpop.f32.mrb[0].mxu0
        %v1773 = vadd.f32 %v1604, %v1772
        %v1774 = vpop.f32.mrb[0].mxu0
        %v1775 = vpop.f32.mrb[0].mxu0
        %v1776 = vadd.f32 %v1607, %v1775
        %v1777 = vpop.f32.mrb[0].mxu0
        %1778 = vmatprep.mubr.bf16.mxu0 0
        %1779 = vmatmul.mubr.bf16.gmra.mrb[0].mxu0 %v795
        %v1780 = vpop.f32.mrb[0].mxu0
        %v1781 = vadd.f32 %v1612, %v1780
        %v1782 = vpop.f32.mrb[0].mxu0
        %v1783 = vpop.f32.mrb[0].mxu0
        %v1784 = vadd.f32 %v1615, %v1783
        %v1785 = vpop.f32.mrb[0].mxu0
        %1786 = vmatprep.mubr.bf16.mxu0 0
        %1787 = vmatmul.mubr.bf16.gmra.mrb[0].mxu0 %v798
        %v1788 = vpop.f32.mrb[0].mxu0
        %v1789 = vadd.f32 %v1620, %v1788
        %v1790 = vpop.f32.mrb[0].mxu0
        %v1791 = vpop.f32.mrb[0].mxu0
        %v1792 = vadd.f32 %v1623, %v1791
        %v1793 = vpop.f32.mrb[0].mxu0
        %1794 = vmatprep.mubr.bf16.mxu0 0
        %1795 = vmatmul.mubr.bf16.gmra.mrb[0].mxu0 %v801
        %v1796 = vpop.f32.mrb[0].mxu0
        %v1797 = vadd.f32 %v1628, %v1796
        %v1798 = vpop.f32.mrb[0].mxu0
        %v1799 = vpop.f32.mrb[0].mxu0
        %v1800 = vadd.f32 %v1631, %v1799
        %v1801 = vpop.f32.mrb[0].mxu0
        %1802 = vmatprep.mubr.bf16.mxu0 0
        %1803 = vmatmul.mubr.bf16.gmra.mrb[0].mxu0 %v804
        %v1804 = vpop.f32.mrb[0].mxu0
        %v1805 = vadd.f32 %v1636, %v1804
        %v1806 = vpop.f32.mrb[0].mxu0
        %v1807 = vpop.f32.mrb[0].mxu0
        %v1808 = vadd.f32 %v1639, %v1807
        %v1809 = vpop.f32.mrb[0].mxu0
        %1810 = vdwg.mxu0
        %v1812 = vsel %vm754, %v626, 0
        %v1815 = vsel %vm754, %v627, 0
        %v1818 = vsel %vm754, %v628, 0
        %v1821 = vsel %vm754, %v629, 0
        %v1824 = vsel %vm754, %v630, 0
        %v1827 = vsel %vm754, %v631, 0
        %v1830 = vsel %vm754, %v632, 0
        %v1833 = vsel %vm754, %v633, 0
        %v1836 = vsel %vm754, %v634, 0
        %v1839 = vsel %vm754, %v635, 0
        %v1842 = vsel %vm754, %v636, 0
        %v1845 = vsel %vm754, %v637, 0
        %v1848 = vsel %vm754, %v638, 0
        %v1851 = vsel %vm754, %v639, 0
        %v1854 = vsel %vm754, %v640, 0
        %v1857 = vsel %vm754, %v641, 0
        %v1860 = vsel %vm754, %v642, 0
        %1862 = vmatprep.subr.bf16.mxu0 0
        %1863 = vmatpush1.bf16.msra.mxu0 %v1215
        %1864 = vmatprep.subr.bf16.mxu0 0
        %1865 = vmatpush1.bf16.msra.mxu0 %v1216
        %1866 = vmatprep.subr.bf16.mxu0 0
        %1867 = vmatpush1.bf16.msra.mxu0 0
        %1868 = vmatprep.subr.bf16.mxu0 0
        %1869 = vmatpush1.bf16.msra.mxu0 0
        %1870 = vmatprep.subr.bf16.mxu0 0
        %1871 = vmatpush1.bf16.msra.mxu0 0
        %1872 = vmatprep.subr.bf16.mxu0 0
        %1873 = vmatpush1.bf16.msra.mxu0 0
        %1874 = vmatprep.subr.bf16.mxu0 0
        %1875 = vmatpush1.bf16.msra.mxu0 0
        %1876 = vmatprep.subr.bf16.mxu0 0
        %1877 = vmatpush1.bf16.msra.mxu0 0
        %1878 = vmatprep.subr.bf16.mxu0 0
        %1879 = vmatpush1.bf16.msra.mxu0 0
        %1880 = vmatprep.subr.bf16.mxu0 0
        %1881 = vmatpush1.bf16.msra.mxu0 0
        %1882 = vmatprep.subr.bf16.mxu0 0
        %1883 = vmatpush1.bf16.msra.mxu0 0
        %1884 = vmatprep.subr.bf16.mxu0 0
        %1885 = vmatpush1.bf16.msra.mxu0 0
        %1886 = vmatprep.subr.bf16.mxu0 0
        %1887 = vmatpush1.bf16.msra.mxu0 0
        %1888 = vmatprep.subr.bf16.mxu0 0
        %1889 = vmatpush1.bf16.msra.mxu0 0
        %1890 = vmatprep.subr.bf16.mxu0 0
        %1891 = vmatpush1.bf16.msra.mxu0 0
        %1892 = vmatprep.subr.bf16.mxu0 0
        %1893 = vmatpush1.bf16.msra.mxu0 0
        %1894 = vmatprep.mubr.bf16.mxu0 0
        %1895 = vmatmul.mubr.bf16.gmra.mrb[0].mxu0 %v1812
        %v1896 = vpop.f32.mrb[0].mxu0
        %v1897 = vadd.f32 0.0, %v1896
        %v1898 = vpop.f32.mrb[0].mxu0
        %v1899 = vpop.f32.mrb[0].mxu0
        %v1900 = vadd.f32 0.0, %v1899
        %v1901 = vpop.f32.mrb[0].mxu0
        %1902 = vmatprep.mubr.bf16.mxu0 0
        %1903 = vmatmul.mubr.bf16.gmra.mrb[0].mxu0 %v1815
        %v1904 = vpop.f32.mrb[0].mxu0
        %v1905 = vadd.f32 0.0, %v1904
        %v1906 = vpop.f32.mrb[0].mxu0
        %v1907 = vpop.f32.mrb[0].mxu0
        %v1908 = vadd.f32 0.0, %v1907
        %v1909 = vpop.f32.mrb[0].mxu0
        %1910 = vmatprep.mubr.bf16.mxu0 0
        %1911 = vmatmul.mubr.bf16.gmra.mrb[0].mxu0 %v1818
        %v1912 = vpop.f32.mrb[0].mxu0
        %v1913 = vadd.f32 0.0, %v1912
        %v1914 = vpop.f32.mrb[0].mxu0
        %v1915 = vpop.f32.mrb[0].mxu0
        %v1916 = vadd.f32 0.0, %v1915
        %v1917 = vpop.f32.mrb[0].mxu0
        %1918 = vmatprep.mubr.bf16.mxu0 0
        %1919 = vmatmul.mubr.bf16.gmra.mrb[0].mxu0 %v1821
        %v1920 = vpop.f32.mrb[0].mxu0
        %v1921 = vadd.f32 0.0, %v1920
        %v1922 = vpop.f32.mrb[0].mxu0
        %v1923 = vpop.f32.mrb[0].mxu0
        %v1924 = vadd.f32 0.0, %v1923
        %v1925 = vpop.f32.mrb[0].mxu0
        %1926 = vmatprep.mubr.bf16.mxu0 0
        %1927 = vmatmul.mubr.bf16.gmra.mrb[0].mxu0 %v1824
        %v1928 = vpop.f32.mrb[0].mxu0
        %v1929 = vadd.f32 0.0, %v1928
        %v1930 = vpop.f32.mrb[0].mxu0
        %v1931 = vpop.f32.mrb[0].mxu0
        %v1932 = vadd.f32 0.0, %v1931
        %v1933 = vpop.f32.mrb[0].mxu0
        %1934 = vmatprep.mubr.bf16.mxu0 0
        %1935 = vmatmul.mubr.bf16.gmra.mrb[0].mxu0 %v1827
        %v1936 = vpop.f32.mrb[0].mxu0
        %v1937 = vadd.f32 0.0, %v1936
        %v1938 = vpop.f32.mrb[0].mxu0
        %v1939 = vpop.f32.mrb[0].mxu0
        %v1940 = vadd.f32 0.0, %v1939
        %v1941 = vpop.f32.mrb[0].mxu0
        %1942 = vmatprep.mubr.bf16.mxu0 0
        %1943 = vmatmul.mubr.bf16.gmra.mrb[0].mxu0 %v1830
        %v1944 = vpop.f32.mrb[0].mxu0
        %v1945 = vadd.f32 0.0, %v1944
        %v1946 = vpop.f32.mrb[0].mxu0
        %v1947 = vpop.f32.mrb[0].mxu0
        %v1948 = vadd.f32 0.0, %v1947
        %v1949 = vpop.f32.mrb[0].mxu0
        %1950 = vmatprep.mubr.bf16.mxu0 0
        %1951 = vmatmul.mubr.bf16.gmra.mrb[0].mxu0 %v1833
        %v1952 = vpop.f32.mrb[0].mxu0
        %v1953 = vadd.f32 0.0, %v1952
        %v1954 = vpop.f32.mrb[0].mxu0
        %v1955 = vpop.f32.mrb[0].mxu0
        %v1956 = vadd.f32 0.0, %v1955
        %v1957 = vpop.f32.mrb[0].mxu0
        %1958 = vmatprep.mubr.bf16.mxu0 0
        %1959 = vmatmul.mubr.bf16.gmra.mrb[0].mxu0 %v1836
        %v1960 = vpop.f32.mrb[0].mxu0
        %v1961 = vadd.f32 0.0, %v1960
        %v1962 = vpop.f32.mrb[0].mxu0
        %v1963 = vpop.f32.mrb[0].mxu0
        %v1964 = vadd.f32 0.0, %v1963
        %v1965 = vpop.f32.mrb[0].mxu0
        %1966 = vmatprep.mubr.bf16.mxu0 0
        %1967 = vmatmul.mubr.bf16.gmra.mrb[0].mxu0 %v1839
        %v1968 = vpop.f32.mrb[0].mxu0
        %v1969 = vadd.f32 0.0, %v1968
        %v1970 = vpop.f32.mrb[0].mxu0
        %v1971 = vpop.f32.mrb[0].mxu0
        %v1972 = vadd.f32 0.0, %v1971
        %v1973 = vpop.f32.mrb[0].mxu0
        %1974 = vmatprep.mubr.bf16.mxu0 0
        %1975 = vmatmul.mubr.bf16.gmra.mrb[0].mxu0 %v1842
        %v1976 = vpop.f32.mrb[0].mxu0
        %v1977 = vadd.f32 0.0, %v1976
        %v1978 = vpop.f32.mrb[0].mxu0
        %v1979 = vpop.f32.mrb[0].mxu0
        %v1980 = vadd.f32 0.0, %v1979
        %v1981 = vpop.f32.mrb[0].mxu0
        %1982 = vmatprep.mubr.bf16.mxu0 0
        %1983 = vmatmul.mubr.bf16.gmra.mrb[0].mxu0 %v1845
        %v1984 = vpop.f32.mrb[0].mxu0
        %v1985 = vadd.f32 0.0, %v1984
        %v1986 = vpop.f32.mrb[0].mxu0
        %v1987 = vpop.f32.mrb[0].mxu0
        %v1988 = vadd.f32 0.0, %v1987
        %v1989 = vpop.f32.mrb[0].mxu0
        %1990 = vmatprep.mubr.bf16.mxu0 0
        %1991 = vmatmul.mubr.bf16.gmra.mrb[0].mxu0 %v1848
        %v1992 = vpop.f32.mrb[0].mxu0
        %v1993 = vadd.f32 0.0, %v1992
        %v1994 = vpop.f32.mrb[0].mxu0
        %v1995 = vpop.f32.mrb[0].mxu0
        %v1996 = vadd.f32 0.0, %v1995
        %v1997 = vpop.f32.mrb[0].mxu0
        %1998 = vmatprep.mubr.bf16.mxu0 0
        %1999 = vmatmul.mubr.bf16.gmra.mrb[0].mxu0 %v1851
        %v2000 = vpop.f32.mrb[0].mxu0
        %v2001 = vadd.f32 0.0, %v2000
        %v2002 = vpop.f32.mrb[0].mxu0
        %v2003 = vpop.f32.mrb[0].mxu0
        %v2004 = vadd.f32 0.0, %v2003
        %v2005 = vpop.f32.mrb[0].mxu0
        %2006 = vmatprep.mubr.bf16.mxu0 0
        %2007 = vmatmul.mubr.bf16.gmra.mrb[0].mxu0 %v1854
        %v2008 = vpop.f32.mrb[0].mxu0
        %v2009 = vadd.f32 0.0, %v2008
        %v2010 = vpop.f32.mrb[0].mxu0
        %v2011 = vpop.f32.mrb[0].mxu0
        %v2012 = vadd.f32 0.0, %v2011
        %v2013 = vpop.f32.mrb[0].mxu0
        %2014 = vmatprep.mubr.bf16.mxu0 0
        %2015 = vmatmul.mubr.bf16.gmra.mrb[0].mxu0 %v1857
        %v2016 = vpop.f32.mrb[0].mxu0
        %v2017 = vadd.f32 0.0, %v2016
        %v2018 = vpop.f32.mrb[0].mxu0
        %v2019 = vpop.f32.mrb[0].mxu0
        %v2020 = vadd.f32 0.0, %v2019
        %v2021 = vpop.f32.mrb[0].mxu0
        %2022 = vmatprep.mubr.bf16.mxu0 0
        %2023 = vmatmul.mubr.bf16.gmra.mrb[0].mxu0 %v1860
        %v2024 = vpop.f32.mrb[0].mxu0
        %v2025 = vadd.f32 0.0, %v2024
        %v2026 = vpop.f32.mrb[0].mxu0
        %v2027 = vpop.f32.mrb[0].mxu0
        %v2028 = vadd.f32 0.0, %v2027
        %v2029 = vpop.f32.mrb[0].mxu0
        %2030 = vdwg.mxu0
        %v2031 = vadd.f32 %v1677, %v1897
        %v2032 = vadd.f32 %v1680, %v1900
        %v2033 = vadd.f32 %v1685, %v1905
        %v2034 = vadd.f32 %v1688, %v1908
        %v2035 = vadd.f32 %v1693, %v1913
        %v2036 = vadd.f32 %v1696, %v1916
        %v2037 = vadd.f32 %v1701, %v1921
        %v2038 = vadd.f32 %v1704, %v1924
        %v2039 = vadd.f32 %v1709, %v1929
        %v2040 = vadd.f32 %v1712, %v1932
        %v2041 = vadd.f32 %v1717, %v1937
        %v2042 = vadd.f32 %v1720, %v1940
        %v2043 = vadd.f32 %v1725, %v1945
        %v2044 = vadd.f32 %v1728, %v1948
        %v2045 = vadd.f32 %v1733, %v1953
        %v2046 = vadd.f32 %v1736, %v1956
        %v2047 = vadd.f32 %v1741, %v1961
        %v2048 = vadd.f32 %v1744, %v1964
        %v2049 = vadd.f32 %v1749, %v1969
        %v2050 = vadd.f32 %v1752, %v1972
        %v2051 = vadd.f32 %v1757, %v1977
        %v2052 = vadd.f32 %v1760, %v1980
        %v2053 = vadd.f32 %v1765, %v1985
        %v2054 = vadd.f32 %v1768, %v1988
        %v2055 = vadd.f32 %v1773, %v1993
        %v2056 = vadd.f32 %v1776, %v1996
        %v2057 = vadd.f32 %v1781, %v2001
        %v2058 = vadd.f32 %v1784, %v2004
        %v2059 = vadd.f32 %v1789, %v2009
        %v2060 = vadd.f32 %v1792, %v2012
        %v2061 = vadd.f32 %v1797, %v2017
        %v2062 = vadd.f32 %v1800, %v2020
        %v2063 = vadd.f32 %v1805, %v2025
        %v2064 = vadd.f32 %v1808, %v2028
        %v2065 = vmax.f32 %v1439, %v2031
        %v2066 = vmax.f32 %v1440, %v2032
        %v2067 = vmax.f32 %v1441, %v2033
        %v2068 = vmax.f32 %v1442, %v2034
        %v2069 = vmax.f32 %v1443, %v2035
        %v2070 = vmax.f32 %v1444, %v2036
        %v2071 = vmax.f32 %v1445, %v2037
        %v2072 = vmax.f32 %v1446, %v2038
        %v2073 = vmax.f32 %v1447, %v2039
        %v2074 = vmax.f32 %v1448, %v2040
        %v2075 = vmax.f32 %v1449, %v2041
        %v2076 = vmax.f32 %v1450, %v2042
        %v2077 = vmax.f32 %v1451, %v2043
        %v2078 = vmax.f32 %v1452, %v2044
        %v2079 = vmax.f32 %v1453, %v2045
        %v2080 = vmax.f32 %v1454, %v2046
        %v2081 = vmax.f32 %v1455, %v2047
        %v2082 = vmax.f32 %v1456, %v2048
        %v2083 = vmax.f32 %v1457, %v2049
        %v2084 = vmax.f32 %v1458, %v2050
        %v2085 = vmax.f32 %v1459, %v2051
        %v2086 = vmax.f32 %v1460, %v2052
        %v2087 = vmax.f32 %v1461, %v2053
        %v2088 = vmax.f32 %v1462, %v2054
        %v2089 = vmax.f32 %v1463, %v2055
        %v2090 = vmax.f32 %v1464, %v2056
        %v2091 = vmax.f32 %v1465, %v2057
        %v2092 = vmax.f32 %v1466, %v2058
        %v2093 = vmax.f32 %v1467, %v2059
        %v2094 = vmax.f32 %v1468, %v2060
        %v2095 = vmax.f32 %v1469, %v2061
        %v2096 = vmax.f32 %v1470, %v2062
        %v2097 = vmax.f32 %v1471, %v2063
        %v2098 = vmax.f32 %v1472, %v2064
        %2099 = vmatprep.subr.bf16.mxu0 0
        %2100 = vmatpush1.bf16.msra.mxu0 %v750
        %2101 = vmatprep.subr.bf16.mxu0 0
        %2102 = vmatpush1.bf16.msra.mxu0 %v751
        %2103 = vmatprep.subr.bf16.mxu0 0
        %2104 = vmatpush1.bf16.msra.mxu0 0
        %2105 = vmatprep.subr.bf16.mxu0 0
        %2106 = vmatpush1.bf16.msra.mxu0 0
        %2107 = vmatprep.subr.bf16.mxu0 0
        %2108 = vmatpush1.bf16.msra.mxu0 0
        %2109 = vmatprep.subr.bf16.mxu0 0
        %2110 = vmatpush1.bf16.msra.mxu0 0
        %2111 = vmatprep.subr.bf16.mxu0 0
        %2112 = vmatpush1.bf16.msra.mxu0 0
        %2113 = vmatprep.subr.bf16.mxu0 0
        %2114 = vmatpush1.bf16.msra.mxu0 0
        %2115 = vmatprep.subr.bf16.mxu0 0
        %2116 = vmatpush1.bf16.msra.mxu0 0
        %2117 = vmatprep.subr.bf16.mxu0 0
        %2118 = vmatpush1.bf16.msra.mxu0 0
        %2119 = vmatprep.subr.bf16.mxu0 0
        %2120 = vmatpush1.bf16.msra.mxu0 0
        %2121 = vmatprep.subr.bf16.mxu0 0
        %2122 = vmatpush1.bf16.msra.mxu0 0
        %2123 = vmatprep.subr.bf16.mxu0 0
        %2124 = vmatpush1.bf16.msra.mxu0 0
        %2125 = vmatprep.subr.bf16.mxu0 0
        %2126 = vmatpush1.bf16.msra.mxu0 0
        %2127 = vmatprep.subr.bf16.mxu0 0
        %2128 = vmatpush1.bf16.msra.mxu0 0
        %2129 = vmatprep.subr.bf16.mxu0 0
        %2130 = vmatpush1.bf16.msra.mxu0 0
        %2131 = vmatprep.mubr.bf16.mxu0 0
        %2132 = vmatmul.mubr.bf16.gmra.mrb[0].mxu0 %v1812
        %v2133 = vpop.f32.mrb[0].mxu0
        %v2134 = vadd.f32 0.0, %v2133
        %v2135 = vpop.f32.mrb[0].mxu0
        %v2136 = vpop.f32.mrb[0].mxu0
        %v2137 = vadd.f32 0.0, %v2136
        %v2138 = vpop.f32.mrb[0].mxu0
        %2139 = vmatprep.mubr.bf16.mxu0 0
        %2140 = vmatmul.mubr.bf16.gmra.mrb[0].mxu0 %v1815
        %v2141 = vpop.f32.mrb[0].mxu0
        %v2142 = vadd.f32 0.0, %v2141
        %v2143 = vpop.f32.mrb[0].mxu0
        %v2144 = vpop.f32.mrb[0].mxu0
        %v2145 = vadd.f32 0.0, %v2144
        %v2146 = vpop.f32.mrb[0].mxu0
        %2147 = vmatprep.mubr.bf16.mxu0 0
        %2148 = vmatmul.mubr.bf16.gmra.mrb[0].mxu0 %v1818
        %v2149 = vpop.f32.mrb[0].mxu0
        %v2150 = vadd.f32 0.0, %v2149
        %v2151 = vpop.f32.mrb[0].mxu0
        %v2152 = vpop.f32.mrb[0].mxu0
        %v2153 = vadd.f32 0.0, %v2152
        %v2154 = vpop.f32.mrb[0].mxu0
        %2155 = vmatprep.mubr.bf16.mxu0 0
        %2156 = vmatmul.mubr.bf16.gmra.mrb[0].mxu0 %v1821
        %v2157 = vpop.f32.mrb[0].mxu0
        %v2158 = vadd.f32 0.0, %v2157
        %v2159 = vpop.f32.mrb[0].mxu0
        %v2160 = vpop.f32.mrb[0].mxu0
        %v2161 = vadd.f32 0.0, %v2160
        %v2162 = vpop.f32.mrb[0].mxu0
        %2163 = vmatprep.mubr.bf16.mxu0 0
        %2164 = vmatmul.mubr.bf16.gmra.mrb[0].mxu0 %v1824
        %v2165 = vpop.f32.mrb[0].mxu0
        %v2166 = vadd.f32 0.0, %v2165
        %v2167 = vpop.f32.mrb[0].mxu0
        %v2168 = vpop.f32.mrb[0].mxu0
        %v2169 = vadd.f32 0.0, %v2168
        %v2170 = vpop.f32.mrb[0].mxu0
        %2171 = vmatprep.mubr.bf16.mxu0 0
        %2172 = vmatmul.mubr.bf16.gmra.mrb[0].mxu0 %v1827
        %v2173 = vpop.f32.mrb[0].mxu0
        %v2174 = vadd.f32 0.0, %v2173
        %v2175 = vpop.f32.mrb[0].mxu0
        %v2176 = vpop.f32.mrb[0].mxu0
        %v2177 = vadd.f32 0.0, %v2176
        %v2178 = vpop.f32.mrb[0].mxu0
        %2179 = vmatprep.mubr.bf16.mxu0 0
        %2180 = vmatmul.mubr.bf16.gmra.mrb[0].mxu0 %v1830
        %v2181 = vpop.f32.mrb[0].mxu0
        %v2182 = vadd.f32 0.0, %v2181
        %v2183 = vpop.f32.mrb[0].mxu0
        %v2184 = vpop.f32.mrb[0].mxu0
        %v2185 = vadd.f32 0.0, %v2184
        %v2186 = vpop.f32.mrb[0].mxu0
        %2187 = vmatprep.mubr.bf16.mxu0 0
        %2188 = vmatmul.mubr.bf16.gmra.mrb[0].mxu0 %v1833
        %v2189 = vpop.f32.mrb[0].mxu0
        %v2190 = vadd.f32 0.0, %v2189
        %v2191 = vpop.f32.mrb[0].mxu0
        %v2192 = vpop.f32.mrb[0].mxu0
        %v2193 = vadd.f32 0.0, %v2192
        %v2194 = vpop.f32.mrb[0].mxu0
        %2195 = vmatprep.mubr.bf16.mxu0 0
        %2196 = vmatmul.mubr.bf16.gmra.mrb[0].mxu0 %v1836
        %v2197 = vpop.f32.mrb[0].mxu0
        %v2198 = vadd.f32 0.0, %v2197
        %v2199 = vpop.f32.mrb[0].mxu0
        %v2200 = vpop.f32.mrb[0].mxu0
        %v2201 = vadd.f32 0.0, %v2200
        %v2202 = vpop.f32.mrb[0].mxu0
        %2203 = vmatprep.mubr.bf16.mxu0 0
        %2204 = vmatmul.mubr.bf16.gmra.mrb[0].mxu0 %v1839
        %v2205 = vpop.f32.mrb[0].mxu0
        %v2206 = vadd.f32 0.0, %v2205
        %v2207 = vpop.f32.mrb[0].mxu0
        %v2208 = vpop.f32.mrb[0].mxu0
        %v2209 = vadd.f32 0.0, %v2208
        %v2210 = vpop.f32.mrb[0].mxu0
        %2211 = vmatprep.mubr.bf16.mxu0 0
        %2212 = vmatmul.mubr.bf16.gmra.mrb[0].mxu0 %v1842
        %v2213 = vpop.f32.mrb[0].mxu0
        %v2214 = vadd.f32 0.0, %v2213
        %v2215 = vpop.f32.mrb[0].mxu0
        %v2216 = vpop.f32.mrb[0].mxu0
        %v2217 = vadd.f32 0.0, %v2216
        %v2218 = vpop.f32.mrb[0].mxu0
        %2219 = vmatprep.mubr.bf16.mxu0 0
        %2220 = vmatmul.mubr.bf16.gmra.mrb[0].mxu0 %v1845
        %v2221 = vpop.f32.mrb[0].mxu0
        %v2222 = vadd.f32 0.0, %v2221
        %v2223 = vpop.f32.mrb[0].mxu0
        %v2224 = vpop.f32.mrb[0].mxu0
        %v2225 = vadd.f32 0.0, %v2224
        %v2226 = vpop.f32.mrb[0].mxu0
        %2227 = vmatprep.mubr.bf16.mxu0 0
        %2228 = vmatmul.mubr.bf16.gmra.mrb[0].mxu0 %v1848
        %v2229 = vpop.f32.mrb[0].mxu0
        %v2230 = vadd.f32 0.0, %v2229
        %v2231 = vpop.f32.mrb[0].mxu0
        %v2232 = vpop.f32.mrb[0].mxu0
        %v2233 = vadd.f32 0.0, %v2232
        %v2234 = vpop.f32.mrb[0].mxu0
        %2235 = vmatprep.mubr.bf16.mxu0 0
        %2236 = vmatmul.mubr.bf16.gmra.mrb[0].mxu0 %v1851
        %v2237 = vpop.f32.mrb[0].mxu0
        %v2238 = vadd.f32 0.0, %v2237
        %v2239 = vpop.f32.mrb[0].mxu0
        %v2240 = vpop.f32.mrb[0].mxu0
        %v2241 = vadd.f32 0.0, %v2240
        %v2242 = vpop.f32.mrb[0].mxu0
        %2243 = vmatprep.mubr.bf16.mxu0 0
        %2244 = vmatmul.mubr.bf16.gmra.mrb[0].mxu0 %v1854
        %v2245 = vpop.f32.mrb[0].mxu0
        %v2246 = vadd.f32 0.0, %v2245
        %v2247 = vpop.f32.mrb[0].mxu0
        %v2248 = vpop.f32.mrb[0].mxu0
        %v2249 = vadd.f32 0.0, %v2248
        %v2250 = vpop.f32.mrb[0].mxu0
        %2251 = vmatprep.mubr.bf16.mxu0 0
        %2252 = vmatmul.mubr.bf16.gmra.mrb[0].mxu0 %v1857
        %v2253 = vpop.f32.mrb[0].mxu0
        %v2254 = vadd.f32 0.0, %v2253
        %v2255 = vpop.f32.mrb[0].mxu0
        %v2256 = vpop.f32.mrb[0].mxu0
        %v2257 = vadd.f32 0.0, %v2256
        %v2258 = vpop.f32.mrb[0].mxu0
        %2259 = vmatprep.mubr.bf16.mxu0 0
        %2260 = vmatmul.mubr.bf16.gmra.mrb[0].mxu0 %v1860
        %v2261 = vpop.f32.mrb[0].mxu0
        %v2262 = vadd.f32 0.0, %v2261
        %v2263 = vpop.f32.mrb[0].mxu0
        %v2264 = vpop.f32.mrb[0].mxu0
        %v2265 = vadd.f32 0.0, %v2264
        %v2266 = vpop.f32.mrb[0].mxu0
        %2267 = vdwg.mxu0
        %2268 = vmatprep.subr.bf16.mxu0 0
        %2269 = vmatpush1.bf16.msra.mxu0 %v983
        %2270 = vmatprep.subr.bf16.mxu0 0
        %2271 = vmatpush1.bf16.msra.mxu0 %v984
        %2272 = vmatprep.subr.bf16.mxu0 0
        %2273 = vmatpush1.bf16.msra.mxu0 0
        %2274 = vmatprep.subr.bf16.mxu0 0
        %2275 = vmatpush1.bf16.msra.mxu0 0
        %2276 = vmatprep.subr.bf16.mxu0 0
        %2277 = vmatpush1.bf16.msra.mxu0 0
        %2278 = vmatprep.subr.bf16.mxu0 0
        %2279 = vmatpush1.bf16.msra.mxu0 0
        %2280 = vmatprep.subr.bf16.mxu0 0
        %2281 = vmatpush1.bf16.msra.mxu0 0
        %2282 = vmatprep.subr.bf16.mxu0 0
        %2283 = vmatpush1.bf16.msra.mxu0 0
        %2284 = vmatprep.subr.bf16.mxu0 0
        %2285 = vmatpush1.bf16.msra.mxu0 0
        %2286 = vmatprep.subr.bf16.mxu0 0
        %2287 = vmatpush1.bf16.msra.mxu0 0
        %2288 = vmatprep.subr.bf16.mxu0 0
        %2289 = vmatpush1.bf16.msra.mxu0 0
        %2290 = vmatprep.subr.bf16.mxu0 0
        %2291 = vmatpush1.bf16.msra.mxu0 0
        %2292 = vmatprep.subr.bf16.mxu0 0
        %2293 = vmatpush1.bf16.msra.mxu0 0
        %2294 = vmatprep.subr.bf16.mxu0 0
        %2295 = vmatpush1.bf16.msra.mxu0 0
        %2296 = vmatprep.subr.bf16.mxu0 0
        %2297 = vmatpush1.bf16.msra.mxu0 0
        %2298 = vmatprep.subr.bf16.mxu0 0
        %2299 = vmatpush1.bf16.msra.mxu0 0
        %2300 = vmatprep.mubr.bf16.mxu0 0
        %2301 = vmatmul.mubr.bf16.gmra.mrb[0].mxu0 %v1220
        %v2302 = vpop.f32.mrb[0].mxu0
        %v2303 = vadd.f32 %v2134, %v2302
        %v2304 = vpop.f32.mrb[0].mxu0
        %v2305 = vpop.f32.mrb[0].mxu0
        %v2306 = vadd.f32 %v2137, %v2305
        %v2307 = vpop.f32.mrb[0].mxu0
        %2308 = vmatprep.mubr.bf16.mxu0 0
        %2309 = vmatmul.mubr.bf16.gmra.mrb[0].mxu0 %v1223
        %v2310 = vpop.f32.mrb[0].mxu0
        %v2311 = vadd.f32 %v2142, %v2310
        %v2312 = vpop.f32.mrb[0].mxu0
        %v2313 = vpop.f32.mrb[0].mxu0
        %v2314 = vadd.f32 %v2145, %v2313
        %v2315 = vpop.f32.mrb[0].mxu0
        %2316 = vmatprep.mubr.bf16.mxu0 0
        %2317 = vmatmul.mubr.bf16.gmra.mrb[0].mxu0 %v1226
        %v2318 = vpop.f32.mrb[0].mxu0
        %v2319 = vadd.f32 %v2150, %v2318
        %v2320 = vpop.f32.mrb[0].mxu0
        %v2321 = vpop.f32.mrb[0].mxu0
        %v2322 = vadd.f32 %v2153, %v2321
        %v2323 = vpop.f32.mrb[0].mxu0
        %2324 = vmatprep.mubr.bf16.mxu0 0
        %2325 = vmatmul.mubr.bf16.gmra.mrb[0].mxu0 %v1229
        %v2326 = vpop.f32.mrb[0].mxu0
        %v2327 = vadd.f32 %v2158, %v2326
        %v2328 = vpop.f32.mrb[0].mxu0
        %v2329 = vpop.f32.mrb[0].mxu0
        %v2330 = vadd.f32 %v2161, %v2329
        %v2331 = vpop.f32.mrb[0].mxu0
        %2332 = vmatprep.mubr.bf16.mxu0 0
        %2333 = vmatmul.mubr.bf16.gmra.mrb[0].mxu0 %v1232
        %v2334 = vpop.f32.mrb[0].mxu0
        %v2335 = vadd.f32 %v2166, %v2334
        %v2336 = vpop.f32.mrb[0].mxu0
        %v2337 = vpop.f32.mrb[0].mxu0
        %v2338 = vadd.f32 %v2169, %v2337
        %v2339 = vpop.f32.mrb[0].mxu0
        %2340 = vmatprep.mubr.bf16.mxu0 0
        %2341 = vmatmul.mubr.bf16.gmra.mrb[0].mxu0 %v1235
        %v2342 = vpop.f32.mrb[0].mxu0
        %v2343 = vadd.f32 %v2174, %v2342
        %v2344 = vpop.f32.mrb[0].mxu0
        %v2345 = vpop.f32.mrb[0].mxu0
        %v2346 = vadd.f32 %v2177, %v2345
        %v2347 = vpop.f32.mrb[0].mxu0
        %2348 = vmatprep.mubr.bf16.mxu0 0
        %2349 = vmatmul.mubr.bf16.gmra.mrb[0].mxu0 %v1238
        %v2350 = vpop.f32.mrb[0].mxu0
        %v2351 = vadd.f32 %v2182, %v2350
        %v2352 = vpop.f32.mrb[0].mxu0
        %v2353 = vpop.f32.mrb[0].mxu0
        %v2354 = vadd.f32 %v2185, %v2353
        %v2355 = vpop.f32.mrb[0].mxu0
        %2356 = vmatprep.mubr.bf16.mxu0 0
        %2357 = vmatmul.mubr.bf16.gmra.mrb[0].mxu0 %v1241
        %v2358 = vpop.f32.mrb[0].mxu0
        %v2359 = vadd.f32 %v2190, %v2358
        %v2360 = vpop.f32.mrb[0].mxu0
        %v2361 = vpop.f32.mrb[0].mxu0
        %v2362 = vadd.f32 %v2193, %v2361
        %v2363 = vpop.f32.mrb[0].mxu0
        %2364 = vmatprep.mubr.bf16.mxu0 0
        %2365 = vmatmul.mubr.bf16.gmra.mrb[0].mxu0 %v1244
        %v2366 = vpop.f32.mrb[0].mxu0
        %v2367 = vadd.f32 %v2198, %v2366
        %v2368 = vpop.f32.mrb[0].mxu0
        %v2369 = vpop.f32.mrb[0].mxu0
        %v2370 = vadd.f32 %v2201, %v2369
        %v2371 = vpop.f32.mrb[0].mxu0
        %2372 = vmatprep.mubr.bf16.mxu0 0
        %2373 = vmatmul.mubr.bf16.gmra.mrb[0].mxu0 %v1247
        %v2374 = vpop.f32.mrb[0].mxu0
        %v2375 = vadd.f32 %v2206, %v2374
        %v2376 = vpop.f32.mrb[0].mxu0
        %v2377 = vpop.f32.mrb[0].mxu0
        %v2378 = vadd.f32 %v2209, %v2377
        %v2379 = vpop.f32.mrb[0].mxu0
        %2380 = vmatprep.mubr.bf16.mxu0 0
        %2381 = vmatmul.mubr.bf16.gmra.mrb[0].mxu0 %v1250
        %v2382 = vpop.f32.mrb[0].mxu0
        %v2383 = vadd.f32 %v2214, %v2382
        %v2384 = vpop.f32.mrb[0].mxu0
        %v2385 = vpop.f32.mrb[0].mxu0
        %v2386 = vadd.f32 %v2217, %v2385
        %v2387 = vpop.f32.mrb[0].mxu0
        %2388 = vmatprep.mubr.bf16.mxu0 0
        %2389 = vmatmul.mubr.bf16.gmra.mrb[0].mxu0 %v1253
        %v2390 = vpop.f32.mrb[0].mxu0
        %v2391 = vadd.f32 %v2222, %v2390
        %v2392 = vpop.f32.mrb[0].mxu0
        %v2393 = vpop.f32.mrb[0].mxu0
        %v2394 = vadd.f32 %v2225, %v2393
        %v2395 = vpop.f32.mrb[0].mxu0
        %2396 = vmatprep.mubr.bf16.mxu0 0
        %2397 = vmatmul.mubr.bf16.gmra.mrb[0].mxu0 %v1256
        %v2398 = vpop.f32.mrb[0].mxu0
        %v2399 = vadd.f32 %v2230, %v2398
        %v2400 = vpop.f32.mrb[0].mxu0
        %v2401 = vpop.f32.mrb[0].mxu0
        %v2402 = vadd.f32 %v2233, %v2401
        %v2403 = vpop.f32.mrb[0].mxu0
        %2404 = vmatprep.mubr.bf16.mxu0 0
        %2405 = vmatmul.mubr.bf16.gmra.mrb[0].mxu0 %v1259
        %v2406 = vpop.f32.mrb[0].mxu0
        %v2407 = vadd.f32 %v2238, %v2406
        %v2408 = vpop.f32.mrb[0].mxu0
        %v2409 = vpop.f32.mrb[0].mxu0
        %v2410 = vadd.f32 %v2241, %v2409
        %v2411 = vpop.f32.mrb[0].mxu0
        %2412 = vmatprep.mubr.bf16.mxu0 0
        %2413 = vmatmul.mubr.bf16.gmra.mrb[0].mxu0 %v1262
        %v2414 = vpop.f32.mrb[0].mxu0
        %v2415 = vadd.f32 %v2246, %v2414
        %v2416 = vpop.f32.mrb[0].mxu0
        %v2417 = vpop.f32.mrb[0].mxu0
        %v2418 = vadd.f32 %v2249, %v2417
        %v2419 = vpop.f32.mrb[0].mxu0
        %2420 = vmatprep.mubr.bf16.mxu0 0
        %2421 = vmatmul.mubr.bf16.gmra.mrb[0].mxu0 %v1265
        %v2422 = vpop.f32.mrb[0].mxu0
        %v2423 = vadd.f32 %v2254, %v2422
        %v2424 = vpop.f32.mrb[0].mxu0
        %v2425 = vpop.f32.mrb[0].mxu0
        %v2426 = vadd.f32 %v2257, %v2425
        %v2427 = vpop.f32.mrb[0].mxu0
        %2428 = vmatprep.mubr.bf16.mxu0 0
        %2429 = vmatmul.mubr.bf16.gmra.mrb[0].mxu0 %v1268
        %v2430 = vpop.f32.mrb[0].mxu0
        %v2431 = vadd.f32 %v2262, %v2430
        %v2432 = vpop.f32.mrb[0].mxu0
        %v2433 = vpop.f32.mrb[0].mxu0
        %v2434 = vadd.f32 %v2265, %v2433
        %v2435 = vpop.f32.mrb[0].mxu0
        %2436 = vdwg.mxu0
        %v2438 = vsel %vm754, %v711, 0
        %v2441 = vsel %vm754, %v712, 0
        %v2444 = vsel %vm754, %v713, 0
        %v2447 = vsel %vm754, %v714, 0
        %v2450 = vsel %vm754, %v715, 0
        %v2453 = vsel %vm754, %v716, 0
        %v2456 = vsel %vm754, %v717, 0
        %v2459 = vsel %vm754, %v718, 0
        %v2462 = vsel %vm754, %v719, 0
        %v2465 = vsel %vm754, %v720, 0
        %v2468 = vsel %vm754, %v721, 0
        %v2471 = vsel %vm754, %v722, 0
        %v2474 = vsel %vm754, %v723, 0
        %v2477 = vsel %vm754, %v724, 0
        %v2480 = vsel %vm754, %v725, 0
        %v2483 = vsel %vm754, %v726, 0
        %v2486 = vsel %vm754, %v727, 0
        %2488 = vmatprep.subr.bf16.mxu0 0
        %2489 = vmatpush1.bf16.msra.mxu0 %v1215
        %2490 = vmatprep.subr.bf16.mxu0 0
        %2491 = vmatpush1.bf16.msra.mxu0 %v1216
        %2492 = vmatprep.subr.bf16.mxu0 0
        %2493 = vmatpush1.bf16.msra.mxu0 0
        %2494 = vmatprep.subr.bf16.mxu0 0
        %2495 = vmatpush1.bf16.msra.mxu0 0
        %2496 = vmatprep.subr.bf16.mxu0 0
        %2497 = vmatpush1.bf16.msra.mxu0 0
        %2498 = vmatprep.subr.bf16.mxu0 0
        %2499 = vmatpush1.bf16.msra.mxu0 0
        %2500 = vmatprep.subr.bf16.mxu0 0
        %2501 = vmatpush1.bf16.msra.mxu0 0
        %2502 = vmatprep.subr.bf16.mxu0 0
        %2503 = vmatpush1.bf16.msra.mxu0 0
        %2504 = vmatprep.subr.bf16.mxu0 0
        %2505 = vmatpush1.bf16.msra.mxu0 0
        %2506 = vmatprep.subr.bf16.mxu0 0
        %2507 = vmatpush1.bf16.msra.mxu0 0
        %2508 = vmatprep.subr.bf16.mxu0 0
        %2509 = vmatpush1.bf16.msra.mxu0 0
        %2510 = vmatprep.subr.bf16.mxu0 0
        %2511 = vmatpush1.bf16.msra.mxu0 0
        %2512 = vmatprep.subr.bf16.mxu0 0
        %2513 = vmatpush1.bf16.msra.mxu0 0
        %2514 = vmatprep.subr.bf16.mxu0 0
        %2515 = vmatpush1.bf16.msra.mxu0 0
        %2516 = vmatprep.subr.bf16.mxu0 0
        %2517 = vmatpush1.bf16.msra.mxu0 0
        %2518 = vmatprep.subr.bf16.mxu0 0
        %2519 = vmatpush1.bf16.msra.mxu0 0
        %2520 = vmatprep.mubr.bf16.mxu0 0
        %2521 = vmatmul.mubr.bf16.gmra.mrb[0].mxu0 %v2438
        %v2522 = vpop.f32.mrb[0].mxu0
        %v2523 = vadd.f32 0.0, %v2522
        %v2524 = vpop.f32.mrb[0].mxu0
        %v2525 = vpop.f32.mrb[0].mxu0
        %v2526 = vadd.f32 0.0, %v2525
        %v2527 = vpop.f32.mrb[0].mxu0
        %2528 = vmatprep.mubr.bf16.mxu0 0
        %2529 = vmatmul.mubr.bf16.gmra.mrb[0].mxu0 %v2441
        %v2530 = vpop.f32.mrb[0].mxu0
        %v2531 = vadd.f32 0.0, %v2530
        %v2532 = vpop.f32.mrb[0].mxu0
        %v2533 = vpop.f32.mrb[0].mxu0
        %v2534 = vadd.f32 0.0, %v2533
        %v2535 = vpop.f32.mrb[0].mxu0
        %2536 = vmatprep.mubr.bf16.mxu0 0
        %2537 = vmatmul.mubr.bf16.gmra.mrb[0].mxu0 %v2444
        %v2538 = vpop.f32.mrb[0].mxu0
        %v2539 = vadd.f32 0.0, %v2538
        %v2540 = vpop.f32.mrb[0].mxu0
        %v2541 = vpop.f32.mrb[0].mxu0
        %v2542 = vadd.f32 0.0, %v2541
        %v2543 = vpop.f32.mrb[0].mxu0
        %2544 = vmatprep.mubr.bf16.mxu0 0
        %2545 = vmatmul.mubr.bf16.gmra.mrb[0].mxu0 %v2447
        %v2546 = vpop.f32.mrb[0].mxu0
        %v2547 = vadd.f32 0.0, %v2546
        %v2548 = vpop.f32.mrb[0].mxu0
        %v2549 = vpop.f32.mrb[0].mxu0
        %v2550 = vadd.f32 0.0, %v2549
        %v2551 = vpop.f32.mrb[0].mxu0
        %2552 = vmatprep.mubr.bf16.mxu0 0
        %2553 = vmatmul.mubr.bf16.gmra.mrb[0].mxu0 %v2450
        %v2554 = vpop.f32.mrb[0].mxu0
        %v2555 = vadd.f32 0.0, %v2554
        %v2556 = vpop.f32.mrb[0].mxu0
        %v2557 = vpop.f32.mrb[0].mxu0
        %v2558 = vadd.f32 0.0, %v2557
        %v2559 = vpop.f32.mrb[0].mxu0
        %2560 = vmatprep.mubr.bf16.mxu0 0
        %2561 = vmatmul.mubr.bf16.gmra.mrb[0].mxu0 %v2453
        %v2562 = vpop.f32.mrb[0].mxu0
        %v2563 = vadd.f32 0.0, %v2562
        %v2564 = vpop.f32.mrb[0].mxu0
        %v2565 = vpop.f32.mrb[0].mxu0
        %v2566 = vadd.f32 0.0, %v2565
        %v2567 = vpop.f32.mrb[0].mxu0
        %2568 = vmatprep.mubr.bf16.mxu0 0
        %2569 = vmatmul.mubr.bf16.gmra.mrb[0].mxu0 %v2456
        %v2570 = vpop.f32.mrb[0].mxu0
        %v2571 = vadd.f32 0.0, %v2570
        %v2572 = vpop.f32.mrb[0].mxu0
        %v2573 = vpop.f32.mrb[0].mxu0
        %v2574 = vadd.f32 0.0, %v2573
        %v2575 = vpop.f32.mrb[0].mxu0
        %2576 = vmatprep.mubr.bf16.mxu0 0
        %2577 = vmatmul.mubr.bf16.gmra.mrb[0].mxu0 %v2459
        %v2578 = vpop.f32.mrb[0].mxu0
        %v2579 = vadd.f32 0.0, %v2578
        %v2580 = vpop.f32.mrb[0].mxu0
        %v2581 = vpop.f32.mrb[0].mxu0
        %v2582 = vadd.f32 0.0, %v2581
        %v2583 = vpop.f32.mrb[0].mxu0
        %2584 = vmatprep.mubr.bf16.mxu0 0
        %2585 = vmatmul.mubr.bf16.gmra.mrb[0].mxu0 %v2462
        %v2586 = vpop.f32.mrb[0].mxu0
        %v2587 = vadd.f32 0.0, %v2586
        %v2588 = vpop.f32.mrb[0].mxu0
        %v2589 = vpop.f32.mrb[0].mxu0
        %v2590 = vadd.f32 0.0, %v2589
        %v2591 = vpop.f32.mrb[0].mxu0
        %2592 = vmatprep.mubr.bf16.mxu0 0
        %2593 = vmatmul.mubr.bf16.gmra.mrb[0].mxu0 %v2465
        %v2594 = vpop.f32.mrb[0].mxu0
        %v2595 = vadd.f32 0.0, %v2594
        %v2596 = vpop.f32.mrb[0].mxu0
        %v2597 = vpop.f32.mrb[0].mxu0
        %v2598 = vadd.f32 0.0, %v2597
        %v2599 = vpop.f32.mrb[0].mxu0
        %2600 = vmatprep.mubr.bf16.mxu0 0
        %2601 = vmatmul.mubr.bf16.gmra.mrb[0].mxu0 %v2468
        %v2602 = vpop.f32.mrb[0].mxu0
        %v2603 = vadd.f32 0.0, %v2602
        %v2604 = vpop.f32.mrb[0].mxu0
        %v2605 = vpop.f32.mrb[0].mxu0
        %v2606 = vadd.f32 0.0, %v2605
        %v2607 = vpop.f32.mrb[0].mxu0
        %2608 = vmatprep.mubr.bf16.mxu0 0
        %2609 = vmatmul.mubr.bf16.gmra.mrb[0].mxu0 %v2471
        %v2610 = vpop.f32.mrb[0].mxu0
        %v2611 = vadd.f32 0.0, %v2610
        %v2612 = vpop.f32.mrb[0].mxu0
        %v2613 = vpop.f32.mrb[0].mxu0
        %v2614 = vadd.f32 0.0, %v2613
        %v2615 = vpop.f32.mrb[0].mxu0
        %2616 = vmatprep.mubr.bf16.mxu0 0
        %2617 = vmatmul.mubr.bf16.gmra.mrb[0].mxu0 %v2474
        %v2618 = vpop.f32.mrb[0].mxu0
        %v2619 = vadd.f32 0.0, %v2618
        %v2620 = vpop.f32.mrb[0].mxu0
        %v2621 = vpop.f32.mrb[0].mxu0
        %v2622 = vadd.f32 0.0, %v2621
        %v2623 = vpop.f32.mrb[0].mxu0
        %2624 = vmatprep.mubr.bf16.mxu0 0
        %2625 = vmatmul.mubr.bf16.gmra.mrb[0].mxu0 %v2477
        %v2626 = vpop.f32.mrb[0].mxu0
        %v2627 = vadd.f32 0.0, %v2626
        %v2628 = vpop.f32.mrb[0].mxu0
        %v2629 = vpop.f32.mrb[0].mxu0
        %v2630 = vadd.f32 0.0, %v2629
        %v2631 = vpop.f32.mrb[0].mxu0
        %2632 = vmatprep.mubr.bf16.mxu0 0
        %2633 = vmatmul.mubr.bf16.gmra.mrb[0].mxu0 %v2480
        %v2634 = vpop.f32.mrb[0].mxu0
        %v2635 = vadd.f32 0.0, %v2634
        %v2636 = vpop.f32.mrb[0].mxu0
        %v2637 = vpop.f32.mrb[0].mxu0
        %v2638 = vadd.f32 0.0, %v2637
        %v2639 = vpop.f32.mrb[0].mxu0
        %2640 = vmatprep.mubr.bf16.mxu0 0
        %2641 = vmatmul.mubr.bf16.gmra.mrb[0].mxu0 %v2483
        %v2642 = vpop.f32.mrb[0].mxu0
        %v2643 = vadd.f32 0.0, %v2642
        %v2644 = vpop.f32.mrb[0].mxu0
        %v2645 = vpop.f32.mrb[0].mxu0
        %v2646 = vadd.f32 0.0, %v2645
        %v2647 = vpop.f32.mrb[0].mxu0
        %2648 = vmatprep.mubr.bf16.mxu0 0
        %2649 = vmatmul.mubr.bf16.gmra.mrb[0].mxu0 %v2486
        %v2650 = vpop.f32.mrb[0].mxu0
        %v2651 = vadd.f32 0.0, %v2650
        %v2652 = vpop.f32.mrb[0].mxu0
        %v2653 = vpop.f32.mrb[0].mxu0
        %v2654 = vadd.f32 0.0, %v2653
        %v2655 = vpop.f32.mrb[0].mxu0
        %2656 = vdwg.mxu0
        %v2657 = vadd.f32 %v2303, %v2523
        %v2658 = vadd.f32 %v2306, %v2526
        %v2659 = vadd.f32 %v2311, %v2531
        %v2660 = vadd.f32 %v2314, %v2534
        %v2661 = vadd.f32 %v2319, %v2539
        %v2662 = vadd.f32 %v2322, %v2542
        %v2663 = vadd.f32 %v2327, %v2547
        %v2664 = vadd.f32 %v2330, %v2550
        %v2665 = vadd.f32 %v2335, %v2555
        %v2666 = vadd.f32 %v2338, %v2558
        %v2667 = vadd.f32 %v2343, %v2563
        %v2668 = vadd.f32 %v2346, %v2566
        %v2669 = vadd.f32 %v2351, %v2571
        %v2670 = vadd.f32 %v2354, %v2574
        %v2671 = vadd.f32 %v2359, %v2579
        %v2672 = vadd.f32 %v2362, %v2582
        %v2673 = vadd.f32 %v2367, %v2587
        %v2674 = vadd.f32 %v2370, %v2590
        %v2675 = vadd.f32 %v2375, %v2595
        %v2676 = vadd.f32 %v2378, %v2598
        %v2677 = vadd.f32 %v2383, %v2603
        %v2678 = vadd.f32 %v2386, %v2606
        %v2679 = vadd.f32 %v2391, %v2611
        %v2680 = vadd.f32 %v2394, %v2614
        %v2681 = vadd.f32 %v2399, %v2619
        %v2682 = vadd.f32 %v2402, %v2622
        %v2683 = vadd.f32 %v2407, %v2627
        %v2684 = vadd.f32 %v2410, %v2630
        %v2685 = vadd.f32 %v2415, %v2635
        %v2686 = vadd.f32 %v2418, %v2638
        %v2687 = vadd.f32 %v2423, %v2643
        %v2688 = vadd.f32 %v2426, %v2646
        %v2689 = vadd.f32 %v2431, %v2651
        %v2690 = vadd.f32 %v2434, %v2654
        %v2691 = vmax.f32 %v2065, %v2657
        %v2692 = vmax.f32 %v2066, %v2658
        %v2693 = vmax.f32 %v2067, %v2659
        %v2694 = vmax.f32 %v2068, %v2660
        %v2695 = vmax.f32 %v2069, %v2661
        %v2696 = vmax.f32 %v2070, %v2662
        %v2697 = vmax.f32 %v2071, %v2663
        %v2698 = vmax.f32 %v2072, %v2664
        %v2699 = vmax.f32 %v2073, %v2665
        %v2700 = vmax.f32 %v2074, %v2666
        %v2701 = vmax.f32 %v2075, %v2667
        %v2702 = vmax.f32 %v2076, %v2668
        %v2703 = vmax.f32 %v2077, %v2669
        %v2704 = vmax.f32 %v2078, %v2670
        %v2705 = vmax.f32 %v2079, %v2671
        %v2706 = vmax.f32 %v2080, %v2672
        %v2707 = vmax.f32 %v2081, %v2673
        %v2708 = vmax.f32 %v2082, %v2674
        %v2709 = vmax.f32 %v2083, %v2675
        %v2710 = vmax.f32 %v2084, %v2676
        %v2711 = vmax.f32 %v2085, %v2677
        %v2712 = vmax.f32 %v2086, %v2678
        %v2713 = vmax.f32 %v2087, %v2679
        %v2714 = vmax.f32 %v2088, %v2680
        %v2715 = vmax.f32 %v2089, %v2681
        %v2716 = vmax.f32 %v2090, %v2682
        %v2717 = vmax.f32 %v2091, %v2683
        %v2718 = vmax.f32 %v2092, %v2684
        %v2719 = vmax.f32 %v2093, %v2685
        %v2720 = vmax.f32 %v2094, %v2686
        %v2721 = vmax.f32 %v2095, %v2687
        %v2722 = vmax.f32 %v2096, %v2688
        %v2723 = vmax.f32 %v2097, %v2689
        %v2724 = vmax.f32 %v2098, %v2690
        %v2725 = vld [vmem:[%s2] sm:$0x1]
        %v2727 = vlaneseq
        %v2728 = vshrl.u32 %v2727, 7
        %v2729 = vsub.s32 0, %v2728
        %v2730 = vrot.slane %v2725, %v2729
        %v2732 = vmul.f32 %v2691, %v2730
        %v2733 = vmul.f32 %v2692, %v2730
        %v2734 = vmul.f32 %v2693, %v2730
        %v2735 = vmul.f32 %v2694, %v2730
        %v2736 = vmul.f32 %v2695, %v2730
        %v2737 = vmul.f32 %v2696, %v2730
        %v2738 = vmul.f32 %v2697, %v2730
        %v2739 = vmul.f32 %v2698, %v2730
        %v2740 = vmul.f32 %v2699, %v2730
        %v2741 = vmul.f32 %v2700, %v2730
        %v2742 = vmul.f32 %v2701, %v2730
        %v2743 = vmul.f32 %v2702, %v2730
        %v2744 = vmul.f32 %v2703, %v2730
        %v2745 = vmul.f32 %v2704, %v2730
        %v2746 = vmul.f32 %v2705, %v2730
        %v2747 = vmul.f32 %v2706, %v2730
        %v2748 = vmul.f32 %v2707, %v2730
        %v2749 = vmul.f32 %v2708, %v2730
        %v2750 = vmul.f32 %v2709, %v2730
        %v2751 = vmul.f32 %v2710, %v2730
        %v2752 = vmul.f32 %v2711, %v2730
        %v2753 = vmul.f32 %v2712, %v2730
        %v2754 = vmul.f32 %v2713, %v2730
        %v2755 = vmul.f32 %v2714, %v2730
        %v2756 = vmul.f32 %v2715, %v2730
        %v2757 = vmul.f32 %v2716, %v2730
        %v2758 = vmul.f32 %v2717, %v2730
        %v2759 = vmul.f32 %v2718, %v2730
        %v2760 = vmul.f32 %v2719, %v2730
        %v2761 = vmul.f32 %v2720, %v2730
        %v2762 = vmul.f32 %v2721, %v2730
        %v2763 = vmul.f32 %v2722, %v2730
        %v2764 = vmul.f32 %v2723, %v2730
        %v2765 = vmul.f32 %v2724, %v2730
        %v2766 = vld [vmem:[%s3] sm:$0x1]
        %v2768 = vlaneseq
        %v2769 = vshrl.u32 %v2768, 7
        %v2770 = vsub.s32 0, %v2769
        %v2771 = vrot.slane %v2766, %v2770
        %v2773 = vadd.f32 %v2732, %v2771
        %v2774 = vadd.f32 %v2733, %v2771
        %v2775 = vadd.f32 %v2734, %v2771
        %v2776 = vadd.f32 %v2735, %v2771
        %v2777 = vadd.f32 %v2736, %v2771
        %v2778 = vadd.f32 %v2737, %v2771
        %v2779 = vadd.f32 %v2738, %v2771
        %v2780 = vadd.f32 %v2739, %v2771
        %v2781 = vadd.f32 %v2740, %v2771
        %v2782 = vadd.f32 %v2741, %v2771
        %v2783 = vadd.f32 %v2742, %v2771
        %v2784 = vadd.f32 %v2743, %v2771
        %v2785 = vadd.f32 %v2744, %v2771
        %v2786 = vadd.f32 %v2745, %v2771
        %v2787 = vadd.f32 %v2746, %v2771
        %v2788 = vadd.f32 %v2747, %v2771
        %v2789 = vadd.f32 %v2748, %v2771
        %v2790 = vadd.f32 %v2749, %v2771
        %v2791 = vadd.f32 %v2750, %v2771
        %v2792 = vadd.f32 %v2751, %v2771
        %v2793 = vadd.f32 %v2752, %v2771
        %v2794 = vadd.f32 %v2753, %v2771
        %v2795 = vadd.f32 %v2754, %v2771
        %v2796 = vadd.f32 %v2755, %v2771
        %v2797 = vadd.f32 %v2756, %v2771
        %v2798 = vadd.f32 %v2757, %v2771
        %v2799 = vadd.f32 %v2758, %v2771
        %v2800 = vadd.f32 %v2759, %v2771
        %v2801 = vadd.f32 %v2760, %v2771
        %v2802 = vadd.f32 %v2761, %v2771
        %v2803 = vadd.f32 %v2762, %v2771
        %v2804 = vadd.f32 %v2763, %v2771
        %v2805 = vadd.f32 %v2764, %v2771
        %v2806 = vadd.f32 %v2765, %v2771
        %vm2807 = vcmp.ge.f32.partialorder %v2773, 0.0
        %vm2808 = vcmp.ge.f32.partialorder %v2774, 0.0
        %vm2809 = vcmp.ge.f32.partialorder %v2775, 0.0
        %vm2810 = vcmp.ge.f32.partialorder %v2776, 0.0
        %vm2811 = vcmp.ge.f32.partialorder %v2777, 0.0
        %vm2812 = vcmp.ge.f32.partialorder %v2778, 0.0
        %vm2813 = vcmp.ge.f32.partialorder %v2779, 0.0
        %vm2814 = vcmp.ge.f32.partialorder %v2780, 0.0
        %vm2815 = vcmp.ge.f32.partialorder %v2781, 0.0
        %vm2816 = vcmp.ge.f32.partialorder %v2782, 0.0
        %vm2817 = vcmp.ge.f32.partialorder %v2783, 0.0
        %vm2818 = vcmp.ge.f32.partialorder %v2784, 0.0
        %vm2819 = vcmp.ge.f32.partialorder %v2785, 0.0
        %vm2820 = vcmp.ge.f32.partialorder %v2786, 0.0
        %vm2821 = vcmp.ge.f32.partialorder %v2787, 0.0
        %vm2822 = vcmp.ge.f32.partialorder %v2788, 0.0
        %vm2823 = vcmp.ge.f32.partialorder %v2789, 0.0
        %vm2824 = vcmp.ge.f32.partialorder %v2790, 0.0
        %vm2825 = vcmp.ge.f32.partialorder %v2791, 0.0
        %vm2826 = vcmp.ge.f32.partialorder %v2792, 0.0
        %vm2827 = vcmp.ge.f32.partialorder %v2793, 0.0
        %vm2828 = vcmp.ge.f32.partialorder %v2794, 0.0
        %vm2829 = vcmp.ge.f32.partialorder %v2795, 0.0
        %vm2830 = vcmp.ge.f32.partialorder %v2796, 0.0
        %vm2831 = vcmp.ge.f32.partialorder %v2797, 0.0
        %vm2832 = vcmp.ge.f32.partialorder %v2798, 0.0
        %vm2833 = vcmp.ge.f32.partialorder %v2799, 0.0
        %vm2834 = vcmp.ge.f32.partialorder %v2800, 0.0
        %vm2835 = vcmp.ge.f32.partialorder %v2801, 0.0
        %vm2836 = vcmp.ge.f32.partialorder %v2802, 0.0
        %vm2837 = vcmp.ge.f32.partialorder %v2803, 0.0
        %vm2838 = vcmp.ge.f32.partialorder %v2804, 0.0
        %vm2839 = vcmp.ge.f32.partialorder %v2805, 0.0
        %vm2840 = vcmp.ge.f32.partialorder %v2806, 0.0
        %v2841 = vmul.f32 %v2773, 0.01
        %v2842 = vmul.f32 %v2774, 0.01
        %v2843 = vmul.f32 %v2775, 0.01
        %v2844 = vmul.f32 %v2776, 0.01
        %v2845 = vmul.f32 %v2777, 0.01
        %v2846 = vmul.f32 %v2778, 0.01
        %v2847 = vmul.f32 %v2779, 0.01
        %v2848 = vmul.f32 %v2780, 0.01
        %v2849 = vmul.f32 %v2781, 0.01
        %v2850 = vmul.f32 %v2782, 0.01
        %v2851 = vmul.f32 %v2783, 0.01
        %v2852 = vmul.f32 %v2784, 0.01
        %v2853 = vmul.f32 %v2785, 0.01
        %v2854 = vmul.f32 %v2786, 0.01
        %v2855 = vmul.f32 %v2787, 0.01
        %v2856 = vmul.f32 %v2788, 0.01
        %v2857 = vmul.f32 %v2789, 0.01
        %v2858 = vmul.f32 %v2790, 0.01
        %v2859 = vmul.f32 %v2791, 0.01
        %v2860 = vmul.f32 %v2792, 0.01
        %v2861 = vmul.f32 %v2793, 0.01
        %v2862 = vmul.f32 %v2794, 0.01
        %v2863 = vmul.f32 %v2795, 0.01
        %v2864 = vmul.f32 %v2796, 0.01
        %v2865 = vmul.f32 %v2797, 0.01
        %v2866 = vmul.f32 %v2798, 0.01
        %v2867 = vmul.f32 %v2799, 0.01
        %v2868 = vmul.f32 %v2800, 0.01
        %v2869 = vmul.f32 %v2801, 0.01
        %v2870 = vmul.f32 %v2802, 0.01
        %v2871 = vmul.f32 %v2803, 0.01
        %v2872 = vmul.f32 %v2804, 0.01
        %v2873 = vmul.f32 %v2805, 0.01
        %v2874 = vmul.f32 %v2806, 0.01
        %v2875 = vsel %vm2807, %v2773, %v2841
        %v2876 = vsel %vm2808, %v2774, %v2842
        %v2877 = vsel %vm2809, %v2775, %v2843
        %v2878 = vsel %vm2810, %v2776, %v2844
        %v2879 = vsel %vm2811, %v2777, %v2845
        %v2880 = vsel %vm2812, %v2778, %v2846
        %v2881 = vsel %vm2813, %v2779, %v2847
        %v2882 = vsel %vm2814, %v2780, %v2848
        %v2883 = vsel %vm2815, %v2781, %v2849
        %v2884 = vsel %vm2816, %v2782, %v2850
        %v2885 = vsel %vm2817, %v2783, %v2851
        %v2886 = vsel %vm2818, %v2784, %v2852
        %v2887 = vsel %vm2819, %v2785, %v2853
        %v2888 = vsel %vm2820, %v2786, %v2854
        %v2889 = vsel %vm2821, %v2787, %v2855
        %v2890 = vsel %vm2822, %v2788, %v2856
        %v2891 = vsel %vm2823, %v2789, %v2857
        %v2892 = vsel %vm2824, %v2790, %v2858
        %v2893 = vsel %vm2825, %v2791, %v2859
        %v2894 = vsel %vm2826, %v2792, %v2860
        %v2895 = vsel %vm2827, %v2793, %v2861
        %v2896 = vsel %vm2828, %v2794, %v2862
        %v2897 = vsel %vm2829, %v2795, %v2863
        %v2898 = vsel %vm2830, %v2796, %v2864
        %v2899 = vsel %vm2831, %v2797, %v2865
        %v2900 = vsel %vm2832, %v2798, %v2866
        %v2901 = vsel %vm2833, %v2799, %v2867
        %v2902 = vsel %vm2834, %v2800, %v2868
        %v2903 = vsel %vm2835, %v2801, %v2869
        %v2904 = vsel %vm2836, %v2802, %v2870
        %v2905 = vsel %vm2837, %v2803, %v2871
        %v2906 = vsel %vm2838, %v2804, %v2872
        %v2907 = vsel %vm2839, %v2805, %v2873
        %v2908 = vsel %vm2840, %v2806, %v2874
        %vm2909 = vcmask 253952
        %2910 = vst.msk [vmem:[#allocation2] sm:$0x1] %vm2909, 0.0
        %2911 = vst.msk [vmem:[#allocation2 + $0x110] sm:$0x1] %vm2909, 0.0
        %2912 = vst.msk [vmem:[#allocation2 + $0x1] sm:$0xff] %vm754, %v2875
        %2913 = vst.msk [vmem:[#allocation2 + $0x9] sm:$0xff] %vm754, %v2876
        %2914 = vst.msk [vmem:[#allocation2 + $0x11] sm:$0xff] %vm754, %v2877
        %2915 = vst.msk [vmem:[#allocation2 + $0x19] sm:$0xff] %vm754, %v2878
        %2916 = vst.msk [vmem:[#allocation2 + $0x21] sm:$0xff] %vm754, %v2879
        %2917 = vst.msk [vmem:[#allocation2 + $0x29] sm:$0xff] %vm754, %v2880
        %2918 = vst.msk [vmem:[#allocation2 + $0x31] sm:$0xff] %vm754, %v2881
        %2919 = vst.msk [vmem:[#allocation2 + $0x39] sm:$0xff] %vm754, %v2882
        %2920 = vst.msk [vmem:[#allocation2 + $0x41] sm:$0xff] %vm754, %v2883
        %2921 = vst.msk [vmem:[#allocation2 + $0x49] sm:$0xff] %vm754, %v2884
        %2922 = vst.msk [vmem:[#allocation2 + $0x51] sm:$0xff] %vm754, %v2885
        %2923 = vst.msk [vmem:[#allocation2 + $0x59] sm:$0xff] %vm754, %v2886
        %2924 = vst.msk [vmem:[#allocation2 + $0x61] sm:$0xff] %vm754, %v2887
        %2925 = vst.msk [vmem:[#allocation2 + $0x69] sm:$0xff] %vm754, %v2888
        %2926 = vst.msk [vmem:[#allocation2 + $0x71] sm:$0xff] %vm754, %v2889
        %2927 = vst.msk [vmem:[#allocation2 + $0x79] sm:$0xff] %vm754, %v2890
        %2928 = vst.msk [vmem:[#allocation2 + $0x81] sm:$0xff] %vm754, %v2891
        %2929 = vst.msk [vmem:[#allocation2 + $0x89] sm:$0xff] %vm754, %v2892
        %2930 = vst.msk [vmem:[#allocation2 + $0x91] sm:$0xff] %vm754, %v2893
        %2931 = vst.msk [vmem:[#allocation2 + $0x99] sm:$0xff] %vm754, %v2894
        %2932 = vst.msk [vmem:[#allocation2 + $0xa1] sm:$0xff] %vm754, %v2895
        %2933 = vst.msk [vmem:[#allocation2 + $0xa9] sm:$0xff] %vm754, %v2896
        %2934 = vst.msk [vmem:[#allocation2 + $0xb1] sm:$0xff] %vm754, %v2897
        %2935 = vst.msk [vmem:[#allocation2 + $0xb9] sm:$0xff] %vm754, %v2898
        %2936 = vst.msk [vmem:[#allocation2 + $0xc1] sm:$0xff] %vm754, %v2899
        %2937 = vst.msk [vmem:[#allocation2 + $0xc9] sm:$0xff] %vm754, %v2900
        %2938 = vst.msk [vmem:[#allocation2 + $0xd1] sm:$0xff] %vm754, %v2901
        %2939 = vst.msk [vmem:[#allocation2 + $0xd9] sm:$0xff] %vm754, %v2902
        %2940 = vst.msk [vmem:[#allocation2 + $0xe1] sm:$0xff] %vm754, %v2903
        %2941 = vst.msk [vmem:[#allocation2 + $0xe9] sm:$0xff] %vm754, %v2904
        %2942 = vst.msk [vmem:[#allocation2 + $0xf1] sm:$0xff] %vm754, %v2905
        %2943 = vst.msk [vmem:[#allocation2 + $0xf9] sm:$0xff] %vm754, %v2906
        %2944 = vst.msk [vmem:[#allocation2 + $0x101] sm:$0xff] %vm754, %v2907
        %vm2945 = vcmask 260096
        %2946 = vst.msk [vmem:[#allocation2 + $0x109] sm:$0x7f] %vm2945, %v2908
        %v2947 = vld [vmem:[#allocation2] ss:$2 sm:$0xff]
        %s2948 = scalar_lea.vmem [#allocation2], 16
        %v2949 = vld [vmem:[%s2948] ss:$2 sm:$0xff]
        %s2950 = scalar_lea.vmem [#allocation2], 32
        %v2951 = vld [vmem:[%s2950] ss:$2 sm:$0xff]
        %s2952 = scalar_lea.vmem [#allocation2], 48
        %v2953 = vld [vmem:[%s2952] ss:$2 sm:$0xff]
        %s2954 = scalar_lea.vmem [#allocation2], 64
        %v2955 = vld [vmem:[%s2954] ss:$2 sm:$0xff]
        %s2956 = scalar_lea.vmem [#allocation2], 80
        %v2957 = vld [vmem:[%s2956] ss:$2 sm:$0xff]
        %s2958 = scalar_lea.vmem [#allocation2], 96
        %v2959 = vld [vmem:[%s2958] ss:$2 sm:$0xff]
        %s2960 = scalar_lea.vmem [#allocation2], 112
        %v2961 = vld [vmem:[%s2960] ss:$2 sm:$0xff]
        %s2962 = scalar_lea.vmem [#allocation2], 128
        %v2963 = vld [vmem:[%s2962] ss:$2 sm:$0xff]
        %s2964 = scalar_lea.vmem [#allocation2], 144
        %v2965 = vld [vmem:[%s2964] ss:$2 sm:$0xff]
        %s2966 = scalar_lea.vmem [#allocation2], 160
        %v2967 = vld [vmem:[%s2966] ss:$2 sm:$0xff]
        %s2968 = scalar_lea.vmem [#allocation2], 176
        %v2969 = vld [vmem:[%s2968] ss:$2 sm:$0xff]
        %s2970 = scalar_lea.vmem [#allocation2], 192
        %v2971 = vld [vmem:[%s2970] ss:$2 sm:$0xff]
        %s2972 = scalar_lea.vmem [#allocation2], 208
        %v2973 = vld [vmem:[%s2972] ss:$2 sm:$0xff]
        %s2974 = scalar_lea.vmem [#allocation2], 224
        %v2975 = vld [vmem:[%s2974] ss:$2 sm:$0xff]
        %s2976 = scalar_lea.vmem [#allocation2], 240
        %v2977 = vld [vmem:[%s2976] ss:$2 sm:$0xff]
        %s2978 = scalar_lea.vmem [#allocation2], 256
        %v2979 = vld [vmem:[%s2978] ss:$2 sm:$0x7f]
        %v2980 = vpack.c.bf16 %v2949, %v2947
        %v2981 = vpack.c.bf16 %v2953, %v2951
        %v2982 = vpack.c.bf16 %v2957, %v2955
        %v2983 = vpack.c.bf16 %v2961, %v2959
        %v2984 = vpack.c.bf16 %v2965, %v2963
        %v2985 = vpack.c.bf16 %v2969, %v2967
        %v2986 = vpack.c.bf16 %v2973, %v2971
        %v2987 = vpack.c.bf16 %v2977, %v2975
        %v2988 = vpack.c.bf16 %v2979, %v2979
        %s2989 = scalar_lea.vmem [#allocation2], 1
        %v2990 = vld [vmem:[%s2989] ss:$2 sm:$0xff]
        %s2991 = scalar_lea.vmem [#allocation2], 17
        %v2992 = vld [vmem:[%s2991] ss:$2 sm:$0xff]
        %s2993 = scalar_lea.vmem [#allocation2], 33
        %v2994 = vld [vmem:[%s2993] ss:$2 sm:$0xff]
        %s2995 = scalar_lea.vmem [#allocation2], 49
        %v2996 = vld [vmem:[%s2995] ss:$2 sm:$0xff]
        %s2997 = scalar_lea.vmem [#allocation2], 65
        %v2998 = vld [vmem:[%s2997] ss:$2 sm:$0xff]
        %s2999 = scalar_lea.vmem [#allocation2], 81
        %v3000 = vld [vmem:[%s2999] ss:$2 sm:$0xff]
        %s3001 = scalar_lea.vmem [#allocation2], 97
        %v3002 = vld [vmem:[%s3001] ss:$2 sm:$0xff]
        %s3003 = scalar_lea.vmem [#allocation2], 113
        %v3004 = vld [vmem:[%s3003] ss:$2 sm:$0xff]
        %s3005 = scalar_lea.vmem [#allocation2], 129
        %v3006 = vld [vmem:[%s3005] ss:$2 sm:$0xff]
        %s3007 = scalar_lea.vmem [#allocation2], 145
        %v3008 = vld [vmem:[%s3007] ss:$2 sm:$0xff]
        %s3009 = scalar_lea.vmem [#allocation2], 161
        %v3010 = vld [vmem:[%s3009] ss:$2 sm:$0xff]
        %s3011 = scalar_lea.vmem [#allocation2], 177
        %v3012 = vld [vmem:[%s3011] ss:$2 sm:$0xff]
        %s3013 = scalar_lea.vmem [#allocation2], 193
        %v3014 = vld [vmem:[%s3013] ss:$2 sm:$0xff]
        %s3015 = scalar_lea.vmem [#allocation2], 209
        %v3016 = vld [vmem:[%s3015] ss:$2 sm:$0xff]
        %s3017 = scalar_lea.vmem [#allocation2], 225
        %v3018 = vld [vmem:[%s3017] ss:$2 sm:$0xff]
        %s3019 = scalar_lea.vmem [#allocation2], 241
        %v3020 = vld [vmem:[%s3019] ss:$2 sm:$0xff]
        %s3021 = scalar_lea.vmem [#allocation2], 257
        %v3022 = vld [vmem:[%s3021] ss:$2 sm:$0x7f]
        %v3023 = vpack.c.bf16 %v2992, %v2990
        %v3024 = vpack.c.bf16 %v2996, %v2994
        %v3025 = vpack.c.bf16 %v3000, %v2998
        %v3026 = vpack.c.bf16 %v3004, %v3002
        %v3027 = vpack.c.bf16 %v3008, %v3006
        %v3028 = vpack.c.bf16 %v3012, %v3010
        %v3029 = vpack.c.bf16 %v3016, %v3014
        %v3030 = vpack.c.bf16 %v3020, %v3018
        %v3031 = vpack.c.bf16 %v3022, %v3022
        %s3032 = scalar_lea.vmem [#allocation2], 2
        %v3033 = vld [vmem:[%s3032] ss:$2 sm:$0xff]
        %s3034 = scalar_lea.vmem [#allocation2], 18
        %v3035 = vld [vmem:[%s3034] ss:$2 sm:$0xff]
        %s3036 = scalar_lea.vmem [#allocation2], 34
        %v3037 = vld [vmem:[%s3036] ss:$2 sm:$0xff]
        %s3038 = scalar_lea.vmem [#allocation2], 50
        %v3039 = vld [vmem:[%s3038] ss:$2 sm:$0xff]
        %s3040 = scalar_lea.vmem [#allocation2], 66
        %v3041 = vld [vmem:[%s3040] ss:$2 sm:$0xff]
        %s3042 = scalar_lea.vmem [#allocation2], 82
        %v3043 = vld [vmem:[%s3042] ss:$2 sm:$0xff]
        %s3044 = scalar_lea.vmem [#allocation2], 98
        %v3045 = vld [vmem:[%s3044] ss:$2 sm:$0xff]
        %s3046 = scalar_lea.vmem [#allocation2], 114
        %v3047 = vld [vmem:[%s3046] ss:$2 sm:$0xff]
        %s3048 = scalar_lea.vmem [#allocation2], 130
        %v3049 = vld [vmem:[%s3048] ss:$2 sm:$0xff]
        %s3050 = scalar_lea.vmem [#allocation2], 146
        %v3051 = vld [vmem:[%s3050] ss:$2 sm:$0xff]
        %s3052 = scalar_lea.vmem [#allocation2], 162
        %v3053 = vld [vmem:[%s3052] ss:$2 sm:$0xff]
        %s3054 = scalar_lea.vmem [#allocation2], 178
        %v3055 = vld [vmem:[%s3054] ss:$2 sm:$0xff]
        %s3056 = scalar_lea.vmem [#allocation2], 194
        %v3057 = vld [vmem:[%s3056] ss:$2 sm:$0xff]
        %s3058 = scalar_lea.vmem [#allocation2], 210
        %v3059 = vld [vmem:[%s3058] ss:$2 sm:$0xff]
        %s3060 = scalar_lea.vmem [#allocation2], 226
        %v3061 = vld [vmem:[%s3060] ss:$2 sm:$0xff]
        %s3062 = scalar_lea.vmem [#allocation2], 242
        %v3063 = vld [vmem:[%s3062] ss:$2 sm:$0xff]
        %s3064 = scalar_lea.vmem [#allocation2], 258
        %v3065 = vld [vmem:[%s3064] ss:$2 sm:$0x7f]
        %v3066 = vpack.c.bf16 %v3035, %v3033
        %v3067 = vpack.c.bf16 %v3039, %v3037
        %v3068 = vpack.c.bf16 %v3043, %v3041
        %v3069 = vpack.c.bf16 %v3047, %v3045
        %v3070 = vpack.c.bf16 %v3051, %v3049
        %v3071 = vpack.c.bf16 %v3055, %v3053
        %v3072 = vpack.c.bf16 %v3059, %v3057
        %v3073 = vpack.c.bf16 %v3063, %v3061
        %v3074 = vpack.c.bf16 %v3065, %v3065
        %s3075 = scalar_lea.vmem [#allocation2], 3
        %v3076 = vld [vmem:[%s3075] ss:$2 sm:$0xff]
        %s3077 = scalar_lea.vmem [#allocation2], 19
        %v3078 = vld [vmem:[%s3077] ss:$2 sm:$0xff]
        %s3079 = scalar_lea.vmem [#allocation2], 35
        %v3080 = vld [vmem:[%s3079] ss:$2 sm:$0xff]
        %s3081 = scalar_lea.vmem [#allocation2], 51
        %v3082 = vld [vmem:[%s3081] ss:$2 sm:$0xff]
        %s3083 = scalar_lea.vmem [#allocation2], 67
        %v3084 = vld [vmem:[%s3083] ss:$2 sm:$0xff]
        %s3085 = scalar_lea.vmem [#allocation2], 83
        %v3086 = vld [vmem:[%s3085] ss:$2 sm:$0xff]
        %s3087 = scalar_lea.vmem [#allocation2], 99
        %v3088 = vld [vmem:[%s3087] ss:$2 sm:$0xff]
        %s3089 = scalar_lea.vmem [#allocation2], 115
        %v3090 = vld [vmem:[%s3089] ss:$2 sm:$0xff]
        %s3091 = scalar_lea.vmem [#allocation2], 131
        %v3092 = vld [vmem:[%s3091] ss:$2 sm:$0xff]
        %s3093 = scalar_lea.vmem [#allocation2], 147
        %v3094 = vld [vmem:[%s3093] ss:$2 sm:$0xff]
        %s3095 = scalar_lea.vmem [#allocation2], 163
        %v3096 = vld [vmem:[%s3095] ss:$2 sm:$0xff]
        %s3097 = scalar_lea.vmem [#allocation2], 179
        %v3098 = vld [vmem:[%s3097] ss:$2 sm:$0xff]
        %s3099 = scalar_lea.vmem [#allocation2], 195
        %v3100 = vld [vmem:[%s3099] ss:$2 sm:$0xff]
        %s3101 = scalar_lea.vmem [#allocation2], 211
        %v3102 = vld [vmem:[%s3101] ss:$2 sm:$0xff]
        %s3103 = scalar_lea.vmem [#allocation2], 227
        %v3104 = vld [vmem:[%s3103] ss:$2 sm:$0xff]
        %s3105 = scalar_lea.vmem [#allocation2], 243
        %v3106 = vld [vmem:[%s3105] ss:$2 sm:$0xff]
        %s3107 = scalar_lea.vmem [#allocation2], 259
        %v3108 = vld [vmem:[%s3107] ss:$2 sm:$0x7f]
        %v3109 = vpack.c.bf16 %v3078, %v3076
        %v3110 = vpack.c.bf16 %v3082, %v3080
        %v3111 = vpack.c.bf16 %v3086, %v3084
        %v3112 = vpack.c.bf16 %v3090, %v3088
        %v3113 = vpack.c.bf16 %v3094, %v3092
        %v3114 = vpack.c.bf16 %v3098, %v3096
        %v3115 = vpack.c.bf16 %v3102, %v3100
        %v3116 = vpack.c.bf16 %v3106, %v3104
        %v3117 = vpack.c.bf16 %v3108, %v3108
        %s3118 = scalar_lea.vmem [#allocation2], 4
        %v3119 = vld [vmem:[%s3118] ss:$2 sm:$0xff]
        %s3120 = scalar_lea.vmem [#allocation2], 20
        %v3121 = vld [vmem:[%s3120] ss:$2 sm:$0xff]
        %s3122 = scalar_lea.vmem [#allocation2], 36
        %v3123 = vld [vmem:[%s3122] ss:$2 sm:$0xff]
        %s3124 = scalar_lea.vmem [#allocation2], 52
        %v3125 = vld [vmem:[%s3124] ss:$2 sm:$0xff]
        %s3126 = scalar_lea.vmem [#allocation2], 68
        %v3127 = vld [vmem:[%s3126] ss:$2 sm:$0xff]
        %s3128 = scalar_lea.vmem [#allocation2], 84
        %v3129 = vld [vmem:[%s3128] ss:$2 sm:$0xff]
        %s3130 = scalar_lea.vmem [#allocation2], 100
        %v3131 = vld [vmem:[%s3130] ss:$2 sm:$0xff]
        %s3132 = scalar_lea.vmem [#allocation2], 116
        %v3133 = vld [vmem:[%s3132] ss:$2 sm:$0xff]
        %s3134 = scalar_lea.vmem [#allocation2], 132
        %v3135 = vld [vmem:[%s3134] ss:$2 sm:$0xff]
        %s3136 = scalar_lea.vmem [#allocation2], 148
        %v3137 = vld [vmem:[%s3136] ss:$2 sm:$0xff]
        %s3138 = scalar_lea.vmem [#allocation2], 164
        %v3139 = vld [vmem:[%s3138] ss:$2 sm:$0xff]
        %s3140 = scalar_lea.vmem [#allocation2], 180
        %v3141 = vld [vmem:[%s3140] ss:$2 sm:$0xff]
        %s3142 = scalar_lea.vmem [#allocation2], 196
        %v3143 = vld [vmem:[%s3142] ss:$2 sm:$0xff]
        %s3144 = scalar_lea.vmem [#allocation2], 212
        %v3145 = vld [vmem:[%s3144] ss:$2 sm:$0xff]
        %s3146 = scalar_lea.vmem [#allocation2], 228
        %v3147 = vld [vmem:[%s3146] ss:$2 sm:$0xff]
        %s3148 = scalar_lea.vmem [#allocation2], 244
        %v3149 = vld [vmem:[%s3148] ss:$2 sm:$0xff]
        %s3150 = scalar_lea.vmem [#allocation2], 260
        %v3151 = vld [vmem:[%s3150] ss:$2 sm:$0x7f]
        %v3152 = vpack.c.bf16 %v3121, %v3119
        %v3153 = vpack.c.bf16 %v3125, %v3123
        %v3154 = vpack.c.bf16 %v3129, %v3127
        %v3155 = vpack.c.bf16 %v3133, %v3131
        %v3156 = vpack.c.bf16 %v3137, %v3135
        %v3157 = vpack.c.bf16 %v3141, %v3139
        %v3158 = vpack.c.bf16 %v3145, %v3143
        %v3159 = vpack.c.bf16 %v3149, %v3147
        %v3160 = vpack.c.bf16 %v3151, %v3151
        %s3161 = scalar_lea.vmem %s1, 48
        %v3162 = vld [vmem:[%s3161] sm:$0xf]
        %v3163 = vld [vmem:[%s3161 + $0x4] sm:$0xf]
        %v3164 = vld [vmem:[%s3161 + $0x8] sm:$0xf]
        %v3165 = vld [vmem:[%s3161 + $0xc] sm:$0xf]
        %s3166 = scalar_lea.vmem %s1, 64
        %v3167 = vld [vmem:[%s3166] sm:$0xf]
        %v3168 = vld [vmem:[%s3166 + $0x4] sm:$0xf]
        %v3169 = vld [vmem:[%s3166 + $0x8] sm:$0xf]
        %v3170 = vld [vmem:[%s3166 + $0xc] sm:$0xf]
        %s3171 = scalar_lea.vmem %s1, 80
        %v3172 = vld [vmem:[%s3171] sm:$0xf]
        %v3173 = vld [vmem:[%s3171 + $0x4] sm:$0xf]
        %v3174 = vld [vmem:[%s3171 + $0x8] sm:$0xf]
        %v3175 = vld [vmem:[%s3171 + $0xc] sm:$0xf]
        %v3180 = vunpack.c.l.b16 %v3167
        %v3181 = vunpack.c.l.b16 %v3168
        %v3182 = vunpack.c.l.b16 %v3169
        %v3183 = vunpack.c.l.b16 %v3170
        %v3184 = vpack.c.b16 %v3181, %v3180
        %v3185 = vpack.c.b16 %v3183, %v3182
        %v3189 = vsel %vm754, %v3023, 0
        %v3192 = vsel %vm754, %v3024, 0
        %v3195 = vsel %vm754, %v3025, 0
        %v3198 = vsel %vm754, %v3026, 0
        %v3201 = vsel %vm754, %v3027, 0
        %v3204 = vsel %vm754, %v3028, 0
        %v3207 = vsel %vm754, %v3029, 0
        %v3210 = vsel %vm754, %v3030, 0
        %v3213 = vsel %vm754, %v3031, 0
        %3215 = vmatprep.subr.bf16.mxu0 0
        %3216 = vmatpush1.bf16.msra.mxu0 %v3184
        %3217 = vmatprep.subr.bf16.mxu0 0
        %3218 = vmatpush1.bf16.msra.mxu0 %v3185
        %3219 = vmatprep.subr.bf16.mxu0 0
        %3220 = vmatpush1.bf16.msra.mxu0 0
        %3221 = vmatprep.subr.bf16.mxu0 0
        %3222 = vmatpush1.bf16.msra.mxu0 0
        %3223 = vmatprep.subr.bf16.mxu0 0
        %3224 = vmatpush1.bf16.msra.mxu0 0
        %3225 = vmatprep.subr.bf16.mxu0 0
        %3226 = vmatpush1.bf16.msra.mxu0 0
        %3227 = vmatprep.subr.bf16.mxu0 0
        %3228 = vmatpush1.bf16.msra.mxu0 0
        %3229 = vmatprep.subr.bf16.mxu0 0
        %3230 = vmatpush1.bf16.msra.mxu0 0
        %3231 = vmatprep.subr.bf16.mxu0 0
        %3232 = vmatpush1.bf16.msra.mxu0 0
        %3233 = vmatprep.subr.bf16.mxu0 0
        %3234 = vmatpush1.bf16.msra.mxu0 0
        %3235 = vmatprep.subr.bf16.mxu0 0
        %3236 = vmatpush1.bf16.msra.mxu0 0
        %3237 = vmatprep.subr.bf16.mxu0 0
        %3238 = vmatpush1.bf16.msra.mxu0 0
        %3239 = vmatprep.subr.bf16.mxu0 0
        %3240 = vmatpush1.bf16.msra.mxu0 0
        %3241 = vmatprep.subr.bf16.mxu0 0
        %3242 = vmatpush1.bf16.msra.mxu0 0
        %3243 = vmatprep.subr.bf16.mxu0 0
        %3244 = vmatpush1.bf16.msra.mxu0 0
        %3245 = vmatprep.subr.bf16.mxu0 0
        %3246 = vmatpush1.bf16.msra.mxu0 0
        %3247 = vmatprep.mubr.bf16.mxu0 0
        %3248 = vmatmul.mubr.bf16.gmra.mrb[0].mxu0 %v3189
        %v3249 = vpop.f32.mrb[0].mxu0
        %v3250 = vadd.f32 0.0, %v3249
        %v3251 = vpop.f32.mrb[0].mxu0
        %v3252 = vpop.f32.mrb[0].mxu0
        %v3253 = vadd.f32 0.0, %v3252
        %v3254 = vpop.f32.mrb[0].mxu0
        %3255 = vmatprep.mubr.bf16.mxu0 0
        %3256 = vmatmul.mubr.bf16.gmra.mrb[0].mxu0 %v3192
        %v3257 = vpop.f32.mrb[0].mxu0
        %v3258 = vadd.f32 0.0, %v3257
        %v3259 = vpop.f32.mrb[0].mxu0
        %v3260 = vpop.f32.mrb[0].mxu0
        %v3261 = vadd.f32 0.0, %v3260
        %v3262 = vpop.f32.mrb[0].mxu0
        %3263 = vmatprep.mubr.bf16.mxu0 0
        %3264 = vmatmul.mubr.bf16.gmra.mrb[0].mxu0 %v3195
        %v3265 = vpop.f32.mrb[0].mxu0
        %v3266 = vadd.f32 0.0, %v3265
        %v3267 = vpop.f32.mrb[0].mxu0
        %v3268 = vpop.f32.mrb[0].mxu0
        %v3269 = vadd.f32 0.0, %v3268
        %v3270 = vpop.f32.mrb[0].mxu0
        %3271 = vmatprep.mubr.bf16.mxu0 0
        %3272 = vmatmul.mubr.bf16.gmra.mrb[0].mxu0 %v3198
        %v3273 = vpop.f32.mrb[0].mxu0
        %v3274 = vadd.f32 0.0, %v3273
        %v3275 = vpop.f32.mrb[0].mxu0
        %v3276 = vpop.f32.mrb[0].mxu0
        %v3277 = vadd.f32 0.0, %v3276
        %v3278 = vpop.f32.mrb[0].mxu0
        %3279 = vmatprep.mubr.bf16.mxu0 0
        %3280 = vmatmul.mubr.bf16.gmra.mrb[0].mxu0 %v3201
        %v3281 = vpop.f32.mrb[0].mxu0
        %v3282 = vadd.f32 0.0, %v3281
        %v3283 = vpop.f32.mrb[0].mxu0
        %v3284 = vpop.f32.mrb[0].mxu0
        %v3285 = vadd.f32 0.0, %v3284
        %v3286 = vpop.f32.mrb[0].mxu0
        %3287 = vmatprep.mubr.bf16.mxu0 0
        %3288 = vmatmul.mubr.bf16.gmra.mrb[0].mxu0 %v3204
        %v3289 = vpop.f32.mrb[0].mxu0
        %v3290 = vadd.f32 0.0, %v3289
        %v3291 = vpop.f32.mrb[0].mxu0
        %v3292 = vpop.f32.mrb[0].mxu0
        %v3293 = vadd.f32 0.0, %v3292
        %v3294 = vpop.f32.mrb[0].mxu0
        %3295 = vmatprep.mubr.bf16.mxu0 0
        %3296 = vmatmul.mubr.bf16.gmra.mrb[0].mxu0 %v3207
        %v3297 = vpop.f32.mrb[0].mxu0
        %v3298 = vadd.f32 0.0, %v3297
        %v3299 = vpop.f32.mrb[0].mxu0
        %v3300 = vpop.f32.mrb[0].mxu0
        %v3301 = vadd.f32 0.0, %v3300
        %v3302 = vpop.f32.mrb[0].mxu0
        %3303 = vmatprep.mubr.bf16.mxu0 0
        %3304 = vmatmul.mubr.bf16.gmra.mrb[0].mxu0 %v3210
        %v3305 = vpop.f32.mrb[0].mxu0
        %v3306 = vadd.f32 0.0, %v3305
        %v3307 = vpop.f32.mrb[0].mxu0
        %v3308 = vpop.f32.mrb[0].mxu0
        %v3309 = vadd.f32 0.0, %v3308
        %v3310 = vpop.f32.mrb[0].mxu0
        %3311 = vmatprep.mubr.bf16.mxu0 0
        %3312 = vmatmul.mubr.bf16.gmra.mrb[0].mxu0 %v3213
        %v3313 = vpop.f32.mrb[0].mxu0
        %v3314 = vadd.f32 0.0, %v3313
        %v3315 = vpop.f32.mrb[0].mxu0
        %v3316 = vpop.f32.mrb[0].mxu0
        %v3317 = vpop.f32.mrb[0].mxu0
        %3318 = vdwg.mxu0
        %v3323 = vunpack.c.l.b16 %v3162
        %v3324 = vunpack.c.l.b16 %v3163
        %v3325 = vunpack.c.l.b16 %v3164
        %v3326 = vunpack.c.l.b16 %v3165
        %v3327 = vpack.c.b16 %v3324, %v3323
        %v3328 = vpack.c.b16 %v3326, %v3325
        %v3332 = vsel %vm754, %v2980, 0
        %v3335 = vsel %vm754, %v2981, 0
        %v3338 = vsel %vm754, %v2982, 0
        %v3341 = vsel %vm754, %v2983, 0
        %v3344 = vsel %vm754, %v2984, 0
        %v3347 = vsel %vm754, %v2985, 0
        %v3350 = vsel %vm754, %v2986, 0
        %v3353 = vsel %vm754, %v2987, 0
        %v3356 = vsel %vm754, %v2988, 0
        %3358 = vmatprep.subr.bf16.mxu0 0
        %3359 = vmatpush1.bf16.msra.mxu0 %v3327
        %3360 = vmatprep.subr.bf16.mxu0 0
        %3361 = vmatpush1.bf16.msra.mxu0 %v3328
        %3362 = vmatprep.subr.bf16.mxu0 0
        %3363 = vmatpush1.bf16.msra.mxu0 0
        %3364 = vmatprep.subr.bf16.mxu0 0
        %3365 = vmatpush1.bf16.msra.mxu0 0
        %3366 = vmatprep.subr.bf16.mxu0 0
        %3367 = vmatpush1.bf16.msra.mxu0 0
        %3368 = vmatprep.subr.bf16.mxu0 0
        %3369 = vmatpush1.bf16.msra.mxu0 0
        %3370 = vmatprep.subr.bf16.mxu0 0
        %3371 = vmatpush1.bf16.msra.mxu0 0
        %3372 = vmatprep.subr.bf16.mxu0 0
        %3373 = vmatpush1.bf16.msra.mxu0 0
        %3374 = vmatprep.subr.bf16.mxu0 0
        %3375 = vmatpush1.bf16.msra.mxu0 0
        %3376 = vmatprep.subr.bf16.mxu0 0
        %3377 = vmatpush1.bf16.msra.mxu0 0
        %3378 = vmatprep.subr.bf16.mxu0 0
        %3379 = vmatpush1.bf16.msra.mxu0 0
        %3380 = vmatprep.subr.bf16.mxu0 0
        %3381 = vmatpush1.bf16.msra.mxu0 0
        %3382 = vmatprep.subr.bf16.mxu0 0
        %3383 = vmatpush1.bf16.msra.mxu0 0
        %3384 = vmatprep.subr.bf16.mxu0 0
        %3385 = vmatpush1.bf16.msra.mxu0 0
        %3386 = vmatprep.subr.bf16.mxu0 0
        %3387 = vmatpush1.bf16.msra.mxu0 0
        %3388 = vmatprep.subr.bf16.mxu0 0
        %3389 = vmatpush1.bf16.msra.mxu0 0
        %3390 = vmatprep.mubr.bf16.mxu0 0
        %3391 = vmatmul.mubr.bf16.gmra.mrb[0].mxu0 %v3332
        %v3392 = vpop.f32.mrb[0].mxu0
        %v3393 = vadd.f32 %v3250, %v3392
        %v3394 = vpop.f32.mrb[0].mxu0
        %v3395 = vpop.f32.mrb[0].mxu0
        %v3396 = vadd.f32 %v3253, %v3395
        %v3397 = vpop.f32.mrb[0].mxu0
        %3398 = vmatprep.mubr.bf16.mxu0 0
        %3399 = vmatmul.mubr.bf16.gmra.mrb[0].mxu0 %v3335
        %v3400 = vpop.f32.mrb[0].mxu0
        %v3401 = vadd.f32 %v3258, %v3400
        %v3402 = vpop.f32.mrb[0].mxu0
        %v3403 = vpop.f32.mrb[0].mxu0
        %v3404 = vadd.f32 %v3261, %v3403
        %v3405 = vpop.f32.mrb[0].mxu0
        %3406 = vmatprep.mubr.bf16.mxu0 0
        %3407 = vmatmul.mubr.bf16.gmra.mrb[0].mxu0 %v3338
        %v3408 = vpop.f32.mrb[0].mxu0
        %v3409 = vadd.f32 %v3266, %v3408
        %v3410 = vpop.f32.mrb[0].mxu0
        %v3411 = vpop.f32.mrb[0].mxu0
        %v3412 = vadd.f32 %v3269, %v3411
        %v3413 = vpop.f32.mrb[0].mxu0
        %3414 = vmatprep.mubr.bf16.mxu0 0
        %3415 = vmatmul.mubr.bf16.gmra.mrb[0].mxu0 %v3341
        %v3416 = vpop.f32.mrb[0].mxu0
        %v3417 = vadd.f32 %v3274, %v3416
        %v3418 = vpop.f32.mrb[0].mxu0
        %v3419 = vpop.f32.mrb[0].mxu0
        %v3420 = vadd.f32 %v3277, %v3419
        %v3421 = vpop.f32.mrb[0].mxu0
        %3422 = vmatprep.mubr.bf16.mxu0 0
        %3423 = vmatmul.mubr.bf16.gmra.mrb[0].mxu0 %v3344
        %v3424 = vpop.f32.mrb[0].mxu0
        %v3425 = vadd.f32 %v3282, %v3424
        %v3426 = vpop.f32.mrb[0].mxu0
        %v3427 = vpop.f32.mrb[0].mxu0
        %v3428 = vadd.f32 %v3285, %v3427
        %v3429 = vpop.f32.mrb[0].mxu0
        %3430 = vmatprep.mubr.bf16.mxu0 0
        %3431 = vmatmul.mubr.bf16.gmra.mrb[0].mxu0 %v3347
        %v3432 = vpop.f32.mrb[0].mxu0
        %v3433 = vadd.f32 %v3290, %v3432
        %v3434 = vpop.f32.mrb[0].mxu0
        %v3435 = vpop.f32.mrb[0].mxu0
        %v3436 = vadd.f32 %v3293, %v3435
        %v3437 = vpop.f32.mrb[0].mxu0
        %3438 = vmatprep.mubr.bf16.mxu0 0
        %3439 = vmatmul.mubr.bf16.gmra.mrb[0].mxu0 %v3350
        %v3440 = vpop.f32.mrb[0].mxu0
        %v3441 = vadd.f32 %v3298, %v3440
        %v3442 = vpop.f32.mrb[0].mxu0
        %v3443 = vpop.f32.mrb[0].mxu0
        %v3444 = vadd.f32 %v3301, %v3443
        %v3445 = vpop.f32.mrb[0].mxu0
        %3446 = vmatprep.mubr.bf16.mxu0 0
        %3447 = vmatmul.mubr.bf16.gmra.mrb[0].mxu0 %v3353
        %v3448 = vpop.f32.mrb[0].mxu0
        %v3449 = vadd.f32 %v3306, %v3448
        %v3450 = vpop.f32.mrb[0].mxu0
        %v3451 = vpop.f32.mrb[0].mxu0
        %v3452 = vadd.f32 %v3309, %v3451
        %v3453 = vpop.f32.mrb[0].mxu0
        %3454 = vmatprep.mubr.bf16.mxu0 0
        %3455 = vmatmul.mubr.bf16.gmra.mrb[0].mxu0 %v3356
        %v3456 = vpop.f32.mrb[0].mxu0
        %v3457 = vadd.f32 %v3314, %v3456
        %v3458 = vpop.f32.mrb[0].mxu0
        %v3459 = vpop.f32.mrb[0].mxu0
        %v3460 = vpop.f32.mrb[0].mxu0
        %3461 = vdwg.mxu0
        %v3466 = vunpack.c.l.b16 %v3172
        %v3467 = vunpack.c.l.b16 %v3173
        %v3468 = vunpack.c.l.b16 %v3174
        %v3469 = vunpack.c.l.b16 %v3175
        %v3470 = vpack.c.b16 %v3467, %v3466
        %v3471 = vpack.c.b16 %v3469, %v3468
        %v3475 = vsel %vm754, %v3066, 0
        %v3478 = vsel %vm754, %v3067, 0
        %v3481 = vsel %vm754, %v3068, 0
        %v3484 = vsel %vm754, %v3069, 0
        %v3487 = vsel %vm754, %v3070, 0
        %v3490 = vsel %vm754, %v3071, 0
        %v3493 = vsel %vm754, %v3072, 0
        %v3496 = vsel %vm754, %v3073, 0
        %v3499 = vsel %vm754, %v3074, 0
        %3501 = vmatprep.subr.bf16.mxu0 0
        %3502 = vmatpush1.bf16.msra.mxu0 %v3470
        %3503 = vmatprep.subr.bf16.mxu0 0
        %3504 = vmatpush1.bf16.msra.mxu0 %v3471
        %3505 = vmatprep.subr.bf16.mxu0 0
        %3506 = vmatpush1.bf16.msra.mxu0 0
        %3507 = vmatprep.subr.bf16.mxu0 0
        %3508 = vmatpush1.bf16.msra.mxu0 0
        %3509 = vmatprep.subr.bf16.mxu0 0
        %3510 = vmatpush1.bf16.msra.mxu0 0
        %3511 = vmatprep.subr.bf16.mxu0 0
        %3512 = vmatpush1.bf16.msra.mxu0 0
        %3513 = vmatprep.subr.bf16.mxu0 0
        %3514 = vmatpush1.bf16.msra.mxu0 0
        %3515 = vmatprep.subr.bf16.mxu0 0
        %3516 = vmatpush1.bf16.msra.mxu0 0
        %3517 = vmatprep.subr.bf16.mxu0 0
        %3518 = vmatpush1.bf16.msra.mxu0 0
        %3519 = vmatprep.subr.bf16.mxu0 0
        %3520 = vmatpush1.bf16.msra.mxu0 0
        %3521 = vmatprep.subr.bf16.mxu0 0
        %3522 = vmatpush1.bf16.msra.mxu0 0
        %3523 = vmatprep.subr.bf16.mxu0 0
        %3524 = vmatpush1.bf16.msra.mxu0 0
        %3525 = vmatprep.subr.bf16.mxu0 0
        %3526 = vmatpush1.bf16.msra.mxu0 0
        %3527 = vmatprep.subr.bf16.mxu0 0
        %3528 = vmatpush1.bf16.msra.mxu0 0
        %3529 = vmatprep.subr.bf16.mxu0 0
        %3530 = vmatpush1.bf16.msra.mxu0 0
        %3531 = vmatprep.subr.bf16.mxu0 0
        %3532 = vmatpush1.bf16.msra.mxu0 0
        %3533 = vmatprep.mubr.bf16.mxu0 0
        %3534 = vmatmul.mubr.bf16.gmra.mrb[0].mxu0 %v3475
        %v3535 = vpop.f32.mrb[0].mxu0
        %v3536 = vadd.f32 0.0, %v3535
        %v3537 = vpop.f32.mrb[0].mxu0
        %v3538 = vpop.f32.mrb[0].mxu0
        %v3539 = vadd.f32 0.0, %v3538
        %v3540 = vpop.f32.mrb[0].mxu0
        %3541 = vmatprep.mubr.bf16.mxu0 0
        %3542 = vmatmul.mubr.bf16.gmra.mrb[0].mxu0 %v3478
        %v3543 = vpop.f32.mrb[0].mxu0
        %v3544 = vadd.f32 0.0, %v3543
        %v3545 = vpop.f32.mrb[0].mxu0
        %v3546 = vpop.f32.mrb[0].mxu0
        %v3547 = vadd.f32 0.0, %v3546
        %v3548 = vpop.f32.mrb[0].mxu0
        %3549 = vmatprep.mubr.bf16.mxu0 0
        %3550 = vmatmul.mubr.bf16.gmra.mrb[0].mxu0 %v3481
        %v3551 = vpop.f32.mrb[0].mxu0
        %v3552 = vadd.f32 0.0, %v3551
        %v3553 = vpop.f32.mrb[0].mxu0
        %v3554 = vpop.f32.mrb[0].mxu0
        %v3555 = vadd.f32 0.0, %v3554
        %v3556 = vpop.f32.mrb[0].mxu0
        %3557 = vmatprep.mubr.bf16.mxu0 0
        %3558 = vmatmul.mubr.bf16.gmra.mrb[0].mxu0 %v3484
        %v3559 = vpop.f32.mrb[0].mxu0
        %v3560 = vadd.f32 0.0, %v3559
        %v3561 = vpop.f32.mrb[0].mxu0
        %v3562 = vpop.f32.mrb[0].mxu0
        %v3563 = vadd.f32 0.0, %v3562
        %v3564 = vpop.f32.mrb[0].mxu0
        %3565 = vmatprep.mubr.bf16.mxu0 0
        %3566 = vmatmul.mubr.bf16.gmra.mrb[0].mxu0 %v3487
        %v3567 = vpop.f32.mrb[0].mxu0
        %v3568 = vadd.f32 0.0, %v3567
        %v3569 = vpop.f32.mrb[0].mxu0
        %v3570 = vpop.f32.mrb[0].mxu0
        %v3571 = vadd.f32 0.0, %v3570
        %v3572 = vpop.f32.mrb[0].mxu0
        %3573 = vmatprep.mubr.bf16.mxu0 0
        %3574 = vmatmul.mubr.bf16.gmra.mrb[0].mxu0 %v3490
        %v3575 = vpop.f32.mrb[0].mxu0
        %v3576 = vadd.f32 0.0, %v3575
        %v3577 = vpop.f32.mrb[0].mxu0
        %v3578 = vpop.f32.mrb[0].mxu0
        %v3579 = vadd.f32 0.0, %v3578
        %v3580 = vpop.f32.mrb[0].mxu0
        %3581 = vmatprep.mubr.bf16.mxu0 0
        %3582 = vmatmul.mubr.bf16.gmra.mrb[0].mxu0 %v3493
        %v3583 = vpop.f32.mrb[0].mxu0
        %v3584 = vadd.f32 0.0, %v3583
        %v3585 = vpop.f32.mrb[0].mxu0
        %v3586 = vpop.f32.mrb[0].mxu0
        %v3587 = vadd.f32 0.0, %v3586
        %v3588 = vpop.f32.mrb[0].mxu0
        %3589 = vmatprep.mubr.bf16.mxu0 0
        %3590 = vmatmul.mubr.bf16.gmra.mrb[0].mxu0 %v3496
        %v3591 = vpop.f32.mrb[0].mxu0
        %v3592 = vadd.f32 0.0, %v3591
        %v3593 = vpop.f32.mrb[0].mxu0
        %v3594 = vpop.f32.mrb[0].mxu0
        %v3595 = vadd.f32 0.0, %v3594
        %v3596 = vpop.f32.mrb[0].mxu0
        %3597 = vmatprep.mubr.bf16.mxu0 0
        %3598 = vmatmul.mubr.bf16.gmra.mrb[0].mxu0 %v3499
        %v3599 = vpop.f32.mrb[0].mxu0
        %v3600 = vadd.f32 0.0, %v3599
        %v3601 = vpop.f32.mrb[0].mxu0
        %v3602 = vpop.f32.mrb[0].mxu0
        %v3603 = vpop.f32.mrb[0].mxu0
        %3604 = vdwg.mxu0
        %v3605 = vadd.f32 %v3393, %v3536
        %v3606 = vadd.f32 %v3396, %v3539
        %v3607 = vadd.f32 %v3401, %v3544
        %v3608 = vadd.f32 %v3404, %v3547
        %v3609 = vadd.f32 %v3409, %v3552
        %v3610 = vadd.f32 %v3412, %v3555
        %v3611 = vadd.f32 %v3417, %v3560
        %v3612 = vadd.f32 %v3420, %v3563
        %v3613 = vadd.f32 %v3425, %v3568
        %v3614 = vadd.f32 %v3428, %v3571
        %v3615 = vadd.f32 %v3433, %v3576
        %v3616 = vadd.f32 %v3436, %v3579
        %v3617 = vadd.f32 %v3441, %v3584
        %v3618 = vadd.f32 %v3444, %v3587
        %v3619 = vadd.f32 %v3449, %v3592
        %v3620 = vadd.f32 %v3452, %v3595
        %v3621 = vadd.f32 %v3457, %v3600
        %3622 = vmatprep.subr.bf16.mxu0 0
        %3623 = vmatpush1.bf16.msra.mxu0 %v3184
        %3624 = vmatprep.subr.bf16.mxu0 0
        %3625 = vmatpush1.bf16.msra.mxu0 %v3185
        %3626 = vmatprep.subr.bf16.mxu0 0
        %3627 = vmatpush1.bf16.msra.mxu0 0
        %3628 = vmatprep.subr.bf16.mxu0 0
        %3629 = vmatpush1.bf16.msra.mxu0 0
        %3630 = vmatprep.subr.bf16.mxu0 0
        %3631 = vmatpush1.bf16.msra.mxu0 0
        %3632 = vmatprep.subr.bf16.mxu0 0
        %3633 = vmatpush1.bf16.msra.mxu0 0
        %3634 = vmatprep.subr.bf16.mxu0 0
        %3635 = vmatpush1.bf16.msra.mxu0 0
        %3636 = vmatprep.subr.bf16.mxu0 0
        %3637 = vmatpush1.bf16.msra.mxu0 0
        %3638 = vmatprep.subr.bf16.mxu0 0
        %3639 = vmatpush1.bf16.msra.mxu0 0
        %3640 = vmatprep.subr.bf16.mxu0 0
        %3641 = vmatpush1.bf16.msra.mxu0 0
        %3642 = vmatprep.subr.bf16.mxu0 0
        %3643 = vmatpush1.bf16.msra.mxu0 0
        %3644 = vmatprep.subr.bf16.mxu0 0
        %3645 = vmatpush1.bf16.msra.mxu0 0
        %3646 = vmatprep.subr.bf16.mxu0 0
        %3647 = vmatpush1.bf16.msra.mxu0 0
        %3648 = vmatprep.subr.bf16.mxu0 0
        %3649 = vmatpush1.bf16.msra.mxu0 0
        %3650 = vmatprep.subr.bf16.mxu0 0
        %3651 = vmatpush1.bf16.msra.mxu0 0
        %3652 = vmatprep.subr.bf16.mxu0 0
        %3653 = vmatpush1.bf16.msra.mxu0 0
        %3654 = vmatprep.mubr.bf16.mxu0 0
        %3655 = vmatmul.mubr.bf16.gmra.mrb[0].mxu0 %v3475
        %v3656 = vpop.f32.mrb[0].mxu0
        %v3657 = vadd.f32 0.0, %v3656
        %v3658 = vpop.f32.mrb[0].mxu0
        %v3659 = vpop.f32.mrb[0].mxu0
        %v3660 = vadd.f32 0.0, %v3659
        %v3661 = vpop.f32.mrb[0].mxu0
        %3662 = vmatprep.mubr.bf16.mxu0 0
        %3663 = vmatmul.mubr.bf16.gmra.mrb[0].mxu0 %v3478
        %v3664 = vpop.f32.mrb[0].mxu0
        %v3665 = vadd.f32 0.0, %v3664
        %v3666 = vpop.f32.mrb[0].mxu0
        %v3667 = vpop.f32.mrb[0].mxu0
        %v3668 = vadd.f32 0.0, %v3667
        %v3669 = vpop.f32.mrb[0].mxu0
        %3670 = vmatprep.mubr.bf16.mxu0 0
        %3671 = vmatmul.mubr.bf16.gmra.mrb[0].mxu0 %v3481
        %v3672 = vpop.f32.mrb[0].mxu0
        %v3673 = vadd.f32 0.0, %v3672
        %v3674 = vpop.f32.mrb[0].mxu0
        %v3675 = vpop.f32.mrb[0].mxu0
        %v3676 = vadd.f32 0.0, %v3675
        %v3677 = vpop.f32.mrb[0].mxu0
        %3678 = vmatprep.mubr.bf16.mxu0 0
        %3679 = vmatmul.mubr.bf16.gmra.mrb[0].mxu0 %v3484
        %v3680 = vpop.f32.mrb[0].mxu0
        %v3681 = vadd.f32 0.0, %v3680
        %v3682 = vpop.f32.mrb[0].mxu0
        %v3683 = vpop.f32.mrb[0].mxu0
        %v3684 = vadd.f32 0.0, %v3683
        %v3685 = vpop.f32.mrb[0].mxu0
        %3686 = vmatprep.mubr.bf16.mxu0 0
        %3687 = vmatmul.mubr.bf16.gmra.mrb[0].mxu0 %v3487
        %v3688 = vpop.f32.mrb[0].mxu0
        %v3689 = vadd.f32 0.0, %v3688
        %v3690 = vpop.f32.mrb[0].mxu0
        %v3691 = vpop.f32.mrb[0].mxu0
        %v3692 = vadd.f32 0.0, %v3691
        %v3693 = vpop.f32.mrb[0].mxu0
        %3694 = vmatprep.mubr.bf16.mxu0 0
        %3695 = vmatmul.mubr.bf16.gmra.mrb[0].mxu0 %v3490
        %v3696 = vpop.f32.mrb[0].mxu0
        %v3697 = vadd.f32 0.0, %v3696
        %v3698 = vpop.f32.mrb[0].mxu0
        %v3699 = vpop.f32.mrb[0].mxu0
        %v3700 = vadd.f32 0.0, %v3699
        %v3701 = vpop.f32.mrb[0].mxu0
        %3702 = vmatprep.mubr.bf16.mxu0 0
        %3703 = vmatmul.mubr.bf16.gmra.mrb[0].mxu0 %v3493
        %v3704 = vpop.f32.mrb[0].mxu0
        %v3705 = vadd.f32 0.0, %v3704
        %v3706 = vpop.f32.mrb[0].mxu0
        %v3707 = vpop.f32.mrb[0].mxu0
        %v3708 = vadd.f32 0.0, %v3707
        %v3709 = vpop.f32.mrb[0].mxu0
        %3710 = vmatprep.mubr.bf16.mxu0 0
        %3711 = vmatmul.mubr.bf16.gmra.mrb[0].mxu0 %v3496
        %v3712 = vpop.f32.mrb[0].mxu0
        %v3713 = vadd.f32 0.0, %v3712
        %v3714 = vpop.f32.mrb[0].mxu0
        %v3715 = vpop.f32.mrb[0].mxu0
        %v3716 = vadd.f32 0.0, %v3715
        %v3717 = vpop.f32.mrb[0].mxu0
        %3718 = vmatprep.mubr.bf16.mxu0 0
        %3719 = vmatmul.mubr.bf16.gmra.mrb[0].mxu0 %v3499
        %v3720 = vpop.f32.mrb[0].mxu0
        %v3721 = vadd.f32 0.0, %v3720
        %v3722 = vpop.f32.mrb[0].mxu0
        %v3723 = vpop.f32.mrb[0].mxu0
        %v3724 = vpop.f32.mrb[0].mxu0
        %3725 = vdwg.mxu0
        %3726 = vmatprep.subr.bf16.mxu0 0
        %3727 = vmatpush1.bf16.msra.mxu0 %v3327
        %3728 = vmatprep.subr.bf16.mxu0 0
        %3729 = vmatpush1.bf16.msra.mxu0 %v3328
        %3730 = vmatprep.subr.bf16.mxu0 0
        %3731 = vmatpush1.bf16.msra.mxu0 0
        %3732 = vmatprep.subr.bf16.mxu0 0
        %3733 = vmatpush1.bf16.msra.mxu0 0
        %3734 = vmatprep.subr.bf16.mxu0 0
        %3735 = vmatpush1.bf16.msra.mxu0 0
        %3736 = vmatprep.subr.bf16.mxu0 0
        %3737 = vmatpush1.bf16.msra.mxu0 0
        %3738 = vmatprep.subr.bf16.mxu0 0
        %3739 = vmatpush1.bf16.msra.mxu0 0
        %3740 = vmatprep.subr.bf16.mxu0 0
        %3741 = vmatpush1.bf16.msra.mxu0 0
        %3742 = vmatprep.subr.bf16.mxu0 0
        %3743 = vmatpush1.bf16.msra.mxu0 0
        %3744 = vmatprep.subr.bf16.mxu0 0
        %3745 = vmatpush1.bf16.msra.mxu0 0
        %3746 = vmatprep.subr.bf16.mxu0 0
        %3747 = vmatpush1.bf16.msra.mxu0 0
        %3748 = vmatprep.subr.bf16.mxu0 0
        %3749 = vmatpush1.bf16.msra.mxu0 0
        %3750 = vmatprep.subr.bf16.mxu0 0
        %3751 = vmatpush1.bf16.msra.mxu0 0
        %3752 = vmatprep.subr.bf16.mxu0 0
        %3753 = vmatpush1.bf16.msra.mxu0 0
        %3754 = vmatprep.subr.bf16.mxu0 0
        %3755 = vmatpush1.bf16.msra.mxu0 0
        %3756 = vmatprep.subr.bf16.mxu0 0
        %3757 = vmatpush1.bf16.msra.mxu0 0
        %3758 = vmatprep.mubr.bf16.mxu0 0
        %3759 = vmatmul.mubr.bf16.gmra.mrb[0].mxu0 %v3189
        %v3760 = vpop.f32.mrb[0].mxu0
        %v3761 = vadd.f32 %v3657, %v3760
        %v3762 = vpop.f32.mrb[0].mxu0
        %v3763 = vpop.f32.mrb[0].mxu0
        %v3764 = vadd.f32 %v3660, %v3763
        %v3765 = vpop.f32.mrb[0].mxu0
        %3766 = vmatprep.mubr.bf16.mxu0 0
        %3767 = vmatmul.mubr.bf16.gmra.mrb[0].mxu0 %v3192
        %v3768 = vpop.f32.mrb[0].mxu0
        %v3769 = vadd.f32 %v3665, %v3768
        %v3770 = vpop.f32.mrb[0].mxu0
        %v3771 = vpop.f32.mrb[0].mxu0
        %v3772 = vadd.f32 %v3668, %v3771
        %v3773 = vpop.f32.mrb[0].mxu0
        %3774 = vmatprep.mubr.bf16.mxu0 0
        %3775 = vmatmul.mubr.bf16.gmra.mrb[0].mxu0 %v3195
        %v3776 = vpop.f32.mrb[0].mxu0
        %v3777 = vadd.f32 %v3673, %v3776
        %v3778 = vpop.f32.mrb[0].mxu0
        %v3779 = vpop.f32.mrb[0].mxu0
        %v3780 = vadd.f32 %v3676, %v3779
        %v3781 = vpop.f32.mrb[0].mxu0
        %3782 = vmatprep.mubr.bf16.mxu0 0
        %3783 = vmatmul.mubr.bf16.gmra.mrb[0].mxu0 %v3198
        %v3784 = vpop.f32.mrb[0].mxu0
        %v3785 = vadd.f32 %v3681, %v3784
        %v3786 = vpop.f32.mrb[0].mxu0
        %v3787 = vpop.f32.mrb[0].mxu0
        %v3788 = vadd.f32 %v3684, %v3787
        %v3789 = vpop.f32.mrb[0].mxu0
        %3790 = vmatprep.mubr.bf16.mxu0 0
        %3791 = vmatmul.mubr.bf16.gmra.mrb[0].mxu0 %v3201
        %v3792 = vpop.f32.mrb[0].mxu0
        %v3793 = vadd.f32 %v3689, %v3792
        %v3794 = vpop.f32.mrb[0].mxu0
        %v3795 = vpop.f32.mrb[0].mxu0
        %v3796 = vadd.f32 %v3692, %v3795
        %v3797 = vpop.f32.mrb[0].mxu0
        %3798 = vmatprep.mubr.bf16.mxu0 0
        %3799 = vmatmul.mubr.bf16.gmra.mrb[0].mxu0 %v3204
        %v3800 = vpop.f32.mrb[0].mxu0
        %v3801 = vadd.f32 %v3697, %v3800
        %v3802 = vpop.f32.mrb[0].mxu0
        %v3803 = vpop.f32.mrb[0].mxu0
        %v3804 = vadd.f32 %v3700, %v3803
        %v3805 = vpop.f32.mrb[0].mxu0
        %3806 = vmatprep.mubr.bf16.mxu0 0
        %3807 = vmatmul.mubr.bf16.gmra.mrb[0].mxu0 %v3207
        %v3808 = vpop.f32.mrb[0].mxu0
        %v3809 = vadd.f32 %v3705, %v3808
        %v3810 = vpop.f32.mrb[0].mxu0
        %v3811 = vpop.f32.mrb[0].mxu0
        %v3812 = vadd.f32 %v3708, %v3811
        %v3813 = vpop.f32.mrb[0].mxu0
        %3814 = vmatprep.mubr.bf16.mxu0 0
        %3815 = vmatmul.mubr.bf16.gmra.mrb[0].mxu0 %v3210
        %v3816 = vpop.f32.mrb[0].mxu0
        %v3817 = vadd.f32 %v3713, %v3816
        %v3818 = vpop.f32.mrb[0].mxu0
        %v3819 = vpop.f32.mrb[0].mxu0
        %v3820 = vadd.f32 %v3716, %v3819
        %v3821 = vpop.f32.mrb[0].mxu0
        %3822 = vmatprep.mubr.bf16.mxu0 0
        %3823 = vmatmul.mubr.bf16.gmra.mrb[0].mxu0 %v3213
        %v3824 = vpop.f32.mrb[0].mxu0
        %v3825 = vadd.f32 %v3721, %v3824
        %v3826 = vpop.f32.mrb[0].mxu0
        %v3827 = vpop.f32.mrb[0].mxu0
        %v3828 = vpop.f32.mrb[0].mxu0
        %3829 = vdwg.mxu0
        %v3831 = vsel %vm754, %v3109, 0
        %v3834 = vsel %vm754, %v3110, 0
        %v3837 = vsel %vm754, %v3111, 0
        %v3840 = vsel %vm754, %v3112, 0
        %v3843 = vsel %vm754, %v3113, 0
        %v3846 = vsel %vm754, %v3114, 0
        %v3849 = vsel %vm754, %v3115, 0
        %v3852 = vsel %vm754, %v3116, 0
        %v3855 = vsel %vm754, %v3117, 0
        %3857 = vmatprep.subr.bf16.mxu0 0
        %3858 = vmatpush1.bf16.msra.mxu0 %v3470
        %3859 = vmatprep.subr.bf16.mxu0 0
        %3860 = vmatpush1.bf16.msra.mxu0 %v3471
        %3861 = vmatprep.subr.bf16.mxu0 0
        %3862 = vmatpush1.bf16.msra.mxu0 0
        %3863 = vmatprep.subr.bf16.mxu0 0
        %3864 = vmatpush1.bf16.msra.mxu0 0
        %3865 = vmatprep.subr.bf16.mxu0 0
        %3866 = vmatpush1.bf16.msra.mxu0 0
        %3867 = vmatprep.subr.bf16.mxu0 0
        %3868 = vmatpush1.bf16.msra.mxu0 0
        %3869 = vmatprep.subr.bf16.mxu0 0
        %3870 = vmatpush1.bf16.msra.mxu0 0
        %3871 = vmatprep.subr.bf16.mxu0 0
        %3872 = vmatpush1.bf16.msra.mxu0 0
        %3873 = vmatprep.subr.bf16.mxu0 0
        %3874 = vmatpush1.bf16.msra.mxu0 0
        %3875 = vmatprep.subr.bf16.mxu0 0
        %3876 = vmatpush1.bf16.msra.mxu0 0
        %3877 = vmatprep.subr.bf16.mxu0 0
        %3878 = vmatpush1.bf16.msra.mxu0 0
        %3879 = vmatprep.subr.bf16.mxu0 0
        %3880 = vmatpush1.bf16.msra.mxu0 0
        %3881 = vmatprep.subr.bf16.mxu0 0
        %3882 = vmatpush1.bf16.msra.mxu0 0
        %3883 = vmatprep.subr.bf16.mxu0 0
        %3884 = vmatpush1.bf16.msra.mxu0 0
        %3885 = vmatprep.subr.bf16.mxu0 0
        %3886 = vmatpush1.bf16.msra.mxu0 0
        %3887 = vmatprep.subr.bf16.mxu0 0
        %3888 = vmatpush1.bf16.msra.mxu0 0
        %3889 = vmatprep.mubr.bf16.mxu0 0
        %3890 = vmatmul.mubr.bf16.gmra.mrb[0].mxu0 %v3831
        %v3891 = vpop.f32.mrb[0].mxu0
        %v3892 = vadd.f32 0.0, %v3891
        %v3893 = vpop.f32.mrb[0].mxu0
        %v3894 = vpop.f32.mrb[0].mxu0
        %v3895 = vadd.f32 0.0, %v3894
        %v3896 = vpop.f32.mrb[0].mxu0
        %3897 = vmatprep.mubr.bf16.mxu0 0
        %3898 = vmatmul.mubr.bf16.gmra.mrb[0].mxu0 %v3834
        %v3899 = vpop.f32.mrb[0].mxu0
        %v3900 = vadd.f32 0.0, %v3899
        %v3901 = vpop.f32.mrb[0].mxu0
        %v3902 = vpop.f32.mrb[0].mxu0
        %v3903 = vadd.f32 0.0, %v3902
        %v3904 = vpop.f32.mrb[0].mxu0
        %3905 = vmatprep.mubr.bf16.mxu0 0
        %3906 = vmatmul.mubr.bf16.gmra.mrb[0].mxu0 %v3837
        %v3907 = vpop.f32.mrb[0].mxu0
        %v3908 = vadd.f32 0.0, %v3907
        %v3909 = vpop.f32.mrb[0].mxu0
        %v3910 = vpop.f32.mrb[0].mxu0
        %v3911 = vadd.f32 0.0, %v3910
        %v3912 = vpop.f32.mrb[0].mxu0
        %3913 = vmatprep.mubr.bf16.mxu0 0
        %3914 = vmatmul.mubr.bf16.gmra.mrb[0].mxu0 %v3840
        %v3915 = vpop.f32.mrb[0].mxu0
        %v3916 = vadd.f32 0.0, %v3915
        %v3917 = vpop.f32.mrb[0].mxu0
        %v3918 = vpop.f32.mrb[0].mxu0
        %v3919 = vadd.f32 0.0, %v3918
        %v3920 = vpop.f32.mrb[0].mxu0
        %3921 = vmatprep.mubr.bf16.mxu0 0
        %3922 = vmatmul.mubr.bf16.gmra.mrb[0].mxu0 %v3843
        %v3923 = vpop.f32.mrb[0].mxu0
        %v3924 = vadd.f32 0.0, %v3923
        %v3925 = vpop.f32.mrb[0].mxu0
        %v3926 = vpop.f32.mrb[0].mxu0
        %v3927 = vadd.f32 0.0, %v3926
        %v3928 = vpop.f32.mrb[0].mxu0
        %3929 = vmatprep.mubr.bf16.mxu0 0
        %3930 = vmatmul.mubr.bf16.gmra.mrb[0].mxu0 %v3846
        %v3931 = vpop.f32.mrb[0].mxu0
        %v3932 = vadd.f32 0.0, %v3931
        %v3933 = vpop.f32.mrb[0].mxu0
        %v3934 = vpop.f32.mrb[0].mxu0
        %v3935 = vadd.f32 0.0, %v3934
        %v3936 = vpop.f32.mrb[0].mxu0
        %3937 = vmatprep.mubr.bf16.mxu0 0
        %3938 = vmatmul.mubr.bf16.gmra.mrb[0].mxu0 %v3849
        %v3939 = vpop.f32.mrb[0].mxu0
        %v3940 = vadd.f32 0.0, %v3939
        %v3941 = vpop.f32.mrb[0].mxu0
        %v3942 = vpop.f32.mrb[0].mxu0
        %v3943 = vadd.f32 0.0, %v3942
        %v3944 = vpop.f32.mrb[0].mxu0
        %3945 = vmatprep.mubr.bf16.mxu0 0
        %3946 = vmatmul.mubr.bf16.gmra.mrb[0].mxu0 %v3852
        %v3947 = vpop.f32.mrb[0].mxu0
        %v3948 = vadd.f32 0.0, %v3947
        %v3949 = vpop.f32.mrb[0].mxu0
        %v3950 = vpop.f32.mrb[0].mxu0
        %v3951 = vadd.f32 0.0, %v3950
        %v3952 = vpop.f32.mrb[0].mxu0
        %3953 = vmatprep.mubr.bf16.mxu0 0
        %3954 = vmatmul.mubr.bf16.gmra.mrb[0].mxu0 %v3855
        %v3955 = vpop.f32.mrb[0].mxu0
        %v3956 = vadd.f32 0.0, %v3955
        %v3957 = vpop.f32.mrb[0].mxu0
        %v3958 = vpop.f32.mrb[0].mxu0
        %v3959 = vpop.f32.mrb[0].mxu0
        %3960 = vdwg.mxu0
        %v3961 = vadd.f32 %v3761, %v3892
        %v3962 = vadd.f32 %v3764, %v3895
        %v3963 = vadd.f32 %v3769, %v3900
        %v3964 = vadd.f32 %v3772, %v3903
        %v3965 = vadd.f32 %v3777, %v3908
        %v3966 = vadd.f32 %v3780, %v3911
        %v3967 = vadd.f32 %v3785, %v3916
        %v3968 = vadd.f32 %v3788, %v3919
        %v3969 = vadd.f32 %v3793, %v3924
        %v3970 = vadd.f32 %v3796, %v3927
        %v3971 = vadd.f32 %v3801, %v3932
        %v3972 = vadd.f32 %v3804, %v3935
        %v3973 = vadd.f32 %v3809, %v3940
        %v3974 = vadd.f32 %v3812, %v3943
        %v3975 = vadd.f32 %v3817, %v3948
        %v3976 = vadd.f32 %v3820, %v3951
        %v3977 = vadd.f32 %v3825, %v3956
        %v3978 = vmax.f32 %v3605, %v3961
        %v3979 = vmax.f32 %v3606, %v3962
        %v3980 = vmax.f32 %v3607, %v3963
        %v3981 = vmax.f32 %v3608, %v3964
        %v3982 = vmax.f32 %v3609, %v3965
        %v3983 = vmax.f32 %v3610, %v3966
        %v3984 = vmax.f32 %v3611, %v3967
        %v3985 = vmax.f32 %v3612, %v3968
        %v3986 = vmax.f32 %v3613, %v3969
        %v3987 = vmax.f32 %v3614, %v3970
        %v3988 = vmax.f32 %v3615, %v3971
        %v3989 = vmax.f32 %v3616, %v3972
        %v3990 = vmax.f32 %v3617, %v3973
        %v3991 = vmax.f32 %v3618, %v3974
        %v3992 = vmax.f32 %v3619, %v3975
        %v3993 = vmax.f32 %v3620, %v3976
        %v3994 = vmax.f32 %v3621, %v3977
        %3995 = vmatprep.subr.bf16.mxu0 0
        %3996 = vmatpush1.bf16.msra.mxu0 %v3184
        %3997 = vmatprep.subr.bf16.mxu0 0
        %3998 = vmatpush1.bf16.msra.mxu0 %v3185
        %3999 = vmatprep.subr.bf16.mxu0 0
        %4000 = vmatpush1.bf16.msra.mxu0 0
        %4001 = vmatprep.subr.bf16.mxu0 0
        %4002 = vmatpush1.bf16.msra.mxu0 0
        %4003 = vmatprep.subr.bf16.mxu0 0
        %4004 = vmatpush1.bf16.msra.mxu0 0
        %4005 = vmatprep.subr.bf16.mxu0 0
        %4006 = vmatpush1.bf16.msra.mxu0 0
        %4007 = vmatprep.subr.bf16.mxu0 0
        %4008 = vmatpush1.bf16.msra.mxu0 0
        %4009 = vmatprep.subr.bf16.mxu0 0
        %4010 = vmatpush1.bf16.msra.mxu0 0
        %4011 = vmatprep.subr.bf16.mxu0 0
        %4012 = vmatpush1.bf16.msra.mxu0 0
        %4013 = vmatprep.subr.bf16.mxu0 0
        %4014 = vmatpush1.bf16.msra.mxu0 0
        %4015 = vmatprep.subr.bf16.mxu0 0
        %4016 = vmatpush1.bf16.msra.mxu0 0
        %4017 = vmatprep.subr.bf16.mxu0 0
        %4018 = vmatpush1.bf16.msra.mxu0 0
        %4019 = vmatprep.subr.bf16.mxu0 0
        %4020 = vmatpush1.bf16.msra.mxu0 0
        %4021 = vmatprep.subr.bf16.mxu0 0
        %4022 = vmatpush1.bf16.msra.mxu0 0
        %4023 = vmatprep.subr.bf16.mxu0 0
        %4024 = vmatpush1.bf16.msra.mxu0 0
        %4025 = vmatprep.subr.bf16.mxu0 0
        %4026 = vmatpush1.bf16.msra.mxu0 0
        %4027 = vmatprep.mubr.bf16.mxu0 0
        %4028 = vmatmul.mubr.bf16.gmra.mrb[0].mxu0 %v3831
        %v4029 = vpop.f32.mrb[0].mxu0
        %v4030 = vadd.f32 0.0, %v4029
        %v4031 = vpop.f32.mrb[0].mxu0
        %v4032 = vpop.f32.mrb[0].mxu0
        %v4033 = vadd.f32 0.0, %v4032
        %v4034 = vpop.f32.mrb[0].mxu0
        %4035 = vmatprep.mubr.bf16.mxu0 0
        %4036 = vmatmul.mubr.bf16.gmra.mrb[0].mxu0 %v3834
        %v4037 = vpop.f32.mrb[0].mxu0
        %v4038 = vadd.f32 0.0, %v4037
        %v4039 = vpop.f32.mrb[0].mxu0
        %v4040 = vpop.f32.mrb[0].mxu0
        %v4041 = vadd.f32 0.0, %v4040
        %v4042 = vpop.f32.mrb[0].mxu0
        %4043 = vmatprep.mubr.bf16.mxu0 0
        %4044 = vmatmul.mubr.bf16.gmra.mrb[0].mxu0 %v3837
        %v4045 = vpop.f32.mrb[0].mxu0
        %v4046 = vadd.f32 0.0, %v4045
        %v4047 = vpop.f32.mrb[0].mxu0
        %v4048 = vpop.f32.mrb[0].mxu0
        %v4049 = vadd.f32 0.0, %v4048
        %v4050 = vpop.f32.mrb[0].mxu0
        %4051 = vmatprep.mubr.bf16.mxu0 0
        %4052 = vmatmul.mubr.bf16.gmra.mrb[0].mxu0 %v3840
        %v4053 = vpop.f32.mrb[0].mxu0
        %v4054 = vadd.f32 0.0, %v4053
        %v4055 = vpop.f32.mrb[0].mxu0
        %v4056 = vpop.f32.mrb[0].mxu0
        %v4057 = vadd.f32 0.0, %v4056
        %v4058 = vpop.f32.mrb[0].mxu0
        %4059 = vmatprep.mubr.bf16.mxu0 0
        %4060 = vmatmul.mubr.bf16.gmra.mrb[0].mxu0 %v3843
        %v4061 = vpop.f32.mrb[0].mxu0
        %v4062 = vadd.f32 0.0, %v4061
        %v4063 = vpop.f32.mrb[0].mxu0
        %v4064 = vpop.f32.mrb[0].mxu0
        %v4065 = vadd.f32 0.0, %v4064
        %v4066 = vpop.f32.mrb[0].mxu0
        %4067 = vmatprep.mubr.bf16.mxu0 0
        %4068 = vmatmul.mubr.bf16.gmra.mrb[0].mxu0 %v3846
        %v4069 = vpop.f32.mrb[0].mxu0
        %v4070 = vadd.f32 0.0, %v4069
        %v4071 = vpop.f32.mrb[0].mxu0
        %v4072 = vpop.f32.mrb[0].mxu0
        %v4073 = vadd.f32 0.0, %v4072
        %v4074 = vpop.f32.mrb[0].mxu0
        %4075 = vmatprep.mubr.bf16.mxu0 0
        %4076 = vmatmul.mubr.bf16.gmra.mrb[0].mxu0 %v3849
        %v4077 = vpop.f32.mrb[0].mxu0
        %v4078 = vadd.f32 0.0, %v4077
        %v4079 = vpop.f32.mrb[0].mxu0
        %v4080 = vpop.f32.mrb[0].mxu0
        %v4081 = vadd.f32 0.0, %v4080
        %v4082 = vpop.f32.mrb[0].mxu0
        %4083 = vmatprep.mubr.bf16.mxu0 0
        %4084 = vmatmul.mubr.bf16.gmra.mrb[0].mxu0 %v3852
        %v4085 = vpop.f32.mrb[0].mxu0
        %v4086 = vadd.f32 0.0, %v4085
        %v4087 = vpop.f32.mrb[0].mxu0
        %v4088 = vpop.f32.mrb[0].mxu0
        %v4089 = vadd.f32 0.0, %v4088
        %v4090 = vpop.f32.mrb[0].mxu0
        %4091 = vmatprep.mubr.bf16.mxu0 0
        %4092 = vmatmul.mubr.bf16.gmra.mrb[0].mxu0 %v3855
        %v4093 = vpop.f32.mrb[0].mxu0
        %v4094 = vadd.f32 0.0, %v4093
        %v4095 = vpop.f32.mrb[0].mxu0
        %v4096 = vpop.f32.mrb[0].mxu0
        %v4097 = vpop.f32.mrb[0].mxu0
        %4098 = vdwg.mxu0
        %4099 = vmatprep.subr.bf16.mxu0 0
        %4100 = vmatpush1.bf16.msra.mxu0 %v3327
        %4101 = vmatprep.subr.bf16.mxu0 0
        %4102 = vmatpush1.bf16.msra.mxu0 %v3328
        %4103 = vmatprep.subr.bf16.mxu0 0
        %4104 = vmatpush1.bf16.msra.mxu0 0
        %4105 = vmatprep.subr.bf16.mxu0 0
        %4106 = vmatpush1.bf16.msra.mxu0 0
        %4107 = vmatprep.subr.bf16.mxu0 0
        %4108 = vmatpush1.bf16.msra.mxu0 0
        %4109 = vmatprep.subr.bf16.mxu0 0
        %4110 = vmatpush1.bf16.msra.mxu0 0
        %4111 = vmatprep.subr.bf16.mxu0 0
        %4112 = vmatpush1.bf16.msra.mxu0 0
        %4113 = vmatprep.subr.bf16.mxu0 0
        %4114 = vmatpush1.bf16.msra.mxu0 0
        %4115 = vmatprep.subr.bf16.mxu0 0
        %4116 = vmatpush1.bf16.msra.mxu0 0
        %4117 = vmatprep.subr.bf16.mxu0 0
        %4118 = vmatpush1.bf16.msra.mxu0 0
        %4119 = vmatprep.subr.bf16.mxu0 0
        %4120 = vmatpush1.bf16.msra.mxu0 0
        %4121 = vmatprep.subr.bf16.mxu0 0
        %4122 = vmatpush1.bf16.msra.mxu0 0
        %4123 = vmatprep.subr.bf16.mxu0 0
        %4124 = vmatpush1.bf16.msra.mxu0 0
        %4125 = vmatprep.subr.bf16.mxu0 0
        %4126 = vmatpush1.bf16.msra.mxu0 0
        %4127 = vmatprep.subr.bf16.mxu0 0
        %4128 = vmatpush1.bf16.msra.mxu0 0
        %4129 = vmatprep.subr.bf16.mxu0 0
        %4130 = vmatpush1.bf16.msra.mxu0 0
        %4131 = vmatprep.mubr.bf16.mxu0 0
        %4132 = vmatmul.mubr.bf16.gmra.mrb[0].mxu0 %v3475
        %v4133 = vpop.f32.mrb[0].mxu0
        %v4134 = vadd.f32 %v4030, %v4133
        %v4135 = vpop.f32.mrb[0].mxu0
        %v4136 = vpop.f32.mrb[0].mxu0
        %v4137 = vadd.f32 %v4033, %v4136
        %v4138 = vpop.f32.mrb[0].mxu0
        %4139 = vmatprep.mubr.bf16.mxu0 0
        %4140 = vmatmul.mubr.bf16.gmra.mrb[0].mxu0 %v3478
        %v4141 = vpop.f32.mrb[0].mxu0
        %v4142 = vadd.f32 %v4038, %v4141
        %v4143 = vpop.f32.mrb[0].mxu0
        %v4144 = vpop.f32.mrb[0].mxu0
        %v4145 = vadd.f32 %v4041, %v4144
        %v4146 = vpop.f32.mrb[0].mxu0
        %4147 = vmatprep.mubr.bf16.mxu0 0
        %4148 = vmatmul.mubr.bf16.gmra.mrb[0].mxu0 %v3481
        %v4149 = vpop.f32.mrb[0].mxu0
        %v4150 = vadd.f32 %v4046, %v4149
        %v4151 = vpop.f32.mrb[0].mxu0
        %v4152 = vpop.f32.mrb[0].mxu0
        %v4153 = vadd.f32 %v4049, %v4152
        %v4154 = vpop.f32.mrb[0].mxu0
        %4155 = vmatprep.mubr.bf16.mxu0 0
        %4156 = vmatmul.mubr.bf16.gmra.mrb[0].mxu0 %v3484
        %v4157 = vpop.f32.mrb[0].mxu0
        %v4158 = vadd.f32 %v4054, %v4157
        %v4159 = vpop.f32.mrb[0].mxu0
        %v4160 = vpop.f32.mrb[0].mxu0
        %v4161 = vadd.f32 %v4057, %v4160
        %v4162 = vpop.f32.mrb[0].mxu0
        %4163 = vmatprep.mubr.bf16.mxu0 0
        %4164 = vmatmul.mubr.bf16.gmra.mrb[0].mxu0 %v3487
        %v4165 = vpop.f32.mrb[0].mxu0
        %v4166 = vadd.f32 %v4062, %v4165
        %v4167 = vpop.f32.mrb[0].mxu0
        %v4168 = vpop.f32.mrb[0].mxu0
        %v4169 = vadd.f32 %v4065, %v4168
        %v4170 = vpop.f32.mrb[0].mxu0
        %4171 = vmatprep.mubr.bf16.mxu0 0
        %4172 = vmatmul.mubr.bf16.gmra.mrb[0].mxu0 %v3490
        %v4173 = vpop.f32.mrb[0].mxu0
        %v4174 = vadd.f32 %v4070, %v4173
        %v4175 = vpop.f32.mrb[0].mxu0
        %v4176 = vpop.f32.mrb[0].mxu0
        %v4177 = vadd.f32 %v4073, %v4176
        %v4178 = vpop.f32.mrb[0].mxu0
        %4179 = vmatprep.mubr.bf16.mxu0 0
        %4180 = vmatmul.mubr.bf16.gmra.mrb[0].mxu0 %v3493
        %v4181 = vpop.f32.mrb[0].mxu0
        %v4182 = vadd.f32 %v4078, %v4181
        %v4183 = vpop.f32.mrb[0].mxu0
        %v4184 = vpop.f32.mrb[0].mxu0
        %v4185 = vadd.f32 %v4081, %v4184
        %v4186 = vpop.f32.mrb[0].mxu0
        %4187 = vmatprep.mubr.bf16.mxu0 0
        %4188 = vmatmul.mubr.bf16.gmra.mrb[0].mxu0 %v3496
        %v4189 = vpop.f32.mrb[0].mxu0
        %v4190 = vadd.f32 %v4086, %v4189
        %v4191 = vpop.f32.mrb[0].mxu0
        %v4192 = vpop.f32.mrb[0].mxu0
        %v4193 = vadd.f32 %v4089, %v4192
        %v4194 = vpop.f32.mrb[0].mxu0
        %4195 = vmatprep.mubr.bf16.mxu0 0
        %4196 = vmatmul.mubr.bf16.gmra.mrb[0].mxu0 %v3499
        %v4197 = vpop.f32.mrb[0].mxu0
        %v4198 = vadd.f32 %v4094, %v4197
        %v4199 = vpop.f32.mrb[0].mxu0
        %v4200 = vpop.f32.mrb[0].mxu0
        %v4201 = vpop.f32.mrb[0].mxu0
        %4202 = vdwg.mxu0
        %v4204 = vsel %vm754, %v3152, 0
        %v4207 = vsel %vm754, %v3153, 0
        %v4210 = vsel %vm754, %v3154, 0
        %v4213 = vsel %vm754, %v3155, 0
        %v4216 = vsel %vm754, %v3156, 0
        %v4219 = vsel %vm754, %v3157, 0
        %v4222 = vsel %vm754, %v3158, 0
        %v4225 = vsel %vm754, %v3159, 0
        %v4228 = vsel %vm754, %v3160, 0
        %4230 = vmatprep.subr.bf16.mxu0 0
        %4231 = vmatpush1.bf16.msra.mxu0 %v3470
        %4232 = vmatprep.subr.bf16.mxu0 0
        %4233 = vmatpush1.bf16.msra.mxu0 %v3471
        %4234 = vmatprep.subr.bf16.mxu0 0
        %4235 = vmatpush1.bf16.msra.mxu0 0
        %4236 = vmatprep.subr.bf16.mxu0 0
        %4237 = vmatpush1.bf16.msra.mxu0 0
        %4238 = vmatprep.subr.bf16.mxu0 0
        %4239 = vmatpush1.bf16.msra.mxu0 0
        %4240 = vmatprep.subr.bf16.mxu0 0
        %4241 = vmatpush1.bf16.msra.mxu0 0
        %4242 = vmatprep.subr.bf16.mxu0 0
        %4243 = vmatpush1.bf16.msra.mxu0 0
        %4244 = vmatprep.subr.bf16.mxu0 0
        %4245 = vmatpush1.bf16.msra.mxu0 0
        %4246 = vmatprep.subr.bf16.mxu0 0
        %4247 = vmatpush1.bf16.msra.mxu0 0
        %4248 = vmatprep.subr.bf16.mxu0 0
        %4249 = vmatpush1.bf16.msra.mxu0 0
        %4250 = vmatprep.subr.bf16.mxu0 0
        %4251 = vmatpush1.bf16.msra.mxu0 0
        %4252 = vmatprep.subr.bf16.mxu0 0
        %4253 = vmatpush1.bf16.msra.mxu0 0
        %4254 = vmatprep.subr.bf16.mxu0 0
        %4255 = vmatpush1.bf16.msra.mxu0 0
        %4256 = vmatprep.subr.bf16.mxu0 0
        %4257 = vmatpush1.bf16.msra.mxu0 0
        %4258 = vmatprep.subr.bf16.mxu0 0
        %4259 = vmatpush1.bf16.msra.mxu0 0
        %4260 = vmatprep.subr.bf16.mxu0 0
        %4261 = vmatpush1.bf16.msra.mxu0 0
        %4262 = vmatprep.mubr.bf16.mxu0 0
        %4263 = vmatmul.mubr.bf16.gmra.mrb[0].mxu0 %v4204
        %v4264 = vpop.f32.mrb[0].mxu0
        %v4265 = vadd.f32 0.0, %v4264
        %v4266 = vpop.f32.mrb[0].mxu0
        %v4267 = vpop.f32.mrb[0].mxu0
        %v4268 = vadd.f32 0.0, %v4267
        %v4269 = vpop.f32.mrb[0].mxu0
        %4270 = vmatprep.mubr.bf16.mxu0 0
        %4271 = vmatmul.mubr.bf16.gmra.mrb[0].mxu0 %v4207
        %v4272 = vpop.f32.mrb[0].mxu0
        %v4273 = vadd.f32 0.0, %v4272
        %v4274 = vpop.f32.mrb[0].mxu0
        %v4275 = vpop.f32.mrb[0].mxu0
        %v4276 = vadd.f32 0.0, %v4275
        %v4277 = vpop.f32.mrb[0].mxu0
        %4278 = vmatprep.mubr.bf16.mxu0 0
        %4279 = vmatmul.mubr.bf16.gmra.mrb[0].mxu0 %v4210
        %v4280 = vpop.f32.mrb[0].mxu0
        %v4281 = vadd.f32 0.0, %v4280
        %v4282 = vpop.f32.mrb[0].mxu0
        %v4283 = vpop.f32.mrb[0].mxu0
        %v4284 = vadd.f32 0.0, %v4283
        %v4285 = vpop.f32.mrb[0].mxu0
        %4286 = vmatprep.mubr.bf16.mxu0 0
        %4287 = vmatmul.mubr.bf16.gmra.mrb[0].mxu0 %v4213
        %v4288 = vpop.f32.mrb[0].mxu0
        %v4289 = vadd.f32 0.0, %v4288
        %v4290 = vpop.f32.mrb[0].mxu0
        %v4291 = vpop.f32.mrb[0].mxu0
        %v4292 = vadd.f32 0.0, %v4291
        %v4293 = vpop.f32.mrb[0].mxu0
        %4294 = vmatprep.mubr.bf16.mxu0 0
        %4295 = vmatmul.mubr.bf16.gmra.mrb[0].mxu0 %v4216
        %v4296 = vpop.f32.mrb[0].mxu0
        %v4297 = vadd.f32 0.0, %v4296
        %v4298 = vpop.f32.mrb[0].mxu0
        %v4299 = vpop.f32.mrb[0].mxu0
        %v4300 = vadd.f32 0.0, %v4299
        %v4301 = vpop.f32.mrb[0].mxu0
        %4302 = vmatprep.mubr.bf16.mxu0 0
        %4303 = vmatmul.mubr.bf16.gmra.mrb[0].mxu0 %v4219
        %v4304 = vpop.f32.mrb[0].mxu0
        %v4305 = vadd.f32 0.0, %v4304
        %v4306 = vpop.f32.mrb[0].mxu0
        %v4307 = vpop.f32.mrb[0].mxu0
        %v4308 = vadd.f32 0.0, %v4307
        %v4309 = vpop.f32.mrb[0].mxu0
        %4310 = vmatprep.mubr.bf16.mxu0 0
        %4311 = vmatmul.mubr.bf16.gmra.mrb[0].mxu0 %v4222
        %v4312 = vpop.f32.mrb[0].mxu0
        %v4313 = vadd.f32 0.0, %v4312
        %v4314 = vpop.f32.mrb[0].mxu0
        %v4315 = vpop.f32.mrb[0].mxu0
        %v4316 = vadd.f32 0.0, %v4315
        %v4317 = vpop.f32.mrb[0].mxu0
        %4318 = vmatprep.mubr.bf16.mxu0 0
        %4319 = vmatmul.mubr.bf16.gmra.mrb[0].mxu0 %v4225
        %v4320 = vpop.f32.mrb[0].mxu0
        %v4321 = vadd.f32 0.0, %v4320
        %v4322 = vpop.f32.mrb[0].mxu0
        %v4323 = vpop.f32.mrb[0].mxu0
        %v4324 = vadd.f32 0.0, %v4323
        %v4325 = vpop.f32.mrb[0].mxu0
        %4326 = vmatprep.mubr.bf16.mxu0 0
        %4327 = vmatmul.mubr.bf16.gmra.mrb[0].mxu0 %v4228
        %v4328 = vpop.f32.mrb[0].mxu0
        %v4329 = vadd.f32 0.0, %v4328
        %v4330 = vpop.f32.mrb[0].mxu0
        %v4331 = vpop.f32.mrb[0].mxu0
        %v4332 = vpop.f32.mrb[0].mxu0
        %4333 = vdwg.mxu0
        %v4334 = vadd.f32 %v4134, %v4265
        %v4335 = vadd.f32 %v4137, %v4268
        %v4336 = vadd.f32 %v4142, %v4273
        %v4337 = vadd.f32 %v4145, %v4276
        %v4338 = vadd.f32 %v4150, %v4281
        %v4339 = vadd.f32 %v4153, %v4284
        %v4340 = vadd.f32 %v4158, %v4289
        %v4341 = vadd.f32 %v4161, %v4292
        %v4342 = vadd.f32 %v4166, %v4297
        %v4343 = vadd.f32 %v4169, %v4300
        %v4344 = vadd.f32 %v4174, %v4305
        %v4345 = vadd.f32 %v4177, %v4308
        %v4346 = vadd.f32 %v4182, %v4313
        %v4347 = vadd.f32 %v4185, %v4316
        %v4348 = vadd.f32 %v4190, %v4321
        %v4349 = vadd.f32 %v4193, %v4324
        %v4350 = vadd.f32 %v4198, %v4329
        %v4351 = vmax.f32 %v3978, %v4334
        %v4352 = vmax.f32 %v3979, %v4335
        %v4353 = vmax.f32 %v3980, %v4336
        %v4354 = vmax.f32 %v3981, %v4337
        %v4355 = vmax.f32 %v3982, %v4338
        %v4356 = vmax.f32 %v3983, %v4339
        %v4357 = vmax.f32 %v3984, %v4340
        %v4358 = vmax.f32 %v3985, %v4341
        %v4359 = vmax.f32 %v3986, %v4342
        %v4360 = vmax.f32 %v3987, %v4343
        %v4361 = vmax.f32 %v3988, %v4344
        %v4362 = vmax.f32 %v3989, %v4345
        %v4363 = vmax.f32 %v3990, %v4346
        %v4364 = vmax.f32 %v3991, %v4347
        %v4365 = vmax.f32 %v3992, %v4348
        %v4366 = vmax.f32 %v3993, %v4349
        %v4367 = vmax.f32 %v3994, %v4350
        %s4368 = scalar_lea.vmem %s2, 1
        %v4369 = vld [vmem:[%s4368] sm:$0x1]
        %v4371 = vlaneseq
        %v4372 = vshrl.u32 %v4371, 7
        %v4373 = vsub.s32 0, %v4372
        %v4374 = vrot.slane %v4369, %v4373
        %v4376 = vmul.f32 %v4351, %v4374
        %v4377 = vmul.f32 %v4352, %v4374
        %v4378 = vmul.f32 %v4353, %v4374
        %v4379 = vmul.f32 %v4354, %v4374
        %v4380 = vmul.f32 %v4355, %v4374
        %v4381 = vmul.f32 %v4356, %v4374
        %v4382 = vmul.f32 %v4357, %v4374
        %v4383 = vmul.f32 %v4358, %v4374
        %v4384 = vmul.f32 %v4359, %v4374
        %v4385 = vmul.f32 %v4360, %v4374
        %v4386 = vmul.f32 %v4361, %v4374
        %v4387 = vmul.f32 %v4362, %v4374
        %v4388 = vmul.f32 %v4363, %v4374
        %v4389 = vmul.f32 %v4364, %v4374
        %v4390 = vmul.f32 %v4365, %v4374
        %v4391 = vmul.f32 %v4366, %v4374
        %v4392 = vmul.f32 %v4367, %v4374
        %s4393 = scalar_lea.vmem %s3, 1
        %v4394 = vld [vmem:[%s4393] sm:$0x1]
        %v4396 = vlaneseq
        %v4397 = vshrl.u32 %v4396, 7
        %v4398 = vsub.s32 0, %v4397
        %v4399 = vrot.slane %v4394, %v4398
        %v4401 = vadd.f32 %v4376, %v4399
        %v4402 = vadd.f32 %v4377, %v4399
        %v4403 = vadd.f32 %v4378, %v4399
        %v4404 = vadd.f32 %v4379, %v4399
        %v4405 = vadd.f32 %v4380, %v4399
        %v4406 = vadd.f32 %v4381, %v4399
        %v4407 = vadd.f32 %v4382, %v4399
        %v4408 = vadd.f32 %v4383, %v4399
        %v4409 = vadd.f32 %v4384, %v4399
        %v4410 = vadd.f32 %v4385, %v4399
        %v4411 = vadd.f32 %v4386, %v4399
        %v4412 = vadd.f32 %v4387, %v4399
        %v4413 = vadd.f32 %v4388, %v4399
        %v4414 = vadd.f32 %v4389, %v4399
        %v4415 = vadd.f32 %v4390, %v4399
        %v4416 = vadd.f32 %v4391, %v4399
        %v4417 = vadd.f32 %v4392, %v4399
        %vm4418 = vcmp.ge.f32.partialorder %v4401, 0.0
        %vm4419 = vcmp.ge.f32.partialorder %v4402, 0.0
        %vm4420 = vcmp.ge.f32.partialorder %v4403, 0.0
        %vm4421 = vcmp.ge.f32.partialorder %v4404, 0.0
        %vm4422 = vcmp.ge.f32.partialorder %v4405, 0.0
        %vm4423 = vcmp.ge.f32.partialorder %v4406, 0.0
        %vm4424 = vcmp.ge.f32.partialorder %v4407, 0.0
        %vm4425 = vcmp.ge.f32.partialorder %v4408, 0.0
        %vm4426 = vcmp.ge.f32.partialorder %v4409, 0.0
        %vm4427 = vcmp.ge.f32.partialorder %v4410, 0.0
        %vm4428 = vcmp.ge.f32.partialorder %v4411, 0.0
        %vm4429 = vcmp.ge.f32.partialorder %v4412, 0.0
        %vm4430 = vcmp.ge.f32.partialorder %v4413, 0.0
        %vm4431 = vcmp.ge.f32.partialorder %v4414, 0.0
        %vm4432 = vcmp.ge.f32.partialorder %v4415, 0.0
        %vm4433 = vcmp.ge.f32.partialorder %v4416, 0.0
        %vm4434 = vcmp.ge.f32.partialorder %v4417, 0.0
        %v4435 = vmul.f32 %v4401, 0.01
        %v4436 = vmul.f32 %v4402, 0.01
        %v4437 = vmul.f32 %v4403, 0.01
        %v4438 = vmul.f32 %v4404, 0.01
        %v4439 = vmul.f32 %v4405, 0.01
        %v4440 = vmul.f32 %v4406, 0.01
        %v4441 = vmul.f32 %v4407, 0.01
        %v4442 = vmul.f32 %v4408, 0.01
        %v4443 = vmul.f32 %v4409, 0.01
        %v4444 = vmul.f32 %v4410, 0.01
        %v4445 = vmul.f32 %v4411, 0.01
        %v4446 = vmul.f32 %v4412, 0.01
        %v4447 = vmul.f32 %v4413, 0.01
        %v4448 = vmul.f32 %v4414, 0.01
        %v4449 = vmul.f32 %v4415, 0.01
        %v4450 = vmul.f32 %v4416, 0.01
        %v4451 = vmul.f32 %v4417, 0.01
        %v4452 = vsel %vm4418, %v4401, %v4435
        %v4453 = vsel %vm4419, %v4402, %v4436
        %v4454 = vsel %vm4420, %v4403, %v4437
        %v4455 = vsel %vm4421, %v4404, %v4438
        %v4456 = vsel %vm4422, %v4405, %v4439
        %v4457 = vsel %vm4423, %v4406, %v4440
        %v4458 = vsel %vm4424, %v4407, %v4441
        %v4459 = vsel %vm4425, %v4408, %v4442
        %v4460 = vsel %vm4426, %v4409, %v4443
        %v4461 = vsel %vm4427, %v4410, %v4444
        %v4462 = vsel %vm4428, %v4411, %v4445
        %v4463 = vsel %vm4429, %v4412, %v4446
        %v4464 = vsel %vm4430, %v4413, %v4447
        %v4465 = vsel %vm4431, %v4414, %v4448
        %v4466 = vsel %vm4432, %v4415, %v4449
        %v4467 = vsel %vm4433, %v4416, %v4450
        %v4468 = vsel %vm4434, %v4417, %v4451
        %4469 = vst.msk [vmem:[#allocation3] sm:$0x1] %vm2909, 0.0
        %4470 = vst.msk [vmem:[#allocation3 + $0x88] sm:$0x1] %vm2909, 0.0
        %4471 = vst.msk [vmem:[#allocation3 + $0x1] sm:$0xff] %vm754, %v4452
        %4472 = vst.msk [vmem:[#allocation3 + $0x9] sm:$0xff] %vm754, %v4453
        %4473 = vst.msk [vmem:[#allocation3 + $0x11] sm:$0xff] %vm754, %v4454
        %4474 = vst.msk [vmem:[#allocation3 + $0x19] sm:$0xff] %vm754, %v4455
        %4475 = vst.msk [vmem:[#allocation3 + $0x21] sm:$0xff] %vm754, %v4456
        %4476 = vst.msk [vmem:[#allocation3 + $0x29] sm:$0xff] %vm754, %v4457
        %4477 = vst.msk [vmem:[#allocation3 + $0x31] sm:$0xff] %vm754, %v4458
        %4478 = vst.msk [vmem:[#allocation3 + $0x39] sm:$0xff] %vm754, %v4459
        %4479 = vst.msk [vmem:[#allocation3 + $0x41] sm:$0xff] %vm754, %v4460
        %4480 = vst.msk [vmem:[#allocation3 + $0x49] sm:$0xff] %vm754, %v4461
        %4481 = vst.msk [vmem:[#allocation3 + $0x51] sm:$0xff] %vm754, %v4462
        %4482 = vst.msk [vmem:[#allocation3 + $0x59] sm:$0xff] %vm754, %v4463
        %4483 = vst.msk [vmem:[#allocation3 + $0x61] sm:$0xff] %vm754, %v4464
        %4484 = vst.msk [vmem:[#allocation3 + $0x69] sm:$0xff] %vm754, %v4465
        %4485 = vst.msk [vmem:[#allocation3 + $0x71] sm:$0xff] %vm754, %v4466
        %4486 = vst.msk [vmem:[#allocation3 + $0x79] sm:$0xff] %vm754, %v4467
        %4487 = vst.msk [vmem:[#allocation3 + $0x81] sm:$0x7f] %vm2945, %v4468
        %v4488 = vld [vmem:[#allocation3] ss:$2 sm:$0xff]
        %s4489 = scalar_lea.vmem [#allocation3], 16
        %v4490 = vld [vmem:[%s4489] ss:$2 sm:$0xff]
        %s4491 = scalar_lea.vmem [#allocation3], 32
        %v4492 = vld [vmem:[%s4491] ss:$2 sm:$0xff]
        %s4493 = scalar_lea.vmem [#allocation3], 48
        %v4494 = vld [vmem:[%s4493] ss:$2 sm:$0xff]
        %s4495 = scalar_lea.vmem [#allocation3], 64
        %v4496 = vld [vmem:[%s4495] ss:$2 sm:$0xff]
        %s4497 = scalar_lea.vmem [#allocation3], 80
        %v4498 = vld [vmem:[%s4497] ss:$2 sm:$0xff]
        %s4499 = scalar_lea.vmem [#allocation3], 96
        %v4500 = vld [vmem:[%s4499] ss:$2 sm:$0xff]
        %s4501 = scalar_lea.vmem [#allocation3], 112
        %v4502 = vld [vmem:[%s4501] ss:$2 sm:$0xff]
        %s4503 = scalar_lea.vmem [#allocation3], 128
        %v4504 = vld [vmem:[%s4503] ss:$2 sm:$0x7]
        %v4505 = vpack.c.bf16 %v4490, %v4488
        %v4506 = vpack.c.bf16 %v4494, %v4492
        %v4507 = vpack.c.bf16 %v4498, %v4496
        %v4508 = vpack.c.bf16 %v4502, %v4500
        %v4509 = vpack.c.bf16 %v4504, %v4504
        %s4510 = scalar_lea.vmem [#allocation3], 1
        %v4511 = vld [vmem:[%s4510] ss:$2 sm:$0xff]
        %s4512 = scalar_lea.vmem [#allocation3], 17
        %v4513 = vld [vmem:[%s4512] ss:$2 sm:$0xff]
        %s4514 = scalar_lea.vmem [#allocation3], 33
        %v4515 = vld [vmem:[%s4514] ss:$2 sm:$0xff]
        %s4516 = scalar_lea.vmem [#allocation3], 49
        %v4517 = vld [vmem:[%s4516] ss:$2 sm:$0xff]
        %s4518 = scalar_lea.vmem [#allocation3], 65
        %v4519 = vld [vmem:[%s4518] ss:$2 sm:$0xff]
        %s4520 = scalar_lea.vmem [#allocation3], 81
        %v4521 = vld [vmem:[%s4520] ss:$2 sm:$0xff]
        %s4522 = scalar_lea.vmem [#allocation3], 97
        %v4523 = vld [vmem:[%s4522] ss:$2 sm:$0xff]
        %s4524 = scalar_lea.vmem [#allocation3], 113
        %v4525 = vld [vmem:[%s4524] ss:$2 sm:$0xff]
        %s4526 = scalar_lea.vmem [#allocation3], 129
        %v4527 = vld [vmem:[%s4526] ss:$2 sm:$0x7]
        %v4528 = vpack.c.bf16 %v4513, %v4511
        %v4529 = vpack.c.bf16 %v4517, %v4515
        %v4530 = vpack.c.bf16 %v4521, %v4519
        %v4531 = vpack.c.bf16 %v4525, %v4523
        %v4532 = vpack.c.bf16 %v4527, %v4527
        %s4533 = scalar_lea.vmem [#allocation3], 2
        %v4534 = vld [vmem:[%s4533] ss:$2 sm:$0xff]
        %s4535 = scalar_lea.vmem [#allocation3], 18
        %v4536 = vld [vmem:[%s4535] ss:$2 sm:$0xff]
        %s4537 = scalar_lea.vmem [#allocation3], 34
        %v4538 = vld [vmem:[%s4537] ss:$2 sm:$0xff]
        %s4539 = scalar_lea.vmem [#allocation3], 50
        %v4540 = vld [vmem:[%s4539] ss:$2 sm:$0xff]
        %s4541 = scalar_lea.vmem [#allocation3], 66
        %v4542 = vld [vmem:[%s4541] ss:$2 sm:$0xff]
        %s4543 = scalar_lea.vmem [#allocation3], 82
        %v4544 = vld [vmem:[%s4543] ss:$2 sm:$0xff]
        %s4545 = scalar_lea.vmem [#allocation3], 98
        %v4546 = vld [vmem:[%s4545] ss:$2 sm:$0xff]
        %s4547 = scalar_lea.vmem [#allocation3], 114
        %v4548 = vld [vmem:[%s4547] ss:$2 sm:$0xff]
        %s4549 = scalar_lea.vmem [#allocation3], 130
        %v4550 = vld [vmem:[%s4549] ss:$2 sm:$0x7]
        %v4551 = vpack.c.bf16 %v4536, %v4534
        %v4552 = vpack.c.bf16 %v4540, %v4538
        %v4553 = vpack.c.bf16 %v4544, %v4542
        %v4554 = vpack.c.bf16 %v4548, %v4546
        %v4555 = vpack.c.bf16 %v4550, %v4550
        %s4556 = scalar_lea.vmem [#allocation3], 3
        %v4557 = vld [vmem:[%s4556] ss:$2 sm:$0xff]
        %s4558 = scalar_lea.vmem [#allocation3], 19
        %v4559 = vld [vmem:[%s4558] ss:$2 sm:$0xff]
        %s4560 = scalar_lea.vmem [#allocation3], 35
        %v4561 = vld [vmem:[%s4560] ss:$2 sm:$0xff]
        %s4562 = scalar_lea.vmem [#allocation3], 51
        %v4563 = vld [vmem:[%s4562] ss:$2 sm:$0xff]
        %s4564 = scalar_lea.vmem [#allocation3], 67
        %v4565 = vld [vmem:[%s4564] ss:$2 sm:$0xff]
        %s4566 = scalar_lea.vmem [#allocation3], 83
        %v4567 = vld [vmem:[%s4566] ss:$2 sm:$0xff]
        %s4568 = scalar_lea.vmem [#allocation3], 99
        %v4569 = vld [vmem:[%s4568] ss:$2 sm:$0xff]
        %s4570 = scalar_lea.vmem [#allocation3], 115
        %v4571 = vld [vmem:[%s4570] ss:$2 sm:$0xff]
        %s4572 = scalar_lea.vmem [#allocation3], 131
        %v4573 = vld [vmem:[%s4572] ss:$2 sm:$0x7]
        %v4574 = vpack.c.bf16 %v4559, %v4557
        %v4575 = vpack.c.bf16 %v4563, %v4561
        %v4576 = vpack.c.bf16 %v4567, %v4565
        %v4577 = vpack.c.bf16 %v4571, %v4569
        %v4578 = vpack.c.bf16 %v4573, %v4573
        %s4579 = scalar_lea.vmem [#allocation3], 4
        %v4580 = vld [vmem:[%s4579] ss:$2 sm:$0xff]
        %s4581 = scalar_lea.vmem [#allocation3], 20
        %v4582 = vld [vmem:[%s4581] ss:$2 sm:$0xff]
        %s4583 = scalar_lea.vmem [#allocation3], 36
        %v4584 = vld [vmem:[%s4583] ss:$2 sm:$0xff]
        %s4585 = scalar_lea.vmem [#allocation3], 52
        %v4586 = vld [vmem:[%s4585] ss:$2 sm:$0xff]
        %s4587 = scalar_lea.vmem [#allocation3], 68
        %v4588 = vld [vmem:[%s4587] ss:$2 sm:$0xff]
        %s4589 = scalar_lea.vmem [#allocation3], 84
        %v4590 = vld [vmem:[%s4589] ss:$2 sm:$0xff]
        %s4591 = scalar_lea.vmem [#allocation3], 100
        %v4592 = vld [vmem:[%s4591] ss:$2 sm:$0xff]
        %s4593 = scalar_lea.vmem [#allocation3], 116
        %v4594 = vld [vmem:[%s4593] ss:$2 sm:$0xff]
        %s4595 = scalar_lea.vmem [#allocation3], 132
        %v4596 = vld [vmem:[%s4595] ss:$2 sm:$0x7]
        %v4597 = vpack.c.bf16 %v4582, %v4580
        %v4598 = vpack.c.bf16 %v4586, %v4584
        %v4599 = vpack.c.bf16 %v4590, %v4588
        %v4600 = vpack.c.bf16 %v4594, %v4592
        %v4601 = vpack.c.bf16 %v4596, %v4596
        %s4602 = scalar_lea.vmem %s1, 96
        %v4603 = vld [vmem:[%s4602] sm:$0xf]
        %v4604 = vld [vmem:[%s4602 + $0x4] sm:$0xf]
        %v4605 = vld [vmem:[%s4602 + $0x8] sm:$0xf]
        %v4606 = vld [vmem:[%s4602 + $0xc] sm:$0xf]
        %s4607 = scalar_lea.vmem %s1, 112
        %v4608 = vld [vmem:[%s4607] sm:$0xf]
        %v4609 = vld [vmem:[%s4607 + $0x4] sm:$0xf]
        %v4610 = vld [vmem:[%s4607 + $0x8] sm:$0xf]
        %v4611 = vld [vmem:[%s4607 + $0xc] sm:$0xf]
        %s4612 = scalar_lea.vmem %s1, 128
        %v4613 = vld [vmem:[%s4612] sm:$0xf]
        %v4614 = vld [vmem:[%s4612 + $0x4] sm:$0xf]
        %v4615 = vld [vmem:[%s4612 + $0x8] sm:$0xf]
        %v4616 = vld [vmem:[%s4612 + $0xc] sm:$0xf]
        %v4621 = vunpack.c.l.b16 %v4608
        %v4622 = vunpack.c.l.b16 %v4609
        %v4623 = vunpack.c.l.b16 %v4610
        %v4624 = vunpack.c.l.b16 %v4611
        %v4625 = vpack.c.b16 %v4622, %v4621
        %v4626 = vpack.c.b16 %v4624, %v4623
        %v4630 = vsel %vm754, %v4528, 0
        %v4633 = vsel %vm754, %v4529, 0
        %v4636 = vsel %vm754, %v4530, 0
        %v4639 = vsel %vm754, %v4531, 0
        %v4642 = vsel %vm754, %v4532, 0
        %4644 = vmatprep.subr.bf16.mxu0 0
        %4645 = vmatpush1.bf16.msra.mxu0 %v4625
        %4646 = vmatprep.subr.bf16.mxu0 0
        %4647 = vmatpush1.bf16.msra.mxu0 %v4626
        %4648 = vmatprep.subr.bf16.mxu0 0
        %4649 = vmatpush1.bf16.msra.mxu0 0
        %4650 = vmatprep.subr.bf16.mxu0 0
        %4651 = vmatpush1.bf16.msra.mxu0 0
        %4652 = vmatprep.subr.bf16.mxu0 0
        %4653 = vmatpush1.bf16.msra.mxu0 0
        %4654 = vmatprep.subr.bf16.mxu0 0
        %4655 = vmatpush1.bf16.msra.mxu0 0
        %4656 = vmatprep.subr.bf16.mxu0 0
        %4657 = vmatpush1.bf16.msra.mxu0 0
        %4658 = vmatprep.subr.bf16.mxu0 0
        %4659 = vmatpush1.bf16.msra.mxu0 0
        %4660 = vmatprep.subr.bf16.mxu0 0
        %4661 = vmatpush1.bf16.msra.mxu0 0
        %4662 = vmatprep.subr.bf16.mxu0 0
        %4663 = vmatpush1.bf16.msra.mxu0 0
        %4664 = vmatprep.subr.bf16.mxu0 0
        %4665 = vmatpush1.bf16.msra.mxu0 0
        %4666 = vmatprep.subr.bf16.mxu0 0
        %4667 = vmatpush1.bf16.msra.mxu0 0
        %4668 = vmatprep.subr.bf16.mxu0 0
        %4669 = vmatpush1.bf16.msra.mxu0 0
        %4670 = vmatprep.subr.bf16.mxu0 0
        %4671 = vmatpush1.bf16.msra.mxu0 0
        %4672 = vmatprep.subr.bf16.mxu0 0
        %4673 = vmatpush1.bf16.msra.mxu0 0
        %4674 = vmatprep.subr.bf16.mxu0 0
        %4675 = vmatpush1.bf16.msra.mxu0 0
        %4676 = vmatprep.mubr.bf16.mxu0 0
        %4677 = vmatmul.mubr.bf16.gmra.mrb[0].mxu0 %v4630
        %v4678 = vpop.f32.mrb[0].mxu0
        %v4679 = vadd.f32 0.0, %v4678
        %v4680 = vpop.f32.mrb[0].mxu0
        %v4681 = vpop.f32.mrb[0].mxu0
        %v4682 = vadd.f32 0.0, %v4681
        %v4683 = vpop.f32.mrb[0].mxu0
        %4684 = vmatprep.mubr.bf16.mxu0 0
        %4685 = vmatmul.mubr.bf16.gmra.mrb[0].mxu0 %v4633
        %v4686 = vpop.f32.mrb[0].mxu0
        %v4687 = vadd.f32 0.0, %v4686
        %v4688 = vpop.f32.mrb[0].mxu0
        %v4689 = vpop.f32.mrb[0].mxu0
        %v4690 = vadd.f32 0.0, %v4689
        %v4691 = vpop.f32.mrb[0].mxu0
        %4692 = vmatprep.mubr.bf16.mxu0 0
        %4693 = vmatmul.mubr.bf16.gmra.mrb[0].mxu0 %v4636
        %v4694 = vpop.f32.mrb[0].mxu0
        %v4695 = vadd.f32 0.0, %v4694
        %v4696 = vpop.f32.mrb[0].mxu0
        %v4697 = vpop.f32.mrb[0].mxu0
        %v4698 = vadd.f32 0.0, %v4697
        %v4699 = vpop.f32.mrb[0].mxu0
        %4700 = vmatprep.mubr.bf16.mxu0 0
        %4701 = vmatmul.mubr.bf16.gmra.mrb[0].mxu0 %v4639
        %v4702 = vpop.f32.mrb[0].mxu0
        %v4703 = vadd.f32 0.0, %v4702
        %v4704 = vpop.f32.mrb[0].mxu0
        %v4705 = vpop.f32.mrb[0].mxu0
        %v4706 = vadd.f32 0.0, %v4705
        %v4707 = vpop.f32.mrb[0].mxu0
        %4708 = vmatprep.mubr.bf16.mxu0 0
        %4709 = vmatmul.mubr.bf16.gmra.mrb[0].mxu0 %v4642
        %v4710 = vpop.f32.mrb[0].mxu0
        %v4711 = vadd.f32 0.0, %v4710
        %v4712 = vpop.f32.mrb[0].mxu0
        %v4713 = vpop.f32.mrb[0].mxu0
        %v4714 = vpop.f32.mrb[0].mxu0
        %4715 = vdwg.mxu0
        %v4720 = vunpack.c.l.b16 %v4603
        %v4721 = vunpack.c.l.b16 %v4604
        %v4722 = vunpack.c.l.b16 %v4605
        %v4723 = vunpack.c.l.b16 %v4606
        %v4724 = vpack.c.b16 %v4721, %v4720
        %v4725 = vpack.c.b16 %v4723, %v4722
        %v4729 = vsel %vm754, %v4505, 0
        %v4732 = vsel %vm754, %v4506, 0
        %v4735 = vsel %vm754, %v4507, 0
        %v4738 = vsel %vm754, %v4508, 0
        %v4741 = vsel %vm754, %v4509, 0
        %4743 = vmatprep.subr.bf16.mxu0 0
        %4744 = vmatpush1.bf16.msra.mxu0 %v4724
        %4745 = vmatprep.subr.bf16.mxu0 0
        %4746 = vmatpush1.bf16.msra.mxu0 %v4725
        %4747 = vmatprep.subr.bf16.mxu0 0
        %4748 = vmatpush1.bf16.msra.mxu0 0
        %4749 = vmatprep.subr.bf16.mxu0 0
        %4750 = vmatpush1.bf16.msra.mxu0 0
        %4751 = vmatprep.subr.bf16.mxu0 0
        %4752 = vmatpush1.bf16.msra.mxu0 0
        %4753 = vmatprep.subr.bf16.mxu0 0
        %4754 = vmatpush1.bf16.msra.mxu0 0
        %4755 = vmatprep.subr.bf16.mxu0 0
        %4756 = vmatpush1.bf16.msra.mxu0 0
        %4757 = vmatprep.subr.bf16.mxu0 0
        %4758 = vmatpush1.bf16.msra.mxu0 0
        %4759 = vmatprep.subr.bf16.mxu0 0
        %4760 = vmatpush1.bf16.msra.mxu0 0
        %4761 = vmatprep.subr.bf16.mxu0 0
        %4762 = vmatpush1.bf16.msra.mxu0 0
        %4763 = vmatprep.subr.bf16.mxu0 0
        %4764 = vmatpush1.bf16.msra.mxu0 0
        %4765 = vmatprep.subr.bf16.mxu0 0
        %4766 = vmatpush1.bf16.msra.mxu0 0
        %4767 = vmatprep.subr.bf16.mxu0 0
        %4768 = vmatpush1.bf16.msra.mxu0 0
        %4769 = vmatprep.subr.bf16.mxu0 0
        %4770 = vmatpush1.bf16.msra.mxu0 0
        %4771 = vmatprep.subr.bf16.mxu0 0
        %4772 = vmatpush1.bf16.msra.mxu0 0
        %4773 = vmatprep.subr.bf16.mxu0 0
        %4774 = vmatpush1.bf16.msra.mxu0 0
        %4775 = vmatprep.mubr.bf16.mxu0 0
        %4776 = vmatmul.mubr.bf16.gmra.mrb[0].mxu0 %v4729
        %v4777 = vpop.f32.mrb[0].mxu0
        %v4778 = vadd.f32 %v4679, %v4777
        %v4779 = vpop.f32.mrb[0].mxu0
        %v4780 = vpop.f32.mrb[0].mxu0
        %v4781 = vadd.f32 %v4682, %v4780
        %v4782 = vpop.f32.mrb[0].mxu0
        %4783 = vmatprep.mubr.bf16.mxu0 0
        %4784 = vmatmul.mubr.bf16.gmra.mrb[0].mxu0 %v4732
        %v4785 = vpop.f32.mrb[0].mxu0
        %v4786 = vadd.f32 %v4687, %v4785
        %v4787 = vpop.f32.mrb[0].mxu0
        %v4788 = vpop.f32.mrb[0].mxu0
        %v4789 = vadd.f32 %v4690, %v4788
        %v4790 = vpop.f32.mrb[0].mxu0
        %4791 = vmatprep.mubr.bf16.mxu0 0
        %4792 = vmatmul.mubr.bf16.gmra.mrb[0].mxu0 %v4735
        %v4793 = vpop.f32.mrb[0].mxu0
        %v4794 = vadd.f32 %v4695, %v4793
        %v4795 = vpop.f32.mrb[0].mxu0
        %v4796 = vpop.f32.mrb[0].mxu0
        %v4797 = vadd.f32 %v4698, %v4796
        %v4798 = vpop.f32.mrb[0].mxu0
        %4799 = vmatprep.mubr.bf16.mxu0 0
        %4800 = vmatmul.mubr.bf16.gmra.mrb[0].mxu0 %v4738
        %v4801 = vpop.f32.mrb[0].mxu0
        %v4802 = vadd.f32 %v4703, %v4801
        %v4803 = vpop.f32.mrb[0].mxu0
        %v4804 = vpop.f32.mrb[0].mxu0
        %v4805 = vadd.f32 %v4706, %v4804
        %v4806 = vpop.f32.mrb[0].mxu0
        %4807 = vmatprep.mubr.bf16.mxu0 0
        %4808 = vmatmul.mubr.bf16.gmra.mrb[0].mxu0 %v4741
        %v4809 = vpop.f32.mrb[0].mxu0
        %v4810 = vadd.f32 %v4711, %v4809
        %v4811 = vpop.f32.mrb[0].mxu0
        %v4812 = vpop.f32.mrb[0].mxu0
        %v4813 = vpop.f32.mrb[0].mxu0
        %4814 = vdwg.mxu0
        %v4819 = vunpack.c.l.b16 %v4613
        %v4820 = vunpack.c.l.b16 %v4614
        %v4821 = vunpack.c.l.b16 %v4615
        %v4822 = vunpack.c.l.b16 %v4616
        %v4823 = vpack.c.b16 %v4820, %v4819
        %v4824 = vpack.c.b16 %v4822, %v4821
        %v4828 = vsel %vm754, %v4551, 0
        %v4831 = vsel %vm754, %v4552, 0
        %v4834 = vsel %vm754, %v4553, 0
        %v4837 = vsel %vm754, %v4554, 0
        %v4840 = vsel %vm754, %v4555, 0
        %4842 = vmatprep.subr.bf16.mxu0 0
        %4843 = vmatpush1.bf16.msra.mxu0 %v4823
        %4844 = vmatprep.subr.bf16.mxu0 0
        %4845 = vmatpush1.bf16.msra.mxu0 %v4824
        %4846 = vmatprep.subr.bf16.mxu0 0
        %4847 = vmatpush1.bf16.msra.mxu0 0
        %4848 = vmatprep.subr.bf16.mxu0 0
        %4849 = vmatpush1.bf16.msra.mxu0 0
        %4850 = vmatprep.subr.bf16.mxu0 0
        %4851 = vmatpush1.bf16.msra.mxu0 0
        %4852 = vmatprep.subr.bf16.mxu0 0
        %4853 = vmatpush1.bf16.msra.mxu0 0
        %4854 = vmatprep.subr.bf16.mxu0 0
        %4855 = vmatpush1.bf16.msra.mxu0 0
        %4856 = vmatprep.subr.bf16.mxu0 0
        %4857 = vmatpush1.bf16.msra.mxu0 0
        %4858 = vmatprep.subr.bf16.mxu0 0
        %4859 = vmatpush1.bf16.msra.mxu0 0
        %4860 = vmatprep.subr.bf16.mxu0 0
        %4861 = vmatpush1.bf16.msra.mxu0 0
        %4862 = vmatprep.subr.bf16.mxu0 0
        %4863 = vmatpush1.bf16.msra.mxu0 0
        %4864 = vmatprep.subr.bf16.mxu0 0
        %4865 = vmatpush1.bf16.msra.mxu0 0
        %4866 = vmatprep.subr.bf16.mxu0 0
        %4867 = vmatpush1.bf16.msra.mxu0 0
        %4868 = vmatprep.subr.bf16.mxu0 0
        %4869 = vmatpush1.bf16.msra.mxu0 0
        %4870 = vmatprep.subr.bf16.mxu0 0
        %4871 = vmatpush1.bf16.msra.mxu0 0
        %4872 = vmatprep.subr.bf16.mxu0 0
        %4873 = vmatpush1.bf16.msra.mxu0 0
        %4874 = vmatprep.mubr.bf16.mxu0 0
        %4875 = vmatmul.mubr.bf16.gmra.mrb[0].mxu0 %v4828
        %v4876 = vpop.f32.mrb[0].mxu0
        %v4877 = vadd.f32 0.0, %v4876
        %v4878 = vpop.f32.mrb[0].mxu0
        %v4879 = vpop.f32.mrb[0].mxu0
        %v4880 = vadd.f32 0.0, %v4879
        %v4881 = vpop.f32.mrb[0].mxu0
        %4882 = vmatprep.mubr.bf16.mxu0 0
        %4883 = vmatmul.mubr.bf16.gmra.mrb[0].mxu0 %v4831
        %v4884 = vpop.f32.mrb[0].mxu0
        %v4885 = vadd.f32 0.0, %v4884
        %v4886 = vpop.f32.mrb[0].mxu0
        %v4887 = vpop.f32.mrb[0].mxu0
        %v4888 = vadd.f32 0.0, %v4887
        %v4889 = vpop.f32.mrb[0].mxu0
        %4890 = vmatprep.mubr.bf16.mxu0 0
        %4891 = vmatmul.mubr.bf16.gmra.mrb[0].mxu0 %v4834
        %v4892 = vpop.f32.mrb[0].mxu0
        %v4893 = vadd.f32 0.0, %v4892
        %v4894 = vpop.f32.mrb[0].mxu0
        %v4895 = vpop.f32.mrb[0].mxu0
        %v4896 = vadd.f32 0.0, %v4895
        %v4897 = vpop.f32.mrb[0].mxu0
        %4898 = vmatprep.mubr.bf16.mxu0 0
        %4899 = vmatmul.mubr.bf16.gmra.mrb[0].mxu0 %v4837
        %v4900 = vpop.f32.mrb[0].mxu0
        %v4901 = vadd.f32 0.0, %v4900
        %v4902 = vpop.f32.mrb[0].mxu0
        %v4903 = vpop.f32.mrb[0].mxu0
        %v4904 = vadd.f32 0.0, %v4903
        %v4905 = vpop.f32.mrb[0].mxu0
        %4906 = vmatprep.mubr.bf16.mxu0 0
        %4907 = vmatmul.mubr.bf16.gmra.mrb[0].mxu0 %v4840
        %v4908 = vpop.f32.mrb[0].mxu0
        %v4909 = vadd.f32 0.0, %v4908
        %v4910 = vpop.f32.mrb[0].mxu0
        %v4911 = vpop.f32.mrb[0].mxu0
        %v4912 = vpop.f32.mrb[0].mxu0
        %4913 = vdwg.mxu0
        %v4914 = vadd.f32 %v4778, %v4877
        %v4915 = vadd.f32 %v4781, %v4880
        %v4916 = vadd.f32 %v4786, %v4885
        %v4917 = vadd.f32 %v4789, %v4888
        %v4918 = vadd.f32 %v4794, %v4893
        %v4919 = vadd.f32 %v4797, %v4896
        %v4920 = vadd.f32 %v4802, %v4901
        %v4921 = vadd.f32 %v4805, %v4904
        %v4922 = vadd.f32 %v4810, %v4909
        %4923 = vmatprep.subr.bf16.mxu0 0
        %4924 = vmatpush1.bf16.msra.mxu0 %v4625
        %4925 = vmatprep.subr.bf16.mxu0 0
        %4926 = vmatpush1.bf16.msra.mxu0 %v4626
        %4927 = vmatprep.subr.bf16.mxu0 0
        %4928 = vmatpush1.bf16.msra.mxu0 0
        %4929 = vmatprep.subr.bf16.mxu0 0
        %4930 = vmatpush1.bf16.msra.mxu0 0
        %4931 = vmatprep.subr.bf16.mxu0 0
        %4932 = vmatpush1.bf16.msra.mxu0 0
        %4933 = vmatprep.subr.bf16.mxu0 0
        %4934 = vmatpush1.bf16.msra.mxu0 0
        %4935 = vmatprep.subr.bf16.mxu0 0
        %4936 = vmatpush1.bf16.msra.mxu0 0
        %4937 = vmatprep.subr.bf16.mxu0 0
        %4938 = vmatpush1.bf16.msra.mxu0 0
        %4939 = vmatprep.subr.bf16.mxu0 0
        %4940 = vmatpush1.bf16.msra.mxu0 0
        %4941 = vmatprep.subr.bf16.mxu0 0
        %4942 = vmatpush1.bf16.msra.mxu0 0
        %4943 = vmatprep.subr.bf16.mxu0 0
        %4944 = vmatpush1.bf16.msra.mxu0 0
        %4945 = vmatprep.subr.bf16.mxu0 0
        %4946 = vmatpush1.bf16.msra.mxu0 0
        %4947 = vmatprep.subr.bf16.mxu0 0
        %4948 = vmatpush1.bf16.msra.mxu0 0
        %4949 = vmatprep.subr.bf16.mxu0 0
        %4950 = vmatpush1.bf16.msra.mxu0 0
        %4951 = vmatprep.subr.bf16.mxu0 0
        %4952 = vmatpush1.bf16.msra.mxu0 0
        %4953 = vmatprep.subr.bf16.mxu0 0
        %4954 = vmatpush1.bf16.msra.mxu0 0
        %4955 = vmatprep.mubr.bf16.mxu0 0
        %4956 = vmatmul.mubr.bf16.gmra.mrb[0].mxu0 %v4828
        %v4957 = vpop.f32.mrb[0].mxu0
        %v4958 = vadd.f32 0.0, %v4957
        %v4959 = vpop.f32.mrb[0].mxu0
        %v4960 = vpop.f32.mrb[0].mxu0
        %v4961 = vadd.f32 0.0, %v4960
        %v4962 = vpop.f32.mrb[0].mxu0
        %4963 = vmatprep.mubr.bf16.mxu0 0
        %4964 = vmatmul.mubr.bf16.gmra.mrb[0].mxu0 %v4831
        %v4965 = vpop.f32.mrb[0].mxu0
        %v4966 = vadd.f32 0.0, %v4965
        %v4967 = vpop.f32.mrb[0].mxu0
        %v4968 = vpop.f32.mrb[0].mxu0
        %v4969 = vadd.f32 0.0, %v4968
        %v4970 = vpop.f32.mrb[0].mxu0
        %4971 = vmatprep.mubr.bf16.mxu0 0
        %4972 = vmatmul.mubr.bf16.gmra.mrb[0].mxu0 %v4834
        %v4973 = vpop.f32.mrb[0].mxu0
        %v4974 = vadd.f32 0.0, %v4973
        %v4975 = vpop.f32.mrb[0].mxu0
        %v4976 = vpop.f32.mrb[0].mxu0
        %v4977 = vadd.f32 0.0, %v4976
        %v4978 = vpop.f32.mrb[0].mxu0
        %4979 = vmatprep.mubr.bf16.mxu0 0
        %4980 = vmatmul.mubr.bf16.gmra.mrb[0].mxu0 %v4837
        %v4981 = vpop.f32.mrb[0].mxu0
        %v4982 = vadd.f32 0.0, %v4981
        %v4983 = vpop.f32.mrb[0].mxu0
        %v4984 = vpop.f32.mrb[0].mxu0
        %v4985 = vadd.f32 0.0, %v4984
        %v4986 = vpop.f32.mrb[0].mxu0
        %4987 = vmatprep.mubr.bf16.mxu0 0
        %4988 = vmatmul.mubr.bf16.gmra.mrb[0].mxu0 %v4840
        %v4989 = vpop.f32.mrb[0].mxu0
        %v4990 = vadd.f32 0.0, %v4989
        %v4991 = vpop.f32.mrb[0].mxu0
        %v4992 = vpop.f32.mrb[0].mxu0
        %v4993 = vpop.f32.mrb[0].mxu0
        %4994 = vdwg.mxu0
        %4995 = vmatprep.subr.bf16.mxu0 0
        %4996 = vmatpush1.bf16.msra.mxu0 %v4724
        %4997 = vmatprep.subr.bf16.mxu0 0
        %4998 = vmatpush1.bf16.msra.mxu0 %v4725
        %4999 = vmatprep.subr.bf16.mxu0 0
        %5000 = vmatpush1.bf16.msra.mxu0 0
        %5001 = vmatprep.subr.bf16.mxu0 0
        %5002 = vmatpush1.bf16.msra.mxu0 0
        %5003 = vmatprep.subr.bf16.mxu0 0
        %5004 = vmatpush1.bf16.msra.mxu0 0
        %5005 = vmatprep.subr.bf16.mxu0 0
        %5006 = vmatpush1.bf16.msra.mxu0 0
        %5007 = vmatprep.subr.bf16.mxu0 0
        %5008 = vmatpush1.bf16.msra.mxu0 0
        %5009 = vmatprep.subr.bf16.mxu0 0
        %5010 = vmatpush1.bf16.msra.mxu0 0
        %5011 = vmatprep.subr.bf16.mxu0 0
        %5012 = vmatpush1.bf16.msra.mxu0 0
        %5013 = vmatprep.subr.bf16.mxu0 0
        %5014 = vmatpush1.bf16.msra.mxu0 0
        %5015 = vmatprep.subr.bf16.mxu0 0
        %5016 = vmatpush1.bf16.msra.mxu0 0
        %5017 = vmatprep.subr.bf16.mxu0 0
        %5018 = vmatpush1.bf16.msra.mxu0 0
        %5019 = vmatprep.subr.bf16.mxu0 0
        %5020 = vmatpush1.bf16.msra.mxu0 0
        %5021 = vmatprep.subr.bf16.mxu0 0
        %5022 = vmatpush1.bf16.msra.mxu0 0
        %5023 = vmatprep.subr.bf16.mxu0 0
        %5024 = vmatpush1.bf16.msra.mxu0 0
        %5025 = vmatprep.subr.bf16.mxu0 0
        %5026 = vmatpush1.bf16.msra.mxu0 0
        %5027 = vmatprep.mubr.bf16.mxu0 0
        %5028 = vmatmul.mubr.bf16.gmra.mrb[0].mxu0 %v4630
        %v5029 = vpop.f32.mrb[0].mxu0
        %v5030 = vadd.f32 %v4958, %v5029
        %v5031 = vpop.f32.mrb[0].mxu0
        %v5032 = vpop.f32.mrb[0].mxu0
        %v5033 = vadd.f32 %v4961, %v5032
        %v5034 = vpop.f32.mrb[0].mxu0
        %5035 = vmatprep.mubr.bf16.mxu0 0
        %5036 = vmatmul.mubr.bf16.gmra.mrb[0].mxu0 %v4633
        %v5037 = vpop.f32.mrb[0].mxu0
        %v5038 = vadd.f32 %v4966, %v5037
        %v5039 = vpop.f32.mrb[0].mxu0
        %v5040 = vpop.f32.mrb[0].mxu0
        %v5041 = vadd.f32 %v4969, %v5040
        %v5042 = vpop.f32.mrb[0].mxu0
        %5043 = vmatprep.mubr.bf16.mxu0 0
        %5044 = vmatmul.mubr.bf16.gmra.mrb[0].mxu0 %v4636
        %v5045 = vpop.f32.mrb[0].mxu0
        %v5046 = vadd.f32 %v4974, %v5045
        %v5047 = vpop.f32.mrb[0].mxu0
        %v5048 = vpop.f32.mrb[0].mxu0
        %v5049 = vadd.f32 %v4977, %v5048
        %v5050 = vpop.f32.mrb[0].mxu0
        %5051 = vmatprep.mubr.bf16.mxu0 0
        %5052 = vmatmul.mubr.bf16.gmra.mrb[0].mxu0 %v4639
        %v5053 = vpop.f32.mrb[0].mxu0
        %v5054 = vadd.f32 %v4982, %v5053
        %v5055 = vpop.f32.mrb[0].mxu0
        %v5056 = vpop.f32.mrb[0].mxu0
        %v5057 = vadd.f32 %v4985, %v5056
        %v5058 = vpop.f32.mrb[0].mxu0
        %5059 = vmatprep.mubr.bf16.mxu0 0
        %5060 = vmatmul.mubr.bf16.gmra.mrb[0].mxu0 %v4642
        %v5061 = vpop.f32.mrb[0].mxu0
        %v5062 = vadd.f32 %v4990, %v5061
        %v5063 = vpop.f32.mrb[0].mxu0
        %v5064 = vpop.f32.mrb[0].mxu0
        %v5065 = vpop.f32.mrb[0].mxu0
        %5066 = vdwg.mxu0
        %v5068 = vsel %vm754, %v4574, 0
        %v5071 = vsel %vm754, %v4575, 0
        %v5074 = vsel %vm754, %v4576, 0
        %v5077 = vsel %vm754, %v4577, 0
        %v5080 = vsel %vm754, %v4578, 0
        %5082 = vmatprep.subr.bf16.mxu0 0
        %5083 = vmatpush1.bf16.msra.mxu0 %v4823
        %5084 = vmatprep.subr.bf16.mxu0 0
        %5085 = vmatpush1.bf16.msra.mxu0 %v4824
        %5086 = vmatprep.subr.bf16.mxu0 0
        %5087 = vmatpush1.bf16.msra.mxu0 0
        %5088 = vmatprep.subr.bf16.mxu0 0
        %5089 = vmatpush1.bf16.msra.mxu0 0
        %5090 = vmatprep.subr.bf16.mxu0 0
        %5091 = vmatpush1.bf16.msra.mxu0 0
        %5092 = vmatprep.subr.bf16.mxu0 0
        %5093 = vmatpush1.bf16.msra.mxu0 0
        %5094 = vmatprep.subr.bf16.mxu0 0
        %5095 = vmatpush1.bf16.msra.mxu0 0
        %5096 = vmatprep.subr.bf16.mxu0 0
        %5097 = vmatpush1.bf16.msra.mxu0 0
        %5098 = vmatprep.subr.bf16.mxu0 0
        %5099 = vmatpush1.bf16.msra.mxu0 0
        %5100 = vmatprep.subr.bf16.mxu0 0
        %5101 = vmatpush1.bf16.msra.mxu0 0
        %5102 = vmatprep.subr.bf16.mxu0 0
        %5103 = vmatpush1.bf16.msra.mxu0 0
        %5104 = vmatprep.subr.bf16.mxu0 0
        %5105 = vmatpush1.bf16.msra.mxu0 0
        %5106 = vmatprep.subr.bf16.mxu0 0
        %5107 = vmatpush1.bf16.msra.mxu0 0
        %5108 = vmatprep.subr.bf16.mxu0 0
        %5109 = vmatpush1.bf16.msra.mxu0 0
        %5110 = vmatprep.subr.bf16.mxu0 0
        %5111 = vmatpush1.bf16.msra.mxu0 0
        %5112 = vmatprep.subr.bf16.mxu0 0
        %5113 = vmatpush1.bf16.msra.mxu0 0
        %5114 = vmatprep.mubr.bf16.mxu0 0
        %5115 = vmatmul.mubr.bf16.gmra.mrb[0].mxu0 %v5068
        %v5116 = vpop.f32.mrb[0].mxu0
        %v5117 = vadd.f32 0.0, %v5116
        %v5118 = vpop.f32.mrb[0].mxu0
        %v5119 = vpop.f32.mrb[0].mxu0
        %v5120 = vadd.f32 0.0, %v5119
        %v5121 = vpop.f32.mrb[0].mxu0
        %5122 = vmatprep.mubr.bf16.mxu0 0
        %5123 = vmatmul.mubr.bf16.gmra.mrb[0].mxu0 %v5071
        %v5124 = vpop.f32.mrb[0].mxu0
        %v5125 = vadd.f32 0.0, %v5124
        %v5126 = vpop.f32.mrb[0].mxu0
        %v5127 = vpop.f32.mrb[0].mxu0
        %v5128 = vadd.f32 0.0, %v5127
        %v5129 = vpop.f32.mrb[0].mxu0
        %5130 = vmatprep.mubr.bf16.mxu0 0
        %5131 = vmatmul.mubr.bf16.gmra.mrb[0].mxu0 %v5074
        %v5132 = vpop.f32.mrb[0].mxu0
        %v5133 = vadd.f32 0.0, %v5132
        %v5134 = vpop.f32.mrb[0].mxu0
        %v5135 = vpop.f32.mrb[0].mxu0
        %v5136 = vadd.f32 0.0, %v5135
        %v5137 = vpop.f32.mrb[0].mxu0
        %5138 = vmatprep.mubr.bf16.mxu0 0
        %5139 = vmatmul.mubr.bf16.gmra.mrb[0].mxu0 %v5077
        %v5140 = vpop.f32.mrb[0].mxu0
        %v5141 = vadd.f32 0.0, %v5140
        %v5142 = vpop.f32.mrb[0].mxu0
        %v5143 = vpop.f32.mrb[0].mxu0
        %v5144 = vadd.f32 0.0, %v5143
        %v5145 = vpop.f32.mrb[0].mxu0
        %5146 = vmatprep.mubr.bf16.mxu0 0
        %5147 = vmatmul.mubr.bf16.gmra.mrb[0].mxu0 %v5080
        %v5148 = vpop.f32.mrb[0].mxu0
        %v5149 = vadd.f32 0.0, %v5148
        %v5150 = vpop.f32.mrb[0].mxu0
        %v5151 = vpop.f32.mrb[0].mxu0
        %v5152 = vpop.f32.mrb[0].mxu0
        %5153 = vdwg.mxu0
        %v5154 = vadd.f32 %v5030, %v5117
        %v5155 = vadd.f32 %v5033, %v5120
        %v5156 = vadd.f32 %v5038, %v5125
        %v5157 = vadd.f32 %v5041, %v5128
        %v5158 = vadd.f32 %v5046, %v5133
        %v5159 = vadd.f32 %v5049, %v5136
        %v5160 = vadd.f32 %v5054, %v5141
        %v5161 = vadd.f32 %v5057, %v5144
        %v5162 = vadd.f32 %v5062, %v5149
        %v5163 = vmax.f32 %v4914, %v5154
        %v5164 = vmax.f32 %v4915, %v5155
        %v5165 = vmax.f32 %v4916, %v5156
        %v5166 = vmax.f32 %v4917, %v5157
        %v5167 = vmax.f32 %v4918, %v5158
        %v5168 = vmax.f32 %v4919, %v5159
        %v5169 = vmax.f32 %v4920, %v5160
        %v5170 = vmax.f32 %v4921, %v5161
        %v5171 = vmax.f32 %v4922, %v5162
        %5172 = vmatprep.subr.bf16.mxu0 0
        %5173 = vmatpush1.bf16.msra.mxu0 %v4625
        %5174 = vmatprep.subr.bf16.mxu0 0
        %5175 = vmatpush1.bf16.msra.mxu0 %v4626
        %5176 = vmatprep.subr.bf16.mxu0 0
        %5177 = vmatpush1.bf16.msra.mxu0 0
        %5178 = vmatprep.subr.bf16.mxu0 0
        %5179 = vmatpush1.bf16.msra.mxu0 0
        %5180 = vmatprep.subr.bf16.mxu0 0
        %5181 = vmatpush1.bf16.msra.mxu0 0
        %5182 = vmatprep.subr.bf16.mxu0 0
        %5183 = vmatpush1.bf16.msra.mxu0 0
        %5184 = vmatprep.subr.bf16.mxu0 0
        %5185 = vmatpush1.bf16.msra.mxu0 0
        %5186 = vmatprep.subr.bf16.mxu0 0
        %5187 = vmatpush1.bf16.msra.mxu0 0
        %5188 = vmatprep.subr.bf16.mxu0 0
        %5189 = vmatpush1.bf16.msra.mxu0 0
        %5190 = vmatprep.subr.bf16.mxu0 0
        %5191 = vmatpush1.bf16.msra.mxu0 0
        %5192 = vmatprep.subr.bf16.mxu0 0
        %5193 = vmatpush1.bf16.msra.mxu0 0
        %5194 = vmatprep.subr.bf16.mxu0 0
        %5195 = vmatpush1.bf16.msra.mxu0 0
        %5196 = vmatprep.subr.bf16.mxu0 0
        %5197 = vmatpush1.bf16.msra.mxu0 0
        %5198 = vmatprep.subr.bf16.mxu0 0
        %5199 = vmatpush1.bf16.msra.mxu0 0
        %5200 = vmatprep.subr.bf16.mxu0 0
        %5201 = vmatpush1.bf16.msra.mxu0 0
        %5202 = vmatprep.subr.bf16.mxu0 0
        %5203 = vmatpush1.bf16.msra.mxu0 0
        %5204 = vmatprep.mubr.bf16.mxu0 0
        %5205 = vmatmul.mubr.bf16.gmra.mrb[0].mxu0 %v5068
        %v5206 = vpop.f32.mrb[0].mxu0
        %v5207 = vadd.f32 0.0, %v5206
        %v5208 = vpop.f32.mrb[0].mxu0
        %v5209 = vpop.f32.mrb[0].mxu0
        %v5210 = vadd.f32 0.0, %v5209
        %v5211 = vpop.f32.mrb[0].mxu0
        %5212 = vmatprep.mubr.bf16.mxu0 0
        %5213 = vmatmul.mubr.bf16.gmra.mrb[0].mxu0 %v5071
        %v5214 = vpop.f32.mrb[0].mxu0
        %v5215 = vadd.f32 0.0, %v5214
        %v5216 = vpop.f32.mrb[0].mxu0
        %v5217 = vpop.f32.mrb[0].mxu0
        %v5218 = vadd.f32 0.0, %v5217
        %v5219 = vpop.f32.mrb[0].mxu0
        %5220 = vmatprep.mubr.bf16.mxu0 0
        %5221 = vmatmul.mubr.bf16.gmra.mrb[0].mxu0 %v5074
        %v5222 = vpop.f32.mrb[0].mxu0
        %v5223 = vadd.f32 0.0, %v5222
        %v5224 = vpop.f32.mrb[0].mxu0
        %v5225 = vpop.f32.mrb[0].mxu0
        %v5226 = vadd.f32 0.0, %v5225
        %v5227 = vpop.f32.mrb[0].mxu0
        %5228 = vmatprep.mubr.bf16.mxu0 0
        %5229 = vmatmul.mubr.bf16.gmra.mrb[0].mxu0 %v5077
        %v5230 = vpop.f32.mrb[0].mxu0
        %v5231 = vadd.f32 0.0, %v5230
        %v5232 = vpop.f32.mrb[0].mxu0
        %v5233 = vpop.f32.mrb[0].mxu0
        %v5234 = vadd.f32 0.0, %v5233
        %v5235 = vpop.f32.mrb[0].mxu0
        %5236 = vmatprep.mubr.bf16.mxu0 0
        %5237 = vmatmul.mubr.bf16.gmra.mrb[0].mxu0 %v5080
        %v5238 = vpop.f32.mrb[0].mxu0
        %v5239 = vadd.f32 0.0, %v5238
        %v5240 = vpop.f32.mrb[0].mxu0
        %v5241 = vpop.f32.mrb[0].mxu0
        %v5242 = vpop.f32.mrb[0].mxu0
        %5243 = vdwg.mxu0
        %5244 = vmatprep.subr.bf16.mxu0 0
        %5245 = vmatpush1.bf16.msra.mxu0 %v4724
        %5246 = vmatprep.subr.bf16.mxu0 0
        %5247 = vmatpush1.bf16.msra.mxu0 %v4725
        %5248 = vmatprep.subr.bf16.mxu0 0
        %5249 = vmatpush1.bf16.msra.mxu0 0
        %5250 = vmatprep.subr.bf16.mxu0 0
        %5251 = vmatpush1.bf16.msra.mxu0 0
        %5252 = vmatprep.subr.bf16.mxu0 0
        %5253 = vmatpush1.bf16.msra.mxu0 0
        %5254 = vmatprep.subr.bf16.mxu0 0
        %5255 = vmatpush1.bf16.msra.mxu0 0
        %5256 = vmatprep.subr.bf16.mxu0 0
        %5257 = vmatpush1.bf16.msra.mxu0 0
        %5258 = vmatprep.subr.bf16.mxu0 0
        %5259 = vmatpush1.bf16.msra.mxu0 0
        %5260 = vmatprep.subr.bf16.mxu0 0
        %5261 = vmatpush1.bf16.msra.mxu0 0
        %5262 = vmatprep.subr.bf16.mxu0 0
        %5263 = vmatpush1.bf16.msra.mxu0 0
        %5264 = vmatprep.subr.bf16.mxu0 0
        %5265 = vmatpush1.bf16.msra.mxu0 0
        %5266 = vmatprep.subr.bf16.mxu0 0
        %5267 = vmatpush1.bf16.msra.mxu0 0
        %5268 = vmatprep.subr.bf16.mxu0 0
        %5269 = vmatpush1.bf16.msra.mxu0 0
        %5270 = vmatprep.subr.bf16.mxu0 0
        %5271 = vmatpush1.bf16.msra.mxu0 0
        %5272 = vmatprep.subr.bf16.mxu0 0
        %5273 = vmatpush1.bf16.msra.mxu0 0
        %5274 = vmatprep.subr.bf16.mxu0 0
        %5275 = vmatpush1.bf16.msra.mxu0 0
        %5276 = vmatprep.mubr.bf16.mxu0 0
        %5277 = vmatmul.mubr.bf16.gmra.mrb[0].mxu0 %v4828
        %v5278 = vpop.f32.mrb[0].mxu0
        %v5279 = vadd.f32 %v5207, %v5278
        %v5280 = vpop.f32.mrb[0].mxu0
        %v5281 = vpop.f32.mrb[0].mxu0
        %v5282 = vadd.f32 %v5210, %v5281
        %v5283 = vpop.f32.mrb[0].mxu0
        %5284 = vmatprep.mubr.bf16.mxu0 0
        %5285 = vmatmul.mubr.bf16.gmra.mrb[0].mxu0 %v4831
        %v5286 = vpop.f32.mrb[0].mxu0
        %v5287 = vadd.f32 %v5215, %v5286
        %v5288 = vpop.f32.mrb[0].mxu0
        %v5289 = vpop.f32.mrb[0].mxu0
        %v5290 = vadd.f32 %v5218, %v5289
        %v5291 = vpop.f32.mrb[0].mxu0
        %5292 = vmatprep.mubr.bf16.mxu0 0
        %5293 = vmatmul.mubr.bf16.gmra.mrb[0].mxu0 %v4834
        %v5294 = vpop.f32.mrb[0].mxu0
        %v5295 = vadd.f32 %v5223, %v5294
        %v5296 = vpop.f32.mrb[0].mxu0
        %v5297 = vpop.f32.mrb[0].mxu0
        %v5298 = vadd.f32 %v5226, %v5297
        %v5299 = vpop.f32.mrb[0].mxu0
        %5300 = vmatprep.mubr.bf16.mxu0 0
        %5301 = vmatmul.mubr.bf16.gmra.mrb[0].mxu0 %v4837
        %v5302 = vpop.f32.mrb[0].mxu0
        %v5303 = vadd.f32 %v5231, %v5302
        %v5304 = vpop.f32.mrb[0].mxu0
        %v5305 = vpop.f32.mrb[0].mxu0
        %v5306 = vadd.f32 %v5234, %v5305
        %v5307 = vpop.f32.mrb[0].mxu0
        %5308 = vmatprep.mubr.bf16.mxu0 0
        %5309 = vmatmul.mubr.bf16.gmra.mrb[0].mxu0 %v4840
        %v5310 = vpop.f32.mrb[0].mxu0
        %v5311 = vadd.f32 %v5239, %v5310
        %v5312 = vpop.f32.mrb[0].mxu0
        %v5313 = vpop.f32.mrb[0].mxu0
        %v5314 = vpop.f32.mrb[0].mxu0
        %5315 = vdwg.mxu0
        %v5317 = vsel %vm754, %v4597, 0
        %v5320 = vsel %vm754, %v4598, 0
        %v5323 = vsel %vm754, %v4599, 0
        %v5326 = vsel %vm754, %v4600, 0
        %v5329 = vsel %vm754, %v4601, 0
        %5331 = vmatprep.subr.bf16.mxu0 0
        %5332 = vmatpush1.bf16.msra.mxu0 %v4823
        %5333 = vmatprep.subr.bf16.mxu0 0
        %5334 = vmatpush1.bf16.msra.mxu0 %v4824
        %5335 = vmatprep.subr.bf16.mxu0 0
        %5336 = vmatpush1.bf16.msra.mxu0 0
        %5337 = vmatprep.subr.bf16.mxu0 0
        %5338 = vmatpush1.bf16.msra.mxu0 0
        %5339 = vmatprep.subr.bf16.mxu0 0
        %5340 = vmatpush1.bf16.msra.mxu0 0
        %5341 = vmatprep.subr.bf16.mxu0 0
        %5342 = vmatpush1.bf16.msra.mxu0 0
        %5343 = vmatprep.subr.bf16.mxu0 0
        %5344 = vmatpush1.bf16.msra.mxu0 0
        %5345 = vmatprep.subr.bf16.mxu0 0
        %5346 = vmatpush1.bf16.msra.mxu0 0
        %5347 = vmatprep.subr.bf16.mxu0 0
        %5348 = vmatpush1.bf16.msra.mxu0 0
        %5349 = vmatprep.subr.bf16.mxu0 0
        %5350 = vmatpush1.bf16.msra.mxu0 0
        %5351 = vmatprep.subr.bf16.mxu0 0
        %5352 = vmatpush1.bf16.msra.mxu0 0
        %5353 = vmatprep.subr.bf16.mxu0 0
        %5354 = vmatpush1.bf16.msra.mxu0 0
        %5355 = vmatprep.subr.bf16.mxu0 0
        %5356 = vmatpush1.bf16.msra.mxu0 0
        %5357 = vmatprep.subr.bf16.mxu0 0
        %5358 = vmatpush1.bf16.msra.mxu0 0
        %5359 = vmatprep.subr.bf16.mxu0 0
        %5360 = vmatpush1.bf16.msra.mxu0 0
        %5361 = vmatprep.subr.bf16.mxu0 0
        %5362 = vmatpush1.bf16.msra.mxu0 0
        %5363 = vmatprep.mubr.bf16.mxu0 0
        %5364 = vmatmul.mubr.bf16.gmra.mrb[0].mxu0 %v5317
        %v5365 = vpop.f32.mrb[0].mxu0
        %v5366 = vadd.f32 0.0, %v5365
        %v5367 = vpop.f32.mrb[0].mxu0
        %v5368 = vpop.f32.mrb[0].mxu0
        %v5369 = vadd.f32 0.0, %v5368
        %v5370 = vpop.f32.mrb[0].mxu0
        %5371 = vmatprep.mubr.bf16.mxu0 0
        %5372 = vmatmul.mubr.bf16.gmra.mrb[0].mxu0 %v5320
        %v5373 = vpop.f32.mrb[0].mxu0
        %v5374 = vadd.f32 0.0, %v5373
        %v5375 = vpop.f32.mrb[0].mxu0
        %v5376 = vpop.f32.mrb[0].mxu0
        %v5377 = vadd.f32 0.0, %v5376
        %v5378 = vpop.f32.mrb[0].mxu0
        %5379 = vmatprep.mubr.bf16.mxu0 0
        %5380 = vmatmul.mubr.bf16.gmra.mrb[0].mxu0 %v5323
        %v5381 = vpop.f32.mrb[0].mxu0
        %v5382 = vadd.f32 0.0, %v5381
        %v5383 = vpop.f32.mrb[0].mxu0
        %v5384 = vpop.f32.mrb[0].mxu0
        %v5385 = vadd.f32 0.0, %v5384
        %v5386 = vpop.f32.mrb[0].mxu0
        %5387 = vmatprep.mubr.bf16.mxu0 0
        %5388 = vmatmul.mubr.bf16.gmra.mrb[0].mxu0 %v5326
        %v5389 = vpop.f32.mrb[0].mxu0
        %v5390 = vadd.f32 0.0, %v5389
        %v5391 = vpop.f32.mrb[0].mxu0
        %v5392 = vpop.f32.mrb[0].mxu0
        %v5393 = vadd.f32 0.0, %v5392
        %v5394 = vpop.f32.mrb[0].mxu0
        %5395 = vmatprep.mubr.bf16.mxu0 0
        %5396 = vmatmul.mubr.bf16.gmra.mrb[0].mxu0 %v5329
        %v5397 = vpop.f32.mrb[0].mxu0
        %v5398 = vadd.f32 0.0, %v5397
        %v5399 = vpop.f32.mrb[0].mxu0
        %v5400 = vpop.f32.mrb[0].mxu0
        %v5401 = vpop.f32.mrb[0].mxu0
        %5402 = vdwg.mxu0
        %v5403 = vadd.f32 %v5279, %v5366
        %v5404 = vadd.f32 %v5282, %v5369
        %v5405 = vadd.f32 %v5287, %v5374
        %v5406 = vadd.f32 %v5290, %v5377
        %v5407 = vadd.f32 %v5295, %v5382
        %v5408 = vadd.f32 %v5298, %v5385
        %v5409 = vadd.f32 %v5303, %v5390
        %v5410 = vadd.f32 %v5306, %v5393
        %v5411 = vadd.f32 %v5311, %v5398
        %v5412 = vmax.f32 %v5163, %v5403
        %v5413 = vmax.f32 %v5164, %v5404
        %v5414 = vmax.f32 %v5165, %v5405
        %v5415 = vmax.f32 %v5166, %v5406
        %v5416 = vmax.f32 %v5167, %v5407
        %v5417 = vmax.f32 %v5168, %v5408
        %v5418 = vmax.f32 %v5169, %v5409
        %v5419 = vmax.f32 %v5170, %v5410
        %v5420 = vmax.f32 %v5171, %v5411
        %s5421 = scalar_lea.vmem %s2, 2
        %v5422 = vld [vmem:[%s5421] sm:$0x1]
        %v5424 = vlaneseq
        %v5425 = vshrl.u32 %v5424, 7
        %v5426 = vsub.s32 0, %v5425
        %v5427 = vrot.slane %v5422, %v5426
        %v5429 = vmul.f32 %v5412, %v5427
        %v5430 = vmul.f32 %v5413, %v5427
        %v5431 = vmul.f32 %v5414, %v5427
        %v5432 = vmul.f32 %v5415, %v5427
        %v5433 = vmul.f32 %v5416, %v5427
        %v5434 = vmul.f32 %v5417, %v5427
        %v5435 = vmul.f32 %v5418, %v5427
        %v5436 = vmul.f32 %v5419, %v5427
        %v5437 = vmul.f32 %v5420, %v5427
        %s5438 = scalar_lea.vmem %s3, 2
        %v5439 = vld [vmem:[%s5438] sm:$0x1]
        %v5441 = vlaneseq
        %v5442 = vshrl.u32 %v5441, 7
        %v5443 = vsub.s32 0, %v5442
        %v5444 = vrot.slane %v5439, %v5443
        %v5446 = vadd.f32 %v5429, %v5444
        %v5447 = vadd.f32 %v5430, %v5444
        %v5448 = vadd.f32 %v5431, %v5444
        %v5449 = vadd.f32 %v5432, %v5444
        %v5450 = vadd.f32 %v5433, %v5444
        %v5451 = vadd.f32 %v5434, %v5444
        %v5452 = vadd.f32 %v5435, %v5444
        %v5453 = vadd.f32 %v5436, %v5444
        %v5454 = vadd.f32 %v5437, %v5444
        %vm5455 = vcmp.ge.f32.partialorder %v5446, 0.0
        %vm5456 = vcmp.ge.f32.partialorder %v5447, 0.0
        %vm5457 = vcmp.ge.f32.partialorder %v5448, 0.0
        %vm5458 = vcmp.ge.f32.partialorder %v5449, 0.0
        %vm5459 = vcmp.ge.f32.partialorder %v5450, 0.0
        %vm5460 = vcmp.ge.f32.partialorder %v5451, 0.0
        %vm5461 = vcmp.ge.f32.partialorder %v5452, 0.0
        %vm5462 = vcmp.ge.f32.partialorder %v5453, 0.0
        %vm5463 = vcmp.ge.f32.partialorder %v5454, 0.0
        %v5464 = vmul.f32 %v5446, 0.01
        %v5465 = vmul.f32 %v5447, 0.01
        %v5466 = vmul.f32 %v5448, 0.01
        %v5467 = vmul.f32 %v5449, 0.01
        %v5468 = vmul.f32 %v5450, 0.01
        %v5469 = vmul.f32 %v5451, 0.01
        %v5470 = vmul.f32 %v5452, 0.01
        %v5471 = vmul.f32 %v5453, 0.01
        %v5472 = vmul.f32 %v5454, 0.01
        %v5473 = vsel %vm5455, %v5446, %v5464
        %v5474 = vsel %vm5456, %v5447, %v5465
        %v5475 = vsel %vm5457, %v5448, %v5466
        %v5476 = vsel %vm5458, %v5449, %v5467
        %v5477 = vsel %vm5459, %v5450, %v5468
        %v5478 = vsel %vm5460, %v5451, %v5469
        %v5479 = vsel %vm5461, %v5452, %v5470
        %v5480 = vsel %vm5462, %v5453, %v5471
        %v5481 = vsel %vm5463, %v5454, %v5472
        %5482 = vst.msk [vmem:[#allocation4] sm:$0x1] %vm2909, 0.0
        %5483 = vst.msk [vmem:[#allocation4 + $0x44] sm:$0x1] %vm2909, 0.0
        %5484 = vst.msk [vmem:[#allocation4 + $0x1] sm:$0xff] %vm754, %v5473
        %5485 = vst.msk [vmem:[#allocation4 + $0x9] sm:$0xff] %vm754, %v5474
        %5486 = vst.msk [vmem:[#allocation4 + $0x11] sm:$0xff] %vm754, %v5475
        %5487 = vst.msk [vmem:[#allocation4 + $0x19] sm:$0xff] %vm754, %v5476
        %5488 = vst.msk [vmem:[#allocation4 + $0x21] sm:$0xff] %vm754, %v5477
        %5489 = vst.msk [vmem:[#allocation4 + $0x29] sm:$0xff] %vm754, %v5478
        %5490 = vst.msk [vmem:[#allocation4 + $0x31] sm:$0xff] %vm754, %v5479
        %5491 = vst.msk [vmem:[#allocation4 + $0x39] sm:$0xff] %vm754, %v5480
        %vm5492 = vcmask 256000
        %5493 = vst.msk [vmem:[#allocation4 + $0x41] sm:$0x7] %vm5492, %v5481
        %v5494 = vld [vmem:[#allocation4] ss:$2 sm:$0xff]
        %s5495 = scalar_lea.vmem [#allocation4], 16
        %v5496 = vld [vmem:[%s5495] ss:$2 sm:$0xff]
        %s5497 = scalar_lea.vmem [#allocation4], 32
        %v5498 = vld [vmem:[%s5497] ss:$2 sm:$0xff]
        %s5499 = scalar_lea.vmem [#allocation4], 48
        %v5500 = vld [vmem:[%s5499] ss:$2 sm:$0xff]
        %s5501 = scalar_lea.vmem [#allocation4], 64
        %v5502 = vld [vmem:[%s5501] ss:$2 sm:$0x1]
        %v5503 = vpack.c.bf16 %v5496, %v5494
        %v5504 = vpack.c.bf16 %v5500, %v5498
        %v5505 = vpack.c.bf16 %v5502, %v5502
        %s5506 = scalar_lea.vmem [#allocation4], 1
        %v5507 = vld [vmem:[%s5506] ss:$2 sm:$0xff]
        %s5508 = scalar_lea.vmem [#allocation4], 17
        %v5509 = vld [vmem:[%s5508] ss:$2 sm:$0xff]
        %s5510 = scalar_lea.vmem [#allocation4], 33
        %v5511 = vld [vmem:[%s5510] ss:$2 sm:$0xff]
        %s5512 = scalar_lea.vmem [#allocation4], 49
        %v5513 = vld [vmem:[%s5512] ss:$2 sm:$0xff]
        %s5514 = scalar_lea.vmem [#allocation4], 65
        %v5515 = vld [vmem:[%s5514] ss:$2 sm:$0x1]
        %v5516 = vpack.c.bf16 %v5509, %v5507
        %v5517 = vpack.c.bf16 %v5513, %v5511
        %v5518 = vpack.c.bf16 %v5515, %v5515
        %s5519 = scalar_lea.vmem [#allocation4], 2
        %v5520 = vld [vmem:[%s5519] ss:$2 sm:$0xff]
        %s5521 = scalar_lea.vmem [#allocation4], 18
        %v5522 = vld [vmem:[%s5521] ss:$2 sm:$0xff]
        %s5523 = scalar_lea.vmem [#allocation4], 34
        %v5524 = vld [vmem:[%s5523] ss:$2 sm:$0xff]
        %s5525 = scalar_lea.vmem [#allocation4], 50
        %v5526 = vld [vmem:[%s5525] ss:$2 sm:$0xff]
        %s5527 = scalar_lea.vmem [#allocation4], 66
        %v5528 = vld [vmem:[%s5527] ss:$2 sm:$0x1]
        %v5529 = vpack.c.bf16 %v5522, %v5520
        %v5530 = vpack.c.bf16 %v5526, %v5524
        %v5531 = vpack.c.bf16 %v5528, %v5528
        %s5532 = scalar_lea.vmem [#allocation4], 3
        %v5533 = vld [vmem:[%s5532] ss:$2 sm:$0xff]
        %s5534 = scalar_lea.vmem [#allocation4], 19
        %v5535 = vld [vmem:[%s5534] ss:$2 sm:$0xff]
        %s5536 = scalar_lea.vmem [#allocation4], 35
        %v5537 = vld [vmem:[%s5536] ss:$2 sm:$0xff]
        %s5538 = scalar_lea.vmem [#allocation4], 51
        %v5539 = vld [vmem:[%s5538] ss:$2 sm:$0xff]
        %s5540 = scalar_lea.vmem [#allocation4], 67
        %v5541 = vld [vmem:[%s5540] ss:$2 sm:$0x1]
        %v5542 = vpack.c.bf16 %v5535, %v5533
        %v5543 = vpack.c.bf16 %v5539, %v5537
        %v5544 = vpack.c.bf16 %v5541, %v5541
        %s5545 = scalar_lea.vmem [#allocation4], 4
        %v5546 = vld [vmem:[%s5545] ss:$2 sm:$0xff]
        %s5547 = scalar_lea.vmem [#allocation4], 20
        %v5548 = vld [vmem:[%s5547] ss:$2 sm:$0xff]
        %s5549 = scalar_lea.vmem [#allocation4], 36
        %v5550 = vld [vmem:[%s5549] ss:$2 sm:$0xff]
        %s5551 = scalar_lea.vmem [#allocation4], 52
        %v5552 = vld [vmem:[%s5551] ss:$2 sm:$0xff]
        %s5553 = scalar_lea.vmem [#allocation4], 68
        %v5554 = vld [vmem:[%s5553] ss:$2 sm:$0x1]
        %v5555 = vpack.c.bf16 %v5548, %v5546
        %v5556 = vpack.c.bf16 %v5552, %v5550
        %v5557 = vpack.c.bf16 %v5554, %v5554
        %s5558 = scalar_lea.vmem %s1, 144
        %v5559 = vld [vmem:[%s5558] sm:$0xf]
        %v5560 = vld [vmem:[%s5558 + $0x4] sm:$0xf]
        %v5561 = vld [vmem:[%s5558 + $0x8] sm:$0xf]
        %v5562 = vld [vmem:[%s5558 + $0xc] sm:$0xf]
        %s5563 = scalar_lea.vmem %s1, 160
        %v5564 = vld [vmem:[%s5563] sm:$0xf]
        %v5565 = vld [vmem:[%s5563 + $0x4] sm:$0xf]
        %v5566 = vld [vmem:[%s5563 + $0x8] sm:$0xf]
        %v5567 = vld [vmem:[%s5563 + $0xc] sm:$0xf]
        %s5568 = scalar_lea.vmem %s1, 176
        %v5569 = vld [vmem:[%s5568] sm:$0xf]
        %v5570 = vld [vmem:[%s5568 + $0x4] sm:$0xf]
        %v5571 = vld [vmem:[%s5568 + $0x8] sm:$0xf]
        %v5572 = vld [vmem:[%s5568 + $0xc] sm:$0xf]
        %v5577 = vunpack.c.l.b16 %v5564
        %v5578 = vunpack.c.l.b16 %v5565
        %v5579 = vunpack.c.l.b16 %v5566
        %v5580 = vunpack.c.l.b16 %v5567
        %v5581 = vpack.c.b16 %v5578, %v5577
        %v5582 = vpack.c.b16 %v5580, %v5579
        %v5586 = vsel %vm754, %v5516, 0
        %v5589 = vsel %vm754, %v5517, 0
        %v5592 = vsel %vm754, %v5518, 0
        %5594 = vmatprep.subr.bf16.mxu0 0
        %5595 = vmatpush1.bf16.msra.mxu0 %v5581
        %5596 = vmatprep.subr.bf16.mxu0 0
        %5597 = vmatpush1.bf16.msra.mxu0 %v5582
        %5598 = vmatprep.subr.bf16.mxu0 0
        %5599 = vmatpush1.bf16.msra.mxu0 0
        %5600 = vmatprep.subr.bf16.mxu0 0
        %5601 = vmatpush1.bf16.msra.mxu0 0
        %5602 = vmatprep.subr.bf16.mxu0 0
        %5603 = vmatpush1.bf16.msra.mxu0 0
        %5604 = vmatprep.subr.bf16.mxu0 0
        %5605 = vmatpush1.bf16.msra.mxu0 0
        %5606 = vmatprep.subr.bf16.mxu0 0
        %5607 = vmatpush1.bf16.msra.mxu0 0
        %5608 = vmatprep.subr.bf16.mxu0 0
        %5609 = vmatpush1.bf16.msra.mxu0 0
        %5610 = vmatprep.subr.bf16.mxu0 0
        %5611 = vmatpush1.bf16.msra.mxu0 0
        %5612 = vmatprep.subr.bf16.mxu0 0
        %5613 = vmatpush1.bf16.msra.mxu0 0
        %5614 = vmatprep.subr.bf16.mxu0 0
        %5615 = vmatpush1.bf16.msra.mxu0 0
        %5616 = vmatprep.subr.bf16.mxu0 0
        %5617 = vmatpush1.bf16.msra.mxu0 0
        %5618 = vmatprep.subr.bf16.mxu0 0
        %5619 = vmatpush1.bf16.msra.mxu0 0
        %5620 = vmatprep.subr.bf16.mxu0 0
        %5621 = vmatpush1.bf16.msra.mxu0 0
        %5622 = vmatprep.subr.bf16.mxu0 0
        %5623 = vmatpush1.bf16.msra.mxu0 0
        %5624 = vmatprep.subr.bf16.mxu0 0
        %5625 = vmatpush1.bf16.msra.mxu0 0
        %5626 = vmatprep.mubr.bf16.mxu0 0
        %5627 = vmatmul.mubr.bf16.gmra.mrb[0].mxu0 %v5586
        %v5628 = vpop.f32.mrb[0].mxu0
        %v5629 = vadd.f32 0.0, %v5628
        %v5630 = vpop.f32.mrb[0].mxu0
        %v5631 = vpop.f32.mrb[0].mxu0
        %v5632 = vadd.f32 0.0, %v5631
        %v5633 = vpop.f32.mrb[0].mxu0
        %5634 = vmatprep.mubr.bf16.mxu0 0
        %5635 = vmatmul.mubr.bf16.gmra.mrb[0].mxu0 %v5589
        %v5636 = vpop.f32.mrb[0].mxu0
        %v5637 = vadd.f32 0.0, %v5636
        %v5638 = vpop.f32.mrb[0].mxu0
        %v5639 = vpop.f32.mrb[0].mxu0
        %v5640 = vadd.f32 0.0, %v5639
        %v5641 = vpop.f32.mrb[0].mxu0
        %5642 = vmatprep.mubr.bf16.mxu0 0
        %5643 = vmatmul.mubr.bf16.gmra.mrb[0].mxu0 %v5592
        %v5644 = vpop.f32.mrb[0].mxu0
        %v5645 = vadd.f32 0.0, %v5644
        %v5646 = vpop.f32.mrb[0].mxu0
        %v5647 = vpop.f32.mrb[0].mxu0
        %v5648 = vpop.f32.mrb[0].mxu0
        %5649 = vdwg.mxu0
        %v5654 = vunpack.c.l.b16 %v5559
        %v5655 = vunpack.c.l.b16 %v5560
        %v5656 = vunpack.c.l.b16 %v5561
        %v5657 = vunpack.c.l.b16 %v5562
        %v5658 = vpack.c.b16 %v5655, %v5654
        %v5659 = vpack.c.b16 %v5657, %v5656
        %v5663 = vsel %vm754, %v5503, 0
        %v5666 = vsel %vm754, %v5504, 0
        %v5669 = vsel %vm754, %v5505, 0
        %5671 = vmatprep.subr.bf16.mxu0 0
        %5672 = vmatpush1.bf16.msra.mxu0 %v5658
        %5673 = vmatprep.subr.bf16.mxu0 0
        %5674 = vmatpush1.bf16.msra.mxu0 %v5659
        %5675 = vmatprep.subr.bf16.mxu0 0
        %5676 = vmatpush1.bf16.msra.mxu0 0
        %5677 = vmatprep.subr.bf16.mxu0 0
        %5678 = vmatpush1.bf16.msra.mxu0 0
        %5679 = vmatprep.subr.bf16.mxu0 0
        %5680 = vmatpush1.bf16.msra.mxu0 0
        %5681 = vmatprep.subr.bf16.mxu0 0
        %5682 = vmatpush1.bf16.msra.mxu0 0
        %5683 = vmatprep.subr.bf16.mxu0 0
        %5684 = vmatpush1.bf16.msra.mxu0 0
        %5685 = vmatprep.subr.bf16.mxu0 0
        %5686 = vmatpush1.bf16.msra.mxu0 0
        %5687 = vmatprep.subr.bf16.mxu0 0
        %5688 = vmatpush1.bf16.msra.mxu0 0
        %5689 = vmatprep.subr.bf16.mxu0 0
        %5690 = vmatpush1.bf16.msra.mxu0 0
        %5691 = vmatprep.subr.bf16.mxu0 0
        %5692 = vmatpush1.bf16.msra.mxu0 0
        %5693 = vmatprep.subr.bf16.mxu0 0
        %5694 = vmatpush1.bf16.msra.mxu0 0
        %5695 = vmatprep.subr.bf16.mxu0 0
        %5696 = vmatpush1.bf16.msra.mxu0 0
        %5697 = vmatprep.subr.bf16.mxu0 0
        %5698 = vmatpush1.bf16.msra.mxu0 0
        %5699 = vmatprep.subr.bf16.mxu0 0
        %5700 = vmatpush1.bf16.msra.mxu0 0
        %5701 = vmatprep.subr.bf16.mxu0 0
        %5702 = vmatpush1.bf16.msra.mxu0 0
        %5703 = vmatprep.mubr.bf16.mxu0 0
        %5704 = vmatmul.mubr.bf16.gmra.mrb[0].mxu0 %v5663
        %v5705 = vpop.f32.mrb[0].mxu0
        %v5706 = vadd.f32 %v5629, %v5705
        %v5707 = vpop.f32.mrb[0].mxu0
        %v5708 = vpop.f32.mrb[0].mxu0
        %v5709 = vadd.f32 %v5632, %v5708
        %v5710 = vpop.f32.mrb[0].mxu0
        %5711 = vmatprep.mubr.bf16.mxu0 0
        %5712 = vmatmul.mubr.bf16.gmra.mrb[0].mxu0 %v5666
        %v5713 = vpop.f32.mrb[0].mxu0
        %v5714 = vadd.f32 %v5637, %v5713
        %v5715 = vpop.f32.mrb[0].mxu0
        %v5716 = vpop.f32.mrb[0].mxu0
        %v5717 = vadd.f32 %v5640, %v5716
        %v5718 = vpop.f32.mrb[0].mxu0
        %5719 = vmatprep.mubr.bf16.mxu0 0
        %5720 = vmatmul.mubr.bf16.gmra.mrb[0].mxu0 %v5669
        %v5721 = vpop.f32.mrb[0].mxu0
        %v5722 = vadd.f32 %v5645, %v5721
        %v5723 = vpop.f32.mrb[0].mxu0
        %v5724 = vpop.f32.mrb[0].mxu0
        %v5725 = vpop.f32.mrb[0].mxu0
        %5726 = vdwg.mxu0
        %v5731 = vunpack.c.l.b16 %v5569
        %v5732 = vunpack.c.l.b16 %v5570
        %v5733 = vunpack.c.l.b16 %v5571
        %v5734 = vunpack.c.l.b16 %v5572
        %v5735 = vpack.c.b16 %v5732, %v5731
        %v5736 = vpack.c.b16 %v5734, %v5733
        %v5740 = vsel %vm754, %v5529, 0
        %v5743 = vsel %vm754, %v5530, 0
        %v5746 = vsel %vm754, %v5531, 0
        %5748 = vmatprep.subr.bf16.mxu0 0
        %5749 = vmatpush1.bf16.msra.mxu0 %v5735
        %5750 = vmatprep.subr.bf16.mxu0 0
        %5751 = vmatpush1.bf16.msra.mxu0 %v5736
        %5752 = vmatprep.subr.bf16.mxu0 0
        %5753 = vmatpush1.bf16.msra.mxu0 0
        %5754 = vmatprep.subr.bf16.mxu0 0
        %5755 = vmatpush1.bf16.msra.mxu0 0
        %5756 = vmatprep.subr.bf16.mxu0 0
        %5757 = vmatpush1.bf16.msra.mxu0 0
        %5758 = vmatprep.subr.bf16.mxu0 0
        %5759 = vmatpush1.bf16.msra.mxu0 0
        %5760 = vmatprep.subr.bf16.mxu0 0
        %5761 = vmatpush1.bf16.msra.mxu0 0
        %5762 = vmatprep.subr.bf16.mxu0 0
        %5763 = vmatpush1.bf16.msra.mxu0 0
        %5764 = vmatprep.subr.bf16.mxu0 0
        %5765 = vmatpush1.bf16.msra.mxu0 0
        %5766 = vmatprep.subr.bf16.mxu0 0
        %5767 = vmatpush1.bf16.msra.mxu0 0
        %5768 = vmatprep.subr.bf16.mxu0 0
        %5769 = vmatpush1.bf16.msra.mxu0 0
        %5770 = vmatprep.subr.bf16.mxu0 0
        %5771 = vmatpush1.bf16.msra.mxu0 0
        %5772 = vmatprep.subr.bf16.mxu0 0
        %5773 = vmatpush1.bf16.msra.mxu0 0
        %5774 = vmatprep.subr.bf16.mxu0 0
        %5775 = vmatpush1.bf16.msra.mxu0 0
        %5776 = vmatprep.subr.bf16.mxu0 0
        %5777 = vmatpush1.bf16.msra.mxu0 0
        %5778 = vmatprep.subr.bf16.mxu0 0
        %5779 = vmatpush1.bf16.msra.mxu0 0
        %5780 = vmatprep.mubr.bf16.mxu0 0
        %5781 = vmatmul.mubr.bf16.gmra.mrb[0].mxu0 %v5740
        %v5782 = vpop.f32.mrb[0].mxu0
        %v5783 = vadd.f32 0.0, %v5782
        %v5784 = vpop.f32.mrb[0].mxu0
        %v5785 = vpop.f32.mrb[0].mxu0
        %v5786 = vadd.f32 0.0, %v5785
        %v5787 = vpop.f32.mrb[0].mxu0
        %5788 = vmatprep.mubr.bf16.mxu0 0
        %5789 = vmatmul.mubr.bf16.gmra.mrb[0].mxu0 %v5743
        %v5790 = vpop.f32.mrb[0].mxu0
        %v5791 = vadd.f32 0.0, %v5790
        %v5792 = vpop.f32.mrb[0].mxu0
        %v5793 = vpop.f32.mrb[0].mxu0
        %v5794 = vadd.f32 0.0, %v5793
        %v5795 = vpop.f32.mrb[0].mxu0
        %5796 = vmatprep.mubr.bf16.mxu0 0
        %5797 = vmatmul.mubr.bf16.gmra.mrb[0].mxu0 %v5746
        %v5798 = vpop.f32.mrb[0].mxu0
        %v5799 = vadd.f32 0.0, %v5798
        %v5800 = vpop.f32.mrb[0].mxu0
        %v5801 = vpop.f32.mrb[0].mxu0
        %v5802 = vpop.f32.mrb[0].mxu0
        %5803 = vdwg.mxu0
        %v5804 = vadd.f32 %v5706, %v5783
        %v5805 = vadd.f32 %v5709, %v5786
        %v5806 = vadd.f32 %v5714, %v5791
        %v5807 = vadd.f32 %v5717, %v5794
        %v5808 = vadd.f32 %v5722, %v5799
        %5809 = vmatprep.subr.bf16.mxu0 0
        %5810 = vmatpush1.bf16.msra.mxu0 %v5581
        %5811 = vmatprep.subr.bf16.mxu0 0
        %5812 = vmatpush1.bf16.msra.mxu0 %v5582
        %5813 = vmatprep.subr.bf16.mxu0 0
        %5814 = vmatpush1.bf16.msra.mxu0 0
        %5815 = vmatprep.subr.bf16.mxu0 0
        %5816 = vmatpush1.bf16.msra.mxu0 0
        %5817 = vmatprep.subr.bf16.mxu0 0
        %5818 = vmatpush1.bf16.msra.mxu0 0
        %5819 = vmatprep.subr.bf16.mxu0 0
        %5820 = vmatpush1.bf16.msra.mxu0 0
        %5821 = vmatprep.subr.bf16.mxu0 0
        %5822 = vmatpush1.bf16.msra.mxu0 0
        %5823 = vmatprep.subr.bf16.mxu0 0
        %5824 = vmatpush1.bf16.msra.mxu0 0
        %5825 = vmatprep.subr.bf16.mxu0 0
        %5826 = vmatpush1.bf16.msra.mxu0 0
        %5827 = vmatprep.subr.bf16.mxu0 0
        %5828 = vmatpush1.bf16.msra.mxu0 0
        %5829 = vmatprep.subr.bf16.mxu0 0
        %5830 = vmatpush1.bf16.msra.mxu0 0
        %5831 = vmatprep.subr.bf16.mxu0 0
        %5832 = vmatpush1.bf16.msra.mxu0 0
        %5833 = vmatprep.subr.bf16.mxu0 0
        %5834 = vmatpush1.bf16.msra.mxu0 0
        %5835 = vmatprep.subr.bf16.mxu0 0
        %5836 = vmatpush1.bf16.msra.mxu0 0
        %5837 = vmatprep.subr.bf16.mxu0 0
        %5838 = vmatpush1.bf16.msra.mxu0 0
        %5839 = vmatprep.subr.bf16.mxu0 0
        %5840 = vmatpush1.bf16.msra.mxu0 0
        %5841 = vmatprep.mubr.bf16.mxu0 0
        %5842 = vmatmul.mubr.bf16.gmra.mrb[0].mxu0 %v5740
        %v5843 = vpop.f32.mrb[0].mxu0
        %v5844 = vadd.f32 0.0, %v5843
        %v5845 = vpop.f32.mrb[0].mxu0
        %v5846 = vpop.f32.mrb[0].mxu0
        %v5847 = vadd.f32 0.0, %v5846
        %v5848 = vpop.f32.mrb[0].mxu0
        %5849 = vmatprep.mubr.bf16.mxu0 0
        %5850 = vmatmul.mubr.bf16.gmra.mrb[0].mxu0 %v5743
        %v5851 = vpop.f32.mrb[0].mxu0
        %v5852 = vadd.f32 0.0, %v5851
        %v5853 = vpop.f32.mrb[0].mxu0
        %v5854 = vpop.f32.mrb[0].mxu0
        %v5855 = vadd.f32 0.0, %v5854
        %v5856 = vpop.f32.mrb[0].mxu0
        %5857 = vmatprep.mubr.bf16.mxu0 0
        %5858 = vmatmul.mubr.bf16.gmra.mrb[0].mxu0 %v5746
        %v5859 = vpop.f32.mrb[0].mxu0
        %v5860 = vadd.f32 0.0, %v5859
        %v5861 = vpop.f32.mrb[0].mxu0
        %v5862 = vpop.f32.mrb[0].mxu0
        %v5863 = vpop.f32.mrb[0].mxu0
        %5864 = vdwg.mxu0
        %5865 = vmatprep.subr.bf16.mxu0 0
        %5866 = vmatpush1.bf16.msra.mxu0 %v5658
        %5867 = vmatprep.subr.bf16.mxu0 0
        %5868 = vmatpush1.bf16.msra.mxu0 %v5659
        %5869 = vmatprep.subr.bf16.mxu0 0
        %5870 = vmatpush1.bf16.msra.mxu0 0
        %5871 = vmatprep.subr.bf16.mxu0 0
        %5872 = vmatpush1.bf16.msra.mxu0 0
        %5873 = vmatprep.subr.bf16.mxu0 0
        %5874 = vmatpush1.bf16.msra.mxu0 0
        %5875 = vmatprep.subr.bf16.mxu0 0
        %5876 = vmatpush1.bf16.msra.mxu0 0
        %5877 = vmatprep.subr.bf16.mxu0 0
        %5878 = vmatpush1.bf16.msra.mxu0 0
        %5879 = vmatprep.subr.bf16.mxu0 0
        %5880 = vmatpush1.bf16.msra.mxu0 0
        %5881 = vmatprep.subr.bf16.mxu0 0
        %5882 = vmatpush1.bf16.msra.mxu0 0
        %5883 = vmatprep.subr.bf16.mxu0 0
        %5884 = vmatpush1.bf16.msra.mxu0 0
        %5885 = vmatprep.subr.bf16.mxu0 0
        %5886 = vmatpush1.bf16.msra.mxu0 0
        %5887 = vmatprep.subr.bf16.mxu0 0
        %5888 = vmatpush1.bf16.msra.mxu0 0
        %5889 = vmatprep.subr.bf16.mxu0 0
        %5890 = vmatpush1.bf16.msra.mxu0 0
        %5891 = vmatprep.subr.bf16.mxu0 0
        %5892 = vmatpush1.bf16.msra.mxu0 0
        %5893 = vmatprep.subr.bf16.mxu0 0
        %5894 = vmatpush1.bf16.msra.mxu0 0
        %5895 = vmatprep.subr.bf16.mxu0 0
        %5896 = vmatpush1.bf16.msra.mxu0 0
        %5897 = vmatprep.mubr.bf16.mxu0 0
        %5898 = vmatmul.mubr.bf16.gmra.mrb[0].mxu0 %v5586
        %v5899 = vpop.f32.mrb[0].mxu0
        %v5900 = vadd.f32 %v5844, %v5899
        %v5901 = vpop.f32.mrb[0].mxu0
        %v5902 = vpop.f32.mrb[0].mxu0
        %v5903 = vadd.f32 %v5847, %v5902
        %v5904 = vpop.f32.mrb[0].mxu0
        %5905 = vmatprep.mubr.bf16.mxu0 0
        %5906 = vmatmul.mubr.bf16.gmra.mrb[0].mxu0 %v5589
        %v5907 = vpop.f32.mrb[0].mxu0
        %v5908 = vadd.f32 %v5852, %v5907
        %v5909 = vpop.f32.mrb[0].mxu0
        %v5910 = vpop.f32.mrb[0].mxu0
        %v5911 = vadd.f32 %v5855, %v5910
        %v5912 = vpop.f32.mrb[0].mxu0
        %5913 = vmatprep.mubr.bf16.mxu0 0
        %5914 = vmatmul.mubr.bf16.gmra.mrb[0].mxu0 %v5592
        %v5915 = vpop.f32.mrb[0].mxu0
        %v5916 = vadd.f32 %v5860, %v5915
        %v5917 = vpop.f32.mrb[0].mxu0
        %v5918 = vpop.f32.mrb[0].mxu0
        %v5919 = vpop.f32.mrb[0].mxu0
        %5920 = vdwg.mxu0
        %v5922 = vsel %vm754, %v5542, 0
        %v5925 = vsel %vm754, %v5543, 0
        %v5928 = vsel %vm754, %v5544, 0
        %5930 = vmatprep.subr.bf16.mxu0 0
        %5931 = vmatpush1.bf16.msra.mxu0 %v5735
        %5932 = vmatprep.subr.bf16.mxu0 0
        %5933 = vmatpush1.bf16.msra.mxu0 %v5736
        %5934 = vmatprep.subr.bf16.mxu0 0
        %5935 = vmatpush1.bf16.msra.mxu0 0
        %5936 = vmatprep.subr.bf16.mxu0 0
        %5937 = vmatpush1.bf16.msra.mxu0 0
        %5938 = vmatprep.subr.bf16.mxu0 0
        %5939 = vmatpush1.bf16.msra.mxu0 0
        %5940 = vmatprep.subr.bf16.mxu0 0
        %5941 = vmatpush1.bf16.msra.mxu0 0
        %5942 = vmatprep.subr.bf16.mxu0 0
        %5943 = vmatpush1.bf16.msra.mxu0 0
        %5944 = vmatprep.subr.bf16.mxu0 0
        %5945 = vmatpush1.bf16.msra.mxu0 0
        %5946 = vmatprep.subr.bf16.mxu0 0
        %5947 = vmatpush1.bf16.msra.mxu0 0
        %5948 = vmatprep.subr.bf16.mxu0 0
        %5949 = vmatpush1.bf16.msra.mxu0 0
        %5950 = vmatprep.subr.bf16.mxu0 0
        %5951 = vmatpush1.bf16.msra.mxu0 0
        %5952 = vmatprep.subr.bf16.mxu0 0
        %5953 = vmatpush1.bf16.msra.mxu0 0
        %5954 = vmatprep.subr.bf16.mxu0 0
        %5955 = vmatpush1.bf16.msra.mxu0 0
        %5956 = vmatprep.subr.bf16.mxu0 0
        %5957 = vmatpush1.bf16.msra.mxu0 0
        %5958 = vmatprep.subr.bf16.mxu0 0
        %5959 = vmatpush1.bf16.msra.mxu0 0
        %5960 = vmatprep.subr.bf16.mxu0 0
        %5961 = vmatpush1.bf16.msra.mxu0 0
        %5962 = vmatprep.mubr.bf16.mxu0 0
        %5963 = vmatmul.mubr.bf16.gmra.mrb[0].mxu0 %v5922
        %v5964 = vpop.f32.mrb[0].mxu0
        %v5965 = vadd.f32 0.0, %v5964
        %v5966 = vpop.f32.mrb[0].mxu0
        %v5967 = vpop.f32.mrb[0].mxu0
        %v5968 = vadd.f32 0.0, %v5967
        %v5969 = vpop.f32.mrb[0].mxu0
        %5970 = vmatprep.mubr.bf16.mxu0 0
        %5971 = vmatmul.mubr.bf16.gmra.mrb[0].mxu0 %v5925
        %v5972 = vpop.f32.mrb[0].mxu0
        %v5973 = vadd.f32 0.0, %v5972
        %v5974 = vpop.f32.mrb[0].mxu0
        %v5975 = vpop.f32.mrb[0].mxu0
        %v5976 = vadd.f32 0.0, %v5975
        %v5977 = vpop.f32.mrb[0].mxu0
        %5978 = vmatprep.mubr.bf16.mxu0 0
        %5979 = vmatmul.mubr.bf16.gmra.mrb[0].mxu0 %v5928
        %v5980 = vpop.f32.mrb[0].mxu0
        %v5981 = vadd.f32 0.0, %v5980
        %v5982 = vpop.f32.mrb[0].mxu0
        %v5983 = vpop.f32.mrb[0].mxu0
        %v5984 = vpop.f32.mrb[0].mxu0
        %5985 = vdwg.mxu0
        %v5986 = vadd.f32 %v5900, %v5965
        %v5987 = vadd.f32 %v5903, %v5968
        %v5988 = vadd.f32 %v5908, %v5973
        %v5989 = vadd.f32 %v5911, %v5976
        %v5990 = vadd.f32 %v5916, %v5981
        %v5991 = vmax.f32 %v5804, %v5986
        %v5992 = vmax.f32 %v5805, %v5987
        %v5993 = vmax.f32 %v5806, %v5988
        %v5994 = vmax.f32 %v5807, %v5989
        %v5995 = vmax.f32 %v5808, %v5990
        %5996 = vmatprep.subr.bf16.mxu0 0
        %5997 = vmatpush1.bf16.msra.mxu0 %v5581
        %5998 = vmatprep.subr.bf16.mxu0 0
        %5999 = vmatpush1.bf16.msra.mxu0 %v5582
        %6000 = vmatprep.subr.bf16.mxu0 0
        %6001 = vmatpush1.bf16.msra.mxu0 0
        %6002 = vmatprep.subr.bf16.mxu0 0
        %6003 = vmatpush1.bf16.msra.mxu0 0
        %6004 = vmatprep.subr.bf16.mxu0 0
        %6005 = vmatpush1.bf16.msra.mxu0 0
        %6006 = vmatprep.subr.bf16.mxu0 0
        %6007 = vmatpush1.bf16.msra.mxu0 0
        %6008 = vmatprep.subr.bf16.mxu0 0
        %6009 = vmatpush1.bf16.msra.mxu0 0
        %6010 = vmatprep.subr.bf16.mxu0 0
        %6011 = vmatpush1.bf16.msra.mxu0 0
        %6012 = vmatprep.subr.bf16.mxu0 0
        %6013 = vmatpush1.bf16.msra.mxu0 0
        %6014 = vmatprep.subr.bf16.mxu0 0
        %6015 = vmatpush1.bf16.msra.mxu0 0
        %6016 = vmatprep.subr.bf16.mxu0 0
        %6017 = vmatpush1.bf16.msra.mxu0 0
        %6018 = vmatprep.subr.bf16.mxu0 0
        %6019 = vmatpush1.bf16.msra.mxu0 0
        %6020 = vmatprep.subr.bf16.mxu0 0
        %6021 = vmatpush1.bf16.msra.mxu0 0
        %6022 = vmatprep.subr.bf16.mxu0 0
        %6023 = vmatpush1.bf16.msra.mxu0 0
        %6024 = vmatprep.subr.bf16.mxu0 0
        %6025 = vmatpush1.bf16.msra.mxu0 0
        %6026 = vmatprep.subr.bf16.mxu0 0
        %6027 = vmatpush1.bf16.msra.mxu0 0
        %6028 = vmatprep.mubr.bf16.mxu0 0
        %6029 = vmatmul.mubr.bf16.gmra.mrb[0].mxu0 %v5922
        %v6030 = vpop.f32.mrb[0].mxu0
        %v6031 = vadd.f32 0.0, %v6030
        %v6032 = vpop.f32.mrb[0].mxu0
        %v6033 = vpop.f32.mrb[0].mxu0
        %v6034 = vadd.f32 0.0, %v6033
        %v6035 = vpop.f32.mrb[0].mxu0
        %6036 = vmatprep.mubr.bf16.mxu0 0
        %6037 = vmatmul.mubr.bf16.gmra.mrb[0].mxu0 %v5925
        %v6038 = vpop.f32.mrb[0].mxu0
        %v6039 = vadd.f32 0.0, %v6038
        %v6040 = vpop.f32.mrb[0].mxu0
        %v6041 = vpop.f32.mrb[0].mxu0
        %v6042 = vadd.f32 0.0, %v6041
        %v6043 = vpop.f32.mrb[0].mxu0
        %6044 = vmatprep.mubr.bf16.mxu0 0
        %6045 = vmatmul.mubr.bf16.gmra.mrb[0].mxu0 %v5928
        %v6046 = vpop.f32.mrb[0].mxu0
        %v6047 = vadd.f32 0.0, %v6046
        %v6048 = vpop.f32.mrb[0].mxu0
        %v6049 = vpop.f32.mrb[0].mxu0
        %v6050 = vpop.f32.mrb[0].mxu0
        %6051 = vdwg.mxu0
        %6052 = vmatprep.subr.bf16.mxu0 0
        %6053 = vmatpush1.bf16.msra.mxu0 %v5658
        %6054 = vmatprep.subr.bf16.mxu0 0
        %6055 = vmatpush1.bf16.msra.mxu0 %v5659
        %6056 = vmatprep.subr.bf16.mxu0 0
        %6057 = vmatpush1.bf16.msra.mxu0 0
        %6058 = vmatprep.subr.bf16.mxu0 0
        %6059 = vmatpush1.bf16.msra.mxu0 0
        %6060 = vmatprep.subr.bf16.mxu0 0
        %6061 = vmatpush1.bf16.msra.mxu0 0
        %6062 = vmatprep.subr.bf16.mxu0 0
        %6063 = vmatpush1.bf16.msra.mxu0 0
        %6064 = vmatprep.subr.bf16.mxu0 0
        %6065 = vmatpush1.bf16.msra.mxu0 0
        %6066 = vmatprep.subr.bf16.mxu0 0
        %6067 = vmatpush1.bf16.msra.mxu0 0
        %6068 = vmatprep.subr.bf16.mxu0 0
        %6069 = vmatpush1.bf16.msra.mxu0 0
        %6070 = vmatprep.subr.bf16.mxu0 0
        %6071 = vmatpush1.bf16.msra.mxu0 0
        %6072 = vmatprep.subr.bf16.mxu0 0
        %6073 = vmatpush1.bf16.msra.mxu0 0
        %6074 = vmatprep.subr.bf16.mxu0 0
        %6075 = vmatpush1.bf16.msra.mxu0 0
        %6076 = vmatprep.subr.bf16.mxu0 0
        %6077 = vmatpush1.bf16.msra.mxu0 0
        %6078 = vmatprep.subr.bf16.mxu0 0
        %6079 = vmatpush1.bf16.msra.mxu0 0
        %6080 = vmatprep.subr.bf16.mxu0 0
        %6081 = vmatpush1.bf16.msra.mxu0 0
        %6082 = vmatprep.subr.bf16.mxu0 0
        %6083 = vmatpush1.bf16.msra.mxu0 0
        %6084 = vmatprep.mubr.bf16.mxu0 0
        %6085 = vmatmul.mubr.bf16.gmra.mrb[0].mxu0 %v5740
        %v6086 = vpop.f32.mrb[0].mxu0
        %v6087 = vadd.f32 %v6031, %v6086
        %v6088 = vpop.f32.mrb[0].mxu0
        %v6089 = vpop.f32.mrb[0].mxu0
        %v6090 = vadd.f32 %v6034, %v6089
        %v6091 = vpop.f32.mrb[0].mxu0
        %6092 = vmatprep.mubr.bf16.mxu0 0
        %6093 = vmatmul.mubr.bf16.gmra.mrb[0].mxu0 %v5743
        %v6094 = vpop.f32.mrb[0].mxu0
        %v6095 = vadd.f32 %v6039, %v6094
        %v6096 = vpop.f32.mrb[0].mxu0
        %v6097 = vpop.f32.mrb[0].mxu0
        %v6098 = vadd.f32 %v6042, %v6097
        %v6099 = vpop.f32.mrb[0].mxu0
        %6100 = vmatprep.mubr.bf16.mxu0 0
        %6101 = vmatmul.mubr.bf16.gmra.mrb[0].mxu0 %v5746
        %v6102 = vpop.f32.mrb[0].mxu0
        %v6103 = vadd.f32 %v6047, %v6102
        %v6104 = vpop.f32.mrb[0].mxu0
        %v6105 = vpop.f32.mrb[0].mxu0
        %v6106 = vpop.f32.mrb[0].mxu0
        %6107 = vdwg.mxu0
        %v6109 = vsel %vm754, %v5555, 0
        %v6112 = vsel %vm754, %v5556, 0
        %v6115 = vsel %vm754, %v5557, 0
        %6117 = vmatprep.subr.bf16.mxu0 0
        %6118 = vmatpush1.bf16.msra.mxu0 %v5735
        %6119 = vmatprep.subr.bf16.mxu0 0
        %6120 = vmatpush1.bf16.msra.mxu0 %v5736
        %6121 = vmatprep.subr.bf16.mxu0 0
        %6122 = vmatpush1.bf16.msra.mxu0 0
        %6123 = vmatprep.subr.bf16.mxu0 0
        %6124 = vmatpush1.bf16.msra.mxu0 0
        %6125 = vmatprep.subr.bf16.mxu0 0
        %6126 = vmatpush1.bf16.msra.mxu0 0
        %6127 = vmatprep.subr.bf16.mxu0 0
        %6128 = vmatpush1.bf16.msra.mxu0 0
        %6129 = vmatprep.subr.bf16.mxu0 0
        %6130 = vmatpush1.bf16.msra.mxu0 0
        %6131 = vmatprep.subr.bf16.mxu0 0
        %6132 = vmatpush1.bf16.msra.mxu0 0
        %6133 = vmatprep.subr.bf16.mxu0 0
        %6134 = vmatpush1.bf16.msra.mxu0 0
        %6135 = vmatprep.subr.bf16.mxu0 0
        %6136 = vmatpush1.bf16.msra.mxu0 0
        %6137 = vmatprep.subr.bf16.mxu0 0
        %6138 = vmatpush1.bf16.msra.mxu0 0
        %6139 = vmatprep.subr.bf16.mxu0 0
        %6140 = vmatpush1.bf16.msra.mxu0 0
        %6141 = vmatprep.subr.bf16.mxu0 0
        %6142 = vmatpush1.bf16.msra.mxu0 0
        %6143 = vmatprep.subr.bf16.mxu0 0
        %6144 = vmatpush1.bf16.msra.mxu0 0
        %6145 = vmatprep.subr.bf16.mxu0 0
        %6146 = vmatpush1.bf16.msra.mxu0 0
        %6147 = vmatprep.subr.bf16.mxu0 0
        %6148 = vmatpush1.bf16.msra.mxu0 0
        %6149 = vmatprep.mubr.bf16.mxu0 0
        %6150 = vmatmul.mubr.bf16.gmra.mrb[0].mxu0 %v6109
        %v6151 = vpop.f32.mrb[0].mxu0
        %v6152 = vadd.f32 0.0, %v6151
        %v6153 = vpop.f32.mrb[0].mxu0
        %v6154 = vpop.f32.mrb[0].mxu0
        %v6155 = vadd.f32 0.0, %v6154
        %v6156 = vpop.f32.mrb[0].mxu0
        %6157 = vmatprep.mubr.bf16.mxu0 0
        %6158 = vmatmul.mubr.bf16.gmra.mrb[0].mxu0 %v6112
        %v6159 = vpop.f32.mrb[0].mxu0
        %v6160 = vadd.f32 0.0, %v6159
        %v6161 = vpop.f32.mrb[0].mxu0
        %v6162 = vpop.f32.mrb[0].mxu0
        %v6163 = vadd.f32 0.0, %v6162
        %v6164 = vpop.f32.mrb[0].mxu0
        %6165 = vmatprep.mubr.bf16.mxu0 0
        %6166 = vmatmul.mubr.bf16.gmra.mrb[0].mxu0 %v6115
        %v6167 = vpop.f32.mrb[0].mxu0
        %v6168 = vadd.f32 0.0, %v6167
        %v6169 = vpop.f32.mrb[0].mxu0
        %v6170 = vpop.f32.mrb[0].mxu0
        %v6171 = vpop.f32.mrb[0].mxu0
        %6172 = vdwg.mxu0
        %v6173 = vadd.f32 %v6087, %v6152
        %v6174 = vadd.f32 %v6090, %v6155
        %v6175 = vadd.f32 %v6095, %v6160
        %v6176 = vadd.f32 %v6098, %v6163
        %v6177 = vadd.f32 %v6103, %v6168
        %v6178 = vmax.f32 %v5991, %v6173
        %v6179 = vmax.f32 %v5992, %v6174
        %v6180 = vmax.f32 %v5993, %v6175
        %v6181 = vmax.f32 %v5994, %v6176
        %v6182 = vmax.f32 %v5995, %v6177
        %s6183 = scalar_lea.vmem %s2, 3
        %v6184 = vld [vmem:[%s6183] sm:$0x1]
        %v6186 = vlaneseq
        %v6187 = vshrl.u32 %v6186, 7
        %v6188 = vsub.s32 0, %v6187
        %v6189 = vrot.slane %v6184, %v6188
        %v6191 = vmul.f32 %v6178, %v6189
        %v6192 = vmul.f32 %v6179, %v6189
        %v6193 = vmul.f32 %v6180, %v6189
        %v6194 = vmul.f32 %v6181, %v6189
        %v6195 = vmul.f32 %v6182, %v6189
        %s6196 = scalar_lea.vmem %s3, 3
        %v6197 = vld [vmem:[%s6196] sm:$0x1]
        %v6199 = vlaneseq
        %v6200 = vshrl.u32 %v6199, 7
        %v6201 = vsub.s32 0, %v6200
        %v6202 = vrot.slane %v6197, %v6201
        %v6204 = vadd.f32 %v6191, %v6202
        %v6205 = vadd.f32 %v6192, %v6202
        %v6206 = vadd.f32 %v6193, %v6202
        %v6207 = vadd.f32 %v6194, %v6202
        %v6208 = vadd.f32 %v6195, %v6202
        %vm6209 = vcmp.ge.f32.partialorder %v6204, 0.0
        %vm6210 = vcmp.ge.f32.partialorder %v6205, 0.0
        %vm6211 = vcmp.ge.f32.partialorder %v6206, 0.0
        %vm6212 = vcmp.ge.f32.partialorder %v6207, 0.0
        %vm6213 = vcmp.ge.f32.partialorder %v6208, 0.0
        %v6214 = vmul.f32 %v6204, 0.01
        %v6215 = vmul.f32 %v6205, 0.01
        %v6216 = vmul.f32 %v6206, 0.01
        %v6217 = vmul.f32 %v6207, 0.01
        %v6218 = vmul.f32 %v6208, 0.01
        %v6219 = vsel %vm6209, %v6204, %v6214
        %v6220 = vsel %vm6210, %v6205, %v6215
        %v6221 = vsel %vm6211, %v6206, %v6216
        %v6222 = vsel %vm6212, %v6207, %v6217
        %v6223 = vsel %vm6213, %v6208, %v6218
        %6224 = vst.msk [vmem:[#allocation5] sm:$0x1] %vm2909, 0.0
        %6225 = vst.msk [vmem:[#allocation5 + $0x22] sm:$0x1] %vm2909, 0.0
        %6226 = vst.msk [vmem:[#allocation5 + $0x1] sm:$0xff] %vm754, %v6219
        %6227 = vst.msk [vmem:[#allocation5 + $0x9] sm:$0xff] %vm754, %v6220
        %6228 = vst.msk [vmem:[#allocation5 + $0x11] sm:$0xff] %vm754, %v6221
        %6229 = vst.msk [vmem:[#allocation5 + $0x19] sm:$0xff] %vm754, %v6222
        %6230 = vst.msk [vmem:[#allocation5 + $0x21] sm:$0x1] %vm2909, %v6223
        %v6231 = vld [vmem:[#allocation5] ss:$2 sm:$0xff]
        %s6232 = scalar_lea.vmem [#allocation5], 16
        %v6233 = vld [vmem:[%s6232] ss:$2 sm:$0xff]
        %v6234 = vpack.c.bf16 %v6233, %v6231
        %s6235 = scalar_lea.vmem [#allocation5], 1
        %v6236 = vld [vmem:[%s6235] ss:$2 sm:$0xff]
        %s6237 = scalar_lea.vmem [#allocation5], 17
        %v6238 = vld [vmem:[%s6237] ss:$2 sm:$0xff]
        %v6239 = vpack.c.bf16 %v6238, %v6236
        %s6240 = scalar_lea.vmem [#allocation5], 2
        %v6241 = vld [vmem:[%s6240] ss:$2 sm:$0xff]
        %s6242 = scalar_lea.vmem [#allocation5], 18
        %v6243 = vld [vmem:[%s6242] ss:$2 sm:$0xff]
        %v6244 = vpack.c.bf16 %v6243, %v6241
        %s6245 = scalar_lea.vmem [#allocation5], 3
        %v6246 = vld [vmem:[%s6245] ss:$2 sm:$0xff]
        %s6247 = scalar_lea.vmem [#allocation5], 19
        %v6248 = vld [vmem:[%s6247] ss:$2 sm:$0xff]
        %v6249 = vpack.c.bf16 %v6248, %v6246
        %s6250 = scalar_lea.vmem [#allocation5], 4
        %v6251 = vld [vmem:[%s6250] ss:$2 sm:$0xff]
        %s6252 = scalar_lea.vmem [#allocation5], 20
        %v6253 = vld [vmem:[%s6252] ss:$2 sm:$0xff]
        %v6254 = vpack.c.bf16 %v6253, %v6251
        %s6255 = scalar_lea.vmem %s1, 192
        %v6256 = vld [vmem:[%s6255] sm:$0xf]
        %v6257 = vld [vmem:[%s6255 + $0x4] sm:$0xf]
        %v6258 = vld [vmem:[%s6255 + $0x8] sm:$0xf]
        %v6259 = vld [vmem:[%s6255 + $0xc] sm:$0xf]
        %s6260 = scalar_lea.vmem %s1, 208
        %v6261 = vld [vmem:[%s6260] sm:$0xf]
        %v6262 = vld [vmem:[%s6260 + $0x4] sm:$0xf]
        %v6263 = vld [vmem:[%s6260 + $0x8] sm:$0xf]
        %v6264 = vld [vmem:[%s6260 + $0xc] sm:$0xf]
        %s6265 = scalar_lea.vmem %s1, 224
        %v6266 = vld [vmem:[%s6265] sm:$0xf]
        %v6267 = vld [vmem:[%s6265 + $0x4] sm:$0xf]
        %v6268 = vld [vmem:[%s6265 + $0x8] sm:$0xf]
        %v6269 = vld [vmem:[%s6265 + $0xc] sm:$0xf]
        %v6274 = vunpack.c.l.b16 %v6261
        %v6275 = vunpack.c.l.b16 %v6262
        %v6276 = vunpack.c.l.b16 %v6263
        %v6277 = vunpack.c.l.b16 %v6264
        %v6278 = vpack.c.b16 %v6275, %v6274
        %v6279 = vpack.c.b16 %v6277, %v6276
        %v6283 = vsel %vm754, %v6239, 0
        %6285 = vmatprep.subr.bf16.mxu0 0
        %6286 = vmatpush1.bf16.msra.mxu0 %v6278
        %6287 = vmatprep.subr.bf16.mxu0 0
        %6288 = vmatpush1.bf16.msra.mxu0 %v6279
        %6289 = vmatprep.subr.bf16.mxu0 0
        %6290 = vmatpush1.bf16.msra.mxu0 0
        %6291 = vmatprep.subr.bf16.mxu0 0
        %6292 = vmatpush1.bf16.msra.mxu0 0
        %6293 = vmatprep.subr.bf16.mxu0 0
        %6294 = vmatpush1.bf16.msra.mxu0 0
        %6295 = vmatprep.subr.bf16.mxu0 0
        %6296 = vmatpush1.bf16.msra.mxu0 0
        %6297 = vmatprep.subr.bf16.mxu0 0
        %6298 = vmatpush1.bf16.msra.mxu0 0
        %6299 = vmatprep.subr.bf16.mxu0 0
        %6300 = vmatpush1.bf16.msra.mxu0 0
        %6301 = vmatprep.subr.bf16.mxu0 0
        %6302 = vmatpush1.bf16.msra.mxu0 0
        %6303 = vmatprep.subr.bf16.mxu0 0
        %6304 = vmatpush1.bf16.msra.mxu0 0
        %6305 = vmatprep.subr.bf16.mxu0 0
        %6306 = vmatpush1.bf16.msra.mxu0 0
        %6307 = vmatprep.subr.bf16.mxu0 0
        %6308 = vmatpush1.bf16.msra.mxu0 0
        %6309 = vmatprep.subr.bf16.mxu0 0
        %6310 = vmatpush1.bf16.msra.mxu0 0
        %6311 = vmatprep.subr.bf16.mxu0 0
        %6312 = vmatpush1.bf16.msra.mxu0 0
        %6313 = vmatprep.subr.bf16.mxu0 0
        %6314 = vmatpush1.bf16.msra.mxu0 0
        %6315 = vmatprep.subr.bf16.mxu0 0
        %6316 = vmatpush1.bf16.msra.mxu0 0
        %6317 = vmatprep.mubr.bf16.mxu0 0
        %6318 = vmatmul.mubr.bf16.gmra.mrb[0].mxu0 %v6283
        %v6319 = vpop.f32.mrb[0].mxu0
        %v6320 = vadd.f32 0.0, %v6319
        %v6321 = vpop.f32.mrb[0].mxu0
        %v6322 = vpop.f32.mrb[0].mxu0
        %v6323 = vadd.f32 0.0, %v6322
        %v6324 = vpop.f32.mrb[0].mxu0
        %6325 = vdwg.mxu0
        %v6330 = vunpack.c.l.b16 %v6256
        %v6331 = vunpack.c.l.b16 %v6257
        %v6332 = vunpack.c.l.b16 %v6258
        %v6333 = vunpack.c.l.b16 %v6259
        %v6334 = vpack.c.b16 %v6331, %v6330
        %v6335 = vpack.c.b16 %v6333, %v6332
        %v6339 = vsel %vm754, %v6234, 0
        %6341 = vmatprep.subr.bf16.mxu0 0
        %6342 = vmatpush1.bf16.msra.mxu0 %v6334
        %6343 = vmatprep.subr.bf16.mxu0 0
        %6344 = vmatpush1.bf16.msra.mxu0 %v6335
        %6345 = vmatprep.subr.bf16.mxu0 0
        %6346 = vmatpush1.bf16.msra.mxu0 0
        %6347 = vmatprep.subr.bf16.mxu0 0
        %6348 = vmatpush1.bf16.msra.mxu0 0
        %6349 = vmatprep.subr.bf16.mxu0 0
        %6350 = vmatpush1.bf16.msra.mxu0 0
        %6351 = vmatprep.subr.bf16.mxu0 0
        %6352 = vmatpush1.bf16.msra.mxu0 0
        %6353 = vmatprep.subr.bf16.mxu0 0
        %6354 = vmatpush1.bf16.msra.mxu0 0
        %6355 = vmatprep.subr.bf16.mxu0 0
        %6356 = vmatpush1.bf16.msra.mxu0 0
        %6357 = vmatprep.subr.bf16.mxu0 0
        %6358 = vmatpush1.bf16.msra.mxu0 0
        %6359 = vmatprep.subr.bf16.mxu0 0
        %6360 = vmatpush1.bf16.msra.mxu0 0
        %6361 = vmatprep.subr.bf16.mxu0 0
        %6362 = vmatpush1.bf16.msra.mxu0 0
        %6363 = vmatprep.subr.bf16.mxu0 0
        %6364 = vmatpush1.bf16.msra.mxu0 0
        %6365 = vmatprep.subr.bf16.mxu0 0
        %6366 = vmatpush1.bf16.msra.mxu0 0
        %6367 = vmatprep.subr.bf16.mxu0 0
        %6368 = vmatpush1.bf16.msra.mxu0 0
        %6369 = vmatprep.subr.bf16.mxu0 0
        %6370 = vmatpush1.bf16.msra.mxu0 0
        %6371 = vmatprep.subr.bf16.mxu0 0
        %6372 = vmatpush1.bf16.msra.mxu0 0
        %6373 = vmatprep.mubr.bf16.mxu0 0
        %6374 = vmatmul.mubr.bf16.gmra.mrb[0].mxu0 %v6339
        %v6375 = vpop.f32.mrb[0].mxu0
        %v6376 = vadd.f32 %v6320, %v6375
        %v6377 = vpop.f32.mrb[0].mxu0
        %v6378 = vpop.f32.mrb[0].mxu0
        %v6379 = vadd.f32 %v6323, %v6378
        %v6380 = vpop.f32.mrb[0].mxu0
        %6381 = vdwg.mxu0
        %v6386 = vunpack.c.l.b16 %v6266
        %v6387 = vunpack.c.l.b16 %v6267
        %v6388 = vunpack.c.l.b16 %v6268
        %v6389 = vunpack.c.l.b16 %v6269
        %v6390 = vpack.c.b16 %v6387, %v6386
        %v6391 = vpack.c.b16 %v6389, %v6388
        %v6395 = vsel %vm754, %v6244, 0
        %6397 = vmatprep.subr.bf16.mxu0 0
        %6398 = vmatpush1.bf16.msra.mxu0 %v6390
        %6399 = vmatprep.subr.bf16.mxu0 0
        %6400 = vmatpush1.bf16.msra.mxu0 %v6391
        %6401 = vmatprep.subr.bf16.mxu0 0
        %6402 = vmatpush1.bf16.msra.mxu0 0
        %6403 = vmatprep.subr.bf16.mxu0 0
        %6404 = vmatpush1.bf16.msra.mxu0 0
        %6405 = vmatprep.subr.bf16.mxu0 0
        %6406 = vmatpush1.bf16.msra.mxu0 0
        %6407 = vmatprep.subr.bf16.mxu0 0
        %6408 = vmatpush1.bf16.msra.mxu0 0
        %6409 = vmatprep.subr.bf16.mxu0 0
        %6410 = vmatpush1.bf16.msra.mxu0 0
        %6411 = vmatprep.subr.bf16.mxu0 0
        %6412 = vmatpush1.bf16.msra.mxu0 0
        %6413 = vmatprep.subr.bf16.mxu0 0
        %6414 = vmatpush1.bf16.msra.mxu0 0
        %6415 = vmatprep.subr.bf16.mxu0 0
        %6416 = vmatpush1.bf16.msra.mxu0 0
        %6417 = vmatprep.subr.bf16.mxu0 0
        %6418 = vmatpush1.bf16.msra.mxu0 0
        %6419 = vmatprep.subr.bf16.mxu0 0
        %6420 = vmatpush1.bf16.msra.mxu0 0
        %6421 = vmatprep.subr.bf16.mxu0 0
        %6422 = vmatpush1.bf16.msra.mxu0 0
        %6423 = vmatprep.subr.bf16.mxu0 0
        %6424 = vmatpush1.bf16.msra.mxu0 0
        %6425 = vmatprep.subr.bf16.mxu0 0
        %6426 = vmatpush1.bf16.msra.mxu0 0
        %6427 = vmatprep.subr.bf16.mxu0 0
        %6428 = vmatpush1.bf16.msra.mxu0 0
        %6429 = vmatprep.mubr.bf16.mxu0 0
        %6430 = vmatmul.mubr.bf16.gmra.mrb[0].mxu0 %v6395
        %v6431 = vpop.f32.mrb[0].mxu0
        %v6432 = vadd.f32 0.0, %v6431
        %v6433 = vpop.f32.mrb[0].mxu0
        %v6434 = vpop.f32.mrb[0].mxu0
        %v6435 = vadd.f32 0.0, %v6434
        %v6436 = vpop.f32.mrb[0].mxu0
        %6437 = vdwg.mxu0
        %v6438 = vadd.f32 %v6376, %v6432
        %v6439 = vadd.f32 %v6379, %v6435
        %6440 = vmatprep.subr.bf16.mxu0 0
        %6441 = vmatpush1.bf16.msra.mxu0 %v6278
        %6442 = vmatprep.subr.bf16.mxu0 0
        %6443 = vmatpush1.bf16.msra.mxu0 %v6279
        %6444 = vmatprep.subr.bf16.mxu0 0
        %6445 = vmatpush1.bf16.msra.mxu0 0
        %6446 = vmatprep.subr.bf16.mxu0 0
        %6447 = vmatpush1.bf16.msra.mxu0 0
        %6448 = vmatprep.subr.bf16.mxu0 0
        %6449 = vmatpush1.bf16.msra.mxu0 0
        %6450 = vmatprep.subr.bf16.mxu0 0
        %6451 = vmatpush1.bf16.msra.mxu0 0
        %6452 = vmatprep.subr.bf16.mxu0 0
        %6453 = vmatpush1.bf16.msra.mxu0 0
        %6454 = vmatprep.subr.bf16.mxu0 0
        %6455 = vmatpush1.bf16.msra.mxu0 0
        %6456 = vmatprep.subr.bf16.mxu0 0
        %6457 = vmatpush1.bf16.msra.mxu0 0
        %6458 = vmatprep.subr.bf16.mxu0 0
        %6459 = vmatpush1.bf16.msra.mxu0 0
        %6460 = vmatprep.subr.bf16.mxu0 0
        %6461 = vmatpush1.bf16.msra.mxu0 0
        %6462 = vmatprep.subr.bf16.mxu0 0
        %6463 = vmatpush1.bf16.msra.mxu0 0
        %6464 = vmatprep.subr.bf16.mxu0 0
        %6465 = vmatpush1.bf16.msra.mxu0 0
        %6466 = vmatprep.subr.bf16.mxu0 0
        %6467 = vmatpush1.bf16.msra.mxu0 0
        %6468 = vmatprep.subr.bf16.mxu0 0
        %6469 = vmatpush1.bf16.msra.mxu0 0
        %6470 = vmatprep.subr.bf16.mxu0 0
        %6471 = vmatpush1.bf16.msra.mxu0 0
        %6472 = vmatprep.mubr.bf16.mxu0 0
        %6473 = vmatmul.mubr.bf16.gmra.mrb[0].mxu0 %v6395
        %v6474 = vpop.f32.mrb[0].mxu0
        %v6475 = vadd.f32 0.0, %v6474
        %v6476 = vpop.f32.mrb[0].mxu0
        %v6477 = vpop.f32.mrb[0].mxu0
        %v6478 = vadd.f32 0.0, %v6477
        %v6479 = vpop.f32.mrb[0].mxu0
        %6480 = vdwg.mxu0
        %6481 = vmatprep.subr.bf16.mxu0 0
        %6482 = vmatpush1.bf16.msra.mxu0 %v6334
        %6483 = vmatprep.subr.bf16.mxu0 0
        %6484 = vmatpush1.bf16.msra.mxu0 %v6335
        %6485 = vmatprep.subr.bf16.mxu0 0
        %6486 = vmatpush1.bf16.msra.mxu0 0
        %6487 = vmatprep.subr.bf16.mxu0 0
        %6488 = vmatpush1.bf16.msra.mxu0 0
        %6489 = vmatprep.subr.bf16.mxu0 0
        %6490 = vmatpush1.bf16.msra.mxu0 0
        %6491 = vmatprep.subr.bf16.mxu0 0
        %6492 = vmatpush1.bf16.msra.mxu0 0
        %6493 = vmatprep.subr.bf16.mxu0 0
        %6494 = vmatpush1.bf16.msra.mxu0 0
        %6495 = vmatprep.subr.bf16.mxu0 0
        %6496 = vmatpush1.bf16.msra.mxu0 0
        %6497 = vmatprep.subr.bf16.mxu0 0
        %6498 = vmatpush1.bf16.msra.mxu0 0
        %6499 = vmatprep.subr.bf16.mxu0 0
        %6500 = vmatpush1.bf16.msra.mxu0 0
        %6501 = vmatprep.subr.bf16.mxu0 0
        %6502 = vmatpush1.bf16.msra.mxu0 0
        %6503 = vmatprep.subr.bf16.mxu0 0
        %6504 = vmatpush1.bf16.msra.mxu0 0
        %6505 = vmatprep.subr.bf16.mxu0 0
        %6506 = vmatpush1.bf16.msra.mxu0 0
        %6507 = vmatprep.subr.bf16.mxu0 0
        %6508 = vmatpush1.bf16.msra.mxu0 0
        %6509 = vmatprep.subr.bf16.mxu0 0
        %6510 = vmatpush1.bf16.msra.mxu0 0
        %6511 = vmatprep.subr.bf16.mxu0 0
        %6512 = vmatpush1.bf16.msra.mxu0 0
        %6513 = vmatprep.mubr.bf16.mxu0 0
        %6514 = vmatmul.mubr.bf16.gmra.mrb[0].mxu0 %v6283
        %v6515 = vpop.f32.mrb[0].mxu0
        %v6516 = vadd.f32 %v6475, %v6515
        %v6517 = vpop.f32.mrb[0].mxu0
        %v6518 = vpop.f32.mrb[0].mxu0
        %v6519 = vadd.f32 %v6478, %v6518
        %v6520 = vpop.f32.mrb[0].mxu0
        %6521 = vdwg.mxu0
        %v6523 = vsel %vm754, %v6249, 0
        %6525 = vmatprep.subr.bf16.mxu0 0
        %6526 = vmatpush1.bf16.msra.mxu0 %v6390
        %6527 = vmatprep.subr.bf16.mxu0 0
        %6528 = vmatpush1.bf16.msra.mxu0 %v6391
        %6529 = vmatprep.subr.bf16.mxu0 0
        %6530 = vmatpush1.bf16.msra.mxu0 0
        %6531 = vmatprep.subr.bf16.mxu0 0
        %6532 = vmatpush1.bf16.msra.mxu0 0
        %6533 = vmatprep.subr.bf16.mxu0 0
        %6534 = vmatpush1.bf16.msra.mxu0 0
        %6535 = vmatprep.subr.bf16.mxu0 0
        %6536 = vmatpush1.bf16.msra.mxu0 0
        %6537 = vmatprep.subr.bf16.mxu0 0
        %6538 = vmatpush1.bf16.msra.mxu0 0
        %6539 = vmatprep.subr.bf16.mxu0 0
        %6540 = vmatpush1.bf16.msra.mxu0 0
        %6541 = vmatprep.subr.bf16.mxu0 0
        %6542 = vmatpush1.bf16.msra.mxu0 0
        %6543 = vmatprep.subr.bf16.mxu0 0
        %6544 = vmatpush1.bf16.msra.mxu0 0
        %6545 = vmatprep.subr.bf16.mxu0 0
        %6546 = vmatpush1.bf16.msra.mxu0 0
        %6547 = vmatprep.subr.bf16.mxu0 0
        %6548 = vmatpush1.bf16.msra.mxu0 0
        %6549 = vmatprep.subr.bf16.mxu0 0
        %6550 = vmatpush1.bf16.msra.mxu0 0
        %6551 = vmatprep.subr.bf16.mxu0 0
        %6552 = vmatpush1.bf16.msra.mxu0 0
        %6553 = vmatprep.subr.bf16.mxu0 0
        %6554 = vmatpush1.bf16.msra.mxu0 0
        %6555 = vmatprep.subr.bf16.mxu0 0
        %6556 = vmatpush1.bf16.msra.mxu0 0
        %6557 = vmatprep.mubr.bf16.mxu0 0
        %6558 = vmatmul.mubr.bf16.gmra.mrb[0].mxu0 %v6523
        %v6559 = vpop.f32.mrb[0].mxu0
        %v6560 = vadd.f32 0.0, %v6559
        %v6561 = vpop.f32.mrb[0].mxu0
        %v6562 = vpop.f32.mrb[0].mxu0
        %v6563 = vadd.f32 0.0, %v6562
        %v6564 = vpop.f32.mrb[0].mxu0
        %6565 = vdwg.mxu0
        %v6566 = vadd.f32 %v6516, %v6560
        %v6567 = vadd.f32 %v6519, %v6563
        %v6568 = vmax.f32 %v6438, %v6566
        %v6569 = vmax.f32 %v6439, %v6567
        %6570 = vmatprep.subr.bf16.mxu0 0
        %6571 = vmatpush1.bf16.msra.mxu0 %v6278
        %6572 = vmatprep.subr.bf16.mxu0 0
        %6573 = vmatpush1.bf16.msra.mxu0 %v6279
        %6574 = vmatprep.subr.bf16.mxu0 0
        %6575 = vmatpush1.bf16.msra.mxu0 0
        %6576 = vmatprep.subr.bf16.mxu0 0
        %6577 = vmatpush1.bf16.msra.mxu0 0
        %6578 = vmatprep.subr.bf16.mxu0 0
        %6579 = vmatpush1.bf16.msra.mxu0 0
        %6580 = vmatprep.subr.bf16.mxu0 0
        %6581 = vmatpush1.bf16.msra.mxu0 0
        %6582 = vmatprep.subr.bf16.mxu0 0
        %6583 = vmatpush1.bf16.msra.mxu0 0
        %6584 = vmatprep.subr.bf16.mxu0 0
        %6585 = vmatpush1.bf16.msra.mxu0 0
        %6586 = vmatprep.subr.bf16.mxu0 0
        %6587 = vmatpush1.bf16.msra.mxu0 0
        %6588 = vmatprep.subr.bf16.mxu0 0
        %6589 = vmatpush1.bf16.msra.mxu0 0
        %6590 = vmatprep.subr.bf16.mxu0 0
        %6591 = vmatpush1.bf16.msra.mxu0 0
        %6592 = vmatprep.subr.bf16.mxu0 0
        %6593 = vmatpush1.bf16.msra.mxu0 0
        %6594 = vmatprep.subr.bf16.mxu0 0
        %6595 = vmatpush1.bf16.msra.mxu0 0
        %6596 = vmatprep.subr.bf16.mxu0 0
        %6597 = vmatpush1.bf16.msra.mxu0 0
        %6598 = vmatprep.subr.bf16.mxu0 0
        %6599 = vmatpush1.bf16.msra.mxu0 0
        %6600 = vmatprep.subr.bf16.mxu0 0
        %6601 = vmatpush1.bf16.msra.mxu0 0
        %6602 = vmatprep.mubr.bf16.mxu0 0
        %6603 = vmatmul.mubr.bf16.gmra.mrb[0].mxu0 %v6523
        %v6604 = vpop.f32.mrb[0].mxu0
        %v6605 = vadd.f32 0.0, %v6604
        %v6606 = vpop.f32.mrb[0].mxu0
        %v6607 = vpop.f32.mrb[0].mxu0
        %v6608 = vadd.f32 0.0, %v6607
        %v6609 = vpop.f32.mrb[0].mxu0
        %6610 = vdwg.mxu0
        %6611 = vmatprep.subr.bf16.mxu0 0
        %6612 = vmatpush1.bf16.msra.mxu0 %v6334
        %6613 = vmatprep.subr.bf16.mxu0 0
        %6614 = vmatpush1.bf16.msra.mxu0 %v6335
        %6615 = vmatprep.subr.bf16.mxu0 0
        %6616 = vmatpush1.bf16.msra.mxu0 0
        %6617 = vmatprep.subr.bf16.mxu0 0
        %6618 = vmatpush1.bf16.msra.mxu0 0
        %6619 = vmatprep.subr.bf16.mxu0 0
        %6620 = vmatpush1.bf16.msra.mxu0 0
        %6621 = vmatprep.subr.bf16.mxu0 0
        %6622 = vmatpush1.bf16.msra.mxu0 0
        %6623 = vmatprep.subr.bf16.mxu0 0
        %6624 = vmatpush1.bf16.msra.mxu0 0
        %6625 = vmatprep.subr.bf16.mxu0 0
        %6626 = vmatpush1.bf16.msra.mxu0 0
        %6627 = vmatprep.subr.bf16.mxu0 0
        %6628 = vmatpush1.bf16.msra.mxu0 0
        %6629 = vmatprep.subr.bf16.mxu0 0
        %6630 = vmatpush1.bf16.msra.mxu0 0
        %6631 = vmatprep.subr.bf16.mxu0 0
        %6632 = vmatpush1.bf16.msra.mxu0 0
        %6633 = vmatprep.subr.bf16.mxu0 0
        %6634 = vmatpush1.bf16.msra.mxu0 0
        %6635 = vmatprep.subr.bf16.mxu0 0
        %6636 = vmatpush1.bf16.msra.mxu0 0
        %6637 = vmatprep.subr.bf16.mxu0 0
        %6638 = vmatpush1.bf16.msra.mxu0 0
        %6639 = vmatprep.subr.bf16.mxu0 0
        %6640 = vmatpush1.bf16.msra.mxu0 0
        %6641 = vmatprep.subr.bf16.mxu0 0
        %6642 = vmatpush1.bf16.msra.mxu0 0
        %6643 = vmatprep.mubr.bf16.mxu0 0
        %6644 = vmatmul.mubr.bf16.gmra.mrb[0].mxu0 %v6395
        %v6645 = vpop.f32.mrb[0].mxu0
        %v6646 = vadd.f32 %v6605, %v6645
        %v6647 = vpop.f32.mrb[0].mxu0
        %v6648 = vpop.f32.mrb[0].mxu0
        %v6649 = vadd.f32 %v6608, %v6648
        %v6650 = vpop.f32.mrb[0].mxu0
        %6651 = vdwg.mxu0
        %v6653 = vsel %vm754, %v6254, 0
        %6655 = vmatprep.subr.bf16.mxu0 0
        %6656 = vmatpush1.bf16.msra.mxu0 %v6390
        %6657 = vmatprep.subr.bf16.mxu0 0
        %6658 = vmatpush1.bf16.msra.mxu0 %v6391
        %6659 = vmatprep.subr.bf16.mxu0 0
        %6660 = vmatpush1.bf16.msra.mxu0 0
        %6661 = vmatprep.subr.bf16.mxu0 0
        %6662 = vmatpush1.bf16.msra.mxu0 0
        %6663 = vmatprep.subr.bf16.mxu0 0
        %6664 = vmatpush1.bf16.msra.mxu0 0
        %6665 = vmatprep.subr.bf16.mxu0 0
        %6666 = vmatpush1.bf16.msra.mxu0 0
        %6667 = vmatprep.subr.bf16.mxu0 0
        %6668 = vmatpush1.bf16.msra.mxu0 0
        %6669 = vmatprep.subr.bf16.mxu0 0
        %6670 = vmatpush1.bf16.msra.mxu0 0
        %6671 = vmatprep.subr.bf16.mxu0 0
        %6672 = vmatpush1.bf16.msra.mxu0 0
        %6673 = vmatprep.subr.bf16.mxu0 0
        %6674 = vmatpush1.bf16.msra.mxu0 0
        %6675 = vmatprep.subr.bf16.mxu0 0
        %6676 = vmatpush1.bf16.msra.mxu0 0
        %6677 = vmatprep.subr.bf16.mxu0 0
        %6678 = vmatpush1.bf16.msra.mxu0 0
        %6679 = vmatprep.subr.bf16.mxu0 0
        %6680 = vmatpush1.bf16.msra.mxu0 0
        %6681 = vmatprep.subr.bf16.mxu0 0
        %6682 = vmatpush1.bf16.msra.mxu0 0
        %6683 = vmatprep.subr.bf16.mxu0 0
        %6684 = vmatpush1.bf16.msra.mxu0 0
        %6685 = vmatprep.subr.bf16.mxu0 0
        %6686 = vmatpush1.bf16.msra.mxu0 0
        %6687 = vmatprep.mubr.bf16.mxu0 0
        %6688 = vmatmul.mubr.bf16.gmra.mrb[0].mxu0 %v6653
        %v6689 = vpop.f32.mrb[0].mxu0
        %v6690 = vadd.f32 0.0, %v6689
        %v6691 = vpop.f32.mrb[0].mxu0
        %v6692 = vpop.f32.mrb[0].mxu0
        %v6693 = vadd.f32 0.0, %v6692
        %v6694 = vpop.f32.mrb[0].mxu0
        %6695 = vdwg.mxu0
        %v6696 = vadd.f32 %v6646, %v6690
        %v6697 = vadd.f32 %v6649, %v6693
        %v6698 = vmax.f32 %v6568, %v6696
        %v6699 = vmax.f32 %v6569, %v6697
        %s6700 = scalar_lea.vmem %s2, 4
        %v6701 = vld [vmem:[%s6700] sm:$0x1]
        %v6703 = vlaneseq
        %v6704 = vshrl.u32 %v6703, 7
        %v6705 = vsub.s32 0, %v6704
        %v6706 = vrot.slane %v6701, %v6705
        %v6708 = vmul.f32 %v6698, %v6706
        %v6709 = vmul.f32 %v6699, %v6706
        %s6710 = scalar_lea.vmem %s3, 4
        %v6711 = vld [vmem:[%s6710] sm:$0x1]
        %v6713 = vlaneseq
        %v6714 = vshrl.u32 %v6713, 7
        %v6715 = vsub.s32 0, %v6714
        %v6716 = vrot.slane %v6711, %v6715
        %v6718 = vadd.f32 %v6708, %v6716
        %v6719 = vadd.f32 %v6709, %v6716
        %vm6720 = vcmp.ge.f32.partialorder %v6718, 0.0
        %vm6721 = vcmp.ge.f32.partialorder %v6719, 0.0
        %v6722 = vmul.f32 %v6718, 0.01
        %v6723 = vmul.f32 %v6719, 0.01
        %v6724 = vsel %vm6720, %v6718, %v6722
        %v6725 = vsel %vm6721, %v6719, %v6723
        %v6726 = vld [vmem:[%s5] sm:$0x1]
        %v6727 = vpack.c.bf16 %v6724, %v6724
        %v6728 = vld [vmem:[%s4] sm:$0xf]
        %v6729 = vld [vmem:[%s4 + $0x4] sm:$0xf]
        %v6730 = vld [vmem:[%s4 + $0x8] sm:$0xf]
        %v6731 = vld [vmem:[%s4 + $0xc] sm:$0xf]
        %v6736 = vunpack.c.l.b16 %v6728
        %v6737 = vunpack.c.l.b16 %v6729
        %v6738 = vunpack.c.l.b16 %v6730
        %v6739 = vunpack.c.l.b16 %v6731
        %v6740 = vpack.c.b16 %v6737, %v6736
        %v6741 = vpack.c.b16 %v6739, %v6738
        %v6745 = vsel %vm754, %v6727, 0
        %6747 = vmatprep.subr.bf16.mxu0 0
        %6748 = vmatpush1.bf16.msra.mxu0 %v6740
        %6749 = vmatprep.subr.bf16.mxu0 0
        %6750 = vmatpush1.bf16.msra.mxu0 %v6741
        %6751 = vmatprep.subr.bf16.mxu0 0
        %6752 = vmatpush1.bf16.msra.mxu0 0
        %6753 = vmatprep.subr.bf16.mxu0 0
        %6754 = vmatpush1.bf16.msra.mxu0 0
        %6755 = vmatprep.subr.bf16.mxu0 0
        %6756 = vmatpush1.bf16.msra.mxu0 0
        %6757 = vmatprep.subr.bf16.mxu0 0
        %6758 = vmatpush1.bf16.msra.mxu0 0
        %6759 = vmatprep.subr.bf16.mxu0 0
        %6760 = vmatpush1.bf16.msra.mxu0 0
        %6761 = vmatprep.subr.bf16.mxu0 0
        %6762 = vmatpush1.bf16.msra.mxu0 0
        %6763 = vmatprep.subr.bf16.mxu0 0
        %6764 = vmatpush1.bf16.msra.mxu0 0
        %6765 = vmatprep.subr.bf16.mxu0 0
        %6766 = vmatpush1.bf16.msra.mxu0 0
        %6767 = vmatprep.subr.bf16.mxu0 0
        %6768 = vmatpush1.bf16.msra.mxu0 0
        %6769 = vmatprep.subr.bf16.mxu0 0
        %6770 = vmatpush1.bf16.msra.mxu0 0
        %6771 = vmatprep.subr.bf16.mxu0 0
        %6772 = vmatpush1.bf16.msra.mxu0 0
        %6773 = vmatprep.subr.bf16.mxu0 0
        %6774 = vmatpush1.bf16.msra.mxu0 0
        %6775 = vmatprep.subr.bf16.mxu0 0
        %6776 = vmatpush1.bf16.msra.mxu0 0
        %6777 = vmatprep.subr.bf16.mxu0 0
        %6778 = vmatpush1.bf16.msra.mxu0 0
        %6779 = vmatprep.mubr.bf16.mxu0 0
        %6780 = vmatmul.mubr.bf16.gmra.mrb[0].mxu0 %v6745
        %v6781 = vpop.f32.mrb[0].mxu0
        %v6782 = vadd.f32 0.0, %v6781
        %v6783 = vpop.f32.mrb[0].mxu0
        %v6784 = vpop.f32.mrb[0].mxu0
        %v6785 = vpop.f32.mrb[0].mxu0
        %6786 = vdwg.mxu0
        %v6787 = vadd.f32 %v6726, %v6782
        %s6788 = scalar_lea.vmem %s4, 16
        %v6789 = vld [vmem:[%s6788] sm:$0xf]
        %v6790 = vld [vmem:[%s6788 + $0x4] sm:$0xf]
        %v6791 = vld [vmem:[%s6788 + $0x8] sm:$0xf]
        %v6792 = vld [vmem:[%s6788 + $0xc] sm:$0xf]
        %v6793 = vshrl.u32 %v6727, 16
        %v6799 = vunpack.c.l.b16 %v6789
        %v6800 = vunpack.c.l.b16 %v6790
        %v6801 = vunpack.c.l.b16 %v6791
        %v6802 = vunpack.c.l.b16 %v6792
        %v6803 = vpack.c.b16 %v6800, %v6799
        %v6804 = vpack.c.b16 %v6802, %v6801
        %v6808 = vsel %vm754, %v6793, 0
        %6810 = vmatprep.subr.bf16.mxu0 0
        %6811 = vmatpush1.bf16.msra.mxu0 %v6803
        %6812 = vmatprep.subr.bf16.mxu0 0
        %6813 = vmatpush1.bf16.msra.mxu0 %v6804
        %6814 = vmatprep.subr.bf16.mxu0 0
        %6815 = vmatpush1.bf16.msra.mxu0 0
        %6816 = vmatprep.subr.bf16.mxu0 0
        %6817 = vmatpush1.bf16.msra.mxu0 0
        %6818 = vmatprep.subr.bf16.mxu0 0
        %6819 = vmatpush1.bf16.msra.mxu0 0
        %6820 = vmatprep.subr.bf16.mxu0 0
        %6821 = vmatpush1.bf16.msra.mxu0 0
        %6822 = vmatprep.subr.bf16.mxu0 0
        %6823 = vmatpush1.bf16.msra.mxu0 0
        %6824 = vmatprep.subr.bf16.mxu0 0
        %6825 = vmatpush1.bf16.msra.mxu0 0
        %6826 = vmatprep.subr.bf16.mxu0 0
        %6827 = vmatpush1.bf16.msra.mxu0 0
        %6828 = vmatprep.subr.bf16.mxu0 0
        %6829 = vmatpush1.bf16.msra.mxu0 0
        %6830 = vmatprep.subr.bf16.mxu0 0
        %6831 = vmatpush1.bf16.msra.mxu0 0
        %6832 = vmatprep.subr.bf16.mxu0 0
        %6833 = vmatpush1.bf16.msra.mxu0 0
        %6834 = vmatprep.subr.bf16.mxu0 0
        %6835 = vmatpush1.bf16.msra.mxu0 0
        %6836 = vmatprep.subr.bf16.mxu0 0
        %6837 = vmatpush1.bf16.msra.mxu0 0
        %6838 = vmatprep.subr.bf16.mxu0 0
        %6839 = vmatpush1.bf16.msra.mxu0 0
        %6840 = vmatprep.subr.bf16.mxu0 0
        %6841 = vmatpush1.bf16.msra.mxu0 0
        %6842 = vmatprep.mubr.bf16.mxu0 0
        %6843 = vmatmul.mubr.bf16.gmra.mrb[0].mxu0 %v6808
        %v6844 = vpop.f32.mrb[0].mxu0
        %v6845 = vadd.f32 0.0, %v6844
        %v6846 = vpop.f32.mrb[0].mxu0
        %v6847 = vpop.f32.mrb[0].mxu0
        %v6848 = vpop.f32.mrb[0].mxu0
        %6849 = vdwg.mxu0
        %v6850 = vadd.f32 %v6787, %v6845
        %s6851 = scalar_lea.vmem %s4, 32
        %v6852 = vld [vmem:[%s6851] sm:$0xf]
        %v6853 = vld [vmem:[%s6851 + $0x4] sm:$0xf]
        %v6854 = vld [vmem:[%s6851 + $0x8] sm:$0xf]
        %v6855 = vld [vmem:[%s6851 + $0xc] sm:$0xf]
        %v6857 = vrot.slane %v6727, 1
        %v6862 = vunpack.c.l.b16 %v6852
        %v6863 = vunpack.c.l.b16 %v6853
        %v6864 = vunpack.c.l.b16 %v6854
        %v6865 = vunpack.c.l.b16 %v6855
        %v6866 = vpack.c.b16 %v6863, %v6862
        %v6867 = vpack.c.b16 %v6865, %v6864
        %v6871 = vsel %vm754, %v6857, 0
        %6873 = vmatprep.subr.bf16.mxu0 0
        %6874 = vmatpush1.bf16.msra.mxu0 %v6866
        %6875 = vmatprep.subr.bf16.mxu0 0
        %6876 = vmatpush1.bf16.msra.mxu0 %v6867
        %6877 = vmatprep.subr.bf16.mxu0 0
        %6878 = vmatpush1.bf16.msra.mxu0 0
        %6879 = vmatprep.subr.bf16.mxu0 0
        %6880 = vmatpush1.bf16.msra.mxu0 0
        %6881 = vmatprep.subr.bf16.mxu0 0
        %6882 = vmatpush1.bf16.msra.mxu0 0
        %6883 = vmatprep.subr.bf16.mxu0 0
        %6884 = vmatpush1.bf16.msra.mxu0 0
        %6885 = vmatprep.subr.bf16.mxu0 0
        %6886 = vmatpush1.bf16.msra.mxu0 0
        %6887 = vmatprep.subr.bf16.mxu0 0
        %6888 = vmatpush1.bf16.msra.mxu0 0
        %6889 = vmatprep.subr.bf16.mxu0 0
        %6890 = vmatpush1.bf16.msra.mxu0 0
        %6891 = vmatprep.subr.bf16.mxu0 0
        %6892 = vmatpush1.bf16.msra.mxu0 0
        %6893 = vmatprep.subr.bf16.mxu0 0
        %6894 = vmatpush1.bf16.msra.mxu0 0
        %6895 = vmatprep.subr.bf16.mxu0 0
        %6896 = vmatpush1.bf16.msra.mxu0 0
        %6897 = vmatprep.subr.bf16.mxu0 0
        %6898 = vmatpush1.bf16.msra.mxu0 0
        %6899 = vmatprep.subr.bf16.mxu0 0
        %6900 = vmatpush1.bf16.msra.mxu0 0
        %6901 = vmatprep.subr.bf16.mxu0 0
        %6902 = vmatpush1.bf16.msra.mxu0 0
        %6903 = vmatprep.subr.bf16.mxu0 0
        %6904 = vmatpush1.bf16.msra.mxu0 0
        %6905 = vmatprep.mubr.bf16.mxu0 0
        %6906 = vmatmul.mubr.bf16.gmra.mrb[0].mxu0 %v6871
        %v6907 = vpop.f32.mrb[0].mxu0
        %v6908 = vadd.f32 0.0, %v6907
        %v6909 = vpop.f32.mrb[0].mxu0
        %v6910 = vpop.f32.mrb[0].mxu0
        %v6911 = vpop.f32.mrb[0].mxu0
        %6912 = vdwg.mxu0
        %v6913 = vadd.f32 %v6850, %v6908
        %s6914 = scalar_lea.vmem %s4, 48
        %v6915 = vld [vmem:[%s6914] sm:$0xf]
        %v6916 = vld [vmem:[%s6914 + $0x4] sm:$0xf]
        %v6917 = vld [vmem:[%s6914 + $0x8] sm:$0xf]
        %v6918 = vld [vmem:[%s6914 + $0xc] sm:$0xf]
        %v6919 = vrot.slane %v6793, 1
        %v6924 = vunpack.c.l.b16 %v6915
        %v6925 = vunpack.c.l.b16 %v6916
        %v6926 = vunpack.c.l.b16 %v6917
        %v6927 = vunpack.c.l.b16 %v6918
        %v6928 = vpack.c.b16 %v6925, %v6924
        %v6929 = vpack.c.b16 %v6927, %v6926
        %v6933 = vsel %vm754, %v6919, 0
        %6935 = vmatprep.subr.bf16.mxu0 0
        %6936 = vmatpush1.bf16.msra.mxu0 %v6928
        %6937 = vmatprep.subr.bf16.mxu0 0
        %6938 = vmatpush1.bf16.msra.mxu0 %v6929
        %6939 = vmatprep.subr.bf16.mxu0 0
        %6940 = vmatpush1.bf16.msra.mxu0 0
        %6941 = vmatprep.subr.bf16.mxu0 0
        %6942 = vmatpush1.bf16.msra.mxu0 0
        %6943 = vmatprep.subr.bf16.mxu0 0
        %6944 = vmatpush1.bf16.msra.mxu0 0
        %6945 = vmatprep.subr.bf16.mxu0 0
        %6946 = vmatpush1.bf16.msra.mxu0 0
        %6947 = vmatprep.subr.bf16.mxu0 0
        %6948 = vmatpush1.bf16.msra.mxu0 0
        %6949 = vmatprep.subr.bf16.mxu0 0
        %6950 = vmatpush1.bf16.msra.mxu0 0
        %6951 = vmatprep.subr.bf16.mxu0 0
        %6952 = vmatpush1.bf16.msra.mxu0 0
        %6953 = vmatprep.subr.bf16.mxu0 0
        %6954 = vmatpush1.bf16.msra.mxu0 0
        %6955 = vmatprep.subr.bf16.mxu0 0
        %6956 = vmatpush1.bf16.msra.mxu0 0
        %6957 = vmatprep.subr.bf16.mxu0 0
        %6958 = vmatpush1.bf16.msra.mxu0 0
        %6959 = vmatprep.subr.bf16.mxu0 0
        %6960 = vmatpush1.bf16.msra.mxu0 0
        %6961 = vmatprep.subr.bf16.mxu0 0
        %6962 = vmatpush1.bf16.msra.mxu0 0
        %6963 = vmatprep.subr.bf16.mxu0 0
        %6964 = vmatpush1.bf16.msra.mxu0 0
        %6965 = vmatprep.subr.bf16.mxu0 0
        %6966 = vmatpush1.bf16.msra.mxu0 0
        %6967 = vmatprep.mubr.bf16.mxu0 0
        %6968 = vmatmul.mubr.bf16.gmra.mrb[0].mxu0 %v6933
        %v6969 = vpop.f32.mrb[0].mxu0
        %v6970 = vadd.f32 0.0, %v6969
        %v6971 = vpop.f32.mrb[0].mxu0
        %v6972 = vpop.f32.mrb[0].mxu0
        %v6973 = vpop.f32.mrb[0].mxu0
        %6974 = vdwg.mxu0
        %v6975 = vadd.f32 %v6913, %v6970
        %s6976 = scalar_lea.vmem %s4, 64
        %v6977 = vld [vmem:[%s6976] sm:$0xf]
        %v6978 = vld [vmem:[%s6976 + $0x4] sm:$0xf]
        %v6979 = vld [vmem:[%s6976 + $0x8] sm:$0xf]
        %v6980 = vld [vmem:[%s6976 + $0xc] sm:$0xf]
        %v6981 = vrot.slane %v6727, 2
        %v6986 = vunpack.c.l.b16 %v6977
        %v6987 = vunpack.c.l.b16 %v6978
        %v6988 = vunpack.c.l.b16 %v6979
        %v6989 = vunpack.c.l.b16 %v6980
        %v6990 = vpack.c.b16 %v6987, %v6986
        %v6991 = vpack.c.b16 %v6989, %v6988
        %v6995 = vsel %vm754, %v6981, 0
        %6997 = vmatprep.subr.bf16.mxu0 0
        %6998 = vmatpush1.bf16.msra.mxu0 %v6990
        %6999 = vmatprep.subr.bf16.mxu0 0
        %7000 = vmatpush1.bf16.msra.mxu0 %v6991
        %7001 = vmatprep.subr.bf16.mxu0 0
        %7002 = vmatpush1.bf16.msra.mxu0 0
        %7003 = vmatprep.subr.bf16.mxu0 0
        %7004 = vmatpush1.bf16.msra.mxu0 0
        %7005 = vmatprep.subr.bf16.mxu0 0
        %7006 = vmatpush1.bf16.msra.mxu0 0
        %7007 = vmatprep.subr.bf16.mxu0 0
        %7008 = vmatpush1.bf16.msra.mxu0 0
        %7009 = vmatprep.subr.bf16.mxu0 0
        %7010 = vmatpush1.bf16.msra.mxu0 0
        %7011 = vmatprep.subr.bf16.mxu0 0
        %7012 = vmatpush1.bf16.msra.mxu0 0
        %7013 = vmatprep.subr.bf16.mxu0 0
        %7014 = vmatpush1.bf16.msra.mxu0 0
        %7015 = vmatprep.subr.bf16.mxu0 0
        %7016 = vmatpush1.bf16.msra.mxu0 0
        %7017 = vmatprep.subr.bf16.mxu0 0
        %7018 = vmatpush1.bf16.msra.mxu0 0
        %7019 = vmatprep.subr.bf16.mxu0 0
        %7020 = vmatpush1.bf16.msra.mxu0 0
        %7021 = vmatprep.subr.bf16.mxu0 0
        %7022 = vmatpush1.bf16.msra.mxu0 0
        %7023 = vmatprep.subr.bf16.mxu0 0
        %7024 = vmatpush1.bf16.msra.mxu0 0
        %7025 = vmatprep.subr.bf16.mxu0 0
        %7026 = vmatpush1.bf16.msra.mxu0 0
        %7027 = vmatprep.subr.bf16.mxu0 0
        %7028 = vmatpush1.bf16.msra.mxu0 0
        %7029 = vmatprep.mubr.bf16.mxu0 0
        %7030 = vmatmul.mubr.bf16.gmra.mrb[0].mxu0 %v6995
        %v7031 = vpop.f32.mrb[0].mxu0
        %v7032 = vadd.f32 0.0, %v7031
        %v7033 = vpop.f32.mrb[0].mxu0
        %v7034 = vpop.f32.mrb[0].mxu0
        %v7035 = vpop.f32.mrb[0].mxu0
        %7036 = vdwg.mxu0
        %v7037 = vadd.f32 %v6975, %v7032
        %s7038 = scalar_lea.vmem %s4, 80
        %v7039 = vld [vmem:[%s7038] sm:$0xf]
        %v7040 = vld [vmem:[%s7038 + $0x4] sm:$0xf]
        %v7041 = vld [vmem:[%s7038 + $0x8] sm:$0xf]
        %v7042 = vld [vmem:[%s7038 + $0xc] sm:$0xf]
        %v7043 = vrot.slane %v6793, 2
        %v7048 = vunpack.c.l.b16 %v7039
        %v7049 = vunpack.c.l.b16 %v7040
        %v7050 = vunpack.c.l.b16 %v7041
        %v7051 = vunpack.c.l.b16 %v7042
        %v7052 = vpack.c.b16 %v7049, %v7048
        %v7053 = vpack.c.b16 %v7051, %v7050
        %v7057 = vsel %vm754, %v7043, 0
        %7059 = vmatprep.subr.bf16.mxu0 0
        %7060 = vmatpush1.bf16.msra.mxu0 %v7052
        %7061 = vmatprep.subr.bf16.mxu0 0
        %7062 = vmatpush1.bf16.msra.mxu0 %v7053
        %7063 = vmatprep.subr.bf16.mxu0 0
        %7064 = vmatpush1.bf16.msra.mxu0 0
        %7065 = vmatprep.subr.bf16.mxu0 0
        %7066 = vmatpush1.bf16.msra.mxu0 0
        %7067 = vmatprep.subr.bf16.mxu0 0
        %7068 = vmatpush1.bf16.msra.mxu0 0
        %7069 = vmatprep.subr.bf16.mxu0 0
        %7070 = vmatpush1.bf16.msra.mxu0 0
        %7071 = vmatprep.subr.bf16.mxu0 0
        %7072 = vmatpush1.bf16.msra.mxu0 0
        %7073 = vmatprep.subr.bf16.mxu0 0
        %7074 = vmatpush1.bf16.msra.mxu0 0
        %7075 = vmatprep.subr.bf16.mxu0 0
        %7076 = vmatpush1.bf16.msra.mxu0 0
        %7077 = vmatprep.subr.bf16.mxu0 0
        %7078 = vmatpush1.bf16.msra.mxu0 0
        %7079 = vmatprep.subr.bf16.mxu0 0
        %7080 = vmatpush1.bf16.msra.mxu0 0
        %7081 = vmatprep.subr.bf16.mxu0 0
        %7082 = vmatpush1.bf16.msra.mxu0 0
        %7083 = vmatprep.subr.bf16.mxu0 0
        %7084 = vmatpush1.bf16.msra.mxu0 0
        %7085 = vmatprep.subr.bf16.mxu0 0
        %7086 = vmatpush1.bf16.msra.mxu0 0
        %7087 = vmatprep.subr.bf16.mxu0 0
        %7088 = vmatpush1.bf16.msra.mxu0 0
        %7089 = vmatprep.subr.bf16.mxu0 0
        %7090 = vmatpush1.bf16.msra.mxu0 0
        %7091 = vmatprep.mubr.bf16.mxu0 0
        %7092 = vmatmul.mubr.bf16.gmra.mrb[0].mxu0 %v7057
        %v7093 = vpop.f32.mrb[0].mxu0
        %v7094 = vadd.f32 0.0, %v7093
        %v7095 = vpop.f32.mrb[0].mxu0
        %v7096 = vpop.f32.mrb[0].mxu0
        %v7097 = vpop.f32.mrb[0].mxu0
        %7098 = vdwg.mxu0
        %v7099 = vadd.f32 %v7037, %v7094
        %s7100 = scalar_lea.vmem %s4, 96
        %v7101 = vld [vmem:[%s7100] sm:$0xf]
        %v7102 = vld [vmem:[%s7100 + $0x4] sm:$0xf]
        %v7103 = vld [vmem:[%s7100 + $0x8] sm:$0xf]
        %v7104 = vld [vmem:[%s7100 + $0xc] sm:$0xf]
        %v7105 = vrot.slane %v6727, 3
        %v7110 = vunpack.c.l.b16 %v7101
        %v7111 = vunpack.c.l.b16 %v7102
        %v7112 = vunpack.c.l.b16 %v7103
        %v7113 = vunpack.c.l.b16 %v7104
        %v7114 = vpack.c.b16 %v7111, %v7110
        %v7115 = vpack.c.b16 %v7113, %v7112
        %v7119 = vsel %vm754, %v7105, 0
        %7121 = vmatprep.subr.bf16.mxu0 0
        %7122 = vmatpush1.bf16.msra.mxu0 %v7114
        %7123 = vmatprep.subr.bf16.mxu0 0
        %7124 = vmatpush1.bf16.msra.mxu0 %v7115
        %7125 = vmatprep.subr.bf16.mxu0 0
        %7126 = vmatpush1.bf16.msra.mxu0 0
        %7127 = vmatprep.subr.bf16.mxu0 0
        %7128 = vmatpush1.bf16.msra.mxu0 0
        %7129 = vmatprep.subr.bf16.mxu0 0
        %7130 = vmatpush1.bf16.msra.mxu0 0
        %7131 = vmatprep.subr.bf16.mxu0 0
        %7132 = vmatpush1.bf16.msra.mxu0 0
        %7133 = vmatprep.subr.bf16.mxu0 0
        %7134 = vmatpush1.bf16.msra.mxu0 0
        %7135 = vmatprep.subr.bf16.mxu0 0
        %7136 = vmatpush1.bf16.msra.mxu0 0
        %7137 = vmatprep.subr.bf16.mxu0 0
        %7138 = vmatpush1.bf16.msra.mxu0 0
        %7139 = vmatprep.subr.bf16.mxu0 0
        %7140 = vmatpush1.bf16.msra.mxu0 0
        %7141 = vmatprep.subr.bf16.mxu0 0
        %7142 = vmatpush1.bf16.msra.mxu0 0
        %7143 = vmatprep.subr.bf16.mxu0 0
        %7144 = vmatpush1.bf16.msra.mxu0 0
        %7145 = vmatprep.subr.bf16.mxu0 0
        %7146 = vmatpush1.bf16.msra.mxu0 0
        %7147 = vmatprep.subr.bf16.mxu0 0
        %7148 = vmatpush1.bf16.msra.mxu0 0
        %7149 = vmatprep.subr.bf16.mxu0 0
        %7150 = vmatpush1.bf16.msra.mxu0 0
        %7151 = vmatprep.subr.bf16.mxu0 0
        %7152 = vmatpush1.bf16.msra.mxu0 0
        %7153 = vmatprep.mubr.bf16.mxu0 0
        %7154 = vmatmul.mubr.bf16.gmra.mrb[0].mxu0 %v7119
        %v7155 = vpop.f32.mrb[0].mxu0
        %v7156 = vadd.f32 0.0, %v7155
        %v7157 = vpop.f32.mrb[0].mxu0
        %v7158 = vpop.f32.mrb[0].mxu0
        %v7159 = vpop.f32.mrb[0].mxu0
        %7160 = vdwg.mxu0
        %v7161 = vadd.f32 %v7099, %v7156
        %s7162 = scalar_lea.vmem %s4, 112
        %v7163 = vld [vmem:[%s7162] sm:$0xf]
        %v7164 = vld [vmem:[%s7162 + $0x4] sm:$0xf]
        %v7165 = vld [vmem:[%s7162 + $0x8] sm:$0xf]
        %v7166 = vld [vmem:[%s7162 + $0xc] sm:$0xf]
        %v7167 = vrot.slane %v6793, 3
        %v7172 = vunpack.c.l.b16 %v7163
        %v7173 = vunpack.c.l.b16 %v7164
        %v7174 = vunpack.c.l.b16 %v7165
        %v7175 = vunpack.c.l.b16 %v7166
        %v7176 = vpack.c.b16 %v7173, %v7172
        %v7177 = vpack.c.b16 %v7175, %v7174
        %v7181 = vsel %vm754, %v7167, 0
        %7183 = vmatprep.subr.bf16.mxu0 0
        %7184 = vmatpush1.bf16.msra.mxu0 %v7176
        %7185 = vmatprep.subr.bf16.mxu0 0
        %7186 = vmatpush1.bf16.msra.mxu0 %v7177
        %7187 = vmatprep.subr.bf16.mxu0 0
        %7188 = vmatpush1.bf16.msra.mxu0 0
        %7189 = vmatprep.subr.bf16.mxu0 0
        %7190 = vmatpush1.bf16.msra.mxu0 0
        %7191 = vmatprep.subr.bf16.mxu0 0
        %7192 = vmatpush1.bf16.msra.mxu0 0
        %7193 = vmatprep.subr.bf16.mxu0 0
        %7194 = vmatpush1.bf16.msra.mxu0 0
        %7195 = vmatprep.subr.bf16.mxu0 0
        %7196 = vmatpush1.bf16.msra.mxu0 0
        %7197 = vmatprep.subr.bf16.mxu0 0
        %7198 = vmatpush1.bf16.msra.mxu0 0
        %7199 = vmatprep.subr.bf16.mxu0 0
        %7200 = vmatpush1.bf16.msra.mxu0 0
        %7201 = vmatprep.subr.bf16.mxu0 0
        %7202 = vmatpush1.bf16.msra.mxu0 0
        %7203 = vmatprep.subr.bf16.mxu0 0
        %7204 = vmatpush1.bf16.msra.mxu0 0
        %7205 = vmatprep.subr.bf16.mxu0 0
        %7206 = vmatpush1.bf16.msra.mxu0 0
        %7207 = vmatprep.subr.bf16.mxu0 0
        %7208 = vmatpush1.bf16.msra.mxu0 0
        %7209 = vmatprep.subr.bf16.mxu0 0
        %7210 = vmatpush1.bf16.msra.mxu0 0
        %7211 = vmatprep.subr.bf16.mxu0 0
        %7212 = vmatpush1.bf16.msra.mxu0 0
        %7213 = vmatprep.subr.bf16.mxu0 0
        %7214 = vmatpush1.bf16.msra.mxu0 0
        %7215 = vmatprep.mubr.bf16.mxu0 0
        %7216 = vmatmul.mubr.bf16.gmra.mrb[0].mxu0 %v7181
        %v7217 = vpop.f32.mrb[0].mxu0
        %v7218 = vadd.f32 0.0, %v7217
        %v7219 = vpop.f32.mrb[0].mxu0
        %v7220 = vpop.f32.mrb[0].mxu0
        %v7221 = vpop.f32.mrb[0].mxu0
        %7222 = vdwg.mxu0
        %v7223 = vadd.f32 %v7161, %v7218
        %v7224 = vpack.c.bf16 %v6725, %v6725
        %s7225 = scalar_lea.vmem %s4, 128
        %v7226 = vld [vmem:[%s7225] sm:$0xf]
        %v7227 = vld [vmem:[%s7225 + $0x4] sm:$0xf]
        %v7228 = vld [vmem:[%s7225 + $0x8] sm:$0xf]
        %v7229 = vld [vmem:[%s7225 + $0xc] sm:$0xf]
        %v7234 = vunpack.c.l.b16 %v7226
        %v7235 = vunpack.c.l.b16 %v7227
        %v7236 = vunpack.c.l.b16 %v7228
        %v7237 = vunpack.c.l.b16 %v7229
        %v7238 = vpack.c.b16 %v7235, %v7234
        %v7239 = vpack.c.b16 %v7237, %v7236
        %v7243 = vsel %vm754, %v7224, 0
        %7245 = vmatprep.subr.bf16.mxu0 0
        %7246 = vmatpush1.bf16.msra.mxu0 %v7238
        %7247 = vmatprep.subr.bf16.mxu0 0
        %7248 = vmatpush1.bf16.msra.mxu0 %v7239
        %7249 = vmatprep.subr.bf16.mxu0 0
        %7250 = vmatpush1.bf16.msra.mxu0 0
        %7251 = vmatprep.subr.bf16.mxu0 0
        %7252 = vmatpush1.bf16.msra.mxu0 0
        %7253 = vmatprep.subr.bf16.mxu0 0
        %7254 = vmatpush1.bf16.msra.mxu0 0
        %7255 = vmatprep.subr.bf16.mxu0 0
        %7256 = vmatpush1.bf16.msra.mxu0 0
        %7257 = vmatprep.subr.bf16.mxu0 0
        %7258 = vmatpush1.bf16.msra.mxu0 0
        %7259 = vmatprep.subr.bf16.mxu0 0
        %7260 = vmatpush1.bf16.msra.mxu0 0
        %7261 = vmatprep.subr.bf16.mxu0 0
        %7262 = vmatpush1.bf16.msra.mxu0 0
        %7263 = vmatprep.subr.bf16.mxu0 0
        %7264 = vmatpush1.bf16.msra.mxu0 0
        %7265 = vmatprep.subr.bf16.mxu0 0
        %7266 = vmatpush1.bf16.msra.mxu0 0
        %7267 = vmatprep.subr.bf16.mxu0 0
        %7268 = vmatpush1.bf16.msra.mxu0 0
        %7269 = vmatprep.subr.bf16.mxu0 0
        %7270 = vmatpush1.bf16.msra.mxu0 0
        %7271 = vmatprep.subr.bf16.mxu0 0
        %7272 = vmatpush1.bf16.msra.mxu0 0
        %7273 = vmatprep.subr.bf16.mxu0 0
        %7274 = vmatpush1.bf16.msra.mxu0 0
        %7275 = vmatprep.subr.bf16.mxu0 0
        %7276 = vmatpush1.bf16.msra.mxu0 0
        %7277 = vmatprep.mubr.bf16.mxu0 0
        %7278 = vmatmul.mubr.bf16.gmra.mrb[0].mxu0 %v7243
        %v7279 = vpop.f32.mrb[0].mxu0
        %v7280 = vadd.f32 0.0, %v7279
        %v7281 = vpop.f32.mrb[0].mxu0
        %v7282 = vpop.f32.mrb[0].mxu0
        %v7283 = vpop.f32.mrb[0].mxu0
        %7284 = vdwg.mxu0
        %v7285 = vadd.f32 %v7223, %v7280
        %s7286 = scalar_lea.vmem %s4, 144
        %v7287 = vld [vmem:[%s7286] sm:$0xf]
        %v7288 = vld [vmem:[%s7286 + $0x4] sm:$0xf]
        %v7289 = vld [vmem:[%s7286 + $0x8] sm:$0xf]
        %v7290 = vld [vmem:[%s7286 + $0xc] sm:$0xf]
        %v7291 = vshrl.u32 %v7224, 16
        %v7297 = vunpack.c.l.b16 %v7287
        %v7298 = vunpack.c.l.b16 %v7288
        %v7299 = vunpack.c.l.b16 %v7289
        %v7300 = vunpack.c.l.b16 %v7290
        %v7301 = vpack.c.b16 %v7298, %v7297
        %v7302 = vpack.c.b16 %v7300, %v7299
        %v7306 = vsel %vm754, %v7291, 0
        %7308 = vmatprep.subr.bf16.mxu0 0
        %7309 = vmatpush1.bf16.msra.mxu0 %v7301
        %7310 = vmatprep.subr.bf16.mxu0 0
        %7311 = vmatpush1.bf16.msra.mxu0 %v7302
        %7312 = vmatprep.subr.bf16.mxu0 0
        %7313 = vmatpush1.bf16.msra.mxu0 0
        %7314 = vmatprep.subr.bf16.mxu0 0
        %7315 = vmatpush1.bf16.msra.mxu0 0
        %7316 = vmatprep.subr.bf16.mxu0 0
        %7317 = vmatpush1.bf16.msra.mxu0 0
        %7318 = vmatprep.subr.bf16.mxu0 0
        %7319 = vmatpush1.bf16.msra.mxu0 0
        %7320 = vmatprep.subr.bf16.mxu0 0
        %7321 = vmatpush1.bf16.msra.mxu0 0
        %7322 = vmatprep.subr.bf16.mxu0 0
        %7323 = vmatpush1.bf16.msra.mxu0 0
        %7324 = vmatprep.subr.bf16.mxu0 0
        %7325 = vmatpush1.bf16.msra.mxu0 0
        %7326 = vmatprep.subr.bf16.mxu0 0
        %7327 = vmatpush1.bf16.msra.mxu0 0
        %7328 = vmatprep.subr.bf16.mxu0 0
        %7329 = vmatpush1.bf16.msra.mxu0 0
        %7330 = vmatprep.subr.bf16.mxu0 0
        %7331 = vmatpush1.bf16.msra.mxu0 0
        %7332 = vmatprep.subr.bf16.mxu0 0
        %7333 = vmatpush1.bf16.msra.mxu0 0
        %7334 = vmatprep.subr.bf16.mxu0 0
        %7335 = vmatpush1.bf16.msra.mxu0 0
        %7336 = vmatprep.subr.bf16.mxu0 0
        %7337 = vmatpush1.bf16.msra.mxu0 0
        %7338 = vmatprep.subr.bf16.mxu0 0
        %7339 = vmatpush1.bf16.msra.mxu0 0
        %7340 = vmatprep.mubr.bf16.mxu0 0
        %7341 = vmatmul.mubr.bf16.gmra.mrb[0].mxu0 %v7306
        %v7342 = vpop.f32.mrb[0].mxu0
        %v7343 = vadd.f32 0.0, %v7342
        %v7344 = vpop.f32.mrb[0].mxu0
        %v7345 = vpop.f32.mrb[0].mxu0
        %v7346 = vpop.f32.mrb[0].mxu0
        %7347 = vdwg.mxu0
        %v7348 = vadd.f32 %v7285, %v7343
        %s7349 = scalar_lea.vmem %s4, 160
        %v7350 = vld [vmem:[%s7349] sm:$0xf]
        %v7351 = vld [vmem:[%s7349 + $0x4] sm:$0xf]
        %v7352 = vld [vmem:[%s7349 + $0x8] sm:$0xf]
        %v7353 = vld [vmem:[%s7349 + $0xc] sm:$0xf]
        %v7355 = vrot.slane %v7224, 1
        %v7360 = vunpack.c.l.b16 %v7350
        %v7361 = vunpack.c.l.b16 %v7351
        %v7362 = vunpack.c.l.b16 %v7352
        %v7363 = vunpack.c.l.b16 %v7353
        %v7364 = vpack.c.b16 %v7361, %v7360
        %v7365 = vpack.c.b16 %v7363, %v7362
        %v7369 = vsel %vm754, %v7355, 0
        %7371 = vmatprep.subr.bf16.mxu0 0
        %7372 = vmatpush1.bf16.msra.mxu0 %v7364
        %7373 = vmatprep.subr.bf16.mxu0 0
        %7374 = vmatpush1.bf16.msra.mxu0 %v7365
        %7375 = vmatprep.subr.bf16.mxu0 0
        %7376 = vmatpush1.bf16.msra.mxu0 0
        %7377 = vmatprep.subr.bf16.mxu0 0
        %7378 = vmatpush1.bf16.msra.mxu0 0
        %7379 = vmatprep.subr.bf16.mxu0 0
        %7380 = vmatpush1.bf16.msra.mxu0 0
        %7381 = vmatprep.subr.bf16.mxu0 0
        %7382 = vmatpush1.bf16.msra.mxu0 0
        %7383 = vmatprep.subr.bf16.mxu0 0
        %7384 = vmatpush1.bf16.msra.mxu0 0
        %7385 = vmatprep.subr.bf16.mxu0 0
        %7386 = vmatpush1.bf16.msra.mxu0 0
        %7387 = vmatprep.subr.bf16.mxu0 0
        %7388 = vmatpush1.bf16.msra.mxu0 0
        %7389 = vmatprep.subr.bf16.mxu0 0
        %7390 = vmatpush1.bf16.msra.mxu0 0
        %7391 = vmatprep.subr.bf16.mxu0 0
        %7392 = vmatpush1.bf16.msra.mxu0 0
        %7393 = vmatprep.subr.bf16.mxu0 0
        %7394 = vmatpush1.bf16.msra.mxu0 0
        %7395 = vmatprep.subr.bf16.mxu0 0
        %7396 = vmatpush1.bf16.msra.mxu0 0
        %7397 = vmatprep.subr.bf16.mxu0 0
        %7398 = vmatpush1.bf16.msra.mxu0 0
        %7399 = vmatprep.subr.bf16.mxu0 0
        %7400 = vmatpush1.bf16.msra.mxu0 0
        %7401 = vmatprep.subr.bf16.mxu0 0
        %7402 = vmatpush1.bf16.msra.mxu0 0
        %7403 = vmatprep.mubr.bf16.mxu0 0
        %7404 = vmatmul.mubr.bf16.gmra.mrb[0].mxu0 %v7369
        %v7405 = vpop.f32.mrb[0].mxu0
        %v7406 = vadd.f32 0.0, %v7405
        %v7407 = vpop.f32.mrb[0].mxu0
        %v7408 = vpop.f32.mrb[0].mxu0
        %v7409 = vpop.f32.mrb[0].mxu0
        %7410 = vdwg.mxu0
        %v7411 = vadd.f32 %v7348, %v7406
        %s7412 = scalar_lea.vmem %s4, 176
        %v7413 = vld [vmem:[%s7412] sm:$0xf]
        %v7414 = vld [vmem:[%s7412 + $0x4] sm:$0xf]
        %v7415 = vld [vmem:[%s7412 + $0x8] sm:$0xf]
        %v7416 = vld [vmem:[%s7412 + $0xc] sm:$0xf]
        %v7417 = vrot.slane %v7291, 1
        %v7422 = vunpack.c.l.b16 %v7413
        %v7423 = vunpack.c.l.b16 %v7414
        %v7424 = vunpack.c.l.b16 %v7415
        %v7425 = vunpack.c.l.b16 %v7416
        %v7426 = vpack.c.b16 %v7423, %v7422
        %v7427 = vpack.c.b16 %v7425, %v7424
        %v7431 = vsel %vm754, %v7417, 0
        %7433 = vmatprep.subr.bf16.mxu0 0
        %7434 = vmatpush1.bf16.msra.mxu0 %v7426
        %7435 = vmatprep.subr.bf16.mxu0 0
        %7436 = vmatpush1.bf16.msra.mxu0 %v7427
        %7437 = vmatprep.subr.bf16.mxu0 0
        %7438 = vmatpush1.bf16.msra.mxu0 0
        %7439 = vmatprep.subr.bf16.mxu0 0
        %7440 = vmatpush1.bf16.msra.mxu0 0
        %7441 = vmatprep.subr.bf16.mxu0 0
        %7442 = vmatpush1.bf16.msra.mxu0 0
        %7443 = vmatprep.subr.bf16.mxu0 0
        %7444 = vmatpush1.bf16.msra.mxu0 0
        %7445 = vmatprep.subr.bf16.mxu0 0
        %7446 = vmatpush1.bf16.msra.mxu0 0
        %7447 = vmatprep.subr.bf16.mxu0 0
        %7448 = vmatpush1.bf16.msra.mxu0 0
        %7449 = vmatprep.subr.bf16.mxu0 0
        %7450 = vmatpush1.bf16.msra.mxu0 0
        %7451 = vmatprep.subr.bf16.mxu0 0
        %7452 = vmatpush1.bf16.msra.mxu0 0
        %7453 = vmatprep.subr.bf16.mxu0 0
        %7454 = vmatpush1.bf16.msra.mxu0 0
        %7455 = vmatprep.subr.bf16.mxu0 0
        %7456 = vmatpush1.bf16.msra.mxu0 0
        %7457 = vmatprep.subr.bf16.mxu0 0
        %7458 = vmatpush1.bf16.msra.mxu0 0
        %7459 = vmatprep.subr.bf16.mxu0 0
        %7460 = vmatpush1.bf16.msra.mxu0 0
        %7461 = vmatprep.subr.bf16.mxu0 0
        %7462 = vmatpush1.bf16.msra.mxu0 0
        %7463 = vmatprep.subr.bf16.mxu0 0
        %7464 = vmatpush1.bf16.msra.mxu0 0
        %7465 = vmatprep.mubr.bf16.mxu0 0
        %7466 = vmatmul.mubr.bf16.gmra.mrb[0].mxu0 %v7431
        %v7467 = vpop.f32.mrb[0].mxu0
        %v7468 = vadd.f32 0.0, %v7467
        %v7469 = vpop.f32.mrb[0].mxu0
        %v7470 = vpop.f32.mrb[0].mxu0
        %v7471 = vpop.f32.mrb[0].mxu0
        %7472 = vdwg.mxu0
        %v7473 = vadd.f32 %v7411, %v7468
        %s7474 = scalar_lea.vmem %s4, 192
        %v7475 = vld [vmem:[%s7474] sm:$0xf]
        %v7476 = vld [vmem:[%s7474 + $0x4] sm:$0xf]
        %v7477 = vld [vmem:[%s7474 + $0x8] sm:$0xf]
        %v7478 = vld [vmem:[%s7474 + $0xc] sm:$0xf]
        %v7479 = vrot.slane %v7224, 2
        %v7484 = vunpack.c.l.b16 %v7475
        %v7485 = vunpack.c.l.b16 %v7476
        %v7486 = vunpack.c.l.b16 %v7477
        %v7487 = vunpack.c.l.b16 %v7478
        %v7488 = vpack.c.b16 %v7485, %v7484
        %v7489 = vpack.c.b16 %v7487, %v7486
        %v7493 = vsel %vm754, %v7479, 0
        %7495 = vmatprep.subr.bf16.mxu0 0
        %7496 = vmatpush1.bf16.msra.mxu0 %v7488
        %7497 = vmatprep.subr.bf16.mxu0 0
        %7498 = vmatpush1.bf16.msra.mxu0 %v7489
        %7499 = vmatprep.subr.bf16.mxu0 0
        %7500 = vmatpush1.bf16.msra.mxu0 0
        %7501 = vmatprep.subr.bf16.mxu0 0
        %7502 = vmatpush1.bf16.msra.mxu0 0
        %7503 = vmatprep.subr.bf16.mxu0 0
        %7504 = vmatpush1.bf16.msra.mxu0 0
        %7505 = vmatprep.subr.bf16.mxu0 0
        %7506 = vmatpush1.bf16.msra.mxu0 0
        %7507 = vmatprep.subr.bf16.mxu0 0
        %7508 = vmatpush1.bf16.msra.mxu0 0
        %7509 = vmatprep.subr.bf16.mxu0 0
        %7510 = vmatpush1.bf16.msra.mxu0 0
        %7511 = vmatprep.subr.bf16.mxu0 0
        %7512 = vmatpush1.bf16.msra.mxu0 0
        %7513 = vmatprep.subr.bf16.mxu0 0
        %7514 = vmatpush1.bf16.msra.mxu0 0
        %7515 = vmatprep.subr.bf16.mxu0 0
        %7516 = vmatpush1.bf16.msra.mxu0 0
        %7517 = vmatprep.subr.bf16.mxu0 0
        %7518 = vmatpush1.bf16.msra.mxu0 0
        %7519 = vmatprep.subr.bf16.mxu0 0
        %7520 = vmatpush1.bf16.msra.mxu0 0
        %7521 = vmatprep.subr.bf16.mxu0 0
        %7522 = vmatpush1.bf16.msra.mxu0 0
        %7523 = vmatprep.subr.bf16.mxu0 0
        %7524 = vmatpush1.bf16.msra.mxu0 0
        %7525 = vmatprep.subr.bf16.mxu0 0
        %7526 = vmatpush1.bf16.msra.mxu0 0
        %7527 = vmatprep.mubr.bf16.mxu0 0
        %7528 = vmatmul.mubr.bf16.gmra.mrb[0].mxu0 %v7493
        %v7529 = vpop.f32.mrb[0].mxu0
        %v7530 = vadd.f32 0.0, %v7529
        %v7531 = vpop.f32.mrb[0].mxu0
        %v7532 = vpop.f32.mrb[0].mxu0
        %v7533 = vpop.f32.mrb[0].mxu0
        %7534 = vdwg.mxu0
        %v7535 = vadd.f32 %v7473, %v7530
        %s7536 = scalar_lea.vmem %s4, 208
        %v7537 = vld [vmem:[%s7536] sm:$0xf]
        %v7538 = vld [vmem:[%s7536 + $0x4] sm:$0xf]
        %v7539 = vld [vmem:[%s7536 + $0x8] sm:$0xf]
        %v7540 = vld [vmem:[%s7536 + $0xc] sm:$0xf]
        %v7541 = vrot.slane %v7291, 2
        %v7546 = vunpack.c.l.b16 %v7537
        %v7547 = vunpack.c.l.b16 %v7538
        %v7548 = vunpack.c.l.b16 %v7539
        %v7549 = vunpack.c.l.b16 %v7540
        %v7550 = vpack.c.b16 %v7547, %v7546
        %v7551 = vpack.c.b16 %v7549, %v7548
        %v7555 = vsel %vm754, %v7541, 0
        %7557 = vmatprep.subr.bf16.mxu0 0
        %7558 = vmatpush1.bf16.msra.mxu0 %v7550
        %7559 = vmatprep.subr.bf16.mxu0 0
        %7560 = vmatpush1.bf16.msra.mxu0 %v7551
        %7561 = vmatprep.subr.bf16.mxu0 0
        %7562 = vmatpush1.bf16.msra.mxu0 0
        %7563 = vmatprep.subr.bf16.mxu0 0
        %7564 = vmatpush1.bf16.msra.mxu0 0
        %7565 = vmatprep.subr.bf16.mxu0 0
        %7566 = vmatpush1.bf16.msra.mxu0 0
        %7567 = vmatprep.subr.bf16.mxu0 0
        %7568 = vmatpush1.bf16.msra.mxu0 0
        %7569 = vmatprep.subr.bf16.mxu0 0
        %7570 = vmatpush1.bf16.msra.mxu0 0
        %7571 = vmatprep.subr.bf16.mxu0 0
        %7572 = vmatpush1.bf16.msra.mxu0 0
        %7573 = vmatprep.subr.bf16.mxu0 0
        %7574 = vmatpush1.bf16.msra.mxu0 0
        %7575 = vmatprep.subr.bf16.mxu0 0
        %7576 = vmatpush1.bf16.msra.mxu0 0
        %7577 = vmatprep.subr.bf16.mxu0 0
        %7578 = vmatpush1.bf16.msra.mxu0 0
        %7579 = vmatprep.subr.bf16.mxu0 0
        %7580 = vmatpush1.bf16.msra.mxu0 0
        %7581 = vmatprep.subr.bf16.mxu0 0
        %7582 = vmatpush1.bf16.msra.mxu0 0
        %7583 = vmatprep.subr.bf16.mxu0 0
        %7584 = vmatpush1.bf16.msra.mxu0 0
        %7585 = vmatprep.subr.bf16.mxu0 0
        %7586 = vmatpush1.bf16.msra.mxu0 0
        %7587 = vmatprep.subr.bf16.mxu0 0
        %7588 = vmatpush1.bf16.msra.mxu0 0
        %7589 = vmatprep.mubr.bf16.mxu0 0
        %7590 = vmatmul.mubr.bf16.gmra.mrb[0].mxu0 %v7555
        %v7591 = vpop.f32.mrb[0].mxu0
        %v7592 = vadd.f32 0.0, %v7591
        %v7593 = vpop.f32.mrb[0].mxu0
        %v7594 = vpop.f32.mrb[0].mxu0
        %v7595 = vpop.f32.mrb[0].mxu0
        %7596 = vdwg.mxu0
        %v7597 = vadd.f32 %v7535, %v7592
        %s7598 = scalar_lea.vmem %s4, 224
        %v7599 = vld [vmem:[%s7598] sm:$0xf]
        %v7600 = vld [vmem:[%s7598 + $0x4] sm:$0xf]
        %v7601 = vld [vmem:[%s7598 + $0x8] sm:$0xf]
        %v7602 = vld [vmem:[%s7598 + $0xc] sm:$0xf]
        %v7603 = vrot.slane %v7224, 3
        %v7608 = vunpack.c.l.b16 %v7599
        %v7609 = vunpack.c.l.b16 %v7600
        %v7610 = vunpack.c.l.b16 %v7601
        %v7611 = vunpack.c.l.b16 %v7602
        %v7612 = vpack.c.b16 %v7609, %v7608
        %v7613 = vpack.c.b16 %v7611, %v7610
        %v7617 = vsel %vm754, %v7603, 0
        %7619 = vmatprep.subr.bf16.mxu0 0
        %7620 = vmatpush1.bf16.msra.mxu0 %v7612
        %7621 = vmatprep.subr.bf16.mxu0 0
        %7622 = vmatpush1.bf16.msra.mxu0 %v7613
        %7623 = vmatprep.subr.bf16.mxu0 0
        %7624 = vmatpush1.bf16.msra.mxu0 0
        %7625 = vmatprep.subr.bf16.mxu0 0
        %7626 = vmatpush1.bf16.msra.mxu0 0
        %7627 = vmatprep.subr.bf16.mxu0 0
        %7628 = vmatpush1.bf16.msra.mxu0 0
        %7629 = vmatprep.subr.bf16.mxu0 0
        %7630 = vmatpush1.bf16.msra.mxu0 0
        %7631 = vmatprep.subr.bf16.mxu0 0
        %7632 = vmatpush1.bf16.msra.mxu0 0
        %7633 = vmatprep.subr.bf16.mxu0 0
        %7634 = vmatpush1.bf16.msra.mxu0 0
        %7635 = vmatprep.subr.bf16.mxu0 0
        %7636 = vmatpush1.bf16.msra.mxu0 0
        %7637 = vmatprep.subr.bf16.mxu0 0
        %7638 = vmatpush1.bf16.msra.mxu0 0
        %7639 = vmatprep.subr.bf16.mxu0 0
        %7640 = vmatpush1.bf16.msra.mxu0 0
        %7641 = vmatprep.subr.bf16.mxu0 0
        %7642 = vmatpush1.bf16.msra.mxu0 0
        %7643 = vmatprep.subr.bf16.mxu0 0
        %7644 = vmatpush1.bf16.msra.mxu0 0
        %7645 = vmatprep.subr.bf16.mxu0 0
        %7646 = vmatpush1.bf16.msra.mxu0 0
        %7647 = vmatprep.subr.bf16.mxu0 0
        %7648 = vmatpush1.bf16.msra.mxu0 0
        %7649 = vmatprep.subr.bf16.mxu0 0
        %7650 = vmatpush1.bf16.msra.mxu0 0
        %7651 = vmatprep.mubr.bf16.mxu0 0
        %7652 = vmatmul.mubr.bf16.gmra.mrb[0].mxu0 %v7617
        %v7653 = vpop.f32.mrb[0].mxu0
        %v7654 = vadd.f32 0.0, %v7653
        %v7655 = vpop.f32.mrb[0].mxu0
        %v7656 = vpop.f32.mrb[0].mxu0
        %v7657 = vpop.f32.mrb[0].mxu0
        %7658 = vdwg.mxu0
        %v7659 = vadd.f32 %v7597, %v7654
        %s7660 = scalar_lea.vmem %s4, 240
        %v7661 = vld [vmem:[%s7660] sm:$0xf]
        %v7662 = vld [vmem:[%s7660 + $0x4] sm:$0xf]
        %v7663 = vld [vmem:[%s7660 + $0x8] sm:$0xf]
        %v7664 = vld [vmem:[%s7660 + $0xc] sm:$0xf]
        %v7665 = vrot.slane %v7291, 3
        %v7670 = vunpack.c.l.b16 %v7661
        %v7671 = vunpack.c.l.b16 %v7662
        %v7672 = vunpack.c.l.b16 %v7663
        %v7673 = vunpack.c.l.b16 %v7664
        %v7674 = vpack.c.b16 %v7671, %v7670
        %v7675 = vpack.c.b16 %v7673, %v7672
        %v7679 = vsel %vm754, %v7665, 0
        %7681 = vmatprep.subr.bf16.mxu0 0
        %7682 = vmatpush1.bf16.msra.mxu0 %v7674
        %7683 = vmatprep.subr.bf16.mxu0 0
        %7684 = vmatpush1.bf16.msra.mxu0 %v7675
        %7685 = vmatprep.subr.bf16.mxu0 0
        %7686 = vmatpush1.bf16.msra.mxu0 0
        %7687 = vmatprep.subr.bf16.mxu0 0
        %7688 = vmatpush1.bf16.msra.mxu0 0
        %7689 = vmatprep.subr.bf16.mxu0 0
        %7690 = vmatpush1.bf16.msra.mxu0 0
        %7691 = vmatprep.subr.bf16.mxu0 0
        %7692 = vmatpush1.bf16.msra.mxu0 0
        %7693 = vmatprep.subr.bf16.mxu0 0
        %7694 = vmatpush1.bf16.msra.mxu0 0
        %7695 = vmatprep.subr.bf16.mxu0 0
        %7696 = vmatpush1.bf16.msra.mxu0 0
        %7697 = vmatprep.subr.bf16.mxu0 0
        %7698 = vmatpush1.bf16.msra.mxu0 0
        %7699 = vmatprep.subr.bf16.mxu0 0
        %7700 = vmatpush1.bf16.msra.mxu0 0
        %7701 = vmatprep.subr.bf16.mxu0 0
        %7702 = vmatpush1.bf16.msra.mxu0 0
        %7703 = vmatprep.subr.bf16.mxu0 0
        %7704 = vmatpush1.bf16.msra.mxu0 0
        %7705 = vmatprep.subr.bf16.mxu0 0
        %7706 = vmatpush1.bf16.msra.mxu0 0
        %7707 = vmatprep.subr.bf16.mxu0 0
        %7708 = vmatpush1.bf16.msra.mxu0 0
        %7709 = vmatprep.subr.bf16.mxu0 0
        %7710 = vmatpush1.bf16.msra.mxu0 0
        %7711 = vmatprep.subr.bf16.mxu0 0
        %7712 = vmatpush1.bf16.msra.mxu0 0
        %7713 = vmatprep.mubr.bf16.mxu0 0
        %7714 = vmatmul.mubr.bf16.gmra.mrb[0].mxu0 %v7679
        %v7715 = vpop.f32.mrb[0].mxu0
        %v7716 = vadd.f32 0.0, %v7715
        %v7717 = vpop.f32.mrb[0].mxu0
        %v7718 = vpop.f32.mrb[0].mxu0
        %v7719 = vpop.f32.mrb[0].mxu0
        %7720 = vdwg.mxu0
        %v7721 = vadd.f32 %v7659, %v7716
        %vm7722 = vcmp.ge.f32.partialorder %v7721, 0.0
        %v7723 = vmul.f32 %v7721, 0.01
        %v7724 = vsel %vm7722, %v7721, %v7723
        %v7725 = vpack.c.bf16 %v7724, %v7724
        %v7726 = vld [vmem:[%s6] sm:$0xf]
        %v7727 = vld [vmem:[%s6 + $0x4] sm:$0xf]
        %v7728 = vld [vmem:[%s6 + $0x8] sm:$0xf]
        %v7729 = vld [vmem:[%s6 + $0xc] sm:$0xf]
        %v7730 = vld [vmem:[%s6 + $0x10] sm:$0xf]
        %v7731 = vld [vmem:[%s6 + $0x14] sm:$0xf]
        %v7732 = vld [vmem:[%s6 + $0x18] sm:$0xf]
        %v7733 = vld [vmem:[%s6 + $0x1c] sm:$0xf]
        %v7734 = vld [vmem:[%s6 + $0x20] sm:$0xf]
        %v7735 = vld [vmem:[%s6 + $0x24] sm:$0xf]
        %v7736 = vld [vmem:[%s6 + $0x28] sm:$0xf]
        %v7737 = vld [vmem:[%s6 + $0x2c] sm:$0xf]
        %v7738 = vld [vmem:[%s6 + $0x30] sm:$0xf]
        %v7739 = vld [vmem:[%s6 + $0x34] sm:$0xf]
        %v7740 = vld [vmem:[%s6 + $0x38] sm:$0xf]
        %v7741 = vld [vmem:[%s6 + $0x3c] sm:$0xf]
        %v7742 = vld [vmem:[%s7] sm:$0x1]
        %v7759 = vunpack.c.l.b16 %v7726
        %v7760 = vunpack.c.l.b16 %v7727
        %v7761 = vunpack.c.l.b16 %v7728
        %v7762 = vunpack.c.l.b16 %v7729
        %v7763 = vunpack.c.l.b16 %v7730
        %v7764 = vunpack.c.l.b16 %v7731
        %v7765 = vunpack.c.l.b16 %v7732
        %v7766 = vunpack.c.l.b16 %v7733
        %v7767 = vunpack.c.l.b16 %v7734
        %v7768 = vunpack.c.l.b16 %v7735
        %v7769 = vunpack.c.l.b16 %v7736
        %v7770 = vunpack.c.l.b16 %v7737
        %v7771 = vunpack.c.l.b16 %v7738
        %v7772 = vunpack.c.l.b16 %v7739
        %v7773 = vunpack.c.l.b16 %v7740
        %v7774 = vunpack.c.l.b16 %v7741
        %v7775 = vpack.c.b16 %v7760, %v7759
        %v7776 = vpack.c.b16 %v7762, %v7761
        %v7777 = vpack.c.b16 %v7764, %v7763
        %v7778 = vpack.c.b16 %v7766, %v7765
        %v7779 = vpack.c.b16 %v7768, %v7767
        %v7780 = vpack.c.b16 %v7770, %v7769
        %v7781 = vpack.c.b16 %v7772, %v7771
        %v7782 = vpack.c.b16 %v7774, %v7773
        %7791 = vmatprep.subr.bf16.mxu0 0
        %7792 = vmatpush1.bf16.msra.mxu0 %v7775
        %7793 = vmatprep.subr.bf16.mxu0 0
        %7794 = vmatpush1.bf16.msra.mxu0 %v7776
        %7795 = vmatprep.subr.bf16.mxu0 0
        %7796 = vmatpush1.bf16.msra.mxu0 %v7777
        %7797 = vmatprep.subr.bf16.mxu0 0
        %7798 = vmatpush1.bf16.msra.mxu0 %v7778
        %7799 = vmatprep.subr.bf16.mxu0 0
        %7800 = vmatpush1.bf16.msra.mxu0 %v7779
        %7801 = vmatprep.subr.bf16.mxu0 0
        %7802 = vmatpush1.bf16.msra.mxu0 %v7780
        %7803 = vmatprep.subr.bf16.mxu0 0
        %7804 = vmatpush1.bf16.msra.mxu0 %v7781
        %7805 = vmatprep.subr.bf16.mxu0 0
        %7806 = vmatpush1.bf16.msra.mxu0 %v7782
        %7807 = vmatprep.subr.bf16.mxu0 0
        %7808 = vmatpush1.bf16.msra.mxu0 0
        %7809 = vmatprep.subr.bf16.mxu0 0
        %7810 = vmatpush1.bf16.msra.mxu0 0
        %7811 = vmatprep.subr.bf16.mxu0 0
        %7812 = vmatpush1.bf16.msra.mxu0 0
        %7813 = vmatprep.subr.bf16.mxu0 0
        %7814 = vmatpush1.bf16.msra.mxu0 0
        %7815 = vmatprep.subr.bf16.mxu0 0
        %7816 = vmatpush1.bf16.msra.mxu0 0
        %7817 = vmatprep.subr.bf16.mxu0 0
        %7818 = vmatpush1.bf16.msra.mxu0 0
        %7819 = vmatprep.subr.bf16.mxu0 0
        %7820 = vmatpush1.bf16.msra.mxu0 0
        %7821 = vmatprep.subr.bf16.mxu0 0
        %7822 = vmatpush1.bf16.msra.mxu0 0
        %7823 = vmatprep.mubr.bf16.mxu0 0
        %7824 = vmatmul.mubr.bf16.gmra.mrb[0].mxu0 %v7725
        %v7825 = vpop.f32.mrb[0].mxu0
        %v7826 = vadd.f32 %v7742, %v7825
        %v7827 = vpop.f32.mrb[0].mxu0
        %v7828 = vpop.f32.mrb[0].mxu0
        %v7829 = vpop.f32.mrb[0].mxu0
        %7830 = vdwg.mxu0
        %vm7831 = vcmask 24576
        %7832 = vst.msk [vmem:[%s297] sm:$0x1] %vm7831, %v7826
        %s7833 = sand.u32 %s203, 1
        %s7834 = scalar_lea.sflag [#allocation7], %s7833
        %s7835 = sand.u32 %s203, 1
        %s7836 = scalar_lea.vmem [#allocation6], %s7835
        // Predicated region
        $region53: #{cnn_simple2_forward.1} parent=51 // pred_check
          %p7837 = pneg %p213
        $region54: #{cnn_simple2_forward.1} parent=51 // pred_check_branch
          %7839 = sbr.rel (%p7837) target = $region56
        $region55: #{cnn_simple2_forward.1} parent=51 // pred_region
          %s7841 = ssub.s32 16, 16
          %7842 = vsyncadd %s7834, %s7841
          %s7843 = smul.addr %s22, 16
          %s7844 = scalar_lea.hbm %s8, %s7843
          %s7846 = sshll.u32 %s7836, 4
          %s7847 = int_to_ptr.vmem [resolvable:$true] %s7846
          %7849 = dma.vmem_to_hbm [thread:$0]  %s7847, 16, %s7844, %s7834
        $region56: #{cnn_simple2_forward.1} parent=51 // pred_fallthru
          _
      $region52: #{cnn_simple2_forward.1} parent=5 // pred_fallthru
        _
      %p7850 = scmp.le.s32.totalorder 2, %s17
      // Predicated region
      $region57: #{cnn_simple2_forward.1} parent=5 // pred_check
        %p7851 = pneg %p7850
      $region58: #{cnn_simple2_forward.1} parent=5 // pred_check_branch
        %7853 = sbr.rel (%p7851) target = $region60
      $region59: #{cnn_simple2_forward.1} parent=5 // pred_region
        %s7854 = ssub.s32 %s17, 2
        // Predicated region
        $region61: #{cnn_simple2_forward.1} parent=59 // pred_check
          %p7855 = pneg %p219
        $region62: #{cnn_simple2_forward.1} parent=59 // pred_check_branch
          %7857 = sbr.rel (%p7855) target = $region64
        $region63: #{cnn_simple2_forward.1} parent=59 // pred_region
          %s7858 = sand.u32 %s204, 1
          %s7859 = scalar_lea.sflag [#allocation7], %s7858
          %s7860 = sand.u32 %s204, 1
          %s7861 = scalar_lea.vmem [#allocation6], %s7860
          %7862 = dma.done %s7859, 16
        $region64: #{cnn_simple2_forward.1} parent=59 // pred_fallthru
          _
      $region60: #{cnn_simple2_forward.1} parent=5 // pred_fallthru
        _
    $region6: #{cnn_simple2_forward.1} parent=1 // loop_footer
      %s21 = sadd.s32 1, %s17
    $region7: #{cnn_simple2_forward.1} parent=1 // loop_footer_branch
      %16 = sbr.rel target = $region3
    $region8: #{cnn_simple2_forward.1} parent=1 // loop_exit
      _
    %7863 = vsyncpa [#allocation7], 1
    %s7864 = scalar_lea.sflag [#allocation7], 1
    %7865 = vsyncpa %s7864, 1

</llo_original>
